<compile_context>
chip_gen: v7x
topology: tpu7x:2x2x1
jax: 0.10.0
libtpu: 0.0.40
codegen_flags: <defaults>
</compile_context>

<pallas_src>
import jax
import jax.numpy as jnp
from jax import lax
from jax.experimental import pallas as pl
from jax.experimental.pallas import tpu as pltpu

_EPS = 1e-5
_LANES = 128


def _round_up(x, m):
    return (x + m - 1) // m * m


# ---------------------------------------------------------------------------
# Fused kernel: (conv1 + bn1 + relu) -> VMEM -> (conv2 + bn2 + add + relu)
# 3x3 conv = 9 shifted-tap matmuls over a zero-halo'd flattened image band.
# ---------------------------------------------------------------------------
def _make_block_kernel(h, w, cin, cp):
    hw = h * w
    mp = hw + 2 * w + 2   # flat band: 1 front pad + (H+2) rows * W + 1 back pad

    def kernel(xf_ref, w1_ref, w2_ref, eye_ref, s1_ref, b1_ref, s2_ref, b2_ref,
               out_ref, out1p_ref):
        # Per-row masks for the left/right image border: the flattened shifted
        # taps would otherwise wrap across the W boundary.  (The top/bottom
        # borders are handled by the zero halo rows baked into the band.)
        col = lax.broadcasted_iota(jnp.int32, (hw, 1), 0) % w
        not_first = col != 0          # tap kw == 0 is invalid at w == 0
        not_last = col != (w - 1)     # tap kw == 2 is invalid at w == W-1

        def conv3x3(tap_fn, w_ref):
            acc = jnp.zeros((hw, cp), jnp.float32)
            for kh in range(3):
                for kw in range(3):
                    tap = tap_fn(kh * w + kw)            # (hw, K) bf16, shifted band
                    if kw == 0:
                        tap = jnp.where(not_first, tap, jnp.zeros_like(tap))
                    elif kw == 2:
                        tap = jnp.where(not_last, tap, jnp.zeros_like(tap))
                    acc += jnp.dot(tap, w_ref[kh * 3 + kw],
                                   preferred_element_type=jnp.float32)
            return acc

        # ---- conv1 + bn1 + relu (result stays in VMEM) ----------------------
        acc1 = conv3x3(lambda s: xf_ref[0, pl.ds(s, hw), :], w1_ref)
        out1 = jnp.maximum(acc1 * s1_ref[...] + b1_ref[...], 0.0)

        zeros_border = jnp.zeros((w + 1, cp), out1p_ref.dtype)
        out1p_ref[pl.ds(0, w + 1), :] = zeros_border                 # top halo
        out1p_ref[pl.ds(w + 1 + hw, w + 1), :] = zeros_border        # bottom halo
        out1p_ref[pl.ds(w + 1, hw), :] = out1.astype(out1p_ref.dtype)

        # ---- conv2 + bn2 + add(identity) + relu -----------------------------
        acc2 = conv3x3(lambda s: out1p_ref[pl.ds(s, hw), :], w2_ref)
        # Residual: already resident from the conv1 input band; lane-pad
        # Cin -> Cp in-register via a tiny identity matmul (exact for bf16).
        ident = xf_ref[0, pl.ds(w + 1, hw), :]
        ident_p = jnp.dot(ident, eye_ref[...], preferred_element_type=jnp.float32)
        out = jnp.maximum(acc2 * s2_ref[...] + b2_ref[...] + ident_p, 0.0)
        out_ref[0, :, :] = out.astype(out_ref.dtype)

    return kernel, mp


# ---------------------------------------------------------------------------
# Wrapper: layout / halo padding / BN folding / pallas_call
# ---------------------------------------------------------------------------
def _fold_bn(gamma, beta, mean, var, eps=_EPS):
    scale = gamma / jnp.sqrt(var + eps)
    bias = beta - mean * scale
    return scale, bias


def quantizable_basic_block_forward(x_nchw, params, *, compute_dtype=jnp.bfloat16):
    x = jnp.transpose(x_nchw, (0, 2, 3, 1)).astype(jnp.float32)   # NCHW -> NHWC
    n, h, w, cin = x.shape
    w1, w2 = params["w1"], params["w2"]                            # HWIO
    planes = w1.shape[-1]

    # TODO(synk): stride>1 / downsample path not implemented.
    assert w1.shape[:3] == (3, 3, cin), "conv1 must be 3x3 over the input channels"
    assert w2.shape == (3, 3, planes, planes), "conv2 must be 3x3 planes->planes"
    assert cin == planes, "identity residual requires inplanes == planes (downsample=None)"

    cp = _round_up(planes, _LANES)       # lane-dense output channel count
    hw = h * w
    kernel, mp = _make_block_kernel(h, w, cin, cp)

    # Zero-halo'd, flattened per-image activation band (bf16 end-to-end):
    # one zero row above/below each image, flattened, plus one zero element
    # front/back so every shifted tap slice stays in range.
    xpad = jnp.pad(x, ((0, 0), (1, 1), (0, 0), (0, 0))).reshape(n, (h + 2) * w, cin)
    xflat = jnp.pad(xpad, ((0, 0), (1, 1), (0, 0))).astype(compute_dtype)   # (n, mp, cin)

    # Weights stay UNscaled bf16 (MXU); BN scale/bias go into the f32 epilogue.
    w1m = jnp.pad(w1, ((0, 0), (0, 0), (0, 0), (0, cp - planes)))
    w1m = w1m.reshape(9, cin, cp).astype(compute_dtype)
    w2m = jnp.pad(w2, ((0, 0), (0, 0), (0, cp - planes), (0, cp - planes)))
    w2m = w2m.reshape(9, cp, cp).astype(compute_dtype)
    eye = jnp.pad(jnp.eye(cin, dtype=jnp.float32), ((0, 0), (0, cp - cin)))
    eye = eye.astype(compute_dtype)                                          # (cin, cp)

    s1, b1 = _fold_bn(params["gamma1"], params["beta1"], params["mean1"], params["var1"])
    s2, b2 = _fold_bn(params["gamma2"], params["beta2"], params["mean2"], params["var2"])

    def row(v):
        return jnp.pad(v, (0, cp - planes)).reshape(1, cp).astype(jnp.float32)

    s1, b1, s2, b2 = row(s1), row(b1), row(s2), row(b2)

    # Need-based VMEM budget (x1.5 headroom), portable to v7x's 64 MiB / TC.
    bpe = jnp.dtype(compute_dtype).itemsize
    need = (2 * mp * cin * bpe                                   # streamed image band (double-buffered)
            + (9 * cin * cp + 9 * cp * cp + cin * cp) * bpe      # resident weights + eye
            + 4 * cp * 4                                         # BN scales / biases
            + mp * cp * bpe                                      # out1 halo'd VMEM scratch
            + 2 * hw * cp * 4                                    # f32 output tiles (double-buffered)
            + 3 * hw * cp * 4)                                   # f32 accumulators / compiler temps
    vmem_limit = int(min(max(need * 3 // 2, 8 << 20), 64 << 20))

    cost = pl.CostEstimate(
        flops=int(2 * n * hw * (9 * cin * cp + 9 * cp * cp + cin * cp) + 6 * n * hw * cp),
        transcendentals=0,
        bytes_accessed=int(xflat.size * bpe
                           + (w1m.size + w2m.size + eye.size) * bpe
                           + 4 * cp * 4
                           + n * hw * cp * 4),
    )

    resident2 = lambda i: (0, 0)
    resident3 = lambda i: (0, 0, 0)

    out = pl.pallas_call(
        kernel,
        out_shape=jax.ShapeDtypeStruct((n, hw, cp), jnp.float32),
        grid=(n,),
        in_specs=[
            pl.BlockSpec((1, mp, cin), lambda i: (i, 0, 0)),   # streamed per-image band
            pl.BlockSpec((9, cin, cp), resident3),             # conv1 taps (resident)
            pl.BlockSpec((9, cp, cp), resident3),              # conv2 taps (resident)
            pl.BlockSpec((cin, cp), resident2),                # eye: lane-pad identity
            pl.BlockSpec((1, cp), resident2),                  # bn1 scale
            pl.BlockSpec((1, cp), resident2),                  # bn1 bias
            pl.BlockSpec((1, cp), resident2),                  # bn2 scale
            pl.BlockSpec((1, cp), resident2),                  # bn2 bias
        ],
        out_specs=pl.BlockSpec((1, hw, cp), lambda i: (i, 0, 0)),
        scratch_shapes=[pltpu.VMEM((mp, cp), compute_dtype)],  # out1 halo'd band
        compiler_params=pltpu.CompilerParams(
            dimension_semantics=("parallel",),   # independent images (2 TCs on v7x)
            vmem_limit_bytes=vmem_limit,
        ),
        cost_estimate=cost,
    )(xflat, w1m, w2m, eye, s1, b1, s2, b2)

    out = out[:, :, :planes].reshape(n, h, w, planes)
    return jnp.transpose(out, (0, 3, 1, 2))                    # NHWC -> NCHW


# ---------------------------------------------------------------------------
# Pure-JAX reference (for correctness check)
# ---------------------------------------------------------------------------
def _reference(x_nchw, params, eps=_EPS):
    x = jnp.transpose(x_nchw, (0, 2, 3, 1))

    def conv(a, wt):
        return lax.conv_general_dilated(a, wt, (1, 1), "SAME",
                                        dimension_numbers=("NHWC", "HWIO", "NHWC"))

    def bn(a, g, b, m, v):
        return (a - m) * (g / jnp.sqrt(v + eps)) + b

    out = jax.nn.relu(bn(conv(x, params["w1"]), params["gamma1"], params["beta1"],
                         params["mean1"], params["var1"]))
    out = bn(conv(out, params["w2"]), params["gamma2"], params["beta2"],
             params["mean2"], params["var2"])
    out = jax.nn.relu(out + x)
    return jnp.transpose(out, (0, 3, 1, 2))


if __name__ == "__main__":
    key = jax.random.PRNGKey(0)
    N, C, H, W = 2, 4, 16, 16            # inplanes = planes = 4, stride = 1
    planes = C
    ks = jax.random.split(key, 12)

    x = jax.random.normal(ks[0], (N, C, H, W), jnp.float32)

    # Conv weights: PyTorch layout (Cout, Cin, 3, 3) -> HWIO (3, 3, Cin, Cout)
    w1_oihw = jax.random.normal(ks[1], (planes, C, 3, 3), jnp.float32) * 0.1
    w2_oihw = jax.random.normal(ks[2], (planes, planes, 3, 3), jnp.float32) * 0.1

    params = dict(
        w1=jnp.transpose(w1_oihw, (2, 3, 1, 0)),
        w2=jnp.transpose(w2_oihw, (2, 3, 1, 0)),
        gamma1=1.0 + 0.1 * jax.random.normal(ks[3], (planes,), jnp.float32),
        beta1=0.1 * jax.random.normal(ks[4], (planes,), jnp.float32),
        mean1=0.1 * jax.random.normal(ks[5], (planes,), jnp.float32),
        var1=jnp.abs(jax.random.normal(ks[6], (planes,), jnp.float32)) + 0.5,
        gamma2=1.0 + 0.1 * jax.random.normal(ks[7], (planes,), jnp.float32),
        beta2=0.1 * jax.random.normal(ks[8], (planes,), jnp.float32),
        mean2=0.1 * jax.random.normal(ks[9], (planes,), jnp.float32),
        var2=jnp.abs(jax.random.normal(ks[10], (planes,), jnp.float32)) + 0.5,
    )

    out = jax.block_until_ready(quantizable_basic_block_forward(x, params))
    ref = jax.block_until_ready(_reference(x, params))

    assert out.shape == (N, C, H, W), out.shape
    # bf16 MXU inputs with f32 accumulation + f32 BN epilogue.
    max_err = float(jnp.max(jnp.abs(out - ref)))
    assert jnp.allclose(out, ref, rtol=5e-2, atol=5e-2), max_err
    print("KERNEL_OK")
</pallas_src>

<mosaic_0001>
module attributes {stable_mosaic.version = 11 : i64} {
  func.func @kernel(%arg0: i32, %arg1: memref<1x290x4xbf16, #tpu.memory_space<vmem>>, %arg2: memref<9x4x128xbf16, #tpu.memory_space<vmem>>, %arg3: memref<9x128x128xbf16, #tpu.memory_space<vmem>>, %arg4: memref<4x128xbf16, #tpu.memory_space<vmem>>, %arg5: memref<1x128xf32, #tpu.memory_space<vmem>>, %arg6: memref<1x128xf32, #tpu.memory_space<vmem>>, %arg7: memref<1x128xf32, #tpu.memory_space<vmem>>, %arg8: memref<1x128xf32, #tpu.memory_space<vmem>>, %arg9: memref<1x256x128xf32, #tpu.memory_space<vmem>>, %arg10: memref<290x128xbf16, #tpu.memory_space<vmem>>) attributes {dimension_semantics = [#tpu.dimension_semantics<parallel>], iteration_bounds = array<i64: 2>, scalar_prefetch = 0 : i64, scratch_operands = 1 : i64, tpu.core_type = #tpu.core_type<tc>, window_params = [{transform_indices = @transform_0, window_bounds = array<i64: 1, 290, 4>}, {pipeline_mode = #tpu.pipeline_mode<synchronous>, transform_indices = @transform_1, window_bounds = array<i64: 9, 4, 128>}, {pipeline_mode = #tpu.pipeline_mode<synchronous>, transform_indices = @transform_2, window_bounds = array<i64: 9, 128, 128>}, {pipeline_mode = #tpu.pipeline_mode<synchronous>, transform_indices = @transform_3, window_bounds = array<i64: 4, 128>}, {pipeline_mode = #tpu.pipeline_mode<synchronous>, transform_indices = @transform_4, window_bounds = array<i64: 1, 128>}, {pipeline_mode = #tpu.pipeline_mode<synchronous>, transform_indices = @transform_5, window_bounds = array<i64: 1, 128>}, {pipeline_mode = #tpu.pipeline_mode<synchronous>, transform_indices = @transform_6, window_bounds = array<i64: 1, 128>}, {pipeline_mode = #tpu.pipeline_mode<synchronous>, transform_indices = @transform_7, window_bounds = array<i64: 1, 128>}, {transform_indices = @transform_8, window_bounds = array<i64: 1, 256, 128>}]} {
    %0 = tpu.iota {dimensions = array<i32: 0>} : vector<256x1xi32>
    %c16_i32 = arith.constant 16 : i32
    %c0_i32 = arith.constant 0 : i32
    %1 = arith.cmpi eq, %c16_i32, %c0_i32 : i32
    %c1_i32 = arith.constant 1 : i32
    %2 = arith.select %1, %c1_i32, %c16_i32 : i32
    %3 = vector.broadcast %2 : i32 to vector<256x1xi32>
    %4 = arith.remsi %0, %3 : vector<256x1xi32>
    %c0_i32_0 = arith.constant 0 : i32
    %5 = vector.broadcast %c0_i32_0 : i32 to vector<256x1xi32>
    %6 = arith.cmpi ne, %4, %5 : vector<256x1xi32>
    %c0_i32_1 = arith.constant 0 : i32
    %7 = vector.broadcast %c0_i32_1 : i32 to vector<256x1xi32>
    %8 = arith.cmpi slt, %4, %7 : vector<256x1xi32>
    %c0_i32_2 = arith.constant 0 : i32
    %9 = arith.cmpi slt, %2, %c0_i32_2 : i32
    %10 = vector.broadcast %9 : i1 to vector<256x1xi1>
    %11 = vector.broadcast %10 : vector<256x1xi1> to vector<256x1xi1>
    %12 = arith.xori %8, %11 : vector<256x1xi1>
    %13 = arith.andi %12, %6 : vector<256x1xi1>
    %14 = vector.broadcast %2 : i32 to vector<256x1xi32>
    %15 = arith.addi %4, %14 : vector<256x1xi32>
    %16 = arith.select %13, %15, %4 : vector<256x1xi1>, vector<256x1xi32>
    %c0_i32_3 = arith.constant 0 : i32
    %17 = vector.broadcast %c0_i32_3 : i32 to vector<256x1xi32>
    %18 = arith.cmpi ne, %16, %17 : vector<256x1xi32>
    %c15_i32 = arith.constant 15 : i32
    %19 = vector.broadcast %c15_i32 : i32 to vector<256x1xi32>
    %20 = arith.cmpi ne, %16, %19 : vector<256x1xi32>
    %cst = arith.constant 0.000000e+00 : f32
    %21 = vector.broadcast %cst : f32 to vector<256x128xf32>
    %c0 = arith.constant 0 : index
    %c0_4 = arith.constant 0 : index
    %c0_5 = arith.constant 0 : index
    %22 = vector.load %arg1[%c0, %c0_4, %c0_5] : memref<1x290x4xbf16, #tpu.memory_space<vmem>>, vector<1x256x4xbf16>
    %23 = vector.shape_cast %22 : vector<1x256x4xbf16> to vector<256x4xbf16>
    %cst_6 = arith.constant 0.000000e+00 : bf16
    %24 = vector.broadcast %cst_6 : bf16 to vector<256x4xbf16>
    %25 = vector.shape_cast %18 : vector<256x1xi1> to vector<256x1xi1>
    %26 = vector.broadcast %25 : vector<256x1xi1> to vector<256x4xi1>
    %27 = arith.select %26, %23, %24 : vector<256x4xi1>, vector<256x4xbf16>
    %c0_7 = arith.constant 0 : index
    %c0_8 = arith.constant 0 : index
    %c0_9 = arith.constant 0 : index
    %28 = vector.load %arg2[%c0_7, %c0_8, %c0_9] : memref<9x4x128xbf16, #tpu.memory_space<vmem>>, vector<1x4x128xbf16>
    %29 = vector.shape_cast %28 : vector<1x4x128xbf16> to vector<4x128xbf16>
    %cst_10 = arith.constant dense<0.000000e+00> : vector<256x128xf32>
    %30 = tpu.matmul %27, %29, %cst_10 {dimension_numbers = #tpu.dot_dimension_numbers<[1], [0], [0], [1], [0, 0, 1, 1], [], []>} : vector<256x4xbf16>, vector<4x128xbf16>, vector<256x128xf32> -> vector<256x128xf32>
    %31 = arith.addf %21, %30 : vector<256x128xf32>
    %c0_11 = arith.constant 0 : index
    %c1 = arith.constant 1 : index
    %c0_12 = arith.constant 0 : index
    %32 = vector.load %arg1[%c0_11, %c1, %c0_12] : memref<1x290x4xbf16, #tpu.memory_space<vmem>>, vector<1x256x4xbf16>
    %33 = vector.shape_cast %32 : vector<1x256x4xbf16> to vector<256x4xbf16>
    %c1_13 = arith.constant 1 : index
    %c0_14 = arith.constant 0 : index
    %c0_15 = arith.constant 0 : index
    %34 = vector.load %arg2[%c1_13, %c0_14, %c0_15] : memref<9x4x128xbf16, #tpu.memory_space<vmem>>, vector<1x4x128xbf16>
    %35 = vector.shape_cast %34 : vector<1x4x128xbf16> to vector<4x128xbf16>
    %cst_16 = arith.constant dense<0.000000e+00> : vector<256x128xf32>
    %36 = tpu.matmul %33, %35, %cst_16 {dimension_numbers = #tpu.dot_dimension_numbers<[1], [0], [0], [1], [0, 0, 1, 1], [], []>} : vector<256x4xbf16>, vector<4x128xbf16>, vector<256x128xf32> -> vector<256x128xf32>
    %37 = arith.addf %31, %36 : vector<256x128xf32>
    %c0_17 = arith.constant 0 : index
    %c2 = arith.constant 2 : index
    %c0_18 = arith.constant 0 : index
    %38 = vector.load %arg1[%c0_17, %c2, %c0_18] : memref<1x290x4xbf16, #tpu.memory_space<vmem>>, vector<1x256x4xbf16>
    %39 = vector.shape_cast %38 : vector<1x256x4xbf16> to vector<256x4xbf16>
    %cst_19 = arith.constant 0.000000e+00 : bf16
    %40 = vector.broadcast %cst_19 : bf16 to vector<256x4xbf16>
    %41 = vector.shape_cast %20 : vector<256x1xi1> to vector<256x1xi1>
    %42 = vector.broadcast %41 : vector<256x1xi1> to vector<256x4xi1>
    %43 = arith.select %42, %39, %40 : vector<256x4xi1>, vector<256x4xbf16>
    %c2_20 = arith.constant 2 : index
    %c0_21 = arith.constant 0 : index
    %c0_22 = arith.constant 0 : index
    %44 = vector.load %arg2[%c2_20, %c0_21, %c0_22] : memref<9x4x128xbf16, #tpu.memory_space<vmem>>, vector<1x4x128xbf16>
    %45 = vector.shape_cast %44 : vector<1x4x128xbf16> to vector<4x128xbf16>
    %cst_23 = arith.constant dense<0.000000e+00> : vector<256x128xf32>
    %46 = tpu.matmul %43, %45, %cst_23 {dimension_numbers = #tpu.dot_dimension_numbers<[1], [0], [0], [1], [0, 0, 1, 1], [], []>} : vector<256x4xbf16>, vector<4x128xbf16>, vector<256x128xf32> -> vector<256x128xf32>
    %47 = arith.addf %37, %46 : vector<256x128xf32>
    %c0_24 = arith.constant 0 : index
    %c16 = arith.constant 16 : index
    %c0_25 = arith.constant 0 : index
    %48 = vector.load %arg1[%c0_24, %c16, %c0_25] : memref<1x290x4xbf16, #tpu.memory_space<vmem>>, vector<1x256x4xbf16>
    %49 = vector.shape_cast %48 : vector<1x256x4xbf16> to vector<256x4xbf16>
    %cst_26 = arith.constant 0.000000e+00 : bf16
    %50 = vector.broadcast %cst_26 : bf16 to vector<256x4xbf16>
    %51 = vector.shape_cast %18 : vector<256x1xi1> to vector<256x1xi1>
    %52 = vector.broadcast %51 : vector<256x1xi1> to vector<256x4xi1>
    %53 = arith.select %52, %49, %50 : vector<256x4xi1>, vector<256x4xbf16>
    %c3 = arith.constant 3 : index
    %c0_27 = arith.constant 0 : index
    %c0_28 = arith.constant 0 : index
    %54 = vector.load %arg2[%c3, %c0_27, %c0_28] : memref<9x4x128xbf16, #tpu.memory_space<vmem>>, vector<1x4x128xbf16>
    %55 = vector.shape_cast %54 : vector<1x4x128xbf16> to vector<4x128xbf16>
    %cst_29 = arith.constant dense<0.000000e+00> : vector<256x128xf32>
    %56 = tpu.matmul %53, %55, %cst_29 {dimension_numbers = #tpu.dot_dimension_numbers<[1], [0], [0], [1], [0, 0, 1, 1], [], []>} : vector<256x4xbf16>, vector<4x128xbf16>, vector<256x128xf32> -> vector<256x128xf32>
    %57 = arith.addf %47, %56 : vector<256x128xf32>
    %c0_30 = arith.constant 0 : index
    %c17 = arith.constant 17 : index
    %c0_31 = arith.constant 0 : index
    %58 = vector.load %arg1[%c0_30, %c17, %c0_31] : memref<1x290x4xbf16, #tpu.memory_space<vmem>>, vector<1x256x4xbf16>
    %59 = vector.shape_cast %58 : vector<1x256x4xbf16> to vector<256x4xbf16>
    %c4 = arith.constant 4 : index
    %c0_32 = arith.constant 0 : index
    %c0_33 = arith.constant 0 : index
    %60 = vector.load %arg2[%c4, %c0_32, %c0_33] : memref<9x4x128xbf16, #tpu.memory_space<vmem>>, vector<1x4x128xbf16>
    %61 = vector.shape_cast %60 : vector<1x4x128xbf16> to vector<4x128xbf16>
    %cst_34 = arith.constant dense<0.000000e+00> : vector<256x128xf32>
    %62 = tpu.matmul %59, %61, %cst_34 {dimension_numbers = #tpu.dot_dimension_numbers<[1], [0], [0], [1], [0, 0, 1, 1], [], []>} : vector<256x4xbf16>, vector<4x128xbf16>, vector<256x128xf32> -> vector<256x128xf32>
    %63 = arith.addf %57, %62 : vector<256x128xf32>
    %c0_35 = arith.constant 0 : index
    %c18 = arith.constant 18 : index
    %c0_36 = arith.constant 0 : index
    %64 = vector.load %arg1[%c0_35, %c18, %c0_36] : memref<1x290x4xbf16, #tpu.memory_space<vmem>>, vector<1x256x4xbf16>
    %65 = vector.shape_cast %64 : vector<1x256x4xbf16> to vector<256x4xbf16>
    %cst_37 = arith.constant 0.000000e+00 : bf16
    %66 = vector.broadcast %cst_37 : bf16 to vector<256x4xbf16>
    %67 = vector.shape_cast %20 : vector<256x1xi1> to vector<256x1xi1>
    %68 = vector.broadcast %67 : vector<256x1xi1> to vector<256x4xi1>
    %69 = arith.select %68, %65, %66 : vector<256x4xi1>, vector<256x4xbf16>
    %c5 = arith.constant 5 : index
    %c0_38 = arith.constant 0 : index
    %c0_39 = arith.constant 0 : index
    %70 = vector.load %arg2[%c5, %c0_38, %c0_39] : memref<9x4x128xbf16, #tpu.memory_space<vmem>>, vector<1x4x128xbf16>
    %71 = vector.shape_cast %70 : vector<1x4x128xbf16> to vector<4x128xbf16>
    %cst_40 = arith.constant dense<0.000000e+00> : vector<256x128xf32>
    %72 = tpu.matmul %69, %71, %cst_40 {dimension_numbers = #tpu.dot_dimension_numbers<[1], [0], [0], [1], [0, 0, 1, 1], [], []>} : vector<256x4xbf16>, vector<4x128xbf16>, vector<256x128xf32> -> vector<256x128xf32>
    %73 = arith.addf %63, %72 : vector<256x128xf32>
    %c0_41 = arith.constant 0 : index
    %c32 = arith.constant 32 : index
    %c0_42 = arith.constant 0 : index
    %74 = vector.load %arg1[%c0_41, %c32, %c0_42] : memref<1x290x4xbf16, #tpu.memory_space<vmem>>, vector<1x256x4xbf16>
    %75 = vector.shape_cast %74 : vector<1x256x4xbf16> to vector<256x4xbf16>
    %cst_43 = arith.constant 0.000000e+00 : bf16
    %76 = vector.broadcast %cst_43 : bf16 to vector<256x4xbf16>
    %77 = vector.shape_cast %18 : vector<256x1xi1> to vector<256x1xi1>
    %78 = vector.broadcast %77 : vector<256x1xi1> to vector<256x4xi1>
    %79 = arith.select %78, %75, %76 : vector<256x4xi1>, vector<256x4xbf16>
    %c6 = arith.constant 6 : index
    %c0_44 = arith.constant 0 : index
    %c0_45 = arith.constant 0 : index
    %80 = vector.load %arg2[%c6, %c0_44, %c0_45] : memref<9x4x128xbf16, #tpu.memory_space<vmem>>, vector<1x4x128xbf16>
    %81 = vector.shape_cast %80 : vector<1x4x128xbf16> to vector<4x128xbf16>
    %cst_46 = arith.constant dense<0.000000e+00> : vector<256x128xf32>
    %82 = tpu.matmul %79, %81, %cst_46 {dimension_numbers = #tpu.dot_dimension_numbers<[1], [0], [0], [1], [0, 0, 1, 1], [], []>} : vector<256x4xbf16>, vector<4x128xbf16>, vector<256x128xf32> -> vector<256x128xf32>
    %83 = arith.addf %73, %82 : vector<256x128xf32>
    %c0_47 = arith.constant 0 : index
    %c33 = arith.constant 33 : index
    %c0_48 = arith.constant 0 : index
    %84 = vector.load %arg1[%c0_47, %c33, %c0_48] : memref<1x290x4xbf16, #tpu.memory_space<vmem>>, vector<1x256x4xbf16>
    %85 = vector.shape_cast %84 : vector<1x256x4xbf16> to vector<256x4xbf16>
    %c7 = arith.constant 7 : index
    %c0_49 = arith.constant 0 : index
    %c0_50 = arith.constant 0 : index
    %86 = vector.load %arg2[%c7, %c0_49, %c0_50] : memref<9x4x128xbf16, #tpu.memory_space<vmem>>, vector<1x4x128xbf16>
    %87 = vector.shape_cast %86 : vector<1x4x128xbf16> to vector<4x128xbf16>
    %cst_51 = arith.constant dense<0.000000e+00> : vector<256x128xf32>
    %88 = tpu.matmul %85, %87, %cst_51 {dimension_numbers = #tpu.dot_dimension_numbers<[1], [0], [0], [1], [0, 0, 1, 1], [], []>} : vector<256x4xbf16>, vector<4x128xbf16>, vector<256x128xf32> -> vector<256x128xf32>
    %89 = arith.addf %83, %88 : vector<256x128xf32>
    %c0_52 = arith.constant 0 : index
    %c34 = arith.constant 34 : index
    %c0_53 = arith.constant 0 : index
    %90 = vector.load %arg1[%c0_52, %c34, %c0_53] : memref<1x290x4xbf16, #tpu.memory_space<vmem>>, vector<1x256x4xbf16>
    %91 = vector.shape_cast %90 : vector<1x256x4xbf16> to vector<256x4xbf16>
    %cst_54 = arith.constant 0.000000e+00 : bf16
    %92 = vector.broadcast %cst_54 : bf16 to vector<256x4xbf16>
    %93 = vector.shape_cast %20 : vector<256x1xi1> to vector<256x1xi1>
    %94 = vector.broadcast %93 : vector<256x1xi1> to vector<256x4xi1>
    %95 = arith.select %94, %91, %92 : vector<256x4xi1>, vector<256x4xbf16>
    %c8 = arith.constant 8 : index
    %c0_55 = arith.constant 0 : index
    %c0_56 = arith.constant 0 : index
    %96 = vector.load %arg2[%c8, %c0_55, %c0_56] : memref<9x4x128xbf16, #tpu.memory_space<vmem>>, vector<1x4x128xbf16>
    %97 = vector.shape_cast %96 : vector<1x4x128xbf16> to vector<4x128xbf16>
    %cst_57 = arith.constant dense<0.000000e+00> : vector<256x128xf32>
    %98 = tpu.matmul %95, %97, %cst_57 {dimension_numbers = #tpu.dot_dimension_numbers<[1], [0], [0], [1], [0, 0, 1, 1], [], []>} : vector<256x4xbf16>, vector<4x128xbf16>, vector<256x128xf32> -> vector<256x128xf32>
    %99 = arith.addf %89, %98 : vector<256x128xf32>
    %c0_58 = arith.constant 0 : index
    %c0_59 = arith.constant 0 : index
    %100 = vector.load %arg5[%c0_58, %c0_59] : memref<1x128xf32, #tpu.memory_space<vmem>>, vector<1x128xf32>
    %101 = vector.broadcast %100 : vector<1x128xf32> to vector<256x128xf32>
    %102 = arith.mulf %99, %101 : vector<256x128xf32>
    %c0_60 = arith.constant 0 : index
    %c0_61 = arith.constant 0 : index
    %103 = vector.load %arg6[%c0_60, %c0_61] : memref<1x128xf32, #tpu.memory_space<vmem>>, vector<1x128xf32>
    %104 = vector.broadcast %103 : vector<1x128xf32> to vector<256x128xf32>
    %105 = arith.addf %102, %104 : vector<256x128xf32>
    %cst_62 = arith.constant 0.000000e+00 : f32
    %106 = vector.broadcast %cst_62 : f32 to vector<256x128xf32>
    %107 = arith.maximumf %105, %106 : vector<256x128xf32>
    %cst_63 = arith.constant 0.000000e+00 : bf16
    %108 = vector.broadcast %cst_63 : bf16 to vector<17x128xbf16>
    %c0_64 = arith.constant 0 : index
    %c0_65 = arith.constant 0 : index
    %109 = vector.load %arg10[%c0_64, %c0_65] : memref<290x128xbf16, #tpu.memory_space<vmem>>, vector<17x128xbf16>
    tpu.vector_store %arg10[%c0_64, %c0_65], %108 {strides = array<i32>} : memref<290x128xbf16, #tpu.memory_space<vmem>>, vector<17x128xbf16>,
    %c273 = arith.constant 273 : index
    %c0_66 = arith.constant 0 : index
    %110 = vector.load %arg10[%c273, %c0_66] : memref<290x128xbf16, #tpu.memory_space<vmem>>, vector<17x128xbf16>
    tpu.vector_store %arg10[%c273, %c0_66], %108 {strides = array<i32>} : memref<290x128xbf16, #tpu.memory_space<vmem>>, vector<17x128xbf16>,
    %111 = arith.truncf %107 : vector<256x128xf32> to vector<256x128xbf16>
    %c17_67 = arith.constant 17 : index
    %c0_68 = arith.constant 0 : index
    %112 = vector.load %arg10[%c17_67, %c0_68] : memref<290x128xbf16, #tpu.memory_space<vmem>>, vector<256x128xbf16>
    tpu.vector_store %arg10[%c17_67, %c0_68], %111 {strides = array<i32>} : memref<290x128xbf16, #tpu.memory_space<vmem>>, vector<256x128xbf16>,
    %cst_69 = arith.constant 0.000000e+00 : f32
    %113 = vector.broadcast %cst_69 : f32 to vector<256x128xf32>
    %c0_70 = arith.constant 0 : index
    %c0_71 = arith.constant 0 : index
    %114 = vector.load %arg10[%c0_70, %c0_71] : memref<290x128xbf16, #tpu.memory_space<vmem>>, vector<256x128xbf16>
    %cst_72 = arith.constant 0.000000e+00 : bf16
    %115 = vector.broadcast %cst_72 : bf16 to vector<256x128xbf16>
    %116 = vector.shape_cast %18 : vector<256x1xi1> to vector<256x1xi1>
    %117 = vector.broadcast %116 : vector<256x1xi1> to vector<256x128xi1>
    %118 = arith.select %117, %114, %115 : vector<256x128xi1>, vector<256x128xbf16>
    %c0_73 = arith.constant 0 : index
    %c0_74 = arith.constant 0 : index
    %c0_75 = arith.constant 0 : index
    %119 = vector.load %arg3[%c0_73, %c0_74, %c0_75] : memref<9x128x128xbf16, #tpu.memory_space<vmem>>, vector<1x128x128xbf16>
    %120 = vector.shape_cast %119 : vector<1x128x128xbf16> to vector<128x128xbf16>
    %cst_76 = arith.constant dense<0.000000e+00> : vector<256x128xf32>
    %121 = tpu.matmul %118, %120, %cst_76 {dimension_numbers = #tpu.dot_dimension_numbers<[1], [0], [0], [1], [0, 0, 1, 1], [], []>} : vector<256x128xbf16>, vector<128x128xbf16>, vector<256x128xf32> -> vector<256x128xf32>
    %122 = arith.addf %113, %121 : vector<256x128xf32>
    %c1_77 = arith.constant 1 : index
    %c0_78 = arith.constant 0 : index
    %123 = vector.load %arg10[%c1_77, %c0_78] : memref<290x128xbf16, #tpu.memory_space<vmem>>, vector<256x128xbf16>
    %c1_79 = arith.constant 1 : index
    %c0_80 = arith.constant 0 : index
    %c0_81 = arith.constant 0 : index
    %124 = vector.load %arg3[%c1_79, %c0_80, %c0_81] : memref<9x128x128xbf16, #tpu.memory_space<vmem>>, vector<1x128x128xbf16>
    %125 = vector.shape_cast %124 : vector<1x128x128xbf16> to vector<128x128xbf16>
    %cst_82 = arith.constant dense<0.000000e+00> : vector<256x128xf32>
    %126 = tpu.matmul %123, %125, %cst_82 {dimension_numbers = #tpu.dot_dimension_numbers<[1], [0], [0], [1], [0, 0, 1, 1], [], []>} : vector<256x128xbf16>, vector<128x128xbf16>, vector<256x128xf32> -> vector<256x128xf32>
    %127 = arith.addf %122, %126 : vector<256x128xf32>
    %c2_83 = arith.constant 2 : index
    %c0_84 = arith.constant 0 : index
    %128 = vector.load %arg10[%c2_83, %c0_84] : memref<290x128xbf16, #tpu.memory_space<vmem>>, vector<256x128xbf16>
    %cst_85 = arith.constant 0.000000e+00 : bf16
    %129 = vector.broadcast %cst_85 : bf16 to vector<256x128xbf16>
    %130 = vector.shape_cast %20 : vector<256x1xi1> to vector<256x1xi1>
    %131 = vector.broadcast %130 : vector<256x1xi1> to vector<256x128xi1>
    %132 = arith.select %131, %128, %129 : vector<256x128xi1>, vector<256x128xbf16>
    %c2_86 = arith.constant 2 : index
    %c0_87 = arith.constant 0 : index
    %c0_88 = arith.constant 0 : index
    %133 = vector.load %arg3[%c2_86, %c0_87, %c0_88] : memref<9x128x128xbf16, #tpu.memory_space<vmem>>, vector<1x128x128xbf16>
    %134 = vector.shape_cast %133 : vector<1x128x128xbf16> to vector<128x128xbf16>
    %cst_89 = arith.constant dense<0.000000e+00> : vector<256x128xf32>
    %135 = tpu.matmul %132, %134, %cst_89 {dimension_numbers = #tpu.dot_dimension_numbers<[1], [0], [0], [1], [0, 0, 1, 1], [], []>} : vector<256x128xbf16>, vector<128x128xbf16>, vector<256x128xf32> -> vector<256x128xf32>
    %136 = arith.addf %127, %135 : vector<256x128xf32>
    %c16_90 = arith.constant 16 : index
    %c0_91 = arith.constant 0 : index
    %137 = vector.load %arg10[%c16_90, %c0_91] : memref<290x128xbf16, #tpu.memory_space<vmem>>, vector<256x128xbf16>
    %cst_92 = arith.constant 0.000000e+00 : bf16
    %138 = vector.broadcast %cst_92 : bf16 to vector<256x128xbf16>
    %139 = vector.shape_cast %18 : vector<256x1xi1> to vector<256x1xi1>
    %140 = vector.broadcast %139 : vector<256x1xi1> to vector<256x128xi1>
    %141 = arith.select %140, %137, %138 : vector<256x128xi1>, vector<256x128xbf16>
    %c3_93 = arith.constant 3 : index
    %c0_94 = arith.constant 0 : index
    %c0_95 = arith.constant 0 : index
    %142 = vector.load %arg3[%c3_93, %c0_94, %c0_95] : memref<9x128x128xbf16, #tpu.memory_space<vmem>>, vector<1x128x128xbf16>
    %143 = vector.shape_cast %142 : vector<1x128x128xbf16> to vector<128x128xbf16>
    %cst_96 = arith.constant dense<0.000000e+00> : vector<256x128xf32>
    %144 = tpu.matmul %141, %143, %cst_96 {dimension_numbers = #tpu.dot_dimension_numbers<[1], [0], [0], [1], [0, 0, 1, 1], [], []>} : vector<256x128xbf16>, vector<128x128xbf16>, vector<256x128xf32> -> vector<256x128xf32>
    %145 = arith.addf %136, %144 : vector<256x128xf32>
    %c17_97 = arith.constant 17 : index
    %c0_98 = arith.constant 0 : index
    %146 = vector.load %arg10[%c17_97, %c0_98] : memref<290x128xbf16, #tpu.memory_space<vmem>>, vector<256x128xbf16>
    %c4_99 = arith.constant 4 : index
    %c0_100 = arith.constant 0 : index
    %c0_101 = arith.constant 0 : index
    %147 = vector.load %arg3[%c4_99, %c0_100, %c0_101] : memref<9x128x128xbf16, #tpu.memory_space<vmem>>, vector<1x128x128xbf16>
    %148 = vector.shape_cast %147 : vector<1x128x128xbf16> to vector<128x128xbf16>
    %cst_102 = arith.constant dense<0.000000e+00> : vector<256x128xf32>
    %149 = tpu.matmul %146, %148, %cst_102 {dimension_numbers = #tpu.dot_dimension_numbers<[1], [0], [0], [1], [0, 0, 1, 1], [], []>} : vector<256x128xbf16>, vector<128x128xbf16>, vector<256x128xf32> -> vector<256x128xf32>
    %150 = arith.addf %145, %149 : vector<256x128xf32>
    %c18_103 = arith.constant 18 : index
    %c0_104 = arith.constant 0 : index
    %151 = vector.load %arg10[%c18_103, %c0_104] : memref<290x128xbf16, #tpu.memory_space<vmem>>, vector<256x128xbf16>
    %cst_105 = arith.constant 0.000000e+00 : bf16
    %152 = vector.broadcast %cst_105 : bf16 to vector<256x128xbf16>
    %153 = vector.shape_cast %20 : vector<256x1xi1> to vector<256x1xi1>
    %154 = vector.broadcast %153 : vector<256x1xi1> to vector<256x128xi1>
    %155 = arith.select %154, %151, %152 : vector<256x128xi1>, vector<256x128xbf16>
    %c5_106 = arith.constant 5 : index
    %c0_107 = arith.constant 0 : index
    %c0_108 = arith.constant 0 : index
    %156 = vector.load %arg3[%c5_106, %c0_107, %c0_108] : memref<9x128x128xbf16, #tpu.memory_space<vmem>>, vector<1x128x128xbf16>
    %157 = vector.shape_cast %156 : vector<1x128x128xbf16> to vector<128x128xbf16>
    %cst_109 = arith.constant dense<0.000000e+00> : vector<256x128xf32>
    %158 = tpu.matmul %155, %157, %cst_109 {dimension_numbers = #tpu.dot_dimension_numbers<[1], [0], [0], [1], [0, 0, 1, 1], [], []>} : vector<256x128xbf16>, vector<128x128xbf16>, vector<256x128xf32> -> vector<256x128xf32>
    %159 = arith.addf %150, %158 : vector<256x128xf32>
    %c32_110 = arith.constant 32 : index
    %c0_111 = arith.constant 0 : index
    %160 = vector.load %arg10[%c32_110, %c0_111] : memref<290x128xbf16, #tpu.memory_space<vmem>>, vector<256x128xbf16>
    %cst_112 = arith.constant 0.000000e+00 : bf16
    %161 = vector.broadcast %cst_112 : bf16 to vector<256x128xbf16>
    %162 = vector.shape_cast %18 : vector<256x1xi1> to vector<256x1xi1>
    %163 = vector.broadcast %162 : vector<256x1xi1> to vector<256x128xi1>
    %164 = arith.select %163, %160, %161 : vector<256x128xi1>, vector<256x128xbf16>
    %c6_113 = arith.constant 6 : index
    %c0_114 = arith.constant 0 : index
    %c0_115 = arith.constant 0 : index
    %165 = vector.load %arg3[%c6_113, %c0_114, %c0_115] : memref<9x128x128xbf16, #tpu.memory_space<vmem>>, vector<1x128x128xbf16>
    %166 = vector.shape_cast %165 : vector<1x128x128xbf16> to vector<128x128xbf16>
    %cst_116 = arith.constant dense<0.000000e+00> : vector<256x128xf32>
    %167 = tpu.matmul %164, %166, %cst_116 {dimension_numbers = #tpu.dot_dimension_numbers<[1], [0], [0], [1], [0, 0, 1, 1], [], []>} : vector<256x128xbf16>, vector<128x128xbf16>, vector<256x128xf32> -> vector<256x128xf32>
    %168 = arith.addf %159, %167 : vector<256x128xf32>
    %c33_117 = arith.constant 33 : index
    %c0_118 = arith.constant 0 : index
    %169 = vector.load %arg10[%c33_117, %c0_118] : memref<290x128xbf16, #tpu.memory_space<vmem>>, vector<256x128xbf16>
    %c7_119 = arith.constant 7 : index
    %c0_120 = arith.constant 0 : index
    %c0_121 = arith.constant 0 : index
    %170 = vector.load %arg3[%c7_119, %c0_120, %c0_121] : memref<9x128x128xbf16, #tpu.memory_space<vmem>>, vector<1x128x128xbf16>
    %171 = vector.shape_cast %170 : vector<1x128x128xbf16> to vector<128x128xbf16>
    %cst_122 = arith.constant dense<0.000000e+00> : vector<256x128xf32>
    %172 = tpu.matmul %169, %171, %cst_122 {dimension_numbers = #tpu.dot_dimension_numbers<[1], [0], [0], [1], [0, 0, 1, 1], [], []>} : vector<256x128xbf16>, vector<128x128xbf16>, vector<256x128xf32> -> vector<256x128xf32>
    %173 = arith.addf %168, %172 : vector<256x128xf32>
    %c34_123 = arith.constant 34 : index
    %c0_124 = arith.constant 0 : index
    %174 = vector.load %arg10[%c34_123, %c0_124] : memref<290x128xbf16, #tpu.memory_space<vmem>>, vector<256x128xbf16>
    %cst_125 = arith.constant 0.000000e+00 : bf16
    %175 = vector.broadcast %cst_125 : bf16 to vector<256x128xbf16>
    %176 = vector.shape_cast %20 : vector<256x1xi1> to vector<256x1xi1>
    %177 = vector.broadcast %176 : vector<256x1xi1> to vector<256x128xi1>
    %178 = arith.select %177, %174, %175 : vector<256x128xi1>, vector<256x128xbf16>
    %c8_126 = arith.constant 8 : index
    %c0_127 = arith.constant 0 : index
    %c0_128 = arith.constant 0 : index
    %179 = vector.load %arg3[%c8_126, %c0_127, %c0_128] : memref<9x128x128xbf16, #tpu.memory_space<vmem>>, vector<1x128x128xbf16>
    %180 = vector.shape_cast %179 : vector<1x128x128xbf16> to vector<128x128xbf16>
    %cst_129 = arith.constant dense<0.000000e+00> : vector<256x128xf32>
    %181 = tpu.matmul %178, %180, %cst_129 {dimension_numbers = #tpu.dot_dimension_numbers<[1], [0], [0], [1], [0, 0, 1, 1], [], []>} : vector<256x128xbf16>, vector<128x128xbf16>, vector<256x128xf32> -> vector<256x128xf32>
    %182 = arith.addf %173, %181 : vector<256x128xf32>
    %c0_130 = arith.constant 0 : index
    %c17_131 = arith.constant 17 : index
    %c0_132 = arith.constant 0 : index
    %183 = vector.load %arg1[%c0_130, %c17_131, %c0_132] : memref<1x290x4xbf16, #tpu.memory_space<vmem>>, vector<1x256x4xbf16>
    %184 = vector.shape_cast %183 : vector<1x256x4xbf16> to vector<256x4xbf16>
    %c0_133 = arith.constant 0 : index
    %c0_134 = arith.constant 0 : index
    %185 = vector.load %arg4[%c0_133, %c0_134] : memref<4x128xbf16, #tpu.memory_space<vmem>>, vector<4x128xbf16>
    %cst_135 = arith.constant dense<0.000000e+00> : vector<256x128xf32>
    %186 = tpu.matmul %184, %185, %cst_135 {dimension_numbers = #tpu.dot_dimension_numbers<[1], [0], [0], [1], [0, 0, 1, 1], [], []>} : vector<256x4xbf16>, vector<4x128xbf16>, vector<256x128xf32> -> vector<256x128xf32>
    %c0_136 = arith.constant 0 : index
    %c0_137 = arith.constant 0 : index
    %187 = vector.load %arg7[%c0_136, %c0_137] : memref<1x128xf32, #tpu.memory_space<vmem>>, vector<1x128xf32>
    %188 = vector.broadcast %187 : vector<1x128xf32> to vector<256x128xf32>
    %189 = arith.mulf %182, %188 : vector<256x128xf32>
    %c0_138 = arith.constant 0 : index
    %c0_139 = arith.constant 0 : index
    %190 = vector.load %arg8[%c0_138, %c0_139] : memref<1x128xf32, #tpu.memory_space<vmem>>, vector<1x128xf32>
    %191 = vector.broadcast %190 : vector<1x128xf32> to vector<256x128xf32>
    %192 = arith.addf %189, %191 : vector<256x128xf32>
    %193 = arith.addf %192, %186 : vector<256x128xf32>
    %cst_140 = arith.constant 0.000000e+00 : f32
    %194 = vector.broadcast %cst_140 : f32 to vector<256x128xf32>
    %195 = arith.maximumf %193, %194 : vector<256x128xf32>
    %c0_141 = arith.constant 0 : index
    %c0_142 = arith.constant 0 : index
    %c0_143 = arith.constant 0 : index
    %196 = vector.load %arg9[%c0_141, %c0_142, %c0_143] : memref<1x256x128xf32, #tpu.memory_space<vmem>>, vector<1x256x128xf32>
    %197 = vector.shape_cast %196 : vector<1x256x128xf32> to vector<256x128xf32>
    %198 = vector.shape_cast %195 : vector<256x128xf32> to vector<1x256x128xf32>
    tpu.vector_store %arg9[%c0_141, %c0_142, %c0_143], %198 {strides = array<i32>} : memref<1x256x128xf32, #tpu.memory_space<vmem>>, vector<1x256x128xf32>,
    return
  }
  func.func @transform_0(%arg0: i32) -> (i32, i32, i32) {
    %c0_i32 = arith.constant 0 : i32
    %c0_i32_0 = arith.constant 0 : i32
    %c0_i32_1 = arith.constant 0 : i32
    return %arg0, %c0_i32, %c0_i32_0 : i32, i32, i32
  }
  func.func @transform_1(%arg0: i32) -> (i32, i32, i32) {
    %c0_i32 = arith.constant 0 : i32
    %c0_i32_0 = arith.constant 0 : i32
    %c0_i32_1 = arith.constant 0 : i32
    %c0_i32_2 = arith.constant 0 : i32
    return %c0_i32, %c0_i32_0, %c0_i32_1 : i32, i32, i32
  }
  func.func @transform_2(%arg0: i32) -> (i32, i32, i32) {
    %c0_i32 = arith.constant 0 : i32
    %c0_i32_0 = arith.constant 0 : i32
    %c0_i32_1 = arith.constant 0 : i32
    %c0_i32_2 = arith.constant 0 : i32
    return %c0_i32, %c0_i32_0, %c0_i32_1 : i32, i32, i32
  }
  func.func @transform_3(%arg0: i32) -> (i32, i32) {
    %c0_i32 = arith.constant 0 : i32
    %c0_i32_0 = arith.constant 0 : i32
    %c0_i32_1 = arith.constant 0 : i32
    return %c0_i32, %c0_i32_0 : i32, i32
  }
  func.func @transform_4(%arg0: i32) -> (i32, i32) {
    %c0_i32 = arith.constant 0 : i32
    %c0_i32_0 = arith.constant 0 : i32
    %c0_i32_1 = arith.constant 0 : i32
    return %c0_i32, %c0_i32_0 : i32, i32
  }
  func.func @transform_5(%arg0: i32) -> (i32, i32) {
    %c0_i32 = arith.constant 0 : i32
    %c0_i32_0 = arith.constant 0 : i32
    %c0_i32_1 = arith.constant 0 : i32
    return %c0_i32, %c0_i32_0 : i32, i32
  }
  func.func @transform_6(%arg0: i32) -> (i32, i32) {
    %c0_i32 = arith.constant 0 : i32
    %c0_i32_0 = arith.constant 0 : i32
    %c0_i32_1 = arith.constant 0 : i32
    return %c0_i32, %c0_i32_0 : i32, i32
  }
  func.func @transform_7(%arg0: i32) -> (i32, i32) {
    %c0_i32 = arith.constant 0 : i32
    %c0_i32_0 = arith.constant 0 : i32
    %c0_i32_1 = arith.constant 0 : i32
    return %c0_i32, %c0_i32_0 : i32, i32
  }
  func.func @transform_8(%arg0: i32) -> (i32, i32, i32) {
    %c0_i32 = arith.constant 0 : i32
    %c0_i32_0 = arith.constant 0 : i32
    %c0_i32_1 = arith.constant 0 : i32
    return %arg0, %c0_i32, %c0_i32_0 : i32, i32, i32
  }
}

</mosaic_0001>

<llo_original>
// kernel: tpu_custom_call.1
$region0: #{tpu_custom_call.1}
  #allocation0 [shape = 'u32[]', space=smem, size = 0x4, offset = 0x4, fixed_abs, tag = 'smem constant byte address 0x4 - core index']
  #allocation1 [shape = 'u32[144,128]{1,0:T(1,128)}', space=vmem, size = 0x12000, scoped, tag = 'internal scratch']
  #allocation2 [shape = 'bf16[290,128]{1,0:T(8,128)(2,1)}', space=vmem, size = 0x12800, scoped, tag = 'scratch operand']
  %s0 = inlined_call_operand.vmem [shape: bf16[2,290,4], index: 0, kind: input, shape index: {}]
  %s1 = inlined_call_operand.vmem [shape: bf16[9,4,128], index: 1, kind: input, shape index: {}]
  %s2 = inlined_call_operand.hbm [shape: bf16[9,128,128], index: 2, kind: input, shape index: {}]
  %s3 = inlined_call_operand.vmem [shape: bf16[4,128], index: 3, kind: input, shape index: {}]
  %s4 = inlined_call_operand.vmem [shape: f32[1,128], index: 4, kind: input, shape index: {}]
  %s5 = inlined_call_operand.vmem [shape: f32[1,128], index: 5, kind: input, shape index: {}]
  %s6 = inlined_call_operand.vmem [shape: f32[1,128], index: 6, kind: input, shape index: {}]
  %s7 = inlined_call_operand.vmem [shape: f32[1,128], index: 7, kind: input, shape index: {}]
  %s8 = inlined_call_operand.hbm [shape: f32[2,256,128], index: 8, kind: output, shape index: {}]
  %s9 = sld [smem:[#allocation0]]
  $region69: #{tpu_custom_call.1} parent=0
    _
  %s11 = ssub.s32 1, %s9
  %s12 = scalar_select 0, %s11, %s9
  $region1: #{tpu_custom_call.1} parent=0
    #allocation3 [shape = 'u8[294912]{0}', space=vmem, size = 0x48000, scoped, tag = 'input window, operand 2, single buffered']
    #allocation4 [shape = 's32[2]{0}', space=sflag, size = 0x8, scoped, tag = 'scoped memory for tpu_custom_call.1']
    #allocation5 [shape = 's32[2]{0}', space=sflag, size = 0x8, scoped, tag = 'scoped memory for tpu_custom_call.1']
    #allocation6 [shape = 'u8[262144]{0}', space=vmem, size = 0x40000, scoped, tag = 'output window, operand 0']
    %13 = vsyncpa [#allocation4], 0
    %14 = vsyncpa [#allocation5], 0
    %s15 = scalar_lea.sflag [#allocation5], 1
    %16 = vsyncpa %s15, 0
    loop: start=0, step=1, limit=4
    $region2: #{tpu_custom_call.1} parent=1 // loop_pre_header
      _
    $region3: #{tpu_custom_call.1} parent=1 // loop_header
      %s18 = sphi 0, %s22
      %p19 = scmp.ge.s32.totalorder %s18, 4
      %s28 = sphi 0, %s30
      %s31 = sphi 0, %s28
      %s32 = sphi 0, %s31
      %s48 = sphi 0, %s32
      %s52 = sphi 0, %s52
      %s54 = sphi 0, %s52
      %s55 = sphi 0, %s54
      %s69 = sphi 0, %s55
      %s73 = sphi 0, %s73
      %s75 = sphi 0, %s73
      %s76 = sphi 0, %s75
      %s90 = sphi 0, %s76
      %s94 = sphi 0, %s94
      %s96 = sphi 0, %s94
      %s97 = sphi 0, %s96
      %s111 = sphi 0, %s97
      %s115 = sphi 0, %s115
      %s117 = sphi 0, %s115
      %s118 = sphi 0, %s117
      %s132 = sphi 0, %s118
      %s136 = sphi 0, %s136
      %s138 = sphi 0, %s136
      %s139 = sphi 0, %s138
      %s153 = sphi 0, %s139
      %s157 = sphi 0, %s157
      %s159 = sphi 0, %s157
      %s160 = sphi 0, %s159
      %s174 = sphi 0, %s160
      %s178 = sphi 0, %s178
      %s180 = sphi 0, %s178
      %s181 = sphi 0, %s180
      %s195 = sphi 0, %s181
      %s201 = sphi 0, %s203
      %s204 = sphi 0, %s201
      %s205 = sphi 0, %s204
      %s221 = sphi 0, %s205
    $region4: #{tpu_custom_call.1} parent=1 // loop_header_branch
      %21 = sbr.rel (%p19) target = $region8
    $region5: #{tpu_custom_call.1} parent=1 // loop_body
      %s23 = ssub.s32 %s18, 1
      %s24 = ssub.s32 %s18, 2
      %s25 = sadd.s32 %s18, 1
      %s26 = ssub.s32 %s18, %s25
      %p27 = scmp.eq.s32.totalorder %s26, 0
      %s29 = sadd.s32 %s28, 1
      %s30 = scalar_select %p27, %s28, %s29
      %p33 = pneg %p27
      %p34 = scmp.eq.s32.totalorder %s18, 1
      %p35 = por %p33, %p34
      %p36 = scmp.ne.s32.totalorder %s28, %s31
      %p37 = scmp.eq.s32.totalorder %s18, 0
      %p38 = por %p36, %p37
      %p39 = scmp.ne.s32.totalorder %s28, %s31
      %p40 = scmp.eq.s32.totalorder %s23, 1
      %p41 = por %p39, %p40
      %p42 = scmp.ne.s32.totalorder %s31, %s32
      %p43 = scmp.eq.s32.totalorder %s23, 0
      %p44 = por %p42, %p43
      %p45 = scmp.ne.s32.totalorder %s31, %s32
      %p46 = scmp.eq.s32.totalorder %s24, 1
      %p47 = por %p45, %p46
      %p49 = scmp.ne.s32.totalorder %s32, %s48
      %p50 = scmp.eq.s32.totalorder %s24, 0
      %p51 = por %p49, %p50
      %s53 = sadd.s32 %s52, 1
      %p56 = scmp.eq.s32.totalorder %s18, 1
      %p57 = scmp.ne.s32.totalorder %s52, %s54
      %p58 = scmp.eq.s32.totalorder %s18, 0
      %p59 = por %p57, %p58
      %p60 = scmp.ne.s32.totalorder %s52, %s54
      %p61 = scmp.eq.s32.totalorder %s23, 1
      %p62 = por %p60, %p61
      %p63 = scmp.ne.s32.totalorder %s54, %s55
      %p64 = scmp.eq.s32.totalorder %s23, 0
      %p65 = por %p63, %p64
      %p66 = scmp.ne.s32.totalorder %s54, %s55
      %p67 = scmp.eq.s32.totalorder %s24, 1
      %p68 = por %p66, %p67
      %p70 = scmp.ne.s32.totalorder %s55, %s69
      %p71 = scmp.eq.s32.totalorder %s24, 0
      %p72 = por %p70, %p71
      %s74 = sadd.s32 %s73, 1
      %p77 = scmp.eq.s32.totalorder %s18, 1
      %p78 = scmp.ne.s32.totalorder %s73, %s75
      %p79 = scmp.eq.s32.totalorder %s18, 0
      %p80 = por %p78, %p79
      %p81 = scmp.ne.s32.totalorder %s73, %s75
      %p82 = scmp.eq.s32.totalorder %s23, 1
      %p83 = por %p81, %p82
      %p84 = scmp.ne.s32.totalorder %s75, %s76
      %p85 = scmp.eq.s32.totalorder %s23, 0
      %p86 = por %p84, %p85
      %p87 = scmp.ne.s32.totalorder %s75, %s76
      %p88 = scmp.eq.s32.totalorder %s24, 1
      %p89 = por %p87, %p88
      %p91 = scmp.ne.s32.totalorder %s76, %s90
      %p92 = scmp.eq.s32.totalorder %s24, 0
      %p93 = por %p91, %p92
      %s95 = sadd.s32 %s94, 1
      %p98 = scmp.eq.s32.totalorder %s18, 1
      %p99 = scmp.ne.s32.totalorder %s94, %s96
      %p100 = scmp.eq.s32.totalorder %s18, 0
      %p101 = por %p99, %p100
      %p102 = scmp.ne.s32.totalorder %s94, %s96
      %p103 = scmp.eq.s32.totalorder %s23, 1
      %p104 = por %p102, %p103
      %p105 = scmp.ne.s32.totalorder %s96, %s97
      %p106 = scmp.eq.s32.totalorder %s23, 0
      %p107 = por %p105, %p106
      %p108 = scmp.ne.s32.totalorder %s96, %s97
      %p109 = scmp.eq.s32.totalorder %s24, 1
      %p110 = por %p108, %p109
      %p112 = scmp.ne.s32.totalorder %s97, %s111
      %p113 = scmp.eq.s32.totalorder %s24, 0
      %p114 = por %p112, %p113
      %s116 = sadd.s32 %s115, 1
      %p119 = scmp.eq.s32.totalorder %s18, 1
      %p120 = scmp.ne.s32.totalorder %s115, %s117
      %p121 = scmp.eq.s32.totalorder %s18, 0
      %p122 = por %p120, %p121
      %p123 = scmp.ne.s32.totalorder %s115, %s117
      %p124 = scmp.eq.s32.totalorder %s23, 1
      %p125 = por %p123, %p124
      %p126 = scmp.ne.s32.totalorder %s117, %s118
      %p127 = scmp.eq.s32.totalorder %s23, 0
      %p128 = por %p126, %p127
      %p129 = scmp.ne.s32.totalorder %s117, %s118
      %p130 = scmp.eq.s32.totalorder %s24, 1
      %p131 = por %p129, %p130
      %p133 = scmp.ne.s32.totalorder %s118, %s132
      %p134 = scmp.eq.s32.totalorder %s24, 0
      %p135 = por %p133, %p134
      %s137 = sadd.s32 %s136, 1
      %p140 = scmp.eq.s32.totalorder %s18, 1
      %p141 = scmp.ne.s32.totalorder %s136, %s138
      %p142 = scmp.eq.s32.totalorder %s18, 0
      %p143 = por %p141, %p142
      %p144 = scmp.ne.s32.totalorder %s136, %s138
      %p145 = scmp.eq.s32.totalorder %s23, 1
      %p146 = por %p144, %p145
      %p147 = scmp.ne.s32.totalorder %s138, %s139
      %p148 = scmp.eq.s32.totalorder %s23, 0
      %p149 = por %p147, %p148
      %p150 = scmp.ne.s32.totalorder %s138, %s139
      %p151 = scmp.eq.s32.totalorder %s24, 1
      %p152 = por %p150, %p151
      %p154 = scmp.ne.s32.totalorder %s139, %s153
      %p155 = scmp.eq.s32.totalorder %s24, 0
      %p156 = por %p154, %p155
      %s158 = sadd.s32 %s157, 1
      %p161 = scmp.eq.s32.totalorder %s18, 1
      %p162 = scmp.ne.s32.totalorder %s157, %s159
      %p163 = scmp.eq.s32.totalorder %s18, 0
      %p164 = por %p162, %p163
      %p165 = scmp.ne.s32.totalorder %s157, %s159
      %p166 = scmp.eq.s32.totalorder %s23, 1
      %p167 = por %p165, %p166
      %p168 = scmp.ne.s32.totalorder %s159, %s160
      %p169 = scmp.eq.s32.totalorder %s23, 0
      %p170 = por %p168, %p169
      %p171 = scmp.ne.s32.totalorder %s159, %s160
      %p172 = scmp.eq.s32.totalorder %s24, 1
      %p173 = por %p171, %p172
      %p175 = scmp.ne.s32.totalorder %s160, %s174
      %p176 = scmp.eq.s32.totalorder %s24, 0
      %p177 = por %p175, %p176
      %s179 = sadd.s32 %s178, 1
      %p182 = scmp.eq.s32.totalorder %s18, 1
      %p183 = scmp.ne.s32.totalorder %s178, %s180
      %p184 = scmp.eq.s32.totalorder %s18, 0
      %p185 = por %p183, %p184
      %p186 = scmp.ne.s32.totalorder %s178, %s180
      %p187 = scmp.eq.s32.totalorder %s23, 1
      %p188 = por %p186, %p187
      %p189 = scmp.ne.s32.totalorder %s180, %s181
      %p190 = scmp.eq.s32.totalorder %s23, 0
      %p191 = por %p189, %p190
      %p192 = scmp.ne.s32.totalorder %s180, %s181
      %p193 = scmp.eq.s32.totalorder %s24, 1
      %p194 = por %p192, %p193
      %p196 = scmp.ne.s32.totalorder %s181, %s195
      %p197 = scmp.eq.s32.totalorder %s24, 0
      %p198 = por %p196, %p197
      %s199 = ssub.s32 %s18, %s25
      %p200 = scmp.eq.s32.totalorder %s199, 0
      %s202 = sadd.s32 %s201, 1
      %s203 = scalar_select %p200, %s201, %s202
      %p206 = pneg %p200
      %p207 = scmp.eq.s32.totalorder %s18, 1
      %p208 = por %p206, %p207
      %p209 = scmp.ne.s32.totalorder %s201, %s204
      %p210 = scmp.eq.s32.totalorder %s18, 0
      %p211 = por %p209, %p210
      %p212 = scmp.ne.s32.totalorder %s201, %s204
      %p213 = scmp.eq.s32.totalorder %s23, 1
      %p214 = por %p212, %p213
      %p215 = scmp.ne.s32.totalorder %s204, %s205
      %p216 = scmp.eq.s32.totalorder %s23, 0
      %p217 = por %p215, %p216
      %p218 = scmp.ne.s32.totalorder %s204, %s205
      %p219 = scmp.eq.s32.totalorder %s24, 1
      %p220 = por %p218, %p219
      %p222 = scmp.ne.s32.totalorder %s205, %s221
      %p223 = scmp.eq.s32.totalorder %s24, 0
      %p224 = por %p222, %p223
      %p225 = scmp.le.s32.totalorder 1, %s18
      %p226 = scmp.lt.s32.totalorder %s18, 3
      %p227 = pnand %p225, %p226
      %p228 = pneg %p227
      // Predicated region
      $region9: #{tpu_custom_call.1} parent=5 // pred_check
        _
      $region10: #{tpu_custom_call.1} parent=5 // pred_check_branch
        %230 = sbr.rel (%p227) target = $region12
      $region11: #{tpu_custom_call.1} parent=5 // pred_region
        %s231 = ssub.s32 %s18, 1
        // Predicated region
        $region13: #{tpu_custom_call.1} parent=11 // pred_check
          %p232 = pneg %p65
        $region14: #{tpu_custom_call.1} parent=11 // pred_check_branch
          %234 = sbr.rel (%p232) target = $region16
        $region15: #{tpu_custom_call.1} parent=11 // pred_region
          _
        $region16: #{tpu_custom_call.1} parent=11 // pred_fallthru
          _
        // Predicated region
        $region17: #{tpu_custom_call.1} parent=11 // pred_check
          %p235 = pneg %p86
        $region18: #{tpu_custom_call.1} parent=11 // pred_check_branch
          %237 = sbr.rel (%p235) target = $region20
        $region19: #{tpu_custom_call.1} parent=11 // pred_region
          %s239 = ssub.s32 9216, 9216
          %240 = vsyncadd [#allocation4], %s239
          %s241 = sshll.u32 [#allocation3], 4
          %s242 = int_to_ptr.vmem [resolvable:$true] %s241
          %247 = dma.hbm_to_vmem [thread:$0]  %s2, 9216, %s242, [#allocation4], 64, 64, 4
        $region20: #{tpu_custom_call.1} parent=11 // pred_fallthru
          _
        // Predicated region
        $region21: #{tpu_custom_call.1} parent=11 // pred_check
          %p248 = pneg %p107
        $region22: #{tpu_custom_call.1} parent=11 // pred_check_branch
          %250 = sbr.rel (%p248) target = $region24
        $region23: #{tpu_custom_call.1} parent=11 // pred_region
          _
        $region24: #{tpu_custom_call.1} parent=11 // pred_fallthru
          _
        // Predicated region
        $region25: #{tpu_custom_call.1} parent=11 // pred_check
          %p251 = pneg %p128
        $region26: #{tpu_custom_call.1} parent=11 // pred_check_branch
          %253 = sbr.rel (%p251) target = $region28
        $region27: #{tpu_custom_call.1} parent=11 // pred_region
          _
        $region28: #{tpu_custom_call.1} parent=11 // pred_fallthru
          _
        // Predicated region
        $region29: #{tpu_custom_call.1} parent=11 // pred_check
          %p254 = pneg %p149
        $region30: #{tpu_custom_call.1} parent=11 // pred_check_branch
          %256 = sbr.rel (%p254) target = $region32
        $region31: #{tpu_custom_call.1} parent=11 // pred_region
          _
        $region32: #{tpu_custom_call.1} parent=11 // pred_fallthru
          _
        // Predicated region
        $region33: #{tpu_custom_call.1} parent=11 // pred_check
          %p257 = pneg %p170
        $region34: #{tpu_custom_call.1} parent=11 // pred_check_branch
          %259 = sbr.rel (%p257) target = $region36
        $region35: #{tpu_custom_call.1} parent=11 // pred_region
          _
        $region36: #{tpu_custom_call.1} parent=11 // pred_fallthru
          _
        // Predicated region
        $region37: #{tpu_custom_call.1} parent=11 // pred_check
          %p260 = pneg %p191
        $region38: #{tpu_custom_call.1} parent=11 // pred_check_branch
          %262 = sbr.rel (%p260) target = $region40
        $region39: #{tpu_custom_call.1} parent=11 // pred_region
          _
        $region40: #{tpu_custom_call.1} parent=11 // pred_fallthru
          _
      $region12: #{tpu_custom_call.1} parent=5 // pred_fallthru
        _
      %p263 = scmp.lt.s32.totalorder %s18, 2
      // Predicated region
      $region41: #{tpu_custom_call.1} parent=5 // pred_check
        %p264 = pneg %p263
      $region42: #{tpu_custom_call.1} parent=5 // pred_check_branch
        %266 = sbr.rel (%p264) target = $region44
      $region43: #{tpu_custom_call.1} parent=5 // pred_region
        // Predicated region
        $region45: #{tpu_custom_call.1} parent=43 // pred_check
          %p267 = pneg %p38
        $region46: #{tpu_custom_call.1} parent=43 // pred_check_branch
          %269 = sbr.rel (%p267) target = $region48
        $region47: #{tpu_custom_call.1} parent=43 // pred_region
          %p270 = scmp.lt.s32.totalorder %s18, 1
          %s271 = scalar_select %p270, %s18, 1
          %s272 = smul.addr %s271, 37
          %s273 = smul.addr %s272, 4
          %s274 = scalar_lea.vmem %s0, %s273
        $region48: #{tpu_custom_call.1} parent=43 // pred_fallthru
          _
      $region44: #{tpu_custom_call.1} parent=5 // pred_fallthru
        _
      %p275 = scmp.le.s32.totalorder 1, %s18
      %p276 = scmp.lt.s32.totalorder %s18, 3
      %p277 = pnand %p275, %p276
      %p278 = pneg %p277
      // Predicated region
      $region49: #{tpu_custom_call.1} parent=5 // pred_check
        _
      $region50: #{tpu_custom_call.1} parent=5 // pred_check_branch
        %280 = sbr.rel (%p277) target = $region52
      $region51: #{tpu_custom_call.1} parent=5 // pred_region
        %s281 = ssub.s32 %s18, 1
        // Predicated region
        $region53: #{tpu_custom_call.1} parent=51 // pred_check
          %p282 = pneg %p86
        $region54: #{tpu_custom_call.1} parent=51 // pred_check_branch
          %284 = sbr.rel (%p282) target = $region56
        $region55: #{tpu_custom_call.1} parent=51 // pred_region
          %285 = dma.done [#allocation4], 9216
        $region56: #{tpu_custom_call.1} parent=51 // pred_fallthru
          _
        %p286 = scmp.lt.s32.totalorder %s23, 1
        %s287 = scalar_select %p286, %s23, 1
        %s288 = smul.addr %s287, 37
        %s289 = smul.addr %s288, 4
        %s290 = scalar_lea.vmem %s0, %s289
        %p291 = pneg %p44
        %p292 = pneg %p41
        %p293 = pneg %p65
        %p294 = pneg %p62
        %p295 = pneg %p86
        %p296 = pneg %p83
        %p297 = pneg %p107
        %p298 = pneg %p104
        %p299 = pneg %p128
        %p300 = pneg %p125
        %p301 = pneg %p149
        %p302 = pneg %p146
        %p303 = pneg %p170
        %p304 = pneg %p167
        %p305 = pneg %p191
        %p306 = pneg %p188
        %p307 = pneg %p217
        %p308 = pneg %p214
        %s309 = sand.u32 %s204, 1
        %s310 = scalar_lea.sflag [#allocation5], %s309
        %s311 = sand.u32 %s204, 1
        %s312 = smul.addr %s311, 256
        %s313 = scalar_lea.vmem [#allocation6], %s312
        %p314 = scmp.lt.s32.totalorder %s23, 1
        %s315 = scalar_select %p314, %s23, 1
        %s316 = smul.addr %s315, 37
        %s317 = smul.addr %s316, 4
        %s318 = scalar_lea.vmem %s0, %s317
        %v322 = vlaneseq
        %v323 = vshrl.u32 %v322, 7
        %v324 = vadd.s32 %v323, 8
        %v325 = vadd.s32 %v323, 16
        %v326 = vadd.s32 %v323, 24
        %v327 = vadd.s32 %v323, 32
        %v328 = vadd.s32 %v323, 40
        %v329 = vadd.s32 %v323, 48
        %v330 = vadd.s32 %v323, 56
        %v331 = vadd.s32 %v323, 64
        %v332 = vadd.s32 %v323, 72
        %v333 = vadd.s32 %v323, 80
        %v334 = vadd.s32 %v323, 88
        %v335 = vadd.s32 %v323, 96
        %v336 = vadd.s32 %v323, 104
        %v337 = vadd.s32 %v323, 112
        %v338 = vadd.s32 %v323, 120
        %v339 = vadd.s32 %v323, 128
        %v340 = vadd.s32 %v323, 136
        %v341 = vadd.s32 %v323, 144
        %v342 = vadd.s32 %v323, 152
        %v343 = vadd.s32 %v323, 160
        %v344 = vadd.s32 %v323, 168
        %v345 = vadd.s32 %v323, 176
        %v346 = vadd.s32 %v323, 184
        %v347 = vadd.s32 %v323, 192
        %v348 = vadd.s32 %v323, 200
        %v349 = vadd.s32 %v323, 208
        %v350 = vadd.s32 %v323, 216
        %v351 = vadd.s32 %v323, 224
        %v352 = vadd.s32 %v323, 232
        %v353 = vadd.s32 %v323, 240
        %v354 = vadd.s32 %v323, 248
        %vm355 = vcmp.lt.s32.totalorder %v323, 0
        %v356 = vsub.s32 0, %v323
        %v357 = vsel %vm355, %v356, %v323
        %v358 = vshrl.u32 %v357, 4
        %v359 = vand.u32 %v357, 15
        %v360 = vsub.s32 0, %v359
        %v361 = vsel %vm355, %v360, %v359
        %vm362 = vcmp.lt.s32.totalorder %v324, 0
        %v363 = vsub.s32 0, %v324
        %v364 = vsel %vm362, %v363, %v324
        %v365 = vshrl.u32 %v364, 4
        %v366 = vand.u32 %v364, 15
        %v367 = vsub.s32 0, %v366
        %v368 = vsel %vm362, %v367, %v366
        %vm369 = vcmp.lt.s32.totalorder %v325, 0
        %v370 = vsub.s32 0, %v325
        %v371 = vsel %vm369, %v370, %v325
        %v372 = vshrl.u32 %v371, 4
        %v373 = vand.u32 %v371, 15
        %v374 = vsub.s32 0, %v373
        %v375 = vsel %vm369, %v374, %v373
        %vm376 = vcmp.lt.s32.totalorder %v326, 0
        %v377 = vsub.s32 0, %v326
        %v378 = vsel %vm376, %v377, %v326
        %v379 = vshrl.u32 %v378, 4
        %v380 = vand.u32 %v378, 15
        %v381 = vsub.s32 0, %v380
        %v382 = vsel %vm376, %v381, %v380
        %vm383 = vcmp.lt.s32.totalorder %v327, 0
        %v384 = vsub.s32 0, %v327
        %v385 = vsel %vm383, %v384, %v327
        %v386 = vshrl.u32 %v385, 4
        %v387 = vand.u32 %v385, 15
        %v388 = vsub.s32 0, %v387
        %v389 = vsel %vm383, %v388, %v387
        %vm390 = vcmp.lt.s32.totalorder %v328, 0
        %v391 = vsub.s32 0, %v328
        %v392 = vsel %vm390, %v391, %v328
        %v393 = vshrl.u32 %v392, 4
        %v394 = vand.u32 %v392, 15
        %v395 = vsub.s32 0, %v394
        %v396 = vsel %vm390, %v395, %v394
        %vm397 = vcmp.lt.s32.totalorder %v329, 0
        %v398 = vsub.s32 0, %v329
        %v399 = vsel %vm397, %v398, %v329
        %v400 = vshrl.u32 %v399, 4
        %v401 = vand.u32 %v399, 15
        %v402 = vsub.s32 0, %v401
        %v403 = vsel %vm397, %v402, %v401
        %vm404 = vcmp.lt.s32.totalorder %v330, 0
        %v405 = vsub.s32 0, %v330
        %v406 = vsel %vm404, %v405, %v330
        %v407 = vshrl.u32 %v406, 4
        %v408 = vand.u32 %v406, 15
        %v409 = vsub.s32 0, %v408
        %v410 = vsel %vm404, %v409, %v408
        %vm411 = vcmp.lt.s32.totalorder %v331, 0
        %v412 = vsub.s32 0, %v331
        %v413 = vsel %vm411, %v412, %v331
        %v414 = vshrl.u32 %v413, 4
        %v415 = vand.u32 %v413, 15
        %v416 = vsub.s32 0, %v415
        %v417 = vsel %vm411, %v416, %v415
        %vm418 = vcmp.lt.s32.totalorder %v332, 0
        %v419 = vsub.s32 0, %v332
        %v420 = vsel %vm418, %v419, %v332
        %v421 = vshrl.u32 %v420, 4
        %v422 = vand.u32 %v420, 15
        %v423 = vsub.s32 0, %v422
        %v424 = vsel %vm418, %v423, %v422
        %vm425 = vcmp.lt.s32.totalorder %v333, 0
        %v426 = vsub.s32 0, %v333
        %v427 = vsel %vm425, %v426, %v333
        %v428 = vshrl.u32 %v427, 4
        %v429 = vand.u32 %v427, 15
        %v430 = vsub.s32 0, %v429
        %v431 = vsel %vm425, %v430, %v429
        %vm432 = vcmp.lt.s32.totalorder %v334, 0
        %v433 = vsub.s32 0, %v334
        %v434 = vsel %vm432, %v433, %v334
        %v435 = vshrl.u32 %v434, 4
        %v436 = vand.u32 %v434, 15
        %v437 = vsub.s32 0, %v436
        %v438 = vsel %vm432, %v437, %v436
        %vm439 = vcmp.lt.s32.totalorder %v335, 0
        %v440 = vsub.s32 0, %v335
        %v441 = vsel %vm439, %v440, %v335
        %v442 = vshrl.u32 %v441, 4
        %v443 = vand.u32 %v441, 15
        %v444 = vsub.s32 0, %v443
        %v445 = vsel %vm439, %v444, %v443
        %vm446 = vcmp.lt.s32.totalorder %v336, 0
        %v447 = vsub.s32 0, %v336
        %v448 = vsel %vm446, %v447, %v336
        %v449 = vshrl.u32 %v448, 4
        %v450 = vand.u32 %v448, 15
        %v451 = vsub.s32 0, %v450
        %v452 = vsel %vm446, %v451, %v450
        %vm453 = vcmp.lt.s32.totalorder %v337, 0
        %v454 = vsub.s32 0, %v337
        %v455 = vsel %vm453, %v454, %v337
        %v456 = vshrl.u32 %v455, 4
        %v457 = vand.u32 %v455, 15
        %v458 = vsub.s32 0, %v457
        %v459 = vsel %vm453, %v458, %v457
        %vm460 = vcmp.lt.s32.totalorder %v338, 0
        %v461 = vsub.s32 0, %v338
        %v462 = vsel %vm460, %v461, %v338
        %v463 = vshrl.u32 %v462, 4
        %v464 = vand.u32 %v462, 15
        %v465 = vsub.s32 0, %v464
        %v466 = vsel %vm460, %v465, %v464
        %vm467 = vcmp.lt.s32.totalorder %v339, 0
        %v468 = vsub.s32 0, %v339
        %v469 = vsel %vm467, %v468, %v339
        %v470 = vshrl.u32 %v469, 4
        %v471 = vand.u32 %v469, 15
        %v472 = vsub.s32 0, %v471
        %v473 = vsel %vm467, %v472, %v471
        %vm474 = vcmp.lt.s32.totalorder %v340, 0
        %v475 = vsub.s32 0, %v340
        %v476 = vsel %vm474, %v475, %v340
        %v477 = vshrl.u32 %v476, 4
        %v478 = vand.u32 %v476, 15
        %v479 = vsub.s32 0, %v478
        %v480 = vsel %vm474, %v479, %v478
        %vm481 = vcmp.lt.s32.totalorder %v341, 0
        %v482 = vsub.s32 0, %v341
        %v483 = vsel %vm481, %v482, %v341
        %v484 = vshrl.u32 %v483, 4
        %v485 = vand.u32 %v483, 15
        %v486 = vsub.s32 0, %v485
        %v487 = vsel %vm481, %v486, %v485
        %vm488 = vcmp.lt.s32.totalorder %v342, 0
        %v489 = vsub.s32 0, %v342
        %v490 = vsel %vm488, %v489, %v342
        %v491 = vshrl.u32 %v490, 4
        %v492 = vand.u32 %v490, 15
        %v493 = vsub.s32 0, %v492
        %v494 = vsel %vm488, %v493, %v492
        %vm495 = vcmp.lt.s32.totalorder %v343, 0
        %v496 = vsub.s32 0, %v343
        %v497 = vsel %vm495, %v496, %v343
        %v498 = vshrl.u32 %v497, 4
        %v499 = vand.u32 %v497, 15
        %v500 = vsub.s32 0, %v499
        %v501 = vsel %vm495, %v500, %v499
        %vm502 = vcmp.lt.s32.totalorder %v344, 0
        %v503 = vsub.s32 0, %v344
        %v504 = vsel %vm502, %v503, %v344
        %v505 = vshrl.u32 %v504, 4
        %v506 = vand.u32 %v504, 15
        %v507 = vsub.s32 0, %v506
        %v508 = vsel %vm502, %v507, %v506
        %vm509 = vcmp.lt.s32.totalorder %v345, 0
        %v510 = vsub.s32 0, %v345
        %v511 = vsel %vm509, %v510, %v345
        %v512 = vshrl.u32 %v511, 4
        %v513 = vand.u32 %v511, 15
        %v514 = vsub.s32 0, %v513
        %v515 = vsel %vm509, %v514, %v513
        %vm516 = vcmp.lt.s32.totalorder %v346, 0
        %v517 = vsub.s32 0, %v346
        %v518 = vsel %vm516, %v517, %v346
        %v519 = vshrl.u32 %v518, 4
        %v520 = vand.u32 %v518, 15
        %v521 = vsub.s32 0, %v520
        %v522 = vsel %vm516, %v521, %v520
        %vm523 = vcmp.lt.s32.totalorder %v347, 0
        %v524 = vsub.s32 0, %v347
        %v525 = vsel %vm523, %v524, %v347
        %v526 = vshrl.u32 %v525, 4
        %v527 = vand.u32 %v525, 15
        %v528 = vsub.s32 0, %v527
        %v529 = vsel %vm523, %v528, %v527
        %vm530 = vcmp.lt.s32.totalorder %v348, 0
        %v531 = vsub.s32 0, %v348
        %v532 = vsel %vm530, %v531, %v348
        %v533 = vshrl.u32 %v532, 4
        %v534 = vand.u32 %v532, 15
        %v535 = vsub.s32 0, %v534
        %v536 = vsel %vm530, %v535, %v534
        %vm537 = vcmp.lt.s32.totalorder %v349, 0
        %v538 = vsub.s32 0, %v349
        %v539 = vsel %vm537, %v538, %v349
        %v540 = vshrl.u32 %v539, 4
        %v541 = vand.u32 %v539, 15
        %v542 = vsub.s32 0, %v541
        %v543 = vsel %vm537, %v542, %v541
        %vm544 = vcmp.lt.s32.totalorder %v350, 0
        %v545 = vsub.s32 0, %v350
        %v546 = vsel %vm544, %v545, %v350
        %v547 = vshrl.u32 %v546, 4
        %v548 = vand.u32 %v546, 15
        %v549 = vsub.s32 0, %v548
        %v550 = vsel %vm544, %v549, %v548
        %vm551 = vcmp.lt.s32.totalorder %v351, 0
        %v552 = vsub.s32 0, %v351
        %v553 = vsel %vm551, %v552, %v351
        %v554 = vshrl.u32 %v553, 4
        %v555 = vand.u32 %v553, 15
        %v556 = vsub.s32 0, %v555
        %v557 = vsel %vm551, %v556, %v555
        %vm558 = vcmp.lt.s32.totalorder %v352, 0
        %v559 = vsub.s32 0, %v352
        %v560 = vsel %vm558, %v559, %v352
        %v561 = vshrl.u32 %v560, 4
        %v562 = vand.u32 %v560, 15
        %v563 = vsub.s32 0, %v562
        %v564 = vsel %vm558, %v563, %v562
        %vm565 = vcmp.lt.s32.totalorder %v353, 0
        %v566 = vsub.s32 0, %v353
        %v567 = vsel %vm565, %v566, %v353
        %v568 = vshrl.u32 %v567, 4
        %v569 = vand.u32 %v567, 15
        %v570 = vsub.s32 0, %v569
        %v571 = vsel %vm565, %v570, %v569
        %vm572 = vcmp.lt.s32.totalorder %v354, 0
        %v573 = vsub.s32 0, %v354
        %v574 = vsel %vm572, %v573, %v354
        %v575 = vshrl.u32 %v574, 4
        %v576 = vand.u32 %v574, 15
        %v577 = vsub.s32 0, %v576
        %v578 = vsel %vm572, %v577, %v576
        %vm579 = vcmp.ne.s32.totalorder %v361, 0
        %vm580 = vcmp.ne.s32.totalorder %v368, 0
        %vm581 = vcmp.ne.s32.totalorder %v375, 0
        %vm582 = vcmp.ne.s32.totalorder %v382, 0
        %vm583 = vcmp.ne.s32.totalorder %v389, 0
        %vm584 = vcmp.ne.s32.totalorder %v396, 0
        %vm585 = vcmp.ne.s32.totalorder %v403, 0
        %vm586 = vcmp.ne.s32.totalorder %v410, 0
        %vm587 = vcmp.ne.s32.totalorder %v417, 0
        %vm588 = vcmp.ne.s32.totalorder %v424, 0
        %vm589 = vcmp.ne.s32.totalorder %v431, 0
        %vm590 = vcmp.ne.s32.totalorder %v438, 0
        %vm591 = vcmp.ne.s32.totalorder %v445, 0
        %vm592 = vcmp.ne.s32.totalorder %v452, 0
        %vm593 = vcmp.ne.s32.totalorder %v459, 0
        %vm594 = vcmp.ne.s32.totalorder %v466, 0
        %vm595 = vcmp.ne.s32.totalorder %v473, 0
        %vm596 = vcmp.ne.s32.totalorder %v480, 0
        %vm597 = vcmp.ne.s32.totalorder %v487, 0
        %vm598 = vcmp.ne.s32.totalorder %v494, 0
        %vm599 = vcmp.ne.s32.totalorder %v501, 0
        %vm600 = vcmp.ne.s32.totalorder %v508, 0
        %vm601 = vcmp.ne.s32.totalorder %v515, 0
        %vm602 = vcmp.ne.s32.totalorder %v522, 0
        %vm603 = vcmp.ne.s32.totalorder %v529, 0
        %vm604 = vcmp.ne.s32.totalorder %v536, 0
        %vm605 = vcmp.ne.s32.totalorder %v543, 0
        %vm606 = vcmp.ne.s32.totalorder %v550, 0
        %vm607 = vcmp.ne.s32.totalorder %v557, 0
        %vm608 = vcmp.ne.s32.totalorder %v564, 0
        %vm609 = vcmp.ne.s32.totalorder %v571, 0
        %vm610 = vcmp.ne.s32.totalorder %v578, 0
        %vm611 = vcmp.lt.s32.totalorder %v361, 0
        %vm612 = vcmp.lt.s32.totalorder %v368, 0
        %vm613 = vcmp.lt.s32.totalorder %v375, 0
        %vm614 = vcmp.lt.s32.totalorder %v382, 0
        %vm615 = vcmp.lt.s32.totalorder %v389, 0
        %vm616 = vcmp.lt.s32.totalorder %v396, 0
        %vm617 = vcmp.lt.s32.totalorder %v403, 0
        %vm618 = vcmp.lt.s32.totalorder %v410, 0
        %vm619 = vcmp.lt.s32.totalorder %v417, 0
        %vm620 = vcmp.lt.s32.totalorder %v424, 0
        %vm621 = vcmp.lt.s32.totalorder %v431, 0
        %vm622 = vcmp.lt.s32.totalorder %v438, 0
        %vm623 = vcmp.lt.s32.totalorder %v445, 0
        %vm624 = vcmp.lt.s32.totalorder %v452, 0
        %vm625 = vcmp.lt.s32.totalorder %v459, 0
        %vm626 = vcmp.lt.s32.totalorder %v466, 0
        %vm627 = vcmp.lt.s32.totalorder %v473, 0
        %vm628 = vcmp.lt.s32.totalorder %v480, 0
        %vm629 = vcmp.lt.s32.totalorder %v487, 0
        %vm630 = vcmp.lt.s32.totalorder %v494, 0
        %vm631 = vcmp.lt.s32.totalorder %v501, 0
        %vm632 = vcmp.lt.s32.totalorder %v508, 0
        %vm633 = vcmp.lt.s32.totalorder %v515, 0
        %vm634 = vcmp.lt.s32.totalorder %v522, 0
        %vm635 = vcmp.lt.s32.totalorder %v529, 0
        %vm636 = vcmp.lt.s32.totalorder %v536, 0
        %vm637 = vcmp.lt.s32.totalorder %v543, 0
        %vm638 = vcmp.lt.s32.totalorder %v550, 0
        %vm639 = vcmp.lt.s32.totalorder %v557, 0
        %vm640 = vcmp.lt.s32.totalorder %v564, 0
        %vm641 = vcmp.lt.s32.totalorder %v571, 0
        %vm642 = vcmp.lt.s32.totalorder %v578, 0
        %vm643 = vmand %vm611, %vm579
        %vm644 = vmand %vm612, %vm580
        %vm645 = vmand %vm613, %vm581
        %vm646 = vmand %vm614, %vm582
        %vm647 = vmand %vm615, %vm583
        %vm648 = vmand %vm616, %vm584
        %vm649 = vmand %vm617, %vm585
        %vm650 = vmand %vm618, %vm586
        %vm651 = vmand %vm619, %vm587
        %vm652 = vmand %vm620, %vm588
        %vm653 = vmand %vm621, %vm589
        %vm654 = vmand %vm622, %vm590
        %vm655 = vmand %vm623, %vm591
        %vm656 = vmand %vm624, %vm592
        %vm657 = vmand %vm625, %vm593
        %vm658 = vmand %vm626, %vm594
        %vm659 = vmand %vm627, %vm595
        %vm660 = vmand %vm628, %vm596
        %vm661 = vmand %vm629, %vm597
        %vm662 = vmand %vm630, %vm598
        %vm663 = vmand %vm631, %vm599
        %vm664 = vmand %vm632, %vm600
        %vm665 = vmand %vm633, %vm601
        %vm666 = vmand %vm634, %vm602
        %vm667 = vmand %vm635, %vm603
        %vm668 = vmand %vm636, %vm604
        %vm669 = vmand %vm637, %vm605
        %vm670 = vmand %vm638, %vm606
        %vm671 = vmand %vm639, %vm607
        %vm672 = vmand %vm640, %vm608
        %vm673 = vmand %vm641, %vm609
        %vm674 = vmand %vm642, %vm610
        %v675 = vadd.s32 %v361, 16
        %v676 = vadd.s32 %v368, 16
        %v677 = vadd.s32 %v375, 16
        %v678 = vadd.s32 %v382, 16
        %v679 = vadd.s32 %v389, 16
        %v680 = vadd.s32 %v396, 16
        %v681 = vadd.s32 %v403, 16
        %v682 = vadd.s32 %v410, 16
        %v683 = vadd.s32 %v417, 16
        %v684 = vadd.s32 %v424, 16
        %v685 = vadd.s32 %v431, 16
        %v686 = vadd.s32 %v438, 16
        %v687 = vadd.s32 %v445, 16
        %v688 = vadd.s32 %v452, 16
        %v689 = vadd.s32 %v459, 16
        %v690 = vadd.s32 %v466, 16
        %v691 = vadd.s32 %v473, 16
        %v692 = vadd.s32 %v480, 16
        %v693 = vadd.s32 %v487, 16
        %v694 = vadd.s32 %v494, 16
        %v695 = vadd.s32 %v501, 16
        %v696 = vadd.s32 %v508, 16
        %v697 = vadd.s32 %v515, 16
        %v698 = vadd.s32 %v522, 16
        %v699 = vadd.s32 %v529, 16
        %v700 = vadd.s32 %v536, 16
        %v701 = vadd.s32 %v543, 16
        %v702 = vadd.s32 %v550, 16
        %v703 = vadd.s32 %v557, 16
        %v704 = vadd.s32 %v564, 16
        %v705 = vadd.s32 %v571, 16
        %v706 = vadd.s32 %v578, 16
        %v707 = vsel %vm643, %v675, %v361
        %v708 = vsel %vm644, %v676, %v368
        %v709 = vsel %vm645, %v677, %v375
        %v710 = vsel %vm646, %v678, %v382
        %v711 = vsel %vm647, %v679, %v389
        %v712 = vsel %vm648, %v680, %v396
        %v713 = vsel %vm649, %v681, %v403
        %v714 = vsel %vm650, %v682, %v410
        %v715 = vsel %vm651, %v683, %v417
        %v716 = vsel %vm652, %v684, %v424
        %v717 = vsel %vm653, %v685, %v431
        %v718 = vsel %vm654, %v686, %v438
        %v719 = vsel %vm655, %v687, %v445
        %v720 = vsel %vm656, %v688, %v452
        %v721 = vsel %vm657, %v689, %v459
        %v722 = vsel %vm658, %v690, %v466
        %v723 = vsel %vm659, %v691, %v473
        %v724 = vsel %vm660, %v692, %v480
        %v725 = vsel %vm661, %v693, %v487
        %v726 = vsel %vm662, %v694, %v494
        %v727 = vsel %vm663, %v695, %v501
        %v728 = vsel %vm664, %v696, %v508
        %v729 = vsel %vm665, %v697, %v515
        %v730 = vsel %vm666, %v698, %v522
        %v731 = vsel %vm667, %v699, %v529
        %v732 = vsel %vm668, %v700, %v536
        %v733 = vsel %vm669, %v701, %v543
        %v734 = vsel %vm670, %v702, %v550
        %v735 = vsel %vm671, %v703, %v557
        %v736 = vsel %vm672, %v704, %v564
        %v737 = vsel %vm673, %v705, %v571
        %v738 = vsel %vm674, %v706, %v578
        %vm739 = vcmp.ne.s32.totalorder %v707, 0
        %vm740 = vcmp.ne.s32.totalorder %v708, 0
        %vm741 = vcmp.ne.s32.totalorder %v709, 0
        %vm742 = vcmp.ne.s32.totalorder %v710, 0
        %vm743 = vcmp.ne.s32.totalorder %v711, 0
        %vm744 = vcmp.ne.s32.totalorder %v712, 0
        %vm745 = vcmp.ne.s32.totalorder %v713, 0
        %vm746 = vcmp.ne.s32.totalorder %v714, 0
        %vm747 = vcmp.ne.s32.totalorder %v715, 0
        %vm748 = vcmp.ne.s32.totalorder %v716, 0
        %vm749 = vcmp.ne.s32.totalorder %v717, 0
        %vm750 = vcmp.ne.s32.totalorder %v718, 0
        %vm751 = vcmp.ne.s32.totalorder %v719, 0
        %vm752 = vcmp.ne.s32.totalorder %v720, 0
        %vm753 = vcmp.ne.s32.totalorder %v721, 0
        %vm754 = vcmp.ne.s32.totalorder %v722, 0
        %vm755 = vcmp.ne.s32.totalorder %v723, 0
        %vm756 = vcmp.ne.s32.totalorder %v724, 0
        %vm757 = vcmp.ne.s32.totalorder %v725, 0
        %vm758 = vcmp.ne.s32.totalorder %v726, 0
        %vm759 = vcmp.ne.s32.totalorder %v727, 0
        %vm760 = vcmp.ne.s32.totalorder %v728, 0
        %vm761 = vcmp.ne.s32.totalorder %v729, 0
        %vm762 = vcmp.ne.s32.totalorder %v730, 0
        %vm763 = vcmp.ne.s32.totalorder %v731, 0
        %vm764 = vcmp.ne.s32.totalorder %v732, 0
        %vm765 = vcmp.ne.s32.totalorder %v733, 0
        %vm766 = vcmp.ne.s32.totalorder %v734, 0
        %vm767 = vcmp.ne.s32.totalorder %v735, 0
        %vm768 = vcmp.ne.s32.totalorder %v736, 0
        %vm769 = vcmp.ne.s32.totalorder %v737, 0
        %vm770 = vcmp.ne.s32.totalorder %v738, 0
        %vm771 = vcmp.ne.s32.totalorder %v707, 15
        %vm772 = vcmp.ne.s32.totalorder %v708, 15
        %vm773 = vcmp.ne.s32.totalorder %v709, 15
        %vm774 = vcmp.ne.s32.totalorder %v710, 15
        %vm775 = vcmp.ne.s32.totalorder %v711, 15
        %vm776 = vcmp.ne.s32.totalorder %v712, 15
        %vm777 = vcmp.ne.s32.totalorder %v713, 15
        %vm778 = vcmp.ne.s32.totalorder %v714, 15
        %vm779 = vcmp.ne.s32.totalorder %v715, 15
        %vm780 = vcmp.ne.s32.totalorder %v716, 15
        %vm781 = vcmp.ne.s32.totalorder %v717, 15
        %vm782 = vcmp.ne.s32.totalorder %v718, 15
        %vm783 = vcmp.ne.s32.totalorder %v719, 15
        %vm784 = vcmp.ne.s32.totalorder %v720, 15
        %vm785 = vcmp.ne.s32.totalorder %v721, 15
        %vm786 = vcmp.ne.s32.totalorder %v722, 15
        %vm787 = vcmp.ne.s32.totalorder %v723, 15
        %vm788 = vcmp.ne.s32.totalorder %v724, 15
        %vm789 = vcmp.ne.s32.totalorder %v725, 15
        %vm790 = vcmp.ne.s32.totalorder %v726, 15
        %vm791 = vcmp.ne.s32.totalorder %v727, 15
        %vm792 = vcmp.ne.s32.totalorder %v728, 15
        %vm793 = vcmp.ne.s32.totalorder %v729, 15
        %vm794 = vcmp.ne.s32.totalorder %v730, 15
        %vm795 = vcmp.ne.s32.totalorder %v731, 15
        %vm796 = vcmp.ne.s32.totalorder %v732, 15
        %vm797 = vcmp.ne.s32.totalorder %v733, 15
        %vm798 = vcmp.ne.s32.totalorder %v734, 15
        %vm799 = vcmp.ne.s32.totalorder %v735, 15
        %vm800 = vcmp.ne.s32.totalorder %v736, 15
        %vm801 = vcmp.ne.s32.totalorder %v737, 15
        %vm802 = vcmp.ne.s32.totalorder %v738, 15
        %v803 = vld [vmem:[%s318] sm:$0xf]
        %v804 = vld [vmem:[%s318 + $0x4] sm:$0xf]
        %v805 = vld [vmem:[%s318 + $0x8] sm:$0xf]
        %v806 = vld [vmem:[%s318 + $0xc] sm:$0xf]
        %v807 = vld [vmem:[%s318 + $0x10] sm:$0xf]
        %v808 = vld [vmem:[%s318 + $0x14] sm:$0xf]
        %v809 = vld [vmem:[%s318 + $0x18] sm:$0xf]
        %v810 = vld [vmem:[%s318 + $0x1c] sm:$0xf]
        %v811 = vld [vmem:[%s318 + $0x20] sm:$0xf]
        %v812 = vld [vmem:[%s318 + $0x24] sm:$0xf]
        %v813 = vld [vmem:[%s318 + $0x28] sm:$0xf]
        %v814 = vld [vmem:[%s318 + $0x2c] sm:$0xf]
        %v815 = vld [vmem:[%s318 + $0x30] sm:$0xf]
        %v816 = vld [vmem:[%s318 + $0x34] sm:$0xf]
        %v817 = vld [vmem:[%s318 + $0x38] sm:$0xf]
        %v818 = vld [vmem:[%s318 + $0x3c] sm:$0xf]
        %v819 = vld [vmem:[%s318 + $0x40] sm:$0xf]
        %v820 = vld [vmem:[%s318 + $0x44] sm:$0xf]
        %v821 = vld [vmem:[%s318 + $0x48] sm:$0xf]
        %v822 = vld [vmem:[%s318 + $0x4c] sm:$0xf]
        %v823 = vld [vmem:[%s318 + $0x50] sm:$0xf]
        %v824 = vld [vmem:[%s318 + $0x54] sm:$0xf]
        %v825 = vld [vmem:[%s318 + $0x58] sm:$0xf]
        %v826 = vld [vmem:[%s318 + $0x5c] sm:$0xf]
        %v827 = vld [vmem:[%s318 + $0x60] sm:$0xf]
        %v828 = vld [vmem:[%s318 + $0x64] sm:$0xf]
        %v829 = vld [vmem:[%s318 + $0x68] sm:$0xf]
        %v830 = vld [vmem:[%s318 + $0x6c] sm:$0xf]
        %v831 = vld [vmem:[%s318 + $0x70] sm:$0xf]
        %v832 = vld [vmem:[%s318 + $0x74] sm:$0xf]
        %v833 = vld [vmem:[%s318 + $0x78] sm:$0xf]
        %v834 = vld [vmem:[%s318 + $0x7c] sm:$0xf]
        %v835 = vsel %vm739, 1, 0
        %v836 = vsel %vm740, 1, 0
        %v837 = vsel %vm741, 1, 0
        %v838 = vsel %vm742, 1, 0
        %v839 = vsel %vm743, 1, 0
        %v840 = vsel %vm744, 1, 0
        %v841 = vsel %vm745, 1, 0
        %v842 = vsel %vm746, 1, 0
        %v843 = vsel %vm747, 1, 0
        %v844 = vsel %vm748, 1, 0
        %v845 = vsel %vm749, 1, 0
        %v846 = vsel %vm750, 1, 0
        %v847 = vsel %vm751, 1, 0
        %v848 = vsel %vm752, 1, 0
        %v849 = vsel %vm753, 1, 0
        %v850 = vsel %vm754, 1, 0
        %v851 = vsel %vm755, 1, 0
        %v852 = vsel %vm756, 1, 0
        %v853 = vsel %vm757, 1, 0
        %v854 = vsel %vm758, 1, 0
        %v855 = vsel %vm759, 1, 0
        %v856 = vsel %vm760, 1, 0
        %v857 = vsel %vm761, 1, 0
        %v858 = vsel %vm762, 1, 0
        %v859 = vsel %vm763, 1, 0
        %v860 = vsel %vm764, 1, 0
        %v861 = vsel %vm765, 1, 0
        %v862 = vsel %vm766, 1, 0
        %v863 = vsel %vm767, 1, 0
        %v864 = vsel %vm768, 1, 0
        %v865 = vsel %vm769, 1, 0
        %v866 = vsel %vm770, 1, 0
        %vm867 = vcmp.eq.s32.totalorder %v835, 1
        %vm868 = vcmp.eq.s32.totalorder %v836, 1
        %vm869 = vcmp.eq.s32.totalorder %v837, 1
        %vm870 = vcmp.eq.s32.totalorder %v838, 1
        %vm871 = vcmp.eq.s32.totalorder %v839, 1
        %vm872 = vcmp.eq.s32.totalorder %v840, 1
        %vm873 = vcmp.eq.s32.totalorder %v841, 1
        %vm874 = vcmp.eq.s32.totalorder %v842, 1
        %vm875 = vcmp.eq.s32.totalorder %v843, 1
        %vm876 = vcmp.eq.s32.totalorder %v844, 1
        %vm877 = vcmp.eq.s32.totalorder %v845, 1
        %vm878 = vcmp.eq.s32.totalorder %v846, 1
        %vm879 = vcmp.eq.s32.totalorder %v847, 1
        %vm880 = vcmp.eq.s32.totalorder %v848, 1
        %vm881 = vcmp.eq.s32.totalorder %v849, 1
        %vm882 = vcmp.eq.s32.totalorder %v850, 1
        %vm883 = vcmp.eq.s32.totalorder %v851, 1
        %vm884 = vcmp.eq.s32.totalorder %v852, 1
        %vm885 = vcmp.eq.s32.totalorder %v853, 1
        %vm886 = vcmp.eq.s32.totalorder %v854, 1
        %vm887 = vcmp.eq.s32.totalorder %v855, 1
        %vm888 = vcmp.eq.s32.totalorder %v856, 1
        %vm889 = vcmp.eq.s32.totalorder %v857, 1
        %vm890 = vcmp.eq.s32.totalorder %v858, 1
        %vm891 = vcmp.eq.s32.totalorder %v859, 1
        %vm892 = vcmp.eq.s32.totalorder %v860, 1
        %vm893 = vcmp.eq.s32.totalorder %v861, 1
        %vm894 = vcmp.eq.s32.totalorder %v862, 1
        %vm895 = vcmp.eq.s32.totalorder %v863, 1
        %vm896 = vcmp.eq.s32.totalorder %v864, 1
        %vm897 = vcmp.eq.s32.totalorder %v865, 1
        %vm898 = vcmp.eq.s32.totalorder %v866, 1
        %vm899 = vmpackc.low %vm867, %vm867
        %vm900 = vmpackc.low %vm868, %vm868
        %vm901 = vmpackc.low %vm869, %vm869
        %vm902 = vmpackc.low %vm870, %vm870
        %vm903 = vmpackc.low %vm871, %vm871
        %vm904 = vmpackc.low %vm872, %vm872
        %vm905 = vmpackc.low %vm873, %vm873
        %vm906 = vmpackc.low %vm874, %vm874
        %vm907 = vmpackc.low %vm875, %vm875
        %vm908 = vmpackc.low %vm876, %vm876
        %vm909 = vmpackc.low %vm877, %vm877
        %vm910 = vmpackc.low %vm878, %vm878
        %vm911 = vmpackc.low %vm879, %vm879
        %vm912 = vmpackc.low %vm880, %vm880
        %vm913 = vmpackc.low %vm881, %vm881
        %vm914 = vmpackc.low %vm882, %vm882
        %vm915 = vmpackc.low %vm883, %vm883
        %vm916 = vmpackc.low %vm884, %vm884
        %vm917 = vmpackc.low %vm885, %vm885
        %vm918 = vmpackc.low %vm886, %vm886
        %vm919 = vmpackc.low %vm887, %vm887
        %vm920 = vmpackc.low %vm888, %vm888
        %vm921 = vmpackc.low %vm889, %vm889
        %vm922 = vmpackc.low %vm890, %vm890
        %vm923 = vmpackc.low %vm891, %vm891
        %vm924 = vmpackc.low %vm892, %vm892
        %vm925 = vmpackc.low %vm893, %vm893
        %vm926 = vmpackc.low %vm894, %vm894
        %vm927 = vmpackc.low %vm895, %vm895
        %vm928 = vmpackc.low %vm896, %vm896
        %vm929 = vmpackc.low %vm897, %vm897
        %vm930 = vmpackc.low %vm898, %vm898
        %v931 = vsel %vm899, %v803, 0
        %v932 = vsel %vm900, %v804, 0
        %v933 = vsel %vm901, %v805, 0
        %v934 = vsel %vm902, %v806, 0
        %v935 = vsel %vm903, %v807, 0
        %v936 = vsel %vm904, %v808, 0
        %v937 = vsel %vm905, %v809, 0
        %v938 = vsel %vm906, %v810, 0
        %v939 = vsel %vm907, %v811, 0
        %v940 = vsel %vm908, %v812, 0
        %v941 = vsel %vm909, %v813, 0
        %v942 = vsel %vm910, %v814, 0
        %v943 = vsel %vm911, %v815, 0
        %v944 = vsel %vm912, %v816, 0
        %v945 = vsel %vm913, %v817, 0
        %v946 = vsel %vm914, %v818, 0
        %v947 = vsel %vm915, %v819, 0
        %v948 = vsel %vm916, %v820, 0
        %v949 = vsel %vm917, %v821, 0
        %v950 = vsel %vm918, %v822, 0
        %v951 = vsel %vm919, %v823, 0
        %v952 = vsel %vm920, %v824, 0
        %v953 = vsel %vm921, %v825, 0
        %v954 = vsel %vm922, %v826, 0
        %v955 = vsel %vm923, %v827, 0
        %v956 = vsel %vm924, %v828, 0
        %v957 = vsel %vm925, %v829, 0
        %v958 = vsel %vm926, %v830, 0
        %v959 = vsel %vm927, %v831, 0
        %v960 = vsel %vm928, %v832, 0
        %v961 = vsel %vm929, %v833, 0
        %v962 = vsel %vm930, %v834, 0
        %v963 = vld [vmem:[%s1] sm:$0x3]
        %v964 = vld [vmem:[%s318 + $0x80] sm:$0x1]
        %s965 = scalar_lea.vmem %s1, 2
        %v966 = vld [vmem:[%s965] sm:$0x3]
        %v1000 = vunpack.c.l.b16 %v803
        %v1001 = vunpack.c.l.b16 %v804
        %v1002 = vunpack.c.l.b16 %v805
        %v1003 = vunpack.c.l.b16 %v806
        %v1004 = vunpack.c.l.b16 %v807
        %v1005 = vunpack.c.l.b16 %v808
        %v1006 = vunpack.c.l.b16 %v809
        %v1007 = vunpack.c.l.b16 %v810
        %v1008 = vunpack.c.l.b16 %v811
        %v1009 = vunpack.c.l.b16 %v812
        %v1010 = vunpack.c.l.b16 %v813
        %v1011 = vunpack.c.l.b16 %v814
        %v1012 = vunpack.c.l.b16 %v815
        %v1013 = vunpack.c.l.b16 %v816
        %v1014 = vunpack.c.l.b16 %v817
        %v1015 = vunpack.c.l.b16 %v818
        %v1016 = vunpack.c.l.b16 %v819
        %v1017 = vunpack.c.l.b16 %v820
        %v1018 = vunpack.c.l.b16 %v821
        %v1019 = vunpack.c.l.b16 %v822
        %v1020 = vunpack.c.l.b16 %v823
        %v1021 = vunpack.c.l.b16 %v824
        %v1022 = vunpack.c.l.b16 %v825
        %v1023 = vunpack.c.l.b16 %v826
        %v1024 = vunpack.c.l.b16 %v827
        %v1025 = vunpack.c.l.b16 %v828
        %v1026 = vunpack.c.l.b16 %v829
        %v1027 = vunpack.c.l.b16 %v830
        %v1028 = vunpack.c.l.b16 %v831
        %v1029 = vunpack.c.l.b16 %v832
        %v1030 = vunpack.c.l.b16 %v833
        %v1031 = vunpack.c.l.b16 %v834
        %v1032 = vunpack.c.l.b16 %v964
        %v1033 = vpack.c.b16 %v1001, %v1000
        %v1034 = vpack.c.b16 %v1003, %v1002
        %v1035 = vpack.c.b16 %v1005, %v1004
        %v1036 = vpack.c.b16 %v1007, %v1006
        %v1037 = vpack.c.b16 %v1009, %v1008
        %v1038 = vpack.c.b16 %v1011, %v1010
        %v1039 = vpack.c.b16 %v1013, %v1012
        %v1040 = vpack.c.b16 %v1015, %v1014
        %v1041 = vpack.c.b16 %v1017, %v1016
        %v1042 = vpack.c.b16 %v1019, %v1018
        %v1043 = vpack.c.b16 %v1021, %v1020
        %v1044 = vpack.c.b16 %v1023, %v1022
        %v1045 = vpack.c.b16 %v1025, %v1024
        %v1046 = vpack.c.b16 %v1027, %v1026
        %v1047 = vpack.c.b16 %v1029, %v1028
        %v1048 = vpack.c.b16 %v1031, %v1030
        %v1049 = vpack.c.b16 %v1032, %v1032
        %vm1050 = vsmask.f32 7424
        %v1052 = vshrl.u32 %v1033, 16
        %v1054 = vshll.u32 %v1033, 16
        %v1056 = vrot.slane %v1054, 1
        %v1057 = vor.u32 %v1052, %v1056
        %v1059 = vshll.u32 %v1034, 16
        %v1061 = vrot.slane %v1059, 1
        %v1062 = vsel %vm1050, %v1057, %v1061
        %v1063 = vshrl.u32 %v1034, 16
        %v1065 = vor.u32 %v1063, %v1061
        %v1067 = vshll.u32 %v1035, 16
        %v1069 = vrot.slane %v1067, 1
        %v1070 = vsel %vm1050, %v1065, %v1069
        %v1071 = vshrl.u32 %v1035, 16
        %v1073 = vor.u32 %v1071, %v1069
        %v1075 = vshll.u32 %v1036, 16
        %v1077 = vrot.slane %v1075, 1
        %v1078 = vsel %vm1050, %v1073, %v1077
        %v1079 = vshrl.u32 %v1036, 16
        %v1081 = vor.u32 %v1079, %v1077
        %v1083 = vshll.u32 %v1037, 16
        %v1085 = vrot.slane %v1083, 1
        %v1086 = vsel %vm1050, %v1081, %v1085
        %v1087 = vshrl.u32 %v1037, 16
        %v1089 = vor.u32 %v1087, %v1085
        %v1091 = vshll.u32 %v1038, 16
        %v1093 = vrot.slane %v1091, 1
        %v1094 = vsel %vm1050, %v1089, %v1093
        %v1095 = vshrl.u32 %v1038, 16
        %v1097 = vor.u32 %v1095, %v1093
        %v1099 = vshll.u32 %v1039, 16
        %v1101 = vrot.slane %v1099, 1
        %v1102 = vsel %vm1050, %v1097, %v1101
        %v1103 = vshrl.u32 %v1039, 16
        %v1105 = vor.u32 %v1103, %v1101
        %v1107 = vshll.u32 %v1040, 16
        %v1109 = vrot.slane %v1107, 1
        %v1110 = vsel %vm1050, %v1105, %v1109
        %v1111 = vshrl.u32 %v1040, 16
        %v1113 = vor.u32 %v1111, %v1109
        %v1115 = vshll.u32 %v1041, 16
        %v1117 = vrot.slane %v1115, 1
        %v1118 = vsel %vm1050, %v1113, %v1117
        %v1119 = vshrl.u32 %v1041, 16
        %v1121 = vor.u32 %v1119, %v1117
        %v1123 = vshll.u32 %v1042, 16
        %v1125 = vrot.slane %v1123, 1
        %v1126 = vsel %vm1050, %v1121, %v1125
        %v1127 = vshrl.u32 %v1042, 16
        %v1129 = vor.u32 %v1127, %v1125
        %v1131 = vshll.u32 %v1043, 16
        %v1133 = vrot.slane %v1131, 1
        %v1134 = vsel %vm1050, %v1129, %v1133
        %v1135 = vshrl.u32 %v1043, 16
        %v1137 = vor.u32 %v1135, %v1133
        %v1139 = vshll.u32 %v1044, 16
        %v1141 = vrot.slane %v1139, 1
        %v1142 = vsel %vm1050, %v1137, %v1141
        %v1143 = vshrl.u32 %v1044, 16
        %v1145 = vor.u32 %v1143, %v1141
        %v1147 = vshll.u32 %v1045, 16
        %v1149 = vrot.slane %v1147, 1
        %v1150 = vsel %vm1050, %v1145, %v1149
        %v1151 = vshrl.u32 %v1045, 16
        %v1153 = vor.u32 %v1151, %v1149
        %v1155 = vshll.u32 %v1046, 16
        %v1157 = vrot.slane %v1155, 1
        %v1158 = vsel %vm1050, %v1153, %v1157
        %v1159 = vshrl.u32 %v1046, 16
        %v1161 = vor.u32 %v1159, %v1157
        %v1163 = vshll.u32 %v1047, 16
        %v1165 = vrot.slane %v1163, 1
        %v1166 = vsel %vm1050, %v1161, %v1165
        %v1167 = vshrl.u32 %v1047, 16
        %v1169 = vor.u32 %v1167, %v1165
        %v1171 = vshll.u32 %v1048, 16
        %v1173 = vrot.slane %v1171, 1
        %v1174 = vsel %vm1050, %v1169, %v1173
        %v1175 = vshrl.u32 %v1048, 16
        %v1177 = vor.u32 %v1175, %v1173
        %v1179 = vshll.u32 %v1049, 16
        %v1181 = vrot.slane %v1179, 1
        %v1182 = vsel %vm1050, %v1177, %v1181
        %vm1183 = vcmask 31744
        %v1185 = vsel %vm1183, %v1062, 0
        %v1188 = vsel %vm1183, %v1070, 0
        %v1191 = vsel %vm1183, %v1078, 0
        %v1194 = vsel %vm1183, %v1086, 0
        %v1197 = vsel %vm1183, %v1094, 0
        %v1200 = vsel %vm1183, %v1102, 0
        %v1203 = vsel %vm1183, %v1110, 0
        %v1206 = vsel %vm1183, %v1118, 0
        %v1209 = vsel %vm1183, %v1126, 0
        %v1212 = vsel %vm1183, %v1134, 0
        %v1215 = vsel %vm1183, %v1142, 0
        %v1218 = vsel %vm1183, %v1150, 0
        %v1221 = vsel %vm1183, %v1158, 0
        %v1224 = vsel %vm1183, %v1166, 0
        %v1227 = vsel %vm1183, %v1174, 0
        %v1230 = vsel %vm1183, %v1182, 0
        %vm1232 = vcmask 1041408
        %v1234 = vsel %vm1232, %v966, 0
        %1236 = vmatprep.subr.bf16.mxu0 0
        %1237 = vmatpush1.bf16.msra.mxu0 %v1234
        %1238 = vmatprep.subr.bf16.mxu0 0
        %1239 = vmatpush1.bf16.msra.mxu0 0
        %1240 = vmatprep.subr.bf16.mxu0 0
        %1241 = vmatpush1.bf16.msra.mxu0 0
        %1242 = vmatprep.subr.bf16.mxu0 0
        %1243 = vmatpush1.bf16.msra.mxu0 0
        %1244 = vmatprep.subr.bf16.mxu0 0
        %1245 = vmatpush1.bf16.msra.mxu0 0
        %1246 = vmatprep.subr.bf16.mxu0 0
        %1247 = vmatpush1.bf16.msra.mxu0 0
        %1248 = vmatprep.subr.bf16.mxu0 0
        %1249 = vmatpush1.bf16.msra.mxu0 0
        %1250 = vmatprep.subr.bf16.mxu0 0
        %1251 = vmatpush1.bf16.msra.mxu0 0
        %1252 = vmatprep.subr.bf16.mxu0 0
        %1253 = vmatpush1.bf16.msra.mxu0 0
        %1254 = vmatprep.subr.bf16.mxu0 0
        %1255 = vmatpush1.bf16.msra.mxu0 0
        %1256 = vmatprep.subr.bf16.mxu0 0
        %1257 = vmatpush1.bf16.msra.mxu0 0
        %1258 = vmatprep.subr.bf16.mxu0 0
        %1259 = vmatpush1.bf16.msra.mxu0 0
        %1260 = vmatprep.subr.bf16.mxu0 0
        %1261 = vmatpush1.bf16.msra.mxu0 0
        %1262 = vmatprep.subr.bf16.mxu0 0
        %1263 = vmatpush1.bf16.msra.mxu0 0
        %1264 = vmatprep.subr.bf16.mxu0 0
        %1265 = vmatpush1.bf16.msra.mxu0 0
        %1266 = vmatprep.subr.bf16.mxu0 0
        %1267 = vmatpush1.bf16.msra.mxu0 0
        %1268 = vmatprep.mubr.bf16.mxu0 0
        %1269 = vmatmul.mubr.bf16.gmra.mrb[0].mxu0 %v1185
        %v1270 = vpop.f32.mrb[0].mxu0
        %v1271 = vadd.f32 0.0, %v1270
        %v1272 = vpop.f32.mrb[0].mxu0
        %v1273 = vpop.f32.mrb[0].mxu0
        %v1274 = vadd.f32 0.0, %v1273
        %v1275 = vpop.f32.mrb[0].mxu0
        %1276 = vmatprep.mubr.bf16.mxu0 0
        %1277 = vmatmul.mubr.bf16.gmra.mrb[0].mxu0 %v1188
        %v1278 = vpop.f32.mrb[0].mxu0
        %v1279 = vadd.f32 0.0, %v1278
        %v1280 = vpop.f32.mrb[0].mxu0
        %v1281 = vpop.f32.mrb[0].mxu0
        %v1282 = vadd.f32 0.0, %v1281
        %v1283 = vpop.f32.mrb[0].mxu0
        %1284 = vmatprep.mubr.bf16.mxu0 0
        %1285 = vmatmul.mubr.bf16.gmra.mrb[0].mxu0 %v1191
        %v1286 = vpop.f32.mrb[0].mxu0
        %v1287 = vadd.f32 0.0, %v1286
        %v1288 = vpop.f32.mrb[0].mxu0
        %v1289 = vpop.f32.mrb[0].mxu0
        %v1290 = vadd.f32 0.0, %v1289
        %v1291 = vpop.f32.mrb[0].mxu0
        %1292 = vmatprep.mubr.bf16.mxu0 0
        %1293 = vmatmul.mubr.bf16.gmra.mrb[0].mxu0 %v1194
        %v1294 = vpop.f32.mrb[0].mxu0
        %v1295 = vadd.f32 0.0, %v1294
        %v1296 = vpop.f32.mrb[0].mxu0
        %v1297 = vpop.f32.mrb[0].mxu0
        %v1298 = vadd.f32 0.0, %v1297
        %v1299 = vpop.f32.mrb[0].mxu0
        %1300 = vmatprep.mubr.bf16.mxu0 0
        %1301 = vmatmul.mubr.bf16.gmra.mrb[0].mxu0 %v1197
        %v1302 = vpop.f32.mrb[0].mxu0
        %v1303 = vadd.f32 0.0, %v1302
        %v1304 = vpop.f32.mrb[0].mxu0
        %v1305 = vpop.f32.mrb[0].mxu0
        %v1306 = vadd.f32 0.0, %v1305
        %v1307 = vpop.f32.mrb[0].mxu0
        %1308 = vmatprep.mubr.bf16.mxu0 0
        %1309 = vmatmul.mubr.bf16.gmra.mrb[0].mxu0 %v1200
        %v1310 = vpop.f32.mrb[0].mxu0
        %v1311 = vadd.f32 0.0, %v1310
        %v1312 = vpop.f32.mrb[0].mxu0
        %v1313 = vpop.f32.mrb[0].mxu0
        %v1314 = vadd.f32 0.0, %v1313
        %v1315 = vpop.f32.mrb[0].mxu0
        %1316 = vmatprep.mubr.bf16.mxu0 0
        %1317 = vmatmul.mubr.bf16.gmra.mrb[0].mxu0 %v1203
        %v1318 = vpop.f32.mrb[0].mxu0
        %v1319 = vadd.f32 0.0, %v1318
        %v1320 = vpop.f32.mrb[0].mxu0
        %v1321 = vpop.f32.mrb[0].mxu0
        %v1322 = vadd.f32 0.0, %v1321
        %v1323 = vpop.f32.mrb[0].mxu0
        %1324 = vmatprep.mubr.bf16.mxu0 0
        %1325 = vmatmul.mubr.bf16.gmra.mrb[0].mxu0 %v1206
        %v1326 = vpop.f32.mrb[0].mxu0
        %v1327 = vadd.f32 0.0, %v1326
        %v1328 = vpop.f32.mrb[0].mxu0
        %v1329 = vpop.f32.mrb[0].mxu0
        %v1330 = vadd.f32 0.0, %v1329
        %v1331 = vpop.f32.mrb[0].mxu0
        %1332 = vmatprep.mubr.bf16.mxu0 0
        %1333 = vmatmul.mubr.bf16.gmra.mrb[0].mxu0 %v1209
        %v1334 = vpop.f32.mrb[0].mxu0
        %v1335 = vadd.f32 0.0, %v1334
        %v1336 = vpop.f32.mrb[0].mxu0
        %v1337 = vpop.f32.mrb[0].mxu0
        %v1338 = vadd.f32 0.0, %v1337
        %v1339 = vpop.f32.mrb[0].mxu0
        %1340 = vmatprep.mubr.bf16.mxu0 0
        %1341 = vmatmul.mubr.bf16.gmra.mrb[0].mxu0 %v1212
        %v1342 = vpop.f32.mrb[0].mxu0
        %v1343 = vadd.f32 0.0, %v1342
        %v1344 = vpop.f32.mrb[0].mxu0
        %v1345 = vpop.f32.mrb[0].mxu0
        %v1346 = vadd.f32 0.0, %v1345
        %v1347 = vpop.f32.mrb[0].mxu0
        %1348 = vmatprep.mubr.bf16.mxu0 0
        %1349 = vmatmul.mubr.bf16.gmra.mrb[0].mxu0 %v1215
        %v1350 = vpop.f32.mrb[0].mxu0
        %v1351 = vadd.f32 0.0, %v1350
        %v1352 = vpop.f32.mrb[0].mxu0
        %v1353 = vpop.f32.mrb[0].mxu0
        %v1354 = vadd.f32 0.0, %v1353
        %v1355 = vpop.f32.mrb[0].mxu0
        %1356 = vmatprep.mubr.bf16.mxu0 0
        %1357 = vmatmul.mubr.bf16.gmra.mrb[0].mxu0 %v1218
        %v1358 = vpop.f32.mrb[0].mxu0
        %v1359 = vadd.f32 0.0, %v1358
        %v1360 = vpop.f32.mrb[0].mxu0
        %v1361 = vpop.f32.mrb[0].mxu0
        %v1362 = vadd.f32 0.0, %v1361
        %v1363 = vpop.f32.mrb[0].mxu0
        %1364 = vmatprep.mubr.bf16.mxu0 0
        %1365 = vmatmul.mubr.bf16.gmra.mrb[0].mxu0 %v1221
        %v1366 = vpop.f32.mrb[0].mxu0
        %v1367 = vadd.f32 0.0, %v1366
        %v1368 = vpop.f32.mrb[0].mxu0
        %v1369 = vpop.f32.mrb[0].mxu0
        %v1370 = vadd.f32 0.0, %v1369
        %v1371 = vpop.f32.mrb[0].mxu0
        %1372 = vmatprep.mubr.bf16.mxu0 0
        %1373 = vmatmul.mubr.bf16.gmra.mrb[0].mxu0 %v1224
        %v1374 = vpop.f32.mrb[0].mxu0
        %v1375 = vadd.f32 0.0, %v1374
        %v1376 = vpop.f32.mrb[0].mxu0
        %v1377 = vpop.f32.mrb[0].mxu0
        %v1378 = vadd.f32 0.0, %v1377
        %v1379 = vpop.f32.mrb[0].mxu0
        %1380 = vmatprep.mubr.bf16.mxu0 0
        %1381 = vmatmul.mubr.bf16.gmra.mrb[0].mxu0 %v1227
        %v1382 = vpop.f32.mrb[0].mxu0
        %v1383 = vadd.f32 0.0, %v1382
        %v1384 = vpop.f32.mrb[0].mxu0
        %v1385 = vpop.f32.mrb[0].mxu0
        %v1386 = vadd.f32 0.0, %v1385
        %v1387 = vpop.f32.mrb[0].mxu0
        %1388 = vmatprep.mubr.bf16.mxu0 0
        %1389 = vmatmul.mubr.bf16.gmra.mrb[0].mxu0 %v1230
        %v1390 = vpop.f32.mrb[0].mxu0
        %v1391 = vadd.f32 0.0, %v1390
        %v1392 = vpop.f32.mrb[0].mxu0
        %v1393 = vpop.f32.mrb[0].mxu0
        %v1394 = vadd.f32 0.0, %v1393
        %v1395 = vpop.f32.mrb[0].mxu0
        %1396 = vdwg.mxu0
        %v1429 = vunpack.c.l.b16 %v931
        %v1430 = vunpack.c.l.b16 %v932
        %v1431 = vunpack.c.l.b16 %v933
        %v1432 = vunpack.c.l.b16 %v934
        %v1433 = vunpack.c.l.b16 %v935
        %v1434 = vunpack.c.l.b16 %v936
        %v1435 = vunpack.c.l.b16 %v937
        %v1436 = vunpack.c.l.b16 %v938
        %v1437 = vunpack.c.l.b16 %v939
        %v1438 = vunpack.c.l.b16 %v940
        %v1439 = vunpack.c.l.b16 %v941
        %v1440 = vunpack.c.l.b16 %v942
        %v1441 = vunpack.c.l.b16 %v943
        %v1442 = vunpack.c.l.b16 %v944
        %v1443 = vunpack.c.l.b16 %v945
        %v1444 = vunpack.c.l.b16 %v946
        %v1445 = vunpack.c.l.b16 %v947
        %v1446 = vunpack.c.l.b16 %v948
        %v1447 = vunpack.c.l.b16 %v949
        %v1448 = vunpack.c.l.b16 %v950
        %v1449 = vunpack.c.l.b16 %v951
        %v1450 = vunpack.c.l.b16 %v952
        %v1451 = vunpack.c.l.b16 %v953
        %v1452 = vunpack.c.l.b16 %v954
        %v1453 = vunpack.c.l.b16 %v955
        %v1454 = vunpack.c.l.b16 %v956
        %v1455 = vunpack.c.l.b16 %v957
        %v1456 = vunpack.c.l.b16 %v958
        %v1457 = vunpack.c.l.b16 %v959
        %v1458 = vunpack.c.l.b16 %v960
        %v1459 = vunpack.c.l.b16 %v961
        %v1460 = vunpack.c.l.b16 %v962
        %v1461 = vpack.c.b16 %v1430, %v1429
        %v1462 = vpack.c.b16 %v1432, %v1431
        %v1463 = vpack.c.b16 %v1434, %v1433
        %v1464 = vpack.c.b16 %v1436, %v1435
        %v1465 = vpack.c.b16 %v1438, %v1437
        %v1466 = vpack.c.b16 %v1440, %v1439
        %v1467 = vpack.c.b16 %v1442, %v1441
        %v1468 = vpack.c.b16 %v1444, %v1443
        %v1469 = vpack.c.b16 %v1446, %v1445
        %v1470 = vpack.c.b16 %v1448, %v1447
        %v1471 = vpack.c.b16 %v1450, %v1449
        %v1472 = vpack.c.b16 %v1452, %v1451
        %v1473 = vpack.c.b16 %v1454, %v1453
        %v1474 = vpack.c.b16 %v1456, %v1455
        %v1475 = vpack.c.b16 %v1458, %v1457
        %v1476 = vpack.c.b16 %v1460, %v1459
        %v1478 = vsel %vm1183, %v1461, 0
        %v1481 = vsel %vm1183, %v1462, 0
        %v1484 = vsel %vm1183, %v1463, 0
        %v1487 = vsel %vm1183, %v1464, 0
        %v1490 = vsel %vm1183, %v1465, 0
        %v1493 = vsel %vm1183, %v1466, 0
        %v1496 = vsel %vm1183, %v1467, 0
        %v1499 = vsel %vm1183, %v1468, 0
        %v1502 = vsel %vm1183, %v1469, 0
        %v1505 = vsel %vm1183, %v1470, 0
        %v1508 = vsel %vm1183, %v1471, 0
        %v1511 = vsel %vm1183, %v1472, 0
        %v1514 = vsel %vm1183, %v1473, 0
        %v1517 = vsel %vm1183, %v1474, 0
        %v1520 = vsel %vm1183, %v1475, 0
        %v1523 = vsel %vm1183, %v1476, 0
        %v1526 = vsel %vm1232, %v963, 0
        %1528 = vmatprep.subr.bf16.mxu0 0
        %1529 = vmatpush1.bf16.msra.mxu0 %v1526
        %1530 = vmatprep.subr.bf16.mxu0 0
        %1531 = vmatpush1.bf16.msra.mxu0 0
        %1532 = vmatprep.subr.bf16.mxu0 0
        %1533 = vmatpush1.bf16.msra.mxu0 0
        %1534 = vmatprep.subr.bf16.mxu0 0
        %1535 = vmatpush1.bf16.msra.mxu0 0
        %1536 = vmatprep.subr.bf16.mxu0 0
        %1537 = vmatpush1.bf16.msra.mxu0 0
        %1538 = vmatprep.subr.bf16.mxu0 0
        %1539 = vmatpush1.bf16.msra.mxu0 0
        %1540 = vmatprep.subr.bf16.mxu0 0
        %1541 = vmatpush1.bf16.msra.mxu0 0
        %1542 = vmatprep.subr.bf16.mxu0 0
        %1543 = vmatpush1.bf16.msra.mxu0 0
        %1544 = vmatprep.subr.bf16.mxu0 0
        %1545 = vmatpush1.bf16.msra.mxu0 0
        %1546 = vmatprep.subr.bf16.mxu0 0
        %1547 = vmatpush1.bf16.msra.mxu0 0
        %1548 = vmatprep.subr.bf16.mxu0 0
        %1549 = vmatpush1.bf16.msra.mxu0 0
        %1550 = vmatprep.subr.bf16.mxu0 0
        %1551 = vmatpush1.bf16.msra.mxu0 0
        %1552 = vmatprep.subr.bf16.mxu0 0
        %1553 = vmatpush1.bf16.msra.mxu0 0
        %1554 = vmatprep.subr.bf16.mxu0 0
        %1555 = vmatpush1.bf16.msra.mxu0 0
        %1556 = vmatprep.subr.bf16.mxu0 0
        %1557 = vmatpush1.bf16.msra.mxu0 0
        %1558 = vmatprep.subr.bf16.mxu0 0
        %1559 = vmatpush1.bf16.msra.mxu0 0
        %1560 = vmatprep.mubr.bf16.mxu0 0
        %1561 = vmatmul.mubr.bf16.gmra.mrb[0].mxu0 %v1478
        %v1562 = vpop.f32.mrb[0].mxu0
        %v1563 = vadd.f32 %v1271, %v1562
        %v1564 = vpop.f32.mrb[0].mxu0
        %v1565 = vpop.f32.mrb[0].mxu0
        %v1566 = vadd.f32 %v1274, %v1565
        %v1567 = vpop.f32.mrb[0].mxu0
        %1568 = vmatprep.mubr.bf16.mxu0 0
        %1569 = vmatmul.mubr.bf16.gmra.mrb[0].mxu0 %v1481
        %v1570 = vpop.f32.mrb[0].mxu0
        %v1571 = vadd.f32 %v1279, %v1570
        %v1572 = vpop.f32.mrb[0].mxu0
        %v1573 = vpop.f32.mrb[0].mxu0
        %v1574 = vadd.f32 %v1282, %v1573
        %v1575 = vpop.f32.mrb[0].mxu0
        %1576 = vmatprep.mubr.bf16.mxu0 0
        %1577 = vmatmul.mubr.bf16.gmra.mrb[0].mxu0 %v1484
        %v1578 = vpop.f32.mrb[0].mxu0
        %v1579 = vadd.f32 %v1287, %v1578
        %v1580 = vpop.f32.mrb[0].mxu0
        %v1581 = vpop.f32.mrb[0].mxu0
        %v1582 = vadd.f32 %v1290, %v1581
        %v1583 = vpop.f32.mrb[0].mxu0
        %1584 = vmatprep.mubr.bf16.mxu0 0
        %1585 = vmatmul.mubr.bf16.gmra.mrb[0].mxu0 %v1487
        %v1586 = vpop.f32.mrb[0].mxu0
        %v1587 = vadd.f32 %v1295, %v1586
        %v1588 = vpop.f32.mrb[0].mxu0
        %v1589 = vpop.f32.mrb[0].mxu0
        %v1590 = vadd.f32 %v1298, %v1589
        %v1591 = vpop.f32.mrb[0].mxu0
        %1592 = vmatprep.mubr.bf16.mxu0 0
        %1593 = vmatmul.mubr.bf16.gmra.mrb[0].mxu0 %v1490
        %v1594 = vpop.f32.mrb[0].mxu0
        %v1595 = vadd.f32 %v1303, %v1594
        %v1596 = vpop.f32.mrb[0].mxu0
        %v1597 = vpop.f32.mrb[0].mxu0
        %v1598 = vadd.f32 %v1306, %v1597
        %v1599 = vpop.f32.mrb[0].mxu0
        %1600 = vmatprep.mubr.bf16.mxu0 0
        %1601 = vmatmul.mubr.bf16.gmra.mrb[0].mxu0 %v1493
        %v1602 = vpop.f32.mrb[0].mxu0
        %v1603 = vadd.f32 %v1311, %v1602
        %v1604 = vpop.f32.mrb[0].mxu0
        %v1605 = vpop.f32.mrb[0].mxu0
        %v1606 = vadd.f32 %v1314, %v1605
        %v1607 = vpop.f32.mrb[0].mxu0
        %1608 = vmatprep.mubr.bf16.mxu0 0
        %1609 = vmatmul.mubr.bf16.gmra.mrb[0].mxu0 %v1496
        %v1610 = vpop.f32.mrb[0].mxu0
        %v1611 = vadd.f32 %v1319, %v1610
        %v1612 = vpop.f32.mrb[0].mxu0
        %v1613 = vpop.f32.mrb[0].mxu0
        %v1614 = vadd.f32 %v1322, %v1613
        %v1615 = vpop.f32.mrb[0].mxu0
        %1616 = vmatprep.mubr.bf16.mxu0 0
        %1617 = vmatmul.mubr.bf16.gmra.mrb[0].mxu0 %v1499
        %v1618 = vpop.f32.mrb[0].mxu0
        %v1619 = vadd.f32 %v1327, %v1618
        %v1620 = vpop.f32.mrb[0].mxu0
        %v1621 = vpop.f32.mrb[0].mxu0
        %v1622 = vadd.f32 %v1330, %v1621
        %v1623 = vpop.f32.mrb[0].mxu0
        %1624 = vmatprep.mubr.bf16.mxu0 0
        %1625 = vmatmul.mubr.bf16.gmra.mrb[0].mxu0 %v1502
        %v1626 = vpop.f32.mrb[0].mxu0
        %v1627 = vadd.f32 %v1335, %v1626
        %v1628 = vpop.f32.mrb[0].mxu0
        %v1629 = vpop.f32.mrb[0].mxu0
        %v1630 = vadd.f32 %v1338, %v1629
        %v1631 = vpop.f32.mrb[0].mxu0
        %1632 = vmatprep.mubr.bf16.mxu0 0
        %1633 = vmatmul.mubr.bf16.gmra.mrb[0].mxu0 %v1505
        %v1634 = vpop.f32.mrb[0].mxu0
        %v1635 = vadd.f32 %v1343, %v1634
        %v1636 = vpop.f32.mrb[0].mxu0
        %v1637 = vpop.f32.mrb[0].mxu0
        %v1638 = vadd.f32 %v1346, %v1637
        %v1639 = vpop.f32.mrb[0].mxu0
        %1640 = vmatprep.mubr.bf16.mxu0 0
        %1641 = vmatmul.mubr.bf16.gmra.mrb[0].mxu0 %v1508
        %v1642 = vpop.f32.mrb[0].mxu0
        %v1643 = vadd.f32 %v1351, %v1642
        %v1644 = vpop.f32.mrb[0].mxu0
        %v1645 = vpop.f32.mrb[0].mxu0
        %v1646 = vadd.f32 %v1354, %v1645
        %v1647 = vpop.f32.mrb[0].mxu0
        %1648 = vmatprep.mubr.bf16.mxu0 0
        %1649 = vmatmul.mubr.bf16.gmra.mrb[0].mxu0 %v1511
        %v1650 = vpop.f32.mrb[0].mxu0
        %v1651 = vadd.f32 %v1359, %v1650
        %v1652 = vpop.f32.mrb[0].mxu0
        %v1653 = vpop.f32.mrb[0].mxu0
        %v1654 = vadd.f32 %v1362, %v1653
        %v1655 = vpop.f32.mrb[0].mxu0
        %1656 = vmatprep.mubr.bf16.mxu0 0
        %1657 = vmatmul.mubr.bf16.gmra.mrb[0].mxu0 %v1514
        %v1658 = vpop.f32.mrb[0].mxu0
        %v1659 = vadd.f32 %v1367, %v1658
        %v1660 = vpop.f32.mrb[0].mxu0
        %v1661 = vpop.f32.mrb[0].mxu0
        %v1662 = vadd.f32 %v1370, %v1661
        %v1663 = vpop.f32.mrb[0].mxu0
        %1664 = vmatprep.mubr.bf16.mxu0 0
        %1665 = vmatmul.mubr.bf16.gmra.mrb[0].mxu0 %v1517
        %v1666 = vpop.f32.mrb[0].mxu0
        %v1667 = vadd.f32 %v1375, %v1666
        %v1668 = vpop.f32.mrb[0].mxu0
        %v1669 = vpop.f32.mrb[0].mxu0
        %v1670 = vadd.f32 %v1378, %v1669
        %v1671 = vpop.f32.mrb[0].mxu0
        %1672 = vmatprep.mubr.bf16.mxu0 0
        %1673 = vmatmul.mubr.bf16.gmra.mrb[0].mxu0 %v1520
        %v1674 = vpop.f32.mrb[0].mxu0
        %v1675 = vadd.f32 %v1383, %v1674
        %v1676 = vpop.f32.mrb[0].mxu0
        %v1677 = vpop.f32.mrb[0].mxu0
        %v1678 = vadd.f32 %v1386, %v1677
        %v1679 = vpop.f32.mrb[0].mxu0
        %1680 = vmatprep.mubr.bf16.mxu0 0
        %1681 = vmatmul.mubr.bf16.gmra.mrb[0].mxu0 %v1523
        %v1682 = vpop.f32.mrb[0].mxu0
        %v1683 = vadd.f32 %v1391, %v1682
        %v1684 = vpop.f32.mrb[0].mxu0
        %v1685 = vpop.f32.mrb[0].mxu0
        %v1686 = vadd.f32 %v1394, %v1685
        %v1687 = vpop.f32.mrb[0].mxu0
        %1688 = vdwg.mxu0
        %v1689 = vld [vmem:[%s318] sm:$0xe]
        %v1690 = vsel %vm771, 1, 0
        %v1691 = vsel %vm772, 1, 0
        %v1692 = vsel %vm773, 1, 0
        %v1693 = vsel %vm774, 1, 0
        %v1694 = vsel %vm775, 1, 0
        %v1695 = vsel %vm776, 1, 0
        %v1696 = vsel %vm777, 1, 0
        %v1697 = vsel %vm778, 1, 0
        %v1698 = vsel %vm779, 1, 0
        %v1699 = vsel %vm780, 1, 0
        %v1700 = vsel %vm781, 1, 0
        %v1701 = vsel %vm782, 1, 0
        %v1702 = vsel %vm783, 1, 0
        %v1703 = vsel %vm784, 1, 0
        %v1704 = vsel %vm785, 1, 0
        %v1705 = vsel %vm786, 1, 0
        %v1706 = vsel %vm787, 1, 0
        %v1707 = vsel %vm788, 1, 0
        %v1708 = vsel %vm789, 1, 0
        %v1709 = vsel %vm790, 1, 0
        %v1710 = vsel %vm791, 1, 0
        %v1711 = vsel %vm792, 1, 0
        %v1712 = vsel %vm793, 1, 0
        %v1713 = vsel %vm794, 1, 0
        %v1714 = vsel %vm795, 1, 0
        %v1715 = vsel %vm796, 1, 0
        %v1716 = vsel %vm797, 1, 0
        %v1717 = vsel %vm798, 1, 0
        %v1718 = vsel %vm799, 1, 0
        %v1719 = vsel %vm800, 1, 0
        %v1720 = vsel %vm801, 1, 0
        %v1721 = vsel %vm802, 1, 0
        %vm1722 = vcmp.eq.s32.totalorder %v1690, 1
        %vm1723 = vcmp.eq.s32.totalorder %v1691, 1
        %vm1724 = vcmp.eq.s32.totalorder %v1692, 1
        %vm1725 = vcmp.eq.s32.totalorder %v1693, 1
        %vm1726 = vcmp.eq.s32.totalorder %v1694, 1
        %vm1727 = vcmp.eq.s32.totalorder %v1695, 1
        %vm1728 = vcmp.eq.s32.totalorder %v1696, 1
        %vm1729 = vcmp.eq.s32.totalorder %v1697, 1
        %vm1730 = vcmp.eq.s32.totalorder %v1698, 1
        %vm1731 = vcmp.eq.s32.totalorder %v1699, 1
        %vm1732 = vcmp.eq.s32.totalorder %v1700, 1
        %vm1733 = vcmp.eq.s32.totalorder %v1701, 1
        %vm1734 = vcmp.eq.s32.totalorder %v1702, 1
        %vm1735 = vcmp.eq.s32.totalorder %v1703, 1
        %vm1736 = vcmp.eq.s32.totalorder %v1704, 1
        %vm1737 = vcmp.eq.s32.totalorder %v1705, 1
        %vm1738 = vcmp.eq.s32.totalorder %v1706, 1
        %vm1739 = vcmp.eq.s32.totalorder %v1707, 1
        %vm1740 = vcmp.eq.s32.totalorder %v1708, 1
        %vm1741 = vcmp.eq.s32.totalorder %v1709, 1
        %vm1742 = vcmp.eq.s32.totalorder %v1710, 1
        %vm1743 = vcmp.eq.s32.totalorder %v1711, 1
        %vm1744 = vcmp.eq.s32.totalorder %v1712, 1
        %vm1745 = vcmp.eq.s32.totalorder %v1713, 1
        %vm1746 = vcmp.eq.s32.totalorder %v1714, 1
        %vm1747 = vcmp.eq.s32.totalorder %v1715, 1
        %vm1748 = vcmp.eq.s32.totalorder %v1716, 1
        %vm1749 = vcmp.eq.s32.totalorder %v1717, 1
        %vm1750 = vcmp.eq.s32.totalorder %v1718, 1
        %vm1751 = vcmp.eq.s32.totalorder %v1719, 1
        %vm1752 = vcmp.eq.s32.totalorder %v1720, 1
        %vm1753 = vcmp.eq.s32.totalorder %v1721, 1
        %vm1754 = vmpackc.low %vm1722, %vm1722
        %vm1755 = vmpackc.low %vm1723, %vm1723
        %vm1756 = vmpackc.low %vm1724, %vm1724
        %vm1757 = vmpackc.low %vm1725, %vm1725
        %vm1758 = vmpackc.low %vm1726, %vm1726
        %vm1759 = vmpackc.low %vm1727, %vm1727
        %vm1760 = vmpackc.low %vm1728, %vm1728
        %vm1761 = vmpackc.low %vm1729, %vm1729
        %vm1762 = vmpackc.low %vm1730, %vm1730
        %vm1763 = vmpackc.low %vm1731, %vm1731
        %vm1764 = vmpackc.low %vm1732, %vm1732
        %vm1765 = vmpackc.low %vm1733, %vm1733
        %vm1766 = vmpackc.low %vm1734, %vm1734
        %vm1767 = vmpackc.low %vm1735, %vm1735
        %vm1768 = vmpackc.low %vm1736, %vm1736
        %vm1769 = vmpackc.low %vm1737, %vm1737
        %vm1770 = vmpackc.low %vm1738, %vm1738
        %vm1771 = vmpackc.low %vm1739, %vm1739
        %vm1772 = vmpackc.low %vm1740, %vm1740
        %vm1773 = vmpackc.low %vm1741, %vm1741
        %vm1774 = vmpackc.low %vm1742, %vm1742
        %vm1775 = vmpackc.low %vm1743, %vm1743
        %vm1776 = vmpackc.low %vm1744, %vm1744
        %vm1777 = vmpackc.low %vm1745, %vm1745
        %vm1778 = vmpackc.low %vm1746, %vm1746
        %vm1779 = vmpackc.low %vm1747, %vm1747
        %vm1780 = vmpackc.low %vm1748, %vm1748
        %vm1781 = vmpackc.low %vm1749, %vm1749
        %vm1782 = vmpackc.low %vm1750, %vm1750
        %vm1783 = vmpackc.low %vm1751, %vm1751
        %vm1784 = vmpackc.low %vm1752, %vm1752
        %vm1785 = vmpackc.low %vm1753, %vm1753
        %v1786 = vsel %vm1754, 65537, 0
        %v1787 = vsel %vm1755, 65537, 0
        %v1788 = vsel %vm1756, 65537, 0
        %v1789 = vsel %vm1757, 65537, 0
        %v1790 = vsel %vm1758, 65537, 0
        %v1791 = vsel %vm1759, 65537, 0
        %v1792 = vsel %vm1760, 65537, 0
        %v1793 = vsel %vm1761, 65537, 0
        %v1794 = vsel %vm1762, 65537, 0
        %v1795 = vsel %vm1763, 65537, 0
        %v1796 = vsel %vm1764, 65537, 0
        %v1797 = vsel %vm1765, 65537, 0
        %v1798 = vsel %vm1766, 65537, 0
        %v1799 = vsel %vm1767, 65537, 0
        %v1800 = vsel %vm1768, 65537, 0
        %v1801 = vsel %vm1769, 65537, 0
        %v1802 = vsel %vm1770, 65537, 0
        %v1803 = vsel %vm1771, 65537, 0
        %v1804 = vsel %vm1772, 65537, 0
        %v1805 = vsel %vm1773, 65537, 0
        %v1806 = vsel %vm1774, 65537, 0
        %v1807 = vsel %vm1775, 65537, 0
        %v1808 = vsel %vm1776, 65537, 0
        %v1809 = vsel %vm1777, 65537, 0
        %v1810 = vsel %vm1778, 65537, 0
        %v1811 = vsel %vm1779, 65537, 0
        %v1812 = vsel %vm1780, 65537, 0
        %v1813 = vsel %vm1781, 65537, 0
        %v1814 = vsel %vm1782, 65537, 0
        %v1815 = vsel %vm1783, 65537, 0
        %v1816 = vsel %vm1784, 65537, 0
        %v1817 = vsel %vm1785, 65537, 0
        %vm1818 = vcmask 1040384
        %vm1819 = vcmask 1044484
        %vm1820 = vmor %vm1818, %vm1819
        %v1821 = vrot.slane %v1786, 7
        %v1822 = vrot.slane %v1821, 4
        %v1823 = vrot.slane %v1787, 7
        %v1824 = vsel %vm1820, %v1822, %v1823
        %v1825 = vrot.slane %v1823, 4
        %v1826 = vrot.slane %v1788, 7
        %v1827 = vsel %vm1820, %v1825, %v1826
        %v1828 = vrot.slane %v1826, 4
        %v1829 = vrot.slane %v1789, 7
        %v1830 = vsel %vm1820, %v1828, %v1829
        %v1831 = vrot.slane %v1829, 4
        %v1832 = vrot.slane %v1790, 7
        %v1833 = vsel %vm1820, %v1831, %v1832
        %v1834 = vrot.slane %v1832, 4
        %v1835 = vrot.slane %v1791, 7
        %v1836 = vsel %vm1820, %v1834, %v1835
        %v1837 = vrot.slane %v1835, 4
        %v1838 = vrot.slane %v1792, 7
        %v1839 = vsel %vm1820, %v1837, %v1838
        %v1840 = vrot.slane %v1838, 4
        %v1841 = vrot.slane %v1793, 7
        %v1842 = vsel %vm1820, %v1840, %v1841
        %v1843 = vrot.slane %v1841, 4
        %v1844 = vrot.slane %v1794, 7
        %v1845 = vsel %vm1820, %v1843, %v1844
        %v1846 = vrot.slane %v1844, 4
        %v1847 = vrot.slane %v1795, 7
        %v1848 = vsel %vm1820, %v1846, %v1847
        %v1849 = vrot.slane %v1847, 4
        %v1850 = vrot.slane %v1796, 7
        %v1851 = vsel %vm1820, %v1849, %v1850
        %v1852 = vrot.slane %v1850, 4
        %v1853 = vrot.slane %v1797, 7
        %v1854 = vsel %vm1820, %v1852, %v1853
        %v1855 = vrot.slane %v1853, 4
        %v1856 = vrot.slane %v1798, 7
        %v1857 = vsel %vm1820, %v1855, %v1856
        %v1858 = vrot.slane %v1856, 4
        %v1859 = vrot.slane %v1799, 7
        %v1860 = vsel %vm1820, %v1858, %v1859
        %v1861 = vrot.slane %v1859, 4
        %v1862 = vrot.slane %v1800, 7
        %v1863 = vsel %vm1820, %v1861, %v1862
        %v1864 = vrot.slane %v1862, 4
        %v1865 = vrot.slane %v1801, 7
        %v1866 = vsel %vm1820, %v1864, %v1865
        %v1867 = vrot.slane %v1865, 4
        %v1868 = vrot.slane %v1802, 7
        %v1869 = vsel %vm1820, %v1867, %v1868
        %v1870 = vrot.slane %v1868, 4
        %v1871 = vrot.slane %v1803, 7
        %v1872 = vsel %vm1820, %v1870, %v1871
        %v1873 = vrot.slane %v1871, 4
        %v1874 = vrot.slane %v1804, 7
        %v1875 = vsel %vm1820, %v1873, %v1874
        %v1876 = vrot.slane %v1874, 4
        %v1877 = vrot.slane %v1805, 7
        %v1878 = vsel %vm1820, %v1876, %v1877
        %v1879 = vrot.slane %v1877, 4
        %v1880 = vrot.slane %v1806, 7
        %v1881 = vsel %vm1820, %v1879, %v1880
        %v1882 = vrot.slane %v1880, 4
        %v1883 = vrot.slane %v1807, 7
        %v1884 = vsel %vm1820, %v1882, %v1883
        %v1885 = vrot.slane %v1883, 4
        %v1886 = vrot.slane %v1808, 7
        %v1887 = vsel %vm1820, %v1885, %v1886
        %v1888 = vrot.slane %v1886, 4
        %v1889 = vrot.slane %v1809, 7
        %v1890 = vsel %vm1820, %v1888, %v1889
        %v1891 = vrot.slane %v1889, 4
        %v1892 = vrot.slane %v1810, 7
        %v1893 = vsel %vm1820, %v1891, %v1892
        %v1894 = vrot.slane %v1892, 4
        %v1895 = vrot.slane %v1811, 7
        %v1896 = vsel %vm1820, %v1894, %v1895
        %v1897 = vrot.slane %v1895, 4
        %v1898 = vrot.slane %v1812, 7
        %v1899 = vsel %vm1820, %v1897, %v1898
        %v1900 = vrot.slane %v1898, 4
        %v1901 = vrot.slane %v1813, 7
        %v1902 = vsel %vm1820, %v1900, %v1901
        %v1903 = vrot.slane %v1901, 4
        %v1904 = vrot.slane %v1814, 7
        %v1905 = vsel %vm1820, %v1903, %v1904
        %v1906 = vrot.slane %v1904, 4
        %v1907 = vrot.slane %v1815, 7
        %v1908 = vsel %vm1820, %v1906, %v1907
        %v1909 = vrot.slane %v1907, 4
        %v1910 = vrot.slane %v1816, 7
        %v1911 = vsel %vm1820, %v1909, %v1910
        %v1912 = vrot.slane %v1910, 4
        %v1913 = vrot.slane %v1817, 7
        %v1914 = vsel %vm1820, %v1912, %v1913
        %v1915 = vrot.slane %v1913, 4
        %vm1916 = vcmp.ne.s16.totalorder %v1821, 0
        %vm1917 = vcmp.ne.s16.totalorder %v1824, 0
        %vm1918 = vcmp.ne.s16.totalorder %v1827, 0
        %vm1919 = vcmp.ne.s16.totalorder %v1830, 0
        %vm1920 = vcmp.ne.s16.totalorder %v1833, 0
        %vm1921 = vcmp.ne.s16.totalorder %v1836, 0
        %vm1922 = vcmp.ne.s16.totalorder %v1839, 0
        %vm1923 = vcmp.ne.s16.totalorder %v1842, 0
        %vm1924 = vcmp.ne.s16.totalorder %v1845, 0
        %vm1925 = vcmp.ne.s16.totalorder %v1848, 0
        %vm1926 = vcmp.ne.s16.totalorder %v1851, 0
        %vm1927 = vcmp.ne.s16.totalorder %v1854, 0
        %vm1928 = vcmp.ne.s16.totalorder %v1857, 0
        %vm1929 = vcmp.ne.s16.totalorder %v1860, 0
        %vm1930 = vcmp.ne.s16.totalorder %v1863, 0
        %vm1931 = vcmp.ne.s16.totalorder %v1866, 0
        %vm1932 = vcmp.ne.s16.totalorder %v1869, 0
        %vm1933 = vcmp.ne.s16.totalorder %v1872, 0
        %vm1934 = vcmp.ne.s16.totalorder %v1875, 0
        %vm1935 = vcmp.ne.s16.totalorder %v1878, 0
        %vm1936 = vcmp.ne.s16.totalorder %v1881, 0
        %vm1937 = vcmp.ne.s16.totalorder %v1884, 0
        %vm1938 = vcmp.ne.s16.totalorder %v1887, 0
        %vm1939 = vcmp.ne.s16.totalorder %v1890, 0
        %vm1940 = vcmp.ne.s16.totalorder %v1893, 0
        %vm1941 = vcmp.ne.s16.totalorder %v1896, 0
        %vm1942 = vcmp.ne.s16.totalorder %v1899, 0
        %vm1943 = vcmp.ne.s16.totalorder %v1902, 0
        %vm1944 = vcmp.ne.s16.totalorder %v1905, 0
        %vm1945 = vcmp.ne.s16.totalorder %v1908, 0
        %vm1946 = vcmp.ne.s16.totalorder %v1911, 0
        %vm1947 = vcmp.ne.s16.totalorder %v1914, 0
        %vm1948 = vcmp.ne.s16.totalorder %v1915, 0
        %v1949 = vsel %vm1916, %v1689, 0
        %v1950 = vsel %vm1917, %v804, 0
        %v1951 = vsel %vm1918, %v805, 0
        %v1952 = vsel %vm1919, %v806, 0
        %v1953 = vsel %vm1920, %v807, 0
        %v1954 = vsel %vm1921, %v808, 0
        %v1955 = vsel %vm1922, %v809, 0
        %v1956 = vsel %vm1923, %v810, 0
        %v1957 = vsel %vm1924, %v811, 0
        %v1958 = vsel %vm1925, %v812, 0
        %v1959 = vsel %vm1926, %v813, 0
        %v1960 = vsel %vm1927, %v814, 0
        %v1961 = vsel %vm1928, %v815, 0
        %v1962 = vsel %vm1929, %v816, 0
        %v1963 = vsel %vm1930, %v817, 0
        %v1964 = vsel %vm1931, %v818, 0
        %v1965 = vsel %vm1932, %v819, 0
        %v1966 = vsel %vm1933, %v820, 0
        %v1967 = vsel %vm1934, %v821, 0
        %v1968 = vsel %vm1935, %v822, 0
        %v1969 = vsel %vm1936, %v823, 0
        %v1970 = vsel %vm1937, %v824, 0
        %v1971 = vsel %vm1938, %v825, 0
        %v1972 = vsel %vm1939, %v826, 0
        %v1973 = vsel %vm1940, %v827, 0
        %v1974 = vsel %vm1941, %v828, 0
        %v1975 = vsel %vm1942, %v829, 0
        %v1976 = vsel %vm1943, %v830, 0
        %v1977 = vsel %vm1944, %v831, 0
        %v1978 = vsel %vm1945, %v832, 0
        %v1979 = vsel %vm1946, %v833, 0
        %v1980 = vsel %vm1947, %v834, 0
        %v1981 = vsel %vm1948, %v964, 0
        %s1982 = scalar_lea.vmem %s1, 4
        %v1983 = vld [vmem:[%s1982] sm:$0x3]
        %v2017 = vunpack.c.l.b16 %v1949
        %v2018 = vunpack.c.l.b16 %v1950
        %v2019 = vunpack.c.l.b16 %v1951
        %v2020 = vunpack.c.l.b16 %v1952
        %v2021 = vunpack.c.l.b16 %v1953
        %v2022 = vunpack.c.l.b16 %v1954
        %v2023 = vunpack.c.l.b16 %v1955
        %v2024 = vunpack.c.l.b16 %v1956
        %v2025 = vunpack.c.l.b16 %v1957
        %v2026 = vunpack.c.l.b16 %v1958
        %v2027 = vunpack.c.l.b16 %v1959
        %v2028 = vunpack.c.l.b16 %v1960
        %v2029 = vunpack.c.l.b16 %v1961
        %v2030 = vunpack.c.l.b16 %v1962
        %v2031 = vunpack.c.l.b16 %v1963
        %v2032 = vunpack.c.l.b16 %v1964
        %v2033 = vunpack.c.l.b16 %v1965
        %v2034 = vunpack.c.l.b16 %v1966
        %v2035 = vunpack.c.l.b16 %v1967
        %v2036 = vunpack.c.l.b16 %v1968
        %v2037 = vunpack.c.l.b16 %v1969
        %v2038 = vunpack.c.l.b16 %v1970
        %v2039 = vunpack.c.l.b16 %v1971
        %v2040 = vunpack.c.l.b16 %v1972
        %v2041 = vunpack.c.l.b16 %v1973
        %v2042 = vunpack.c.l.b16 %v1974
        %v2043 = vunpack.c.l.b16 %v1975
        %v2044 = vunpack.c.l.b16 %v1976
        %v2045 = vunpack.c.l.b16 %v1977
        %v2046 = vunpack.c.l.b16 %v1978
        %v2047 = vunpack.c.l.b16 %v1979
        %v2048 = vunpack.c.l.b16 %v1980
        %v2049 = vunpack.c.l.b16 %v1981
        %v2050 = vpack.c.b16 %v2018, %v2017
        %v2051 = vpack.c.b16 %v2020, %v2019
        %v2052 = vpack.c.b16 %v2022, %v2021
        %v2053 = vpack.c.b16 %v2024, %v2023
        %v2054 = vpack.c.b16 %v2026, %v2025
        %v2055 = vpack.c.b16 %v2028, %v2027
        %v2056 = vpack.c.b16 %v2030, %v2029
        %v2057 = vpack.c.b16 %v2032, %v2031
        %v2058 = vpack.c.b16 %v2034, %v2033
        %v2059 = vpack.c.b16 %v2036, %v2035
        %v2060 = vpack.c.b16 %v2038, %v2037
        %v2061 = vpack.c.b16 %v2040, %v2039
        %v2062 = vpack.c.b16 %v2042, %v2041
        %v2063 = vpack.c.b16 %v2044, %v2043
        %v2064 = vpack.c.b16 %v2046, %v2045
        %v2065 = vpack.c.b16 %v2048, %v2047
        %v2066 = vpack.c.b16 %v2049, %v2049
        %vm2067 = vcmask 1046528
        %v2068 = vrot.slane %v2050, 1
        %v2069 = vrot.slane %v2051, 1
        %v2070 = vsel %vm2067, %v2068, %v2069
        %v2071 = vrot.slane %v2052, 1
        %v2072 = vsel %vm2067, %v2069, %v2071
        %v2073 = vrot.slane %v2053, 1
        %v2074 = vsel %vm2067, %v2071, %v2073
        %v2075 = vrot.slane %v2054, 1
        %v2076 = vsel %vm2067, %v2073, %v2075
        %v2077 = vrot.slane %v2055, 1
        %v2078 = vsel %vm2067, %v2075, %v2077
        %v2079 = vrot.slane %v2056, 1
        %v2080 = vsel %vm2067, %v2077, %v2079
        %v2081 = vrot.slane %v2057, 1
        %v2082 = vsel %vm2067, %v2079, %v2081
        %v2083 = vrot.slane %v2058, 1
        %v2084 = vsel %vm2067, %v2081, %v2083
        %v2085 = vrot.slane %v2059, 1
        %v2086 = vsel %vm2067, %v2083, %v2085
        %v2087 = vrot.slane %v2060, 1
        %v2088 = vsel %vm2067, %v2085, %v2087
        %v2089 = vrot.slane %v2061, 1
        %v2090 = vsel %vm2067, %v2087, %v2089
        %v2091 = vrot.slane %v2062, 1
        %v2092 = vsel %vm2067, %v2089, %v2091
        %v2093 = vrot.slane %v2063, 1
        %v2094 = vsel %vm2067, %v2091, %v2093
        %v2095 = vrot.slane %v2064, 1
        %v2096 = vsel %vm2067, %v2093, %v2095
        %v2097 = vrot.slane %v2065, 1
        %v2098 = vsel %vm2067, %v2095, %v2097
        %v2099 = vrot.slane %v2066, 1
        %v2100 = vsel %vm2067, %v2097, %v2099
        %v2102 = vsel %vm1183, %v2070, 0
        %v2105 = vsel %vm1183, %v2072, 0
        %v2108 = vsel %vm1183, %v2074, 0
        %v2111 = vsel %vm1183, %v2076, 0
        %v2114 = vsel %vm1183, %v2078, 0
        %v2117 = vsel %vm1183, %v2080, 0
        %v2120 = vsel %vm1183, %v2082, 0
        %v2123 = vsel %vm1183, %v2084, 0
        %v2126 = vsel %vm1183, %v2086, 0
        %v2129 = vsel %vm1183, %v2088, 0
        %v2132 = vsel %vm1183, %v2090, 0
        %v2135 = vsel %vm1183, %v2092, 0
        %v2138 = vsel %vm1183, %v2094, 0
        %v2141 = vsel %vm1183, %v2096, 0
        %v2144 = vsel %vm1183, %v2098, 0
        %v2147 = vsel %vm1183, %v2100, 0
        %v2150 = vsel %vm1232, %v1983, 0
        %2152 = vmatprep.subr.bf16.mxu0 0
        %2153 = vmatpush1.bf16.msra.mxu0 %v2150
        %2154 = vmatprep.subr.bf16.mxu0 0
        %2155 = vmatpush1.bf16.msra.mxu0 0
        %2156 = vmatprep.subr.bf16.mxu0 0
        %2157 = vmatpush1.bf16.msra.mxu0 0
        %2158 = vmatprep.subr.bf16.mxu0 0
        %2159 = vmatpush1.bf16.msra.mxu0 0
        %2160 = vmatprep.subr.bf16.mxu0 0
        %2161 = vmatpush1.bf16.msra.mxu0 0
        %2162 = vmatprep.subr.bf16.mxu0 0
        %2163 = vmatpush1.bf16.msra.mxu0 0
        %2164 = vmatprep.subr.bf16.mxu0 0
        %2165 = vmatpush1.bf16.msra.mxu0 0
        %2166 = vmatprep.subr.bf16.mxu0 0
        %2167 = vmatpush1.bf16.msra.mxu0 0
        %2168 = vmatprep.subr.bf16.mxu0 0
        %2169 = vmatpush1.bf16.msra.mxu0 0
        %2170 = vmatprep.subr.bf16.mxu0 0
        %2171 = vmatpush1.bf16.msra.mxu0 0
        %2172 = vmatprep.subr.bf16.mxu0 0
        %2173 = vmatpush1.bf16.msra.mxu0 0
        %2174 = vmatprep.subr.bf16.mxu0 0
        %2175 = vmatpush1.bf16.msra.mxu0 0
        %2176 = vmatprep.subr.bf16.mxu0 0
        %2177 = vmatpush1.bf16.msra.mxu0 0
        %2178 = vmatprep.subr.bf16.mxu0 0
        %2179 = vmatpush1.bf16.msra.mxu0 0
        %2180 = vmatprep.subr.bf16.mxu0 0
        %2181 = vmatpush1.bf16.msra.mxu0 0
        %2182 = vmatprep.subr.bf16.mxu0 0
        %2183 = vmatpush1.bf16.msra.mxu0 0
        %2184 = vmatprep.mubr.bf16.mxu0 0
        %2185 = vmatmul.mubr.bf16.gmra.mrb[0].mxu0 %v2102
        %v2186 = vpop.f32.mrb[0].mxu0
        %v2187 = vadd.f32 0.0, %v2186
        %v2188 = vpop.f32.mrb[0].mxu0
        %v2189 = vpop.f32.mrb[0].mxu0
        %v2190 = vadd.f32 0.0, %v2189
        %v2191 = vpop.f32.mrb[0].mxu0
        %2192 = vmatprep.mubr.bf16.mxu0 0
        %2193 = vmatmul.mubr.bf16.gmra.mrb[0].mxu0 %v2105
        %v2194 = vpop.f32.mrb[0].mxu0
        %v2195 = vadd.f32 0.0, %v2194
        %v2196 = vpop.f32.mrb[0].mxu0
        %v2197 = vpop.f32.mrb[0].mxu0
        %v2198 = vadd.f32 0.0, %v2197
        %v2199 = vpop.f32.mrb[0].mxu0
        %2200 = vmatprep.mubr.bf16.mxu0 0
        %2201 = vmatmul.mubr.bf16.gmra.mrb[0].mxu0 %v2108
        %v2202 = vpop.f32.mrb[0].mxu0
        %v2203 = vadd.f32 0.0, %v2202
        %v2204 = vpop.f32.mrb[0].mxu0
        %v2205 = vpop.f32.mrb[0].mxu0
        %v2206 = vadd.f32 0.0, %v2205
        %v2207 = vpop.f32.mrb[0].mxu0
        %2208 = vmatprep.mubr.bf16.mxu0 0
        %2209 = vmatmul.mubr.bf16.gmra.mrb[0].mxu0 %v2111
        %v2210 = vpop.f32.mrb[0].mxu0
        %v2211 = vadd.f32 0.0, %v2210
        %v2212 = vpop.f32.mrb[0].mxu0
        %v2213 = vpop.f32.mrb[0].mxu0
        %v2214 = vadd.f32 0.0, %v2213
        %v2215 = vpop.f32.mrb[0].mxu0
        %2216 = vmatprep.mubr.bf16.mxu0 0
        %2217 = vmatmul.mubr.bf16.gmra.mrb[0].mxu0 %v2114
        %v2218 = vpop.f32.mrb[0].mxu0
        %v2219 = vadd.f32 0.0, %v2218
        %v2220 = vpop.f32.mrb[0].mxu0
        %v2221 = vpop.f32.mrb[0].mxu0
        %v2222 = vadd.f32 0.0, %v2221
        %v2223 = vpop.f32.mrb[0].mxu0
        %2224 = vmatprep.mubr.bf16.mxu0 0
        %2225 = vmatmul.mubr.bf16.gmra.mrb[0].mxu0 %v2117
        %v2226 = vpop.f32.mrb[0].mxu0
        %v2227 = vadd.f32 0.0, %v2226
        %v2228 = vpop.f32.mrb[0].mxu0
        %v2229 = vpop.f32.mrb[0].mxu0
        %v2230 = vadd.f32 0.0, %v2229
        %v2231 = vpop.f32.mrb[0].mxu0
        %2232 = vmatprep.mubr.bf16.mxu0 0
        %2233 = vmatmul.mubr.bf16.gmra.mrb[0].mxu0 %v2120
        %v2234 = vpop.f32.mrb[0].mxu0
        %v2235 = vadd.f32 0.0, %v2234
        %v2236 = vpop.f32.mrb[0].mxu0
        %v2237 = vpop.f32.mrb[0].mxu0
        %v2238 = vadd.f32 0.0, %v2237
        %v2239 = vpop.f32.mrb[0].mxu0
        %2240 = vmatprep.mubr.bf16.mxu0 0
        %2241 = vmatmul.mubr.bf16.gmra.mrb[0].mxu0 %v2123
        %v2242 = vpop.f32.mrb[0].mxu0
        %v2243 = vadd.f32 0.0, %v2242
        %v2244 = vpop.f32.mrb[0].mxu0
        %v2245 = vpop.f32.mrb[0].mxu0
        %v2246 = vadd.f32 0.0, %v2245
        %v2247 = vpop.f32.mrb[0].mxu0
        %2248 = vmatprep.mubr.bf16.mxu0 0
        %2249 = vmatmul.mubr.bf16.gmra.mrb[0].mxu0 %v2126
        %v2250 = vpop.f32.mrb[0].mxu0
        %v2251 = vadd.f32 0.0, %v2250
        %v2252 = vpop.f32.mrb[0].mxu0
        %v2253 = vpop.f32.mrb[0].mxu0
        %v2254 = vadd.f32 0.0, %v2253
        %v2255 = vpop.f32.mrb[0].mxu0
        %2256 = vmatprep.mubr.bf16.mxu0 0
        %2257 = vmatmul.mubr.bf16.gmra.mrb[0].mxu0 %v2129
        %v2258 = vpop.f32.mrb[0].mxu0
        %v2259 = vadd.f32 0.0, %v2258
        %v2260 = vpop.f32.mrb[0].mxu0
        %v2261 = vpop.f32.mrb[0].mxu0
        %v2262 = vadd.f32 0.0, %v2261
        %v2263 = vpop.f32.mrb[0].mxu0
        %2264 = vmatprep.mubr.bf16.mxu0 0
        %2265 = vmatmul.mubr.bf16.gmra.mrb[0].mxu0 %v2132
        %v2266 = vpop.f32.mrb[0].mxu0
        %v2267 = vadd.f32 0.0, %v2266
        %v2268 = vpop.f32.mrb[0].mxu0
        %v2269 = vpop.f32.mrb[0].mxu0
        %v2270 = vadd.f32 0.0, %v2269
        %v2271 = vpop.f32.mrb[0].mxu0
        %2272 = vmatprep.mubr.bf16.mxu0 0
        %2273 = vmatmul.mubr.bf16.gmra.mrb[0].mxu0 %v2135
        %v2274 = vpop.f32.mrb[0].mxu0
        %v2275 = vadd.f32 0.0, %v2274
        %v2276 = vpop.f32.mrb[0].mxu0
        %v2277 = vpop.f32.mrb[0].mxu0
        %v2278 = vadd.f32 0.0, %v2277
        %v2279 = vpop.f32.mrb[0].mxu0
        %2280 = vmatprep.mubr.bf16.mxu0 0
        %2281 = vmatmul.mubr.bf16.gmra.mrb[0].mxu0 %v2138
        %v2282 = vpop.f32.mrb[0].mxu0
        %v2283 = vadd.f32 0.0, %v2282
        %v2284 = vpop.f32.mrb[0].mxu0
        %v2285 = vpop.f32.mrb[0].mxu0
        %v2286 = vadd.f32 0.0, %v2285
        %v2287 = vpop.f32.mrb[0].mxu0
        %2288 = vmatprep.mubr.bf16.mxu0 0
        %2289 = vmatmul.mubr.bf16.gmra.mrb[0].mxu0 %v2141
        %v2290 = vpop.f32.mrb[0].mxu0
        %v2291 = vadd.f32 0.0, %v2290
        %v2292 = vpop.f32.mrb[0].mxu0
        %v2293 = vpop.f32.mrb[0].mxu0
        %v2294 = vadd.f32 0.0, %v2293
        %v2295 = vpop.f32.mrb[0].mxu0
        %2296 = vmatprep.mubr.bf16.mxu0 0
        %2297 = vmatmul.mubr.bf16.gmra.mrb[0].mxu0 %v2144
        %v2298 = vpop.f32.mrb[0].mxu0
        %v2299 = vadd.f32 0.0, %v2298
        %v2300 = vpop.f32.mrb[0].mxu0
        %v2301 = vpop.f32.mrb[0].mxu0
        %v2302 = vadd.f32 0.0, %v2301
        %v2303 = vpop.f32.mrb[0].mxu0
        %2304 = vmatprep.mubr.bf16.mxu0 0
        %2305 = vmatmul.mubr.bf16.gmra.mrb[0].mxu0 %v2147
        %v2306 = vpop.f32.mrb[0].mxu0
        %v2307 = vadd.f32 0.0, %v2306
        %v2308 = vpop.f32.mrb[0].mxu0
        %v2309 = vpop.f32.mrb[0].mxu0
        %v2310 = vadd.f32 0.0, %v2309
        %v2311 = vpop.f32.mrb[0].mxu0
        %2312 = vdwg.mxu0
        %v2313 = vadd.f32 %v1563, %v2187
        %v2314 = vadd.f32 %v1566, %v2190
        %v2315 = vadd.f32 %v1571, %v2195
        %v2316 = vadd.f32 %v1574, %v2198
        %v2317 = vadd.f32 %v1579, %v2203
        %v2318 = vadd.f32 %v1582, %v2206
        %v2319 = vadd.f32 %v1587, %v2211
        %v2320 = vadd.f32 %v1590, %v2214
        %v2321 = vadd.f32 %v1595, %v2219
        %v2322 = vadd.f32 %v1598, %v2222
        %v2323 = vadd.f32 %v1603, %v2227
        %v2324 = vadd.f32 %v1606, %v2230
        %v2325 = vadd.f32 %v1611, %v2235
        %v2326 = vadd.f32 %v1614, %v2238
        %v2327 = vadd.f32 %v1619, %v2243
        %v2328 = vadd.f32 %v1622, %v2246
        %v2329 = vadd.f32 %v1627, %v2251
        %v2330 = vadd.f32 %v1630, %v2254
        %v2331 = vadd.f32 %v1635, %v2259
        %v2332 = vadd.f32 %v1638, %v2262
        %v2333 = vadd.f32 %v1643, %v2267
        %v2334 = vadd.f32 %v1646, %v2270
        %v2335 = vadd.f32 %v1651, %v2275
        %v2336 = vadd.f32 %v1654, %v2278
        %v2337 = vadd.f32 %v1659, %v2283
        %v2338 = vadd.f32 %v1662, %v2286
        %v2339 = vadd.f32 %v1667, %v2291
        %v2340 = vadd.f32 %v1670, %v2294
        %v2341 = vadd.f32 %v1675, %v2299
        %v2342 = vadd.f32 %v1678, %v2302
        %v2343 = vadd.f32 %v1683, %v2307
        %v2344 = vadd.f32 %v1686, %v2310
        %v2345 = vld [vmem:[%s318 + $0x8] sm:$0xf]
        %v2346 = vld [vmem:[%s318 + $0xc] sm:$0xf]
        %v2347 = vld [vmem:[%s318 + $0x10] sm:$0xf]
        %v2348 = vld [vmem:[%s318 + $0x14] sm:$0xf]
        %v2349 = vld [vmem:[%s318 + $0x18] sm:$0xf]
        %v2350 = vld [vmem:[%s318 + $0x1c] sm:$0xf]
        %v2351 = vld [vmem:[%s318 + $0x20] sm:$0xf]
        %v2352 = vld [vmem:[%s318 + $0x24] sm:$0xf]
        %v2353 = vld [vmem:[%s318 + $0x28] sm:$0xf]
        %v2354 = vld [vmem:[%s318 + $0x2c] sm:$0xf]
        %v2355 = vld [vmem:[%s318 + $0x30] sm:$0xf]
        %v2356 = vld [vmem:[%s318 + $0x34] sm:$0xf]
        %v2357 = vld [vmem:[%s318 + $0x38] sm:$0xf]
        %v2358 = vld [vmem:[%s318 + $0x3c] sm:$0xf]
        %v2359 = vld [vmem:[%s318 + $0x40] sm:$0xf]
        %v2360 = vld [vmem:[%s318 + $0x44] sm:$0xf]
        %v2361 = vld [vmem:[%s318 + $0x48] sm:$0xf]
        %v2362 = vld [vmem:[%s318 + $0x4c] sm:$0xf]
        %v2363 = vld [vmem:[%s318 + $0x50] sm:$0xf]
        %v2364 = vld [vmem:[%s318 + $0x54] sm:$0xf]
        %v2365 = vld [vmem:[%s318 + $0x58] sm:$0xf]
        %v2366 = vld [vmem:[%s318 + $0x5c] sm:$0xf]
        %v2367 = vld [vmem:[%s318 + $0x60] sm:$0xf]
        %v2368 = vld [vmem:[%s318 + $0x64] sm:$0xf]
        %v2369 = vld [vmem:[%s318 + $0x68] sm:$0xf]
        %v2370 = vld [vmem:[%s318 + $0x6c] sm:$0xf]
        %v2371 = vld [vmem:[%s318 + $0x70] sm:$0xf]
        %v2372 = vld [vmem:[%s318 + $0x74] sm:$0xf]
        %v2373 = vld [vmem:[%s318 + $0x78] sm:$0xf]
        %v2374 = vld [vmem:[%s318 + $0x7c] sm:$0xf]
        %v2375 = vld [vmem:[%s318 + $0x80] sm:$0xf]
        %v2376 = vld [vmem:[%s318 + $0x84] sm:$0xf]
        %v2377 = vsel %vm899, %v2345, 0
        %v2378 = vsel %vm900, %v2346, 0
        %v2379 = vsel %vm901, %v2347, 0
        %v2380 = vsel %vm902, %v2348, 0
        %v2381 = vsel %vm903, %v2349, 0
        %v2382 = vsel %vm904, %v2350, 0
        %v2383 = vsel %vm905, %v2351, 0
        %v2384 = vsel %vm906, %v2352, 0
        %v2385 = vsel %vm907, %v2353, 0
        %v2386 = vsel %vm908, %v2354, 0
        %v2387 = vsel %vm909, %v2355, 0
        %v2388 = vsel %vm910, %v2356, 0
        %v2389 = vsel %vm911, %v2357, 0
        %v2390 = vsel %vm912, %v2358, 0
        %v2391 = vsel %vm913, %v2359, 0
        %v2392 = vsel %vm914, %v2360, 0
        %v2393 = vsel %vm915, %v2361, 0
        %v2394 = vsel %vm916, %v2362, 0
        %v2395 = vsel %vm917, %v2363, 0
        %v2396 = vsel %vm918, %v2364, 0
        %v2397 = vsel %vm919, %v2365, 0
        %v2398 = vsel %vm920, %v2366, 0
        %v2399 = vsel %vm921, %v2367, 0
        %v2400 = vsel %vm922, %v2368, 0
        %v2401 = vsel %vm923, %v2369, 0
        %v2402 = vsel %vm924, %v2370, 0
        %v2403 = vsel %vm925, %v2371, 0
        %v2404 = vsel %vm926, %v2372, 0
        %v2405 = vsel %vm927, %v2373, 0
        %v2406 = vsel %vm928, %v2374, 0
        %v2407 = vsel %vm929, %v2375, 0
        %v2408 = vsel %vm930, %v2376, 0
        %s2409 = scalar_lea.vmem %s1, 6
        %v2410 = vld [vmem:[%s2409] sm:$0x3]
        %v2443 = vunpack.c.l.b16 %v2377
        %v2444 = vunpack.c.l.b16 %v2378
        %v2445 = vunpack.c.l.b16 %v2379
        %v2446 = vunpack.c.l.b16 %v2380
        %v2447 = vunpack.c.l.b16 %v2381
        %v2448 = vunpack.c.l.b16 %v2382
        %v2449 = vunpack.c.l.b16 %v2383
        %v2450 = vunpack.c.l.b16 %v2384
        %v2451 = vunpack.c.l.b16 %v2385
        %v2452 = vunpack.c.l.b16 %v2386
        %v2453 = vunpack.c.l.b16 %v2387
        %v2454 = vunpack.c.l.b16 %v2388
        %v2455 = vunpack.c.l.b16 %v2389
        %v2456 = vunpack.c.l.b16 %v2390
        %v2457 = vunpack.c.l.b16 %v2391
        %v2458 = vunpack.c.l.b16 %v2392
        %v2459 = vunpack.c.l.b16 %v2393
        %v2460 = vunpack.c.l.b16 %v2394
        %v2461 = vunpack.c.l.b16 %v2395
        %v2462 = vunpack.c.l.b16 %v2396
        %v2463 = vunpack.c.l.b16 %v2397
        %v2464 = vunpack.c.l.b16 %v2398
        %v2465 = vunpack.c.l.b16 %v2399
        %v2466 = vunpack.c.l.b16 %v2400
        %v2467 = vunpack.c.l.b16 %v2401
        %v2468 = vunpack.c.l.b16 %v2402
        %v2469 = vunpack.c.l.b16 %v2403
        %v2470 = vunpack.c.l.b16 %v2404
        %v2471 = vunpack.c.l.b16 %v2405
        %v2472 = vunpack.c.l.b16 %v2406
        %v2473 = vunpack.c.l.b16 %v2407
        %v2474 = vunpack.c.l.b16 %v2408
        %v2475 = vpack.c.b16 %v2444, %v2443
        %v2476 = vpack.c.b16 %v2446, %v2445
        %v2477 = vpack.c.b16 %v2448, %v2447
        %v2478 = vpack.c.b16 %v2450, %v2449
        %v2479 = vpack.c.b16 %v2452, %v2451
        %v2480 = vpack.c.b16 %v2454, %v2453
        %v2481 = vpack.c.b16 %v2456, %v2455
        %v2482 = vpack.c.b16 %v2458, %v2457
        %v2483 = vpack.c.b16 %v2460, %v2459
        %v2484 = vpack.c.b16 %v2462, %v2461
        %v2485 = vpack.c.b16 %v2464, %v2463
        %v2486 = vpack.c.b16 %v2466, %v2465
        %v2487 = vpack.c.b16 %v2468, %v2467
        %v2488 = vpack.c.b16 %v2470, %v2469
        %v2489 = vpack.c.b16 %v2472, %v2471
        %v2490 = vpack.c.b16 %v2474, %v2473
        %v2492 = vsel %vm1183, %v2475, 0
        %v2495 = vsel %vm1183, %v2476, 0
        %v2498 = vsel %vm1183, %v2477, 0
        %v2501 = vsel %vm1183, %v2478, 0
        %v2504 = vsel %vm1183, %v2479, 0
        %v2507 = vsel %vm1183, %v2480, 0
        %v2510 = vsel %vm1183, %v2481, 0
        %v2513 = vsel %vm1183, %v2482, 0
        %v2516 = vsel %vm1183, %v2483, 0
        %v2519 = vsel %vm1183, %v2484, 0
        %v2522 = vsel %vm1183, %v2485, 0
        %v2525 = vsel %vm1183, %v2486, 0
        %v2528 = vsel %vm1183, %v2487, 0
        %v2531 = vsel %vm1183, %v2488, 0
        %v2534 = vsel %vm1183, %v2489, 0
        %v2537 = vsel %vm1183, %v2490, 0
        %v2540 = vsel %vm1232, %v2410, 0
        %2542 = vmatprep.subr.bf16.mxu0 0
        %2543 = vmatpush1.bf16.msra.mxu0 %v2540
        %2544 = vmatprep.subr.bf16.mxu0 0
        %2545 = vmatpush1.bf16.msra.mxu0 0
        %2546 = vmatprep.subr.bf16.mxu0 0
        %2547 = vmatpush1.bf16.msra.mxu0 0
        %2548 = vmatprep.subr.bf16.mxu0 0
        %2549 = vmatpush1.bf16.msra.mxu0 0
        %2550 = vmatprep.subr.bf16.mxu0 0
        %2551 = vmatpush1.bf16.msra.mxu0 0
        %2552 = vmatprep.subr.bf16.mxu0 0
        %2553 = vmatpush1.bf16.msra.mxu0 0
        %2554 = vmatprep.subr.bf16.mxu0 0
        %2555 = vmatpush1.bf16.msra.mxu0 0
        %2556 = vmatprep.subr.bf16.mxu0 0
        %2557 = vmatpush1.bf16.msra.mxu0 0
        %2558 = vmatprep.subr.bf16.mxu0 0
        %2559 = vmatpush1.bf16.msra.mxu0 0
        %2560 = vmatprep.subr.bf16.mxu0 0
        %2561 = vmatpush1.bf16.msra.mxu0 0
        %2562 = vmatprep.subr.bf16.mxu0 0
        %2563 = vmatpush1.bf16.msra.mxu0 0
        %2564 = vmatprep.subr.bf16.mxu0 0
        %2565 = vmatpush1.bf16.msra.mxu0 0
        %2566 = vmatprep.subr.bf16.mxu0 0
        %2567 = vmatpush1.bf16.msra.mxu0 0
        %2568 = vmatprep.subr.bf16.mxu0 0
        %2569 = vmatpush1.bf16.msra.mxu0 0
        %2570 = vmatprep.subr.bf16.mxu0 0
        %2571 = vmatpush1.bf16.msra.mxu0 0
        %2572 = vmatprep.subr.bf16.mxu0 0
        %2573 = vmatpush1.bf16.msra.mxu0 0
        %2574 = vmatprep.mubr.bf16.mxu0 0
        %2575 = vmatmul.mubr.bf16.gmra.mrb[0].mxu0 %v2492
        %v2576 = vpop.f32.mrb[0].mxu0
        %v2577 = vadd.f32 0.0, %v2576
        %v2578 = vpop.f32.mrb[0].mxu0
        %v2579 = vpop.f32.mrb[0].mxu0
        %v2580 = vadd.f32 0.0, %v2579
        %v2581 = vpop.f32.mrb[0].mxu0
        %2582 = vmatprep.mubr.bf16.mxu0 0
        %2583 = vmatmul.mubr.bf16.gmra.mrb[0].mxu0 %v2495
        %v2584 = vpop.f32.mrb[0].mxu0
        %v2585 = vadd.f32 0.0, %v2584
        %v2586 = vpop.f32.mrb[0].mxu0
        %v2587 = vpop.f32.mrb[0].mxu0
        %v2588 = vadd.f32 0.0, %v2587
        %v2589 = vpop.f32.mrb[0].mxu0
        %2590 = vmatprep.mubr.bf16.mxu0 0
        %2591 = vmatmul.mubr.bf16.gmra.mrb[0].mxu0 %v2498
        %v2592 = vpop.f32.mrb[0].mxu0
        %v2593 = vadd.f32 0.0, %v2592
        %v2594 = vpop.f32.mrb[0].mxu0
        %v2595 = vpop.f32.mrb[0].mxu0
        %v2596 = vadd.f32 0.0, %v2595
        %v2597 = vpop.f32.mrb[0].mxu0
        %2598 = vmatprep.mubr.bf16.mxu0 0
        %2599 = vmatmul.mubr.bf16.gmra.mrb[0].mxu0 %v2501
        %v2600 = vpop.f32.mrb[0].mxu0
        %v2601 = vadd.f32 0.0, %v2600
        %v2602 = vpop.f32.mrb[0].mxu0
        %v2603 = vpop.f32.mrb[0].mxu0
        %v2604 = vadd.f32 0.0, %v2603
        %v2605 = vpop.f32.mrb[0].mxu0
        %2606 = vmatprep.mubr.bf16.mxu0 0
        %2607 = vmatmul.mubr.bf16.gmra.mrb[0].mxu0 %v2504
        %v2608 = vpop.f32.mrb[0].mxu0
        %v2609 = vadd.f32 0.0, %v2608
        %v2610 = vpop.f32.mrb[0].mxu0
        %v2611 = vpop.f32.mrb[0].mxu0
        %v2612 = vadd.f32 0.0, %v2611
        %v2613 = vpop.f32.mrb[0].mxu0
        %2614 = vmatprep.mubr.bf16.mxu0 0
        %2615 = vmatmul.mubr.bf16.gmra.mrb[0].mxu0 %v2507
        %v2616 = vpop.f32.mrb[0].mxu0
        %v2617 = vadd.f32 0.0, %v2616
        %v2618 = vpop.f32.mrb[0].mxu0
        %v2619 = vpop.f32.mrb[0].mxu0
        %v2620 = vadd.f32 0.0, %v2619
        %v2621 = vpop.f32.mrb[0].mxu0
        %2622 = vmatprep.mubr.bf16.mxu0 0
        %2623 = vmatmul.mubr.bf16.gmra.mrb[0].mxu0 %v2510
        %v2624 = vpop.f32.mrb[0].mxu0
        %v2625 = vadd.f32 0.0, %v2624
        %v2626 = vpop.f32.mrb[0].mxu0
        %v2627 = vpop.f32.mrb[0].mxu0
        %v2628 = vadd.f32 0.0, %v2627
        %v2629 = vpop.f32.mrb[0].mxu0
        %2630 = vmatprep.mubr.bf16.mxu0 0
        %2631 = vmatmul.mubr.bf16.gmra.mrb[0].mxu0 %v2513
        %v2632 = vpop.f32.mrb[0].mxu0
        %v2633 = vadd.f32 0.0, %v2632
        %v2634 = vpop.f32.mrb[0].mxu0
        %v2635 = vpop.f32.mrb[0].mxu0
        %v2636 = vadd.f32 0.0, %v2635
        %v2637 = vpop.f32.mrb[0].mxu0
        %2638 = vmatprep.mubr.bf16.mxu0 0
        %2639 = vmatmul.mubr.bf16.gmra.mrb[0].mxu0 %v2516
        %v2640 = vpop.f32.mrb[0].mxu0
        %v2641 = vadd.f32 0.0, %v2640
        %v2642 = vpop.f32.mrb[0].mxu0
        %v2643 = vpop.f32.mrb[0].mxu0
        %v2644 = vadd.f32 0.0, %v2643
        %v2645 = vpop.f32.mrb[0].mxu0
        %2646 = vmatprep.mubr.bf16.mxu0 0
        %2647 = vmatmul.mubr.bf16.gmra.mrb[0].mxu0 %v2519
        %v2648 = vpop.f32.mrb[0].mxu0
        %v2649 = vadd.f32 0.0, %v2648
        %v2650 = vpop.f32.mrb[0].mxu0
        %v2651 = vpop.f32.mrb[0].mxu0
        %v2652 = vadd.f32 0.0, %v2651
        %v2653 = vpop.f32.mrb[0].mxu0
        %2654 = vmatprep.mubr.bf16.mxu0 0
        %2655 = vmatmul.mubr.bf16.gmra.mrb[0].mxu0 %v2522
        %v2656 = vpop.f32.mrb[0].mxu0
        %v2657 = vadd.f32 0.0, %v2656
        %v2658 = vpop.f32.mrb[0].mxu0
        %v2659 = vpop.f32.mrb[0].mxu0
        %v2660 = vadd.f32 0.0, %v2659
        %v2661 = vpop.f32.mrb[0].mxu0
        %2662 = vmatprep.mubr.bf16.mxu0 0
        %2663 = vmatmul.mubr.bf16.gmra.mrb[0].mxu0 %v2525
        %v2664 = vpop.f32.mrb[0].mxu0
        %v2665 = vadd.f32 0.0, %v2664
        %v2666 = vpop.f32.mrb[0].mxu0
        %v2667 = vpop.f32.mrb[0].mxu0
        %v2668 = vadd.f32 0.0, %v2667
        %v2669 = vpop.f32.mrb[0].mxu0
        %2670 = vmatprep.mubr.bf16.mxu0 0
        %2671 = vmatmul.mubr.bf16.gmra.mrb[0].mxu0 %v2528
        %v2672 = vpop.f32.mrb[0].mxu0
        %v2673 = vadd.f32 0.0, %v2672
        %v2674 = vpop.f32.mrb[0].mxu0
        %v2675 = vpop.f32.mrb[0].mxu0
        %v2676 = vadd.f32 0.0, %v2675
        %v2677 = vpop.f32.mrb[0].mxu0
        %2678 = vmatprep.mubr.bf16.mxu0 0
        %2679 = vmatmul.mubr.bf16.gmra.mrb[0].mxu0 %v2531
        %v2680 = vpop.f32.mrb[0].mxu0
        %v2681 = vadd.f32 0.0, %v2680
        %v2682 = vpop.f32.mrb[0].mxu0
        %v2683 = vpop.f32.mrb[0].mxu0
        %v2684 = vadd.f32 0.0, %v2683
        %v2685 = vpop.f32.mrb[0].mxu0
        %2686 = vmatprep.mubr.bf16.mxu0 0
        %2687 = vmatmul.mubr.bf16.gmra.mrb[0].mxu0 %v2534
        %v2688 = vpop.f32.mrb[0].mxu0
        %v2689 = vadd.f32 0.0, %v2688
        %v2690 = vpop.f32.mrb[0].mxu0
        %v2691 = vpop.f32.mrb[0].mxu0
        %v2692 = vadd.f32 0.0, %v2691
        %v2693 = vpop.f32.mrb[0].mxu0
        %2694 = vmatprep.mubr.bf16.mxu0 0
        %2695 = vmatmul.mubr.bf16.gmra.mrb[0].mxu0 %v2537
        %v2696 = vpop.f32.mrb[0].mxu0
        %v2697 = vadd.f32 0.0, %v2696
        %v2698 = vpop.f32.mrb[0].mxu0
        %v2699 = vpop.f32.mrb[0].mxu0
        %v2700 = vadd.f32 0.0, %v2699
        %v2701 = vpop.f32.mrb[0].mxu0
        %2702 = vdwg.mxu0
        %v2703 = vadd.f32 %v2313, %v2577
        %v2704 = vadd.f32 %v2314, %v2580
        %v2705 = vadd.f32 %v2315, %v2585
        %v2706 = vadd.f32 %v2316, %v2588
        %v2707 = vadd.f32 %v2317, %v2593
        %v2708 = vadd.f32 %v2318, %v2596
        %v2709 = vadd.f32 %v2319, %v2601
        %v2710 = vadd.f32 %v2320, %v2604
        %v2711 = vadd.f32 %v2321, %v2609
        %v2712 = vadd.f32 %v2322, %v2612
        %v2713 = vadd.f32 %v2323, %v2617
        %v2714 = vadd.f32 %v2324, %v2620
        %v2715 = vadd.f32 %v2325, %v2625
        %v2716 = vadd.f32 %v2326, %v2628
        %v2717 = vadd.f32 %v2327, %v2633
        %v2718 = vadd.f32 %v2328, %v2636
        %v2719 = vadd.f32 %v2329, %v2641
        %v2720 = vadd.f32 %v2330, %v2644
        %v2721 = vadd.f32 %v2331, %v2649
        %v2722 = vadd.f32 %v2332, %v2652
        %v2723 = vadd.f32 %v2333, %v2657
        %v2724 = vadd.f32 %v2334, %v2660
        %v2725 = vadd.f32 %v2335, %v2665
        %v2726 = vadd.f32 %v2336, %v2668
        %v2727 = vadd.f32 %v2337, %v2673
        %v2728 = vadd.f32 %v2338, %v2676
        %v2729 = vadd.f32 %v2339, %v2681
        %v2730 = vadd.f32 %v2340, %v2684
        %v2731 = vadd.f32 %v2341, %v2689
        %v2732 = vadd.f32 %v2342, %v2692
        %v2733 = vadd.f32 %v2343, %v2697
        %v2734 = vadd.f32 %v2344, %v2700
        %v2735 = vld [vmem:[%s318 + $0x8] sm:$0xf]
        %v2736 = vld [vmem:[%s318 + $0xc] sm:$0xf]
        %v2737 = vld [vmem:[%s318 + $0x10] sm:$0xf]
        %v2738 = vld [vmem:[%s318 + $0x14] sm:$0xf]
        %v2739 = vld [vmem:[%s318 + $0x18] sm:$0xf]
        %v2740 = vld [vmem:[%s318 + $0x1c] sm:$0xf]
        %v2741 = vld [vmem:[%s318 + $0x20] sm:$0xf]
        %v2742 = vld [vmem:[%s318 + $0x24] sm:$0xf]
        %v2743 = vld [vmem:[%s318 + $0x28] sm:$0xf]
        %v2744 = vld [vmem:[%s318 + $0x2c] sm:$0xf]
        %v2745 = vld [vmem:[%s318 + $0x30] sm:$0xf]
        %v2746 = vld [vmem:[%s318 + $0x34] sm:$0xf]
        %v2747 = vld [vmem:[%s318 + $0x38] sm:$0xf]
        %v2748 = vld [vmem:[%s318 + $0x3c] sm:$0xf]
        %v2749 = vld [vmem:[%s318 + $0x40] sm:$0xf]
        %v2750 = vld [vmem:[%s318 + $0x44] sm:$0xf]
        %v2751 = vld [vmem:[%s318 + $0x48] sm:$0xf]
        %v2752 = vld [vmem:[%s318 + $0x4c] sm:$0xf]
        %v2753 = vld [vmem:[%s318 + $0x50] sm:$0xf]
        %v2754 = vld [vmem:[%s318 + $0x54] sm:$0xf]
        %v2755 = vld [vmem:[%s318 + $0x58] sm:$0xf]
        %v2756 = vld [vmem:[%s318 + $0x5c] sm:$0xf]
        %v2757 = vld [vmem:[%s318 + $0x60] sm:$0xf]
        %v2758 = vld [vmem:[%s318 + $0x64] sm:$0xf]
        %v2759 = vld [vmem:[%s318 + $0x68] sm:$0xf]
        %v2760 = vld [vmem:[%s318 + $0x6c] sm:$0xf]
        %v2761 = vld [vmem:[%s318 + $0x70] sm:$0xf]
        %v2762 = vld [vmem:[%s318 + $0x74] sm:$0xf]
        %v2763 = vld [vmem:[%s318 + $0x78] sm:$0xf]
        %v2764 = vld [vmem:[%s318 + $0x7c] sm:$0xf]
        %v2765 = vld [vmem:[%s318 + $0x80] sm:$0xf]
        %v2766 = vld [vmem:[%s318 + $0x84] sm:$0xf]
        %v2767 = vld [vmem:[%s318 + $0x88] sm:$0x1]
        %s2768 = scalar_lea.vmem %s1, 8
        %v2769 = vld [vmem:[%s2768] sm:$0x3]
        %v2803 = vunpack.c.l.b16 %v2735
        %v2804 = vunpack.c.l.b16 %v2736
        %v2805 = vunpack.c.l.b16 %v2737
        %v2806 = vunpack.c.l.b16 %v2738
        %v2807 = vunpack.c.l.b16 %v2739
        %v2808 = vunpack.c.l.b16 %v2740
        %v2809 = vunpack.c.l.b16 %v2741
        %v2810 = vunpack.c.l.b16 %v2742
        %v2811 = vunpack.c.l.b16 %v2743
        %v2812 = vunpack.c.l.b16 %v2744
        %v2813 = vunpack.c.l.b16 %v2745
        %v2814 = vunpack.c.l.b16 %v2746
        %v2815 = vunpack.c.l.b16 %v2747
        %v2816 = vunpack.c.l.b16 %v2748
        %v2817 = vunpack.c.l.b16 %v2749
        %v2818 = vunpack.c.l.b16 %v2750
        %v2819 = vunpack.c.l.b16 %v2751
        %v2820 = vunpack.c.l.b16 %v2752
        %v2821 = vunpack.c.l.b16 %v2753
        %v2822 = vunpack.c.l.b16 %v2754
        %v2823 = vunpack.c.l.b16 %v2755
        %v2824 = vunpack.c.l.b16 %v2756
        %v2825 = vunpack.c.l.b16 %v2757
        %v2826 = vunpack.c.l.b16 %v2758
        %v2827 = vunpack.c.l.b16 %v2759
        %v2828 = vunpack.c.l.b16 %v2760
        %v2829 = vunpack.c.l.b16 %v2761
        %v2830 = vunpack.c.l.b16 %v2762
        %v2831 = vunpack.c.l.b16 %v2763
        %v2832 = vunpack.c.l.b16 %v2764
        %v2833 = vunpack.c.l.b16 %v2765
        %v2834 = vunpack.c.l.b16 %v2766
        %v2835 = vunpack.c.l.b16 %v2767
        %v2836 = vpack.c.b16 %v2804, %v2803
        %v2837 = vpack.c.b16 %v2806, %v2805
        %v2838 = vpack.c.b16 %v2808, %v2807
        %v2839 = vpack.c.b16 %v2810, %v2809
        %v2840 = vpack.c.b16 %v2812, %v2811
        %v2841 = vpack.c.b16 %v2814, %v2813
        %v2842 = vpack.c.b16 %v2816, %v2815
        %v2843 = vpack.c.b16 %v2818, %v2817
        %v2844 = vpack.c.b16 %v2820, %v2819
        %v2845 = vpack.c.b16 %v2822, %v2821
        %v2846 = vpack.c.b16 %v2824, %v2823
        %v2847 = vpack.c.b16 %v2826, %v2825
        %v2848 = vpack.c.b16 %v2828, %v2827
        %v2849 = vpack.c.b16 %v2830, %v2829
        %v2850 = vpack.c.b16 %v2832, %v2831
        %v2851 = vpack.c.b16 %v2834, %v2833
        %v2852 = vpack.c.b16 %v2835, %v2835
        %v2854 = vshrl.u32 %v2836, 16
        %v2856 = vshll.u32 %v2836, 16
        %v2858 = vrot.slane %v2856, 1
        %v2859 = vor.u32 %v2854, %v2858
        %v2861 = vshll.u32 %v2837, 16
        %v2863 = vrot.slane %v2861, 1
        %v2864 = vsel %vm1050, %v2859, %v2863
        %v2865 = vshrl.u32 %v2837, 16
        %v2867 = vor.u32 %v2865, %v2863
        %v2869 = vshll.u32 %v2838, 16
        %v2871 = vrot.slane %v2869, 1
        %v2872 = vsel %vm1050, %v2867, %v2871
        %v2873 = vshrl.u32 %v2838, 16
        %v2875 = vor.u32 %v2873, %v2871
        %v2877 = vshll.u32 %v2839, 16
        %v2879 = vrot.slane %v2877, 1
        %v2880 = vsel %vm1050, %v2875, %v2879
        %v2881 = vshrl.u32 %v2839, 16
        %v2883 = vor.u32 %v2881, %v2879
        %v2885 = vshll.u32 %v2840, 16
        %v2887 = vrot.slane %v2885, 1
        %v2888 = vsel %vm1050, %v2883, %v2887
        %v2889 = vshrl.u32 %v2840, 16
        %v2891 = vor.u32 %v2889, %v2887
        %v2893 = vshll.u32 %v2841, 16
        %v2895 = vrot.slane %v2893, 1
        %v2896 = vsel %vm1050, %v2891, %v2895
        %v2897 = vshrl.u32 %v2841, 16
        %v2899 = vor.u32 %v2897, %v2895
        %v2901 = vshll.u32 %v2842, 16
        %v2903 = vrot.slane %v2901, 1
        %v2904 = vsel %vm1050, %v2899, %v2903
        %v2905 = vshrl.u32 %v2842, 16
        %v2907 = vor.u32 %v2905, %v2903
        %v2909 = vshll.u32 %v2843, 16
        %v2911 = vrot.slane %v2909, 1
        %v2912 = vsel %vm1050, %v2907, %v2911
        %v2913 = vshrl.u32 %v2843, 16
        %v2915 = vor.u32 %v2913, %v2911
        %v2917 = vshll.u32 %v2844, 16
        %v2919 = vrot.slane %v2917, 1
        %v2920 = vsel %vm1050, %v2915, %v2919
        %v2921 = vshrl.u32 %v2844, 16
        %v2923 = vor.u32 %v2921, %v2919
        %v2925 = vshll.u32 %v2845, 16
        %v2927 = vrot.slane %v2925, 1
        %v2928 = vsel %vm1050, %v2923, %v2927
        %v2929 = vshrl.u32 %v2845, 16
        %v2931 = vor.u32 %v2929, %v2927
        %v2933 = vshll.u32 %v2846, 16
        %v2935 = vrot.slane %v2933, 1
        %v2936 = vsel %vm1050, %v2931, %v2935
        %v2937 = vshrl.u32 %v2846, 16
        %v2939 = vor.u32 %v2937, %v2935
        %v2941 = vshll.u32 %v2847, 16
        %v2943 = vrot.slane %v2941, 1
        %v2944 = vsel %vm1050, %v2939, %v2943
        %v2945 = vshrl.u32 %v2847, 16
        %v2947 = vor.u32 %v2945, %v2943
        %v2949 = vshll.u32 %v2848, 16
        %v2951 = vrot.slane %v2949, 1
        %v2952 = vsel %vm1050, %v2947, %v2951
        %v2953 = vshrl.u32 %v2848, 16
        %v2955 = vor.u32 %v2953, %v2951
        %v2957 = vshll.u32 %v2849, 16
        %v2959 = vrot.slane %v2957, 1
        %v2960 = vsel %vm1050, %v2955, %v2959
        %v2961 = vshrl.u32 %v2849, 16
        %v2963 = vor.u32 %v2961, %v2959
        %v2965 = vshll.u32 %v2850, 16
        %v2967 = vrot.slane %v2965, 1
        %v2968 = vsel %vm1050, %v2963, %v2967
        %v2969 = vshrl.u32 %v2850, 16
        %v2971 = vor.u32 %v2969, %v2967
        %v2973 = vshll.u32 %v2851, 16
        %v2975 = vrot.slane %v2973, 1
        %v2976 = vsel %vm1050, %v2971, %v2975
        %v2977 = vshrl.u32 %v2851, 16
        %v2979 = vor.u32 %v2977, %v2975
        %v2981 = vshll.u32 %v2852, 16
        %v2983 = vrot.slane %v2981, 1
        %v2984 = vsel %vm1050, %v2979, %v2983
        %v2986 = vsel %vm1183, %v2864, 0
        %v2989 = vsel %vm1183, %v2872, 0
        %v2992 = vsel %vm1183, %v2880, 0
        %v2995 = vsel %vm1183, %v2888, 0
        %v2998 = vsel %vm1183, %v2896, 0
        %v3001 = vsel %vm1183, %v2904, 0
        %v3004 = vsel %vm1183, %v2912, 0
        %v3007 = vsel %vm1183, %v2920, 0
        %v3010 = vsel %vm1183, %v2928, 0
        %v3013 = vsel %vm1183, %v2936, 0
        %v3016 = vsel %vm1183, %v2944, 0
        %v3019 = vsel %vm1183, %v2952, 0
        %v3022 = vsel %vm1183, %v2960, 0
        %v3025 = vsel %vm1183, %v2968, 0
        %v3028 = vsel %vm1183, %v2976, 0
        %v3031 = vsel %vm1183, %v2984, 0
        %v3034 = vsel %vm1232, %v2769, 0
        %3036 = vmatprep.subr.bf16.mxu0 0
        %3037 = vmatpush1.bf16.msra.mxu0 %v3034
        %3038 = vmatprep.subr.bf16.mxu0 0
        %3039 = vmatpush1.bf16.msra.mxu0 0
        %3040 = vmatprep.subr.bf16.mxu0 0
        %3041 = vmatpush1.bf16.msra.mxu0 0
        %3042 = vmatprep.subr.bf16.mxu0 0
        %3043 = vmatpush1.bf16.msra.mxu0 0
        %3044 = vmatprep.subr.bf16.mxu0 0
        %3045 = vmatpush1.bf16.msra.mxu0 0
        %3046 = vmatprep.subr.bf16.mxu0 0
        %3047 = vmatpush1.bf16.msra.mxu0 0
        %3048 = vmatprep.subr.bf16.mxu0 0
        %3049 = vmatpush1.bf16.msra.mxu0 0
        %3050 = vmatprep.subr.bf16.mxu0 0
        %3051 = vmatpush1.bf16.msra.mxu0 0
        %3052 = vmatprep.subr.bf16.mxu0 0
        %3053 = vmatpush1.bf16.msra.mxu0 0
        %3054 = vmatprep.subr.bf16.mxu0 0
        %3055 = vmatpush1.bf16.msra.mxu0 0
        %3056 = vmatprep.subr.bf16.mxu0 0
        %3057 = vmatpush1.bf16.msra.mxu0 0
        %3058 = vmatprep.subr.bf16.mxu0 0
        %3059 = vmatpush1.bf16.msra.mxu0 0
        %3060 = vmatprep.subr.bf16.mxu0 0
        %3061 = vmatpush1.bf16.msra.mxu0 0
        %3062 = vmatprep.subr.bf16.mxu0 0
        %3063 = vmatpush1.bf16.msra.mxu0 0
        %3064 = vmatprep.subr.bf16.mxu0 0
        %3065 = vmatpush1.bf16.msra.mxu0 0
        %3066 = vmatprep.subr.bf16.mxu0 0
        %3067 = vmatpush1.bf16.msra.mxu0 0
        %3068 = vmatprep.mubr.bf16.mxu0 0
        %3069 = vmatmul.mubr.bf16.gmra.mrb[0].mxu0 %v2986
        %v3070 = vpop.f32.mrb[0].mxu0
        %v3071 = vadd.f32 0.0, %v3070
        %v3072 = vpop.f32.mrb[0].mxu0
        %v3073 = vpop.f32.mrb[0].mxu0
        %v3074 = vadd.f32 0.0, %v3073
        %v3075 = vpop.f32.mrb[0].mxu0
        %3076 = vmatprep.mubr.bf16.mxu0 0
        %3077 = vmatmul.mubr.bf16.gmra.mrb[0].mxu0 %v2989
        %v3078 = vpop.f32.mrb[0].mxu0
        %v3079 = vadd.f32 0.0, %v3078
        %v3080 = vpop.f32.mrb[0].mxu0
        %v3081 = vpop.f32.mrb[0].mxu0
        %v3082 = vadd.f32 0.0, %v3081
        %v3083 = vpop.f32.mrb[0].mxu0
        %3084 = vmatprep.mubr.bf16.mxu0 0
        %3085 = vmatmul.mubr.bf16.gmra.mrb[0].mxu0 %v2992
        %v3086 = vpop.f32.mrb[0].mxu0
        %v3087 = vadd.f32 0.0, %v3086
        %v3088 = vpop.f32.mrb[0].mxu0
        %v3089 = vpop.f32.mrb[0].mxu0
        %v3090 = vadd.f32 0.0, %v3089
        %v3091 = vpop.f32.mrb[0].mxu0
        %3092 = vmatprep.mubr.bf16.mxu0 0
        %3093 = vmatmul.mubr.bf16.gmra.mrb[0].mxu0 %v2995
        %v3094 = vpop.f32.mrb[0].mxu0
        %v3095 = vadd.f32 0.0, %v3094
        %v3096 = vpop.f32.mrb[0].mxu0
        %v3097 = vpop.f32.mrb[0].mxu0
        %v3098 = vadd.f32 0.0, %v3097
        %v3099 = vpop.f32.mrb[0].mxu0
        %3100 = vmatprep.mubr.bf16.mxu0 0
        %3101 = vmatmul.mubr.bf16.gmra.mrb[0].mxu0 %v2998
        %v3102 = vpop.f32.mrb[0].mxu0
        %v3103 = vadd.f32 0.0, %v3102
        %v3104 = vpop.f32.mrb[0].mxu0
        %v3105 = vpop.f32.mrb[0].mxu0
        %v3106 = vadd.f32 0.0, %v3105
        %v3107 = vpop.f32.mrb[0].mxu0
        %3108 = vmatprep.mubr.bf16.mxu0 0
        %3109 = vmatmul.mubr.bf16.gmra.mrb[0].mxu0 %v3001
        %v3110 = vpop.f32.mrb[0].mxu0
        %v3111 = vadd.f32 0.0, %v3110
        %v3112 = vpop.f32.mrb[0].mxu0
        %v3113 = vpop.f32.mrb[0].mxu0
        %v3114 = vadd.f32 0.0, %v3113
        %v3115 = vpop.f32.mrb[0].mxu0
        %3116 = vmatprep.mubr.bf16.mxu0 0
        %3117 = vmatmul.mubr.bf16.gmra.mrb[0].mxu0 %v3004
        %v3118 = vpop.f32.mrb[0].mxu0
        %v3119 = vadd.f32 0.0, %v3118
        %v3120 = vpop.f32.mrb[0].mxu0
        %v3121 = vpop.f32.mrb[0].mxu0
        %v3122 = vadd.f32 0.0, %v3121
        %v3123 = vpop.f32.mrb[0].mxu0
        %3124 = vmatprep.mubr.bf16.mxu0 0
        %3125 = vmatmul.mubr.bf16.gmra.mrb[0].mxu0 %v3007
        %v3126 = vpop.f32.mrb[0].mxu0
        %v3127 = vadd.f32 0.0, %v3126
        %v3128 = vpop.f32.mrb[0].mxu0
        %v3129 = vpop.f32.mrb[0].mxu0
        %v3130 = vadd.f32 0.0, %v3129
        %v3131 = vpop.f32.mrb[0].mxu0
        %3132 = vmatprep.mubr.bf16.mxu0 0
        %3133 = vmatmul.mubr.bf16.gmra.mrb[0].mxu0 %v3010
        %v3134 = vpop.f32.mrb[0].mxu0
        %v3135 = vadd.f32 0.0, %v3134
        %v3136 = vpop.f32.mrb[0].mxu0
        %v3137 = vpop.f32.mrb[0].mxu0
        %v3138 = vadd.f32 0.0, %v3137
        %v3139 = vpop.f32.mrb[0].mxu0
        %3140 = vmatprep.mubr.bf16.mxu0 0
        %3141 = vmatmul.mubr.bf16.gmra.mrb[0].mxu0 %v3013
        %v3142 = vpop.f32.mrb[0].mxu0
        %v3143 = vadd.f32 0.0, %v3142
        %v3144 = vpop.f32.mrb[0].mxu0
        %v3145 = vpop.f32.mrb[0].mxu0
        %v3146 = vadd.f32 0.0, %v3145
        %v3147 = vpop.f32.mrb[0].mxu0
        %3148 = vmatprep.mubr.bf16.mxu0 0
        %3149 = vmatmul.mubr.bf16.gmra.mrb[0].mxu0 %v3016
        %v3150 = vpop.f32.mrb[0].mxu0
        %v3151 = vadd.f32 0.0, %v3150
        %v3152 = vpop.f32.mrb[0].mxu0
        %v3153 = vpop.f32.mrb[0].mxu0
        %v3154 = vadd.f32 0.0, %v3153
        %v3155 = vpop.f32.mrb[0].mxu0
        %3156 = vmatprep.mubr.bf16.mxu0 0
        %3157 = vmatmul.mubr.bf16.gmra.mrb[0].mxu0 %v3019
        %v3158 = vpop.f32.mrb[0].mxu0
        %v3159 = vadd.f32 0.0, %v3158
        %v3160 = vpop.f32.mrb[0].mxu0
        %v3161 = vpop.f32.mrb[0].mxu0
        %v3162 = vadd.f32 0.0, %v3161
        %v3163 = vpop.f32.mrb[0].mxu0
        %3164 = vmatprep.mubr.bf16.mxu0 0
        %3165 = vmatmul.mubr.bf16.gmra.mrb[0].mxu0 %v3022
        %v3166 = vpop.f32.mrb[0].mxu0
        %v3167 = vadd.f32 0.0, %v3166
        %v3168 = vpop.f32.mrb[0].mxu0
        %v3169 = vpop.f32.mrb[0].mxu0
        %v3170 = vadd.f32 0.0, %v3169
        %v3171 = vpop.f32.mrb[0].mxu0
        %3172 = vmatprep.mubr.bf16.mxu0 0
        %3173 = vmatmul.mubr.bf16.gmra.mrb[0].mxu0 %v3025
        %v3174 = vpop.f32.mrb[0].mxu0
        %v3175 = vadd.f32 0.0, %v3174
        %v3176 = vpop.f32.mrb[0].mxu0
        %v3177 = vpop.f32.mrb[0].mxu0
        %v3178 = vadd.f32 0.0, %v3177
        %v3179 = vpop.f32.mrb[0].mxu0
        %3180 = vmatprep.mubr.bf16.mxu0 0
        %3181 = vmatmul.mubr.bf16.gmra.mrb[0].mxu0 %v3028
        %v3182 = vpop.f32.mrb[0].mxu0
        %v3183 = vadd.f32 0.0, %v3182
        %v3184 = vpop.f32.mrb[0].mxu0
        %v3185 = vpop.f32.mrb[0].mxu0
        %v3186 = vadd.f32 0.0, %v3185
        %v3187 = vpop.f32.mrb[0].mxu0
        %3188 = vmatprep.mubr.bf16.mxu0 0
        %3189 = vmatmul.mubr.bf16.gmra.mrb[0].mxu0 %v3031
        %v3190 = vpop.f32.mrb[0].mxu0
        %v3191 = vadd.f32 0.0, %v3190
        %v3192 = vpop.f32.mrb[0].mxu0
        %v3193 = vpop.f32.mrb[0].mxu0
        %v3194 = vadd.f32 0.0, %v3193
        %v3195 = vpop.f32.mrb[0].mxu0
        %3196 = vdwg.mxu0
        %v3197 = vadd.f32 %v2703, %v3071
        %v3198 = vadd.f32 %v2704, %v3074
        %v3199 = vadd.f32 %v2705, %v3079
        %v3200 = vadd.f32 %v2706, %v3082
        %v3201 = vadd.f32 %v2707, %v3087
        %v3202 = vadd.f32 %v2708, %v3090
        %v3203 = vadd.f32 %v2709, %v3095
        %v3204 = vadd.f32 %v2710, %v3098
        %v3205 = vadd.f32 %v2711, %v3103
        %v3206 = vadd.f32 %v2712, %v3106
        %v3207 = vadd.f32 %v2713, %v3111
        %v3208 = vadd.f32 %v2714, %v3114
        %v3209 = vadd.f32 %v2715, %v3119
        %v3210 = vadd.f32 %v2716, %v3122
        %v3211 = vadd.f32 %v2717, %v3127
        %v3212 = vadd.f32 %v2718, %v3130
        %v3213 = vadd.f32 %v2719, %v3135
        %v3214 = vadd.f32 %v2720, %v3138
        %v3215 = vadd.f32 %v2721, %v3143
        %v3216 = vadd.f32 %v2722, %v3146
        %v3217 = vadd.f32 %v2723, %v3151
        %v3218 = vadd.f32 %v2724, %v3154
        %v3219 = vadd.f32 %v2725, %v3159
        %v3220 = vadd.f32 %v2726, %v3162
        %v3221 = vadd.f32 %v2727, %v3167
        %v3222 = vadd.f32 %v2728, %v3170
        %v3223 = vadd.f32 %v2729, %v3175
        %v3224 = vadd.f32 %v2730, %v3178
        %v3225 = vadd.f32 %v2731, %v3183
        %v3226 = vadd.f32 %v2732, %v3186
        %v3227 = vadd.f32 %v2733, %v3191
        %v3228 = vadd.f32 %v2734, %v3194
        %v3229 = vld [vmem:[%s318 + $0x8] sm:$0xe]
        %v3230 = vsel %vm1916, %v3229, 0
        %v3231 = vsel %vm1917, %v2736, 0
        %v3232 = vsel %vm1918, %v2737, 0
        %v3233 = vsel %vm1919, %v2738, 0
        %v3234 = vsel %vm1920, %v2739, 0
        %v3235 = vsel %vm1921, %v2740, 0
        %v3236 = vsel %vm1922, %v2741, 0
        %v3237 = vsel %vm1923, %v2742, 0
        %v3238 = vsel %vm1924, %v2743, 0
        %v3239 = vsel %vm1925, %v2744, 0
        %v3240 = vsel %vm1926, %v2745, 0
        %v3241 = vsel %vm1927, %v2746, 0
        %v3242 = vsel %vm1928, %v2747, 0
        %v3243 = vsel %vm1929, %v2748, 0
        %v3244 = vsel %vm1930, %v2749, 0
        %v3245 = vsel %vm1931, %v2750, 0
        %v3246 = vsel %vm1932, %v2751, 0
        %v3247 = vsel %vm1933, %v2752, 0
        %v3248 = vsel %vm1934, %v2753, 0
        %v3249 = vsel %vm1935, %v2754, 0
        %v3250 = vsel %vm1936, %v2755, 0
        %v3251 = vsel %vm1937, %v2756, 0
        %v3252 = vsel %vm1938, %v2757, 0
        %v3253 = vsel %vm1939, %v2758, 0
        %v3254 = vsel %vm1940, %v2759, 0
        %v3255 = vsel %vm1941, %v2760, 0
        %v3256 = vsel %vm1942, %v2761, 0
        %v3257 = vsel %vm1943, %v2762, 0
        %v3258 = vsel %vm1944, %v2763, 0
        %v3259 = vsel %vm1945, %v2764, 0
        %v3260 = vsel %vm1946, %v2765, 0
        %v3261 = vsel %vm1947, %v2766, 0
        %v3262 = vsel %vm1948, %v2767, 0
        %s3263 = scalar_lea.vmem %s1, 10
        %v3264 = vld [vmem:[%s3263] sm:$0x3]
        %v3298 = vunpack.c.l.b16 %v3230
        %v3299 = vunpack.c.l.b16 %v3231
        %v3300 = vunpack.c.l.b16 %v3232
        %v3301 = vunpack.c.l.b16 %v3233
        %v3302 = vunpack.c.l.b16 %v3234
        %v3303 = vunpack.c.l.b16 %v3235
        %v3304 = vunpack.c.l.b16 %v3236
        %v3305 = vunpack.c.l.b16 %v3237
        %v3306 = vunpack.c.l.b16 %v3238
        %v3307 = vunpack.c.l.b16 %v3239
        %v3308 = vunpack.c.l.b16 %v3240
        %v3309 = vunpack.c.l.b16 %v3241
        %v3310 = vunpack.c.l.b16 %v3242
        %v3311 = vunpack.c.l.b16 %v3243
        %v3312 = vunpack.c.l.b16 %v3244
        %v3313 = vunpack.c.l.b16 %v3245
        %v3314 = vunpack.c.l.b16 %v3246
        %v3315 = vunpack.c.l.b16 %v3247
        %v3316 = vunpack.c.l.b16 %v3248
        %v3317 = vunpack.c.l.b16 %v3249
        %v3318 = vunpack.c.l.b16 %v3250
        %v3319 = vunpack.c.l.b16 %v3251
        %v3320 = vunpack.c.l.b16 %v3252
        %v3321 = vunpack.c.l.b16 %v3253
        %v3322 = vunpack.c.l.b16 %v3254
        %v3323 = vunpack.c.l.b16 %v3255
        %v3324 = vunpack.c.l.b16 %v3256
        %v3325 = vunpack.c.l.b16 %v3257
        %v3326 = vunpack.c.l.b16 %v3258
        %v3327 = vunpack.c.l.b16 %v3259
        %v3328 = vunpack.c.l.b16 %v3260
        %v3329 = vunpack.c.l.b16 %v3261
        %v3330 = vunpack.c.l.b16 %v3262
        %v3331 = vpack.c.b16 %v3299, %v3298
        %v3332 = vpack.c.b16 %v3301, %v3300
        %v3333 = vpack.c.b16 %v3303, %v3302
        %v3334 = vpack.c.b16 %v3305, %v3304
        %v3335 = vpack.c.b16 %v3307, %v3306
        %v3336 = vpack.c.b16 %v3309, %v3308
        %v3337 = vpack.c.b16 %v3311, %v3310
        %v3338 = vpack.c.b16 %v3313, %v3312
        %v3339 = vpack.c.b16 %v3315, %v3314
        %v3340 = vpack.c.b16 %v3317, %v3316
        %v3341 = vpack.c.b16 %v3319, %v3318
        %v3342 = vpack.c.b16 %v3321, %v3320
        %v3343 = vpack.c.b16 %v3323, %v3322
        %v3344 = vpack.c.b16 %v3325, %v3324
        %v3345 = vpack.c.b16 %v3327, %v3326
        %v3346 = vpack.c.b16 %v3329, %v3328
        %v3347 = vpack.c.b16 %v3330, %v3330
        %v3348 = vrot.slane %v3331, 1
        %v3349 = vrot.slane %v3332, 1
        %v3350 = vsel %vm2067, %v3348, %v3349
        %v3351 = vrot.slane %v3333, 1
        %v3352 = vsel %vm2067, %v3349, %v3351
        %v3353 = vrot.slane %v3334, 1
        %v3354 = vsel %vm2067, %v3351, %v3353
        %v3355 = vrot.slane %v3335, 1
        %v3356 = vsel %vm2067, %v3353, %v3355
        %v3357 = vrot.slane %v3336, 1
        %v3358 = vsel %vm2067, %v3355, %v3357
        %v3359 = vrot.slane %v3337, 1
        %v3360 = vsel %vm2067, %v3357, %v3359
        %v3361 = vrot.slane %v3338, 1
        %v3362 = vsel %vm2067, %v3359, %v3361
        %v3363 = vrot.slane %v3339, 1
        %v3364 = vsel %vm2067, %v3361, %v3363
        %v3365 = vrot.slane %v3340, 1
        %v3366 = vsel %vm2067, %v3363, %v3365
        %v3367 = vrot.slane %v3341, 1
        %v3368 = vsel %vm2067, %v3365, %v3367
        %v3369 = vrot.slane %v3342, 1
        %v3370 = vsel %vm2067, %v3367, %v3369
        %v3371 = vrot.slane %v3343, 1
        %v3372 = vsel %vm2067, %v3369, %v3371
        %v3373 = vrot.slane %v3344, 1
        %v3374 = vsel %vm2067, %v3371, %v3373
        %v3375 = vrot.slane %v3345, 1
        %v3376 = vsel %vm2067, %v3373, %v3375
        %v3377 = vrot.slane %v3346, 1
        %v3378 = vsel %vm2067, %v3375, %v3377
        %v3379 = vrot.slane %v3347, 1
        %v3380 = vsel %vm2067, %v3377, %v3379
        %v3382 = vsel %vm1183, %v3350, 0
        %v3385 = vsel %vm1183, %v3352, 0
        %v3388 = vsel %vm1183, %v3354, 0
        %v3391 = vsel %vm1183, %v3356, 0
        %v3394 = vsel %vm1183, %v3358, 0
        %v3397 = vsel %vm1183, %v3360, 0
        %v3400 = vsel %vm1183, %v3362, 0
        %v3403 = vsel %vm1183, %v3364, 0
        %v3406 = vsel %vm1183, %v3366, 0
        %v3409 = vsel %vm1183, %v3368, 0
        %v3412 = vsel %vm1183, %v3370, 0
        %v3415 = vsel %vm1183, %v3372, 0
        %v3418 = vsel %vm1183, %v3374, 0
        %v3421 = vsel %vm1183, %v3376, 0
        %v3424 = vsel %vm1183, %v3378, 0
        %v3427 = vsel %vm1183, %v3380, 0
        %v3430 = vsel %vm1232, %v3264, 0
        %3432 = vmatprep.subr.bf16.mxu0 0
        %3433 = vmatpush1.bf16.msra.mxu0 %v3430
        %3434 = vmatprep.subr.bf16.mxu0 0
        %3435 = vmatpush1.bf16.msra.mxu0 0
        %3436 = vmatprep.subr.bf16.mxu0 0
        %3437 = vmatpush1.bf16.msra.mxu0 0
        %3438 = vmatprep.subr.bf16.mxu0 0
        %3439 = vmatpush1.bf16.msra.mxu0 0
        %3440 = vmatprep.subr.bf16.mxu0 0
        %3441 = vmatpush1.bf16.msra.mxu0 0
        %3442 = vmatprep.subr.bf16.mxu0 0
        %3443 = vmatpush1.bf16.msra.mxu0 0
        %3444 = vmatprep.subr.bf16.mxu0 0
        %3445 = vmatpush1.bf16.msra.mxu0 0
        %3446 = vmatprep.subr.bf16.mxu0 0
        %3447 = vmatpush1.bf16.msra.mxu0 0
        %3448 = vmatprep.subr.bf16.mxu0 0
        %3449 = vmatpush1.bf16.msra.mxu0 0
        %3450 = vmatprep.subr.bf16.mxu0 0
        %3451 = vmatpush1.bf16.msra.mxu0 0
        %3452 = vmatprep.subr.bf16.mxu0 0
        %3453 = vmatpush1.bf16.msra.mxu0 0
        %3454 = vmatprep.subr.bf16.mxu0 0
        %3455 = vmatpush1.bf16.msra.mxu0 0
        %3456 = vmatprep.subr.bf16.mxu0 0
        %3457 = vmatpush1.bf16.msra.mxu0 0
        %3458 = vmatprep.subr.bf16.mxu0 0
        %3459 = vmatpush1.bf16.msra.mxu0 0
        %3460 = vmatprep.subr.bf16.mxu0 0
        %3461 = vmatpush1.bf16.msra.mxu0 0
        %3462 = vmatprep.subr.bf16.mxu0 0
        %3463 = vmatpush1.bf16.msra.mxu0 0
        %3464 = vmatprep.mubr.bf16.mxu0 0
        %3465 = vmatmul.mubr.bf16.gmra.mrb[0].mxu0 %v3382
        %v3466 = vpop.f32.mrb[0].mxu0
        %v3467 = vadd.f32 0.0, %v3466
        %v3468 = vpop.f32.mrb[0].mxu0
        %v3469 = vpop.f32.mrb[0].mxu0
        %v3470 = vadd.f32 0.0, %v3469
        %v3471 = vpop.f32.mrb[0].mxu0
        %3472 = vmatprep.mubr.bf16.mxu0 0
        %3473 = vmatmul.mubr.bf16.gmra.mrb[0].mxu0 %v3385
        %v3474 = vpop.f32.mrb[0].mxu0
        %v3475 = vadd.f32 0.0, %v3474
        %v3476 = vpop.f32.mrb[0].mxu0
        %v3477 = vpop.f32.mrb[0].mxu0
        %v3478 = vadd.f32 0.0, %v3477
        %v3479 = vpop.f32.mrb[0].mxu0
        %3480 = vmatprep.mubr.bf16.mxu0 0
        %3481 = vmatmul.mubr.bf16.gmra.mrb[0].mxu0 %v3388
        %v3482 = vpop.f32.mrb[0].mxu0
        %v3483 = vadd.f32 0.0, %v3482
        %v3484 = vpop.f32.mrb[0].mxu0
        %v3485 = vpop.f32.mrb[0].mxu0
        %v3486 = vadd.f32 0.0, %v3485
        %v3487 = vpop.f32.mrb[0].mxu0
        %3488 = vmatprep.mubr.bf16.mxu0 0
        %3489 = vmatmul.mubr.bf16.gmra.mrb[0].mxu0 %v3391
        %v3490 = vpop.f32.mrb[0].mxu0
        %v3491 = vadd.f32 0.0, %v3490
        %v3492 = vpop.f32.mrb[0].mxu0
        %v3493 = vpop.f32.mrb[0].mxu0
        %v3494 = vadd.f32 0.0, %v3493
        %v3495 = vpop.f32.mrb[0].mxu0
        %3496 = vmatprep.mubr.bf16.mxu0 0
        %3497 = vmatmul.mubr.bf16.gmra.mrb[0].mxu0 %v3394
        %v3498 = vpop.f32.mrb[0].mxu0
        %v3499 = vadd.f32 0.0, %v3498
        %v3500 = vpop.f32.mrb[0].mxu0
        %v3501 = vpop.f32.mrb[0].mxu0
        %v3502 = vadd.f32 0.0, %v3501
        %v3503 = vpop.f32.mrb[0].mxu0
        %3504 = vmatprep.mubr.bf16.mxu0 0
        %3505 = vmatmul.mubr.bf16.gmra.mrb[0].mxu0 %v3397
        %v3506 = vpop.f32.mrb[0].mxu0
        %v3507 = vadd.f32 0.0, %v3506
        %v3508 = vpop.f32.mrb[0].mxu0
        %v3509 = vpop.f32.mrb[0].mxu0
        %v3510 = vadd.f32 0.0, %v3509
        %v3511 = vpop.f32.mrb[0].mxu0
        %3512 = vmatprep.mubr.bf16.mxu0 0
        %3513 = vmatmul.mubr.bf16.gmra.mrb[0].mxu0 %v3400
        %v3514 = vpop.f32.mrb[0].mxu0
        %v3515 = vadd.f32 0.0, %v3514
        %v3516 = vpop.f32.mrb[0].mxu0
        %v3517 = vpop.f32.mrb[0].mxu0
        %v3518 = vadd.f32 0.0, %v3517
        %v3519 = vpop.f32.mrb[0].mxu0
        %3520 = vmatprep.mubr.bf16.mxu0 0
        %3521 = vmatmul.mubr.bf16.gmra.mrb[0].mxu0 %v3403
        %v3522 = vpop.f32.mrb[0].mxu0
        %v3523 = vadd.f32 0.0, %v3522
        %v3524 = vpop.f32.mrb[0].mxu0
        %v3525 = vpop.f32.mrb[0].mxu0
        %v3526 = vadd.f32 0.0, %v3525
        %v3527 = vpop.f32.mrb[0].mxu0
        %3528 = vmatprep.mubr.bf16.mxu0 0
        %3529 = vmatmul.mubr.bf16.gmra.mrb[0].mxu0 %v3406
        %v3530 = vpop.f32.mrb[0].mxu0
        %v3531 = vadd.f32 0.0, %v3530
        %v3532 = vpop.f32.mrb[0].mxu0
        %v3533 = vpop.f32.mrb[0].mxu0
        %v3534 = vadd.f32 0.0, %v3533
        %v3535 = vpop.f32.mrb[0].mxu0
        %3536 = vmatprep.mubr.bf16.mxu0 0
        %3537 = vmatmul.mubr.bf16.gmra.mrb[0].mxu0 %v3409
        %v3538 = vpop.f32.mrb[0].mxu0
        %v3539 = vadd.f32 0.0, %v3538
        %v3540 = vpop.f32.mrb[0].mxu0
        %v3541 = vpop.f32.mrb[0].mxu0
        %v3542 = vadd.f32 0.0, %v3541
        %v3543 = vpop.f32.mrb[0].mxu0
        %3544 = vmatprep.mubr.bf16.mxu0 0
        %3545 = vmatmul.mubr.bf16.gmra.mrb[0].mxu0 %v3412
        %v3546 = vpop.f32.mrb[0].mxu0
        %v3547 = vadd.f32 0.0, %v3546
        %v3548 = vpop.f32.mrb[0].mxu0
        %v3549 = vpop.f32.mrb[0].mxu0
        %v3550 = vadd.f32 0.0, %v3549
        %v3551 = vpop.f32.mrb[0].mxu0
        %3552 = vmatprep.mubr.bf16.mxu0 0
        %3553 = vmatmul.mubr.bf16.gmra.mrb[0].mxu0 %v3415
        %v3554 = vpop.f32.mrb[0].mxu0
        %v3555 = vadd.f32 0.0, %v3554
        %v3556 = vpop.f32.mrb[0].mxu0
        %v3557 = vpop.f32.mrb[0].mxu0
        %v3558 = vadd.f32 0.0, %v3557
        %v3559 = vpop.f32.mrb[0].mxu0
        %3560 = vmatprep.mubr.bf16.mxu0 0
        %3561 = vmatmul.mubr.bf16.gmra.mrb[0].mxu0 %v3418
        %v3562 = vpop.f32.mrb[0].mxu0
        %v3563 = vadd.f32 0.0, %v3562
        %v3564 = vpop.f32.mrb[0].mxu0
        %v3565 = vpop.f32.mrb[0].mxu0
        %v3566 = vadd.f32 0.0, %v3565
        %v3567 = vpop.f32.mrb[0].mxu0
        %3568 = vmatprep.mubr.bf16.mxu0 0
        %3569 = vmatmul.mubr.bf16.gmra.mrb[0].mxu0 %v3421
        %v3570 = vpop.f32.mrb[0].mxu0
        %v3571 = vadd.f32 0.0, %v3570
        %v3572 = vpop.f32.mrb[0].mxu0
        %v3573 = vpop.f32.mrb[0].mxu0
        %v3574 = vadd.f32 0.0, %v3573
        %v3575 = vpop.f32.mrb[0].mxu0
        %3576 = vmatprep.mubr.bf16.mxu0 0
        %3577 = vmatmul.mubr.bf16.gmra.mrb[0].mxu0 %v3424
        %v3578 = vpop.f32.mrb[0].mxu0
        %v3579 = vadd.f32 0.0, %v3578
        %v3580 = vpop.f32.mrb[0].mxu0
        %v3581 = vpop.f32.mrb[0].mxu0
        %v3582 = vadd.f32 0.0, %v3581
        %v3583 = vpop.f32.mrb[0].mxu0
        %3584 = vmatprep.mubr.bf16.mxu0 0
        %3585 = vmatmul.mubr.bf16.gmra.mrb[0].mxu0 %v3427
        %v3586 = vpop.f32.mrb[0].mxu0
        %v3587 = vadd.f32 0.0, %v3586
        %v3588 = vpop.f32.mrb[0].mxu0
        %v3589 = vpop.f32.mrb[0].mxu0
        %v3590 = vadd.f32 0.0, %v3589
        %v3591 = vpop.f32.mrb[0].mxu0
        %3592 = vdwg.mxu0
        %v3593 = vadd.f32 %v3197, %v3467
        %v3594 = vadd.f32 %v3198, %v3470
        %v3595 = vadd.f32 %v3199, %v3475
        %v3596 = vadd.f32 %v3200, %v3478
        %v3597 = vadd.f32 %v3201, %v3483
        %v3598 = vadd.f32 %v3202, %v3486
        %v3599 = vadd.f32 %v3203, %v3491
        %v3600 = vadd.f32 %v3204, %v3494
        %v3601 = vadd.f32 %v3205, %v3499
        %v3602 = vadd.f32 %v3206, %v3502
        %v3603 = vadd.f32 %v3207, %v3507
        %v3604 = vadd.f32 %v3208, %v3510
        %v3605 = vadd.f32 %v3209, %v3515
        %v3606 = vadd.f32 %v3210, %v3518
        %v3607 = vadd.f32 %v3211, %v3523
        %v3608 = vadd.f32 %v3212, %v3526
        %v3609 = vadd.f32 %v3213, %v3531
        %v3610 = vadd.f32 %v3214, %v3534
        %v3611 = vadd.f32 %v3215, %v3539
        %v3612 = vadd.f32 %v3216, %v3542
        %v3613 = vadd.f32 %v3217, %v3547
        %v3614 = vadd.f32 %v3218, %v3550
        %v3615 = vadd.f32 %v3219, %v3555
        %v3616 = vadd.f32 %v3220, %v3558
        %v3617 = vadd.f32 %v3221, %v3563
        %v3618 = vadd.f32 %v3222, %v3566
        %v3619 = vadd.f32 %v3223, %v3571
        %v3620 = vadd.f32 %v3224, %v3574
        %v3621 = vadd.f32 %v3225, %v3579
        %v3622 = vadd.f32 %v3226, %v3582
        %v3623 = vadd.f32 %v3227, %v3587
        %v3624 = vadd.f32 %v3228, %v3590
        %v3625 = vld [vmem:[%s318 + $0x10] sm:$0xf]
        %v3626 = vld [vmem:[%s318 + $0x14] sm:$0xf]
        %v3627 = vld [vmem:[%s318 + $0x18] sm:$0xf]
        %v3628 = vld [vmem:[%s318 + $0x1c] sm:$0xf]
        %v3629 = vld [vmem:[%s318 + $0x20] sm:$0xf]
        %v3630 = vld [vmem:[%s318 + $0x24] sm:$0xf]
        %v3631 = vld [vmem:[%s318 + $0x28] sm:$0xf]
        %v3632 = vld [vmem:[%s318 + $0x2c] sm:$0xf]
        %v3633 = vld [vmem:[%s318 + $0x30] sm:$0xf]
        %v3634 = vld [vmem:[%s318 + $0x34] sm:$0xf]
        %v3635 = vld [vmem:[%s318 + $0x38] sm:$0xf]
        %v3636 = vld [vmem:[%s318 + $0x3c] sm:$0xf]
        %v3637 = vld [vmem:[%s318 + $0x40] sm:$0xf]
        %v3638 = vld [vmem:[%s318 + $0x44] sm:$0xf]
        %v3639 = vld [vmem:[%s318 + $0x48] sm:$0xf]
        %v3640 = vld [vmem:[%s318 + $0x4c] sm:$0xf]
        %v3641 = vld [vmem:[%s318 + $0x50] sm:$0xf]
        %v3642 = vld [vmem:[%s318 + $0x54] sm:$0xf]
        %v3643 = vld [vmem:[%s318 + $0x58] sm:$0xf]
        %v3644 = vld [vmem:[%s318 + $0x5c] sm:$0xf]
        %v3645 = vld [vmem:[%s318 + $0x60] sm:$0xf]
        %v3646 = vld [vmem:[%s318 + $0x64] sm:$0xf]
        %v3647 = vld [vmem:[%s318 + $0x68] sm:$0xf]
        %v3648 = vld [vmem:[%s318 + $0x6c] sm:$0xf]
        %v3649 = vld [vmem:[%s318 + $0x70] sm:$0xf]
        %v3650 = vld [vmem:[%s318 + $0x74] sm:$0xf]
        %v3651 = vld [vmem:[%s318 + $0x78] sm:$0xf]
        %v3652 = vld [vmem:[%s318 + $0x7c] sm:$0xf]
        %v3653 = vld [vmem:[%s318 + $0x80] sm:$0xf]
        %v3654 = vld [vmem:[%s318 + $0x84] sm:$0xf]
        %v3655 = vld [vmem:[%s318 + $0x88] sm:$0xf]
        %v3656 = vld [vmem:[%s318 + $0x8c] sm:$0xf]
        %v3657 = vsel %vm899, %v3625, 0
        %v3658 = vsel %vm900, %v3626, 0
        %v3659 = vsel %vm901, %v3627, 0
        %v3660 = vsel %vm902, %v3628, 0
        %v3661 = vsel %vm903, %v3629, 0
        %v3662 = vsel %vm904, %v3630, 0
        %v3663 = vsel %vm905, %v3631, 0
        %v3664 = vsel %vm906, %v3632, 0
        %v3665 = vsel %vm907, %v3633, 0
        %v3666 = vsel %vm908, %v3634, 0
        %v3667 = vsel %vm909, %v3635, 0
        %v3668 = vsel %vm910, %v3636, 0
        %v3669 = vsel %vm911, %v3637, 0
        %v3670 = vsel %vm912, %v3638, 0
        %v3671 = vsel %vm913, %v3639, 0
        %v3672 = vsel %vm914, %v3640, 0
        %v3673 = vsel %vm915, %v3641, 0
        %v3674 = vsel %vm916, %v3642, 0
        %v3675 = vsel %vm917, %v3643, 0
        %v3676 = vsel %vm918, %v3644, 0
        %v3677 = vsel %vm919, %v3645, 0
        %v3678 = vsel %vm920, %v3646, 0
        %v3679 = vsel %vm921, %v3647, 0
        %v3680 = vsel %vm922, %v3648, 0
        %v3681 = vsel %vm923, %v3649, 0
        %v3682 = vsel %vm924, %v3650, 0
        %v3683 = vsel %vm925, %v3651, 0
        %v3684 = vsel %vm926, %v3652, 0
        %v3685 = vsel %vm927, %v3653, 0
        %v3686 = vsel %vm928, %v3654, 0
        %v3687 = vsel %vm929, %v3655, 0
        %v3688 = vsel %vm930, %v3656, 0
        %s3689 = scalar_lea.vmem %s1, 12
        %v3690 = vld [vmem:[%s3689] sm:$0x3]
        %v3723 = vunpack.c.l.b16 %v3657
        %v3724 = vunpack.c.l.b16 %v3658
        %v3725 = vunpack.c.l.b16 %v3659
        %v3726 = vunpack.c.l.b16 %v3660
        %v3727 = vunpack.c.l.b16 %v3661
        %v3728 = vunpack.c.l.b16 %v3662
        %v3729 = vunpack.c.l.b16 %v3663
        %v3730 = vunpack.c.l.b16 %v3664
        %v3731 = vunpack.c.l.b16 %v3665
        %v3732 = vunpack.c.l.b16 %v3666
        %v3733 = vunpack.c.l.b16 %v3667
        %v3734 = vunpack.c.l.b16 %v3668
        %v3735 = vunpack.c.l.b16 %v3669
        %v3736 = vunpack.c.l.b16 %v3670
        %v3737 = vunpack.c.l.b16 %v3671
        %v3738 = vunpack.c.l.b16 %v3672
        %v3739 = vunpack.c.l.b16 %v3673
        %v3740 = vunpack.c.l.b16 %v3674
        %v3741 = vunpack.c.l.b16 %v3675
        %v3742 = vunpack.c.l.b16 %v3676
        %v3743 = vunpack.c.l.b16 %v3677
        %v3744 = vunpack.c.l.b16 %v3678
        %v3745 = vunpack.c.l.b16 %v3679
        %v3746 = vunpack.c.l.b16 %v3680
        %v3747 = vunpack.c.l.b16 %v3681
        %v3748 = vunpack.c.l.b16 %v3682
        %v3749 = vunpack.c.l.b16 %v3683
        %v3750 = vunpack.c.l.b16 %v3684
        %v3751 = vunpack.c.l.b16 %v3685
        %v3752 = vunpack.c.l.b16 %v3686
        %v3753 = vunpack.c.l.b16 %v3687
        %v3754 = vunpack.c.l.b16 %v3688
        %v3755 = vpack.c.b16 %v3724, %v3723
        %v3756 = vpack.c.b16 %v3726, %v3725
        %v3757 = vpack.c.b16 %v3728, %v3727
        %v3758 = vpack.c.b16 %v3730, %v3729
        %v3759 = vpack.c.b16 %v3732, %v3731
        %v3760 = vpack.c.b16 %v3734, %v3733
        %v3761 = vpack.c.b16 %v3736, %v3735
        %v3762 = vpack.c.b16 %v3738, %v3737
        %v3763 = vpack.c.b16 %v3740, %v3739
        %v3764 = vpack.c.b16 %v3742, %v3741
        %v3765 = vpack.c.b16 %v3744, %v3743
        %v3766 = vpack.c.b16 %v3746, %v3745
        %v3767 = vpack.c.b16 %v3748, %v3747
        %v3768 = vpack.c.b16 %v3750, %v3749
        %v3769 = vpack.c.b16 %v3752, %v3751
        %v3770 = vpack.c.b16 %v3754, %v3753
        %v3772 = vsel %vm1183, %v3755, 0
        %v3775 = vsel %vm1183, %v3756, 0
        %v3778 = vsel %vm1183, %v3757, 0
        %v3781 = vsel %vm1183, %v3758, 0
        %v3784 = vsel %vm1183, %v3759, 0
        %v3787 = vsel %vm1183, %v3760, 0
        %v3790 = vsel %vm1183, %v3761, 0
        %v3793 = vsel %vm1183, %v3762, 0
        %v3796 = vsel %vm1183, %v3763, 0
        %v3799 = vsel %vm1183, %v3764, 0
        %v3802 = vsel %vm1183, %v3765, 0
        %v3805 = vsel %vm1183, %v3766, 0
        %v3808 = vsel %vm1183, %v3767, 0
        %v3811 = vsel %vm1183, %v3768, 0
        %v3814 = vsel %vm1183, %v3769, 0
        %v3817 = vsel %vm1183, %v3770, 0
        %v3820 = vsel %vm1232, %v3690, 0
        %3822 = vmatprep.subr.bf16.mxu0 0
        %3823 = vmatpush1.bf16.msra.mxu0 %v3820
        %3824 = vmatprep.subr.bf16.mxu0 0
        %3825 = vmatpush1.bf16.msra.mxu0 0
        %3826 = vmatprep.subr.bf16.mxu0 0
        %3827 = vmatpush1.bf16.msra.mxu0 0
        %3828 = vmatprep.subr.bf16.mxu0 0
        %3829 = vmatpush1.bf16.msra.mxu0 0
        %3830 = vmatprep.subr.bf16.mxu0 0
        %3831 = vmatpush1.bf16.msra.mxu0 0
        %3832 = vmatprep.subr.bf16.mxu0 0
        %3833 = vmatpush1.bf16.msra.mxu0 0
        %3834 = vmatprep.subr.bf16.mxu0 0
        %3835 = vmatpush1.bf16.msra.mxu0 0
        %3836 = vmatprep.subr.bf16.mxu0 0
        %3837 = vmatpush1.bf16.msra.mxu0 0
        %3838 = vmatprep.subr.bf16.mxu0 0
        %3839 = vmatpush1.bf16.msra.mxu0 0
        %3840 = vmatprep.subr.bf16.mxu0 0
        %3841 = vmatpush1.bf16.msra.mxu0 0
        %3842 = vmatprep.subr.bf16.mxu0 0
        %3843 = vmatpush1.bf16.msra.mxu0 0
        %3844 = vmatprep.subr.bf16.mxu0 0
        %3845 = vmatpush1.bf16.msra.mxu0 0
        %3846 = vmatprep.subr.bf16.mxu0 0
        %3847 = vmatpush1.bf16.msra.mxu0 0
        %3848 = vmatprep.subr.bf16.mxu0 0
        %3849 = vmatpush1.bf16.msra.mxu0 0
        %3850 = vmatprep.subr.bf16.mxu0 0
        %3851 = vmatpush1.bf16.msra.mxu0 0
        %3852 = vmatprep.subr.bf16.mxu0 0
        %3853 = vmatpush1.bf16.msra.mxu0 0
        %3854 = vmatprep.mubr.bf16.mxu0 0
        %3855 = vmatmul.mubr.bf16.gmra.mrb[0].mxu0 %v3772
        %v3856 = vpop.f32.mrb[0].mxu0
        %v3857 = vadd.f32 0.0, %v3856
        %v3858 = vpop.f32.mrb[0].mxu0
        %v3859 = vpop.f32.mrb[0].mxu0
        %v3860 = vadd.f32 0.0, %v3859
        %v3861 = vpop.f32.mrb[0].mxu0
        %3862 = vmatprep.mubr.bf16.mxu0 0
        %3863 = vmatmul.mubr.bf16.gmra.mrb[0].mxu0 %v3775
        %v3864 = vpop.f32.mrb[0].mxu0
        %v3865 = vadd.f32 0.0, %v3864
        %v3866 = vpop.f32.mrb[0].mxu0
        %v3867 = vpop.f32.mrb[0].mxu0
        %v3868 = vadd.f32 0.0, %v3867
        %v3869 = vpop.f32.mrb[0].mxu0
        %3870 = vmatprep.mubr.bf16.mxu0 0
        %3871 = vmatmul.mubr.bf16.gmra.mrb[0].mxu0 %v3778
        %v3872 = vpop.f32.mrb[0].mxu0
        %v3873 = vadd.f32 0.0, %v3872
        %v3874 = vpop.f32.mrb[0].mxu0
        %v3875 = vpop.f32.mrb[0].mxu0
        %v3876 = vadd.f32 0.0, %v3875
        %v3877 = vpop.f32.mrb[0].mxu0
        %3878 = vmatprep.mubr.bf16.mxu0 0
        %3879 = vmatmul.mubr.bf16.gmra.mrb[0].mxu0 %v3781
        %v3880 = vpop.f32.mrb[0].mxu0
        %v3881 = vadd.f32 0.0, %v3880
        %v3882 = vpop.f32.mrb[0].mxu0
        %v3883 = vpop.f32.mrb[0].mxu0
        %v3884 = vadd.f32 0.0, %v3883
        %v3885 = vpop.f32.mrb[0].mxu0
        %3886 = vmatprep.mubr.bf16.mxu0 0
        %3887 = vmatmul.mubr.bf16.gmra.mrb[0].mxu0 %v3784
        %v3888 = vpop.f32.mrb[0].mxu0
        %v3889 = vadd.f32 0.0, %v3888
        %v3890 = vpop.f32.mrb[0].mxu0
        %v3891 = vpop.f32.mrb[0].mxu0
        %v3892 = vadd.f32 0.0, %v3891
        %v3893 = vpop.f32.mrb[0].mxu0
        %3894 = vmatprep.mubr.bf16.mxu0 0
        %3895 = vmatmul.mubr.bf16.gmra.mrb[0].mxu0 %v3787
        %v3896 = vpop.f32.mrb[0].mxu0
        %v3897 = vadd.f32 0.0, %v3896
        %v3898 = vpop.f32.mrb[0].mxu0
        %v3899 = vpop.f32.mrb[0].mxu0
        %v3900 = vadd.f32 0.0, %v3899
        %v3901 = vpop.f32.mrb[0].mxu0
        %3902 = vmatprep.mubr.bf16.mxu0 0
        %3903 = vmatmul.mubr.bf16.gmra.mrb[0].mxu0 %v3790
        %v3904 = vpop.f32.mrb[0].mxu0
        %v3905 = vadd.f32 0.0, %v3904
        %v3906 = vpop.f32.mrb[0].mxu0
        %v3907 = vpop.f32.mrb[0].mxu0
        %v3908 = vadd.f32 0.0, %v3907
        %v3909 = vpop.f32.mrb[0].mxu0
        %3910 = vmatprep.mubr.bf16.mxu0 0
        %3911 = vmatmul.mubr.bf16.gmra.mrb[0].mxu0 %v3793
        %v3912 = vpop.f32.mrb[0].mxu0
        %v3913 = vadd.f32 0.0, %v3912
        %v3914 = vpop.f32.mrb[0].mxu0
        %v3915 = vpop.f32.mrb[0].mxu0
        %v3916 = vadd.f32 0.0, %v3915
        %v3917 = vpop.f32.mrb[0].mxu0
        %3918 = vmatprep.mubr.bf16.mxu0 0
        %3919 = vmatmul.mubr.bf16.gmra.mrb[0].mxu0 %v3796
        %v3920 = vpop.f32.mrb[0].mxu0
        %v3921 = vadd.f32 0.0, %v3920
        %v3922 = vpop.f32.mrb[0].mxu0
        %v3923 = vpop.f32.mrb[0].mxu0
        %v3924 = vadd.f32 0.0, %v3923
        %v3925 = vpop.f32.mrb[0].mxu0
        %3926 = vmatprep.mubr.bf16.mxu0 0
        %3927 = vmatmul.mubr.bf16.gmra.mrb[0].mxu0 %v3799
        %v3928 = vpop.f32.mrb[0].mxu0
        %v3929 = vadd.f32 0.0, %v3928
        %v3930 = vpop.f32.mrb[0].mxu0
        %v3931 = vpop.f32.mrb[0].mxu0
        %v3932 = vadd.f32 0.0, %v3931
        %v3933 = vpop.f32.mrb[0].mxu0
        %3934 = vmatprep.mubr.bf16.mxu0 0
        %3935 = vmatmul.mubr.bf16.gmra.mrb[0].mxu0 %v3802
        %v3936 = vpop.f32.mrb[0].mxu0
        %v3937 = vadd.f32 0.0, %v3936
        %v3938 = vpop.f32.mrb[0].mxu0
        %v3939 = vpop.f32.mrb[0].mxu0
        %v3940 = vadd.f32 0.0, %v3939
        %v3941 = vpop.f32.mrb[0].mxu0
        %3942 = vmatprep.mubr.bf16.mxu0 0
        %3943 = vmatmul.mubr.bf16.gmra.mrb[0].mxu0 %v3805
        %v3944 = vpop.f32.mrb[0].mxu0
        %v3945 = vadd.f32 0.0, %v3944
        %v3946 = vpop.f32.mrb[0].mxu0
        %v3947 = vpop.f32.mrb[0].mxu0
        %v3948 = vadd.f32 0.0, %v3947
        %v3949 = vpop.f32.mrb[0].mxu0
        %3950 = vmatprep.mubr.bf16.mxu0 0
        %3951 = vmatmul.mubr.bf16.gmra.mrb[0].mxu0 %v3808
        %v3952 = vpop.f32.mrb[0].mxu0
        %v3953 = vadd.f32 0.0, %v3952
        %v3954 = vpop.f32.mrb[0].mxu0
        %v3955 = vpop.f32.mrb[0].mxu0
        %v3956 = vadd.f32 0.0, %v3955
        %v3957 = vpop.f32.mrb[0].mxu0
        %3958 = vmatprep.mubr.bf16.mxu0 0
        %3959 = vmatmul.mubr.bf16.gmra.mrb[0].mxu0 %v3811
        %v3960 = vpop.f32.mrb[0].mxu0
        %v3961 = vadd.f32 0.0, %v3960
        %v3962 = vpop.f32.mrb[0].mxu0
        %v3963 = vpop.f32.mrb[0].mxu0
        %v3964 = vadd.f32 0.0, %v3963
        %v3965 = vpop.f32.mrb[0].mxu0
        %3966 = vmatprep.mubr.bf16.mxu0 0
        %3967 = vmatmul.mubr.bf16.gmra.mrb[0].mxu0 %v3814
        %v3968 = vpop.f32.mrb[0].mxu0
        %v3969 = vadd.f32 0.0, %v3968
        %v3970 = vpop.f32.mrb[0].mxu0
        %v3971 = vpop.f32.mrb[0].mxu0
        %v3972 = vadd.f32 0.0, %v3971
        %v3973 = vpop.f32.mrb[0].mxu0
        %3974 = vmatprep.mubr.bf16.mxu0 0
        %3975 = vmatmul.mubr.bf16.gmra.mrb[0].mxu0 %v3817
        %v3976 = vpop.f32.mrb[0].mxu0
        %v3977 = vadd.f32 0.0, %v3976
        %v3978 = vpop.f32.mrb[0].mxu0
        %v3979 = vpop.f32.mrb[0].mxu0
        %v3980 = vadd.f32 0.0, %v3979
        %v3981 = vpop.f32.mrb[0].mxu0
        %3982 = vdwg.mxu0
        %v3983 = vadd.f32 %v3593, %v3857
        %v3984 = vadd.f32 %v3594, %v3860
        %v3985 = vadd.f32 %v3595, %v3865
        %v3986 = vadd.f32 %v3596, %v3868
        %v3987 = vadd.f32 %v3597, %v3873
        %v3988 = vadd.f32 %v3598, %v3876
        %v3989 = vadd.f32 %v3599, %v3881
        %v3990 = vadd.f32 %v3600, %v3884
        %v3991 = vadd.f32 %v3601, %v3889
        %v3992 = vadd.f32 %v3602, %v3892
        %v3993 = vadd.f32 %v3603, %v3897
        %v3994 = vadd.f32 %v3604, %v3900
        %v3995 = vadd.f32 %v3605, %v3905
        %v3996 = vadd.f32 %v3606, %v3908
        %v3997 = vadd.f32 %v3607, %v3913
        %v3998 = vadd.f32 %v3608, %v3916
        %v3999 = vadd.f32 %v3609, %v3921
        %v4000 = vadd.f32 %v3610, %v3924
        %v4001 = vadd.f32 %v3611, %v3929
        %v4002 = vadd.f32 %v3612, %v3932
        %v4003 = vadd.f32 %v3613, %v3937
        %v4004 = vadd.f32 %v3614, %v3940
        %v4005 = vadd.f32 %v3615, %v3945
        %v4006 = vadd.f32 %v3616, %v3948
        %v4007 = vadd.f32 %v3617, %v3953
        %v4008 = vadd.f32 %v3618, %v3956
        %v4009 = vadd.f32 %v3619, %v3961
        %v4010 = vadd.f32 %v3620, %v3964
        %v4011 = vadd.f32 %v3621, %v3969
        %v4012 = vadd.f32 %v3622, %v3972
        %v4013 = vadd.f32 %v3623, %v3977
        %v4014 = vadd.f32 %v3624, %v3980
        %v4015 = vld [vmem:[%s318 + $0x10] sm:$0xf]
        %v4016 = vld [vmem:[%s318 + $0x14] sm:$0xf]
        %v4017 = vld [vmem:[%s318 + $0x18] sm:$0xf]
        %v4018 = vld [vmem:[%s318 + $0x1c] sm:$0xf]
        %v4019 = vld [vmem:[%s318 + $0x20] sm:$0xf]
        %v4020 = vld [vmem:[%s318 + $0x24] sm:$0xf]
        %v4021 = vld [vmem:[%s318 + $0x28] sm:$0xf]
        %v4022 = vld [vmem:[%s318 + $0x2c] sm:$0xf]
        %v4023 = vld [vmem:[%s318 + $0x30] sm:$0xf]
        %v4024 = vld [vmem:[%s318 + $0x34] sm:$0xf]
        %v4025 = vld [vmem:[%s318 + $0x38] sm:$0xf]
        %v4026 = vld [vmem:[%s318 + $0x3c] sm:$0xf]
        %v4027 = vld [vmem:[%s318 + $0x40] sm:$0xf]
        %v4028 = vld [vmem:[%s318 + $0x44] sm:$0xf]
        %v4029 = vld [vmem:[%s318 + $0x48] sm:$0xf]
        %v4030 = vld [vmem:[%s318 + $0x4c] sm:$0xf]
        %v4031 = vld [vmem:[%s318 + $0x50] sm:$0xf]
        %v4032 = vld [vmem:[%s318 + $0x54] sm:$0xf]
        %v4033 = vld [vmem:[%s318 + $0x58] sm:$0xf]
        %v4034 = vld [vmem:[%s318 + $0x5c] sm:$0xf]
        %v4035 = vld [vmem:[%s318 + $0x60] sm:$0xf]
        %v4036 = vld [vmem:[%s318 + $0x64] sm:$0xf]
        %v4037 = vld [vmem:[%s318 + $0x68] sm:$0xf]
        %v4038 = vld [vmem:[%s318 + $0x6c] sm:$0xf]
        %v4039 = vld [vmem:[%s318 + $0x70] sm:$0xf]
        %v4040 = vld [vmem:[%s318 + $0x74] sm:$0xf]
        %v4041 = vld [vmem:[%s318 + $0x78] sm:$0xf]
        %v4042 = vld [vmem:[%s318 + $0x7c] sm:$0xf]
        %v4043 = vld [vmem:[%s318 + $0x80] sm:$0xf]
        %v4044 = vld [vmem:[%s318 + $0x84] sm:$0xf]
        %v4045 = vld [vmem:[%s318 + $0x88] sm:$0xf]
        %v4046 = vld [vmem:[%s318 + $0x8c] sm:$0xf]
        %v4047 = vld [vmem:[%s318 + $0x90] sm:$0x1]
        %s4048 = scalar_lea.vmem %s1, 14
        %v4049 = vld [vmem:[%s4048] sm:$0x3]
        %v4083 = vunpack.c.l.b16 %v4015
        %v4084 = vunpack.c.l.b16 %v4016
        %v4085 = vunpack.c.l.b16 %v4017
        %v4086 = vunpack.c.l.b16 %v4018
        %v4087 = vunpack.c.l.b16 %v4019
        %v4088 = vunpack.c.l.b16 %v4020
        %v4089 = vunpack.c.l.b16 %v4021
        %v4090 = vunpack.c.l.b16 %v4022
        %v4091 = vunpack.c.l.b16 %v4023
        %v4092 = vunpack.c.l.b16 %v4024
        %v4093 = vunpack.c.l.b16 %v4025
        %v4094 = vunpack.c.l.b16 %v4026
        %v4095 = vunpack.c.l.b16 %v4027
        %v4096 = vunpack.c.l.b16 %v4028
        %v4097 = vunpack.c.l.b16 %v4029
        %v4098 = vunpack.c.l.b16 %v4030
        %v4099 = vunpack.c.l.b16 %v4031
        %v4100 = vunpack.c.l.b16 %v4032
        %v4101 = vunpack.c.l.b16 %v4033
        %v4102 = vunpack.c.l.b16 %v4034
        %v4103 = vunpack.c.l.b16 %v4035
        %v4104 = vunpack.c.l.b16 %v4036
        %v4105 = vunpack.c.l.b16 %v4037
        %v4106 = vunpack.c.l.b16 %v4038
        %v4107 = vunpack.c.l.b16 %v4039
        %v4108 = vunpack.c.l.b16 %v4040
        %v4109 = vunpack.c.l.b16 %v4041
        %v4110 = vunpack.c.l.b16 %v4042
        %v4111 = vunpack.c.l.b16 %v4043
        %v4112 = vunpack.c.l.b16 %v4044
        %v4113 = vunpack.c.l.b16 %v4045
        %v4114 = vunpack.c.l.b16 %v4046
        %v4115 = vunpack.c.l.b16 %v4047
        %v4116 = vpack.c.b16 %v4084, %v4083
        %v4117 = vpack.c.b16 %v4086, %v4085
        %v4118 = vpack.c.b16 %v4088, %v4087
        %v4119 = vpack.c.b16 %v4090, %v4089
        %v4120 = vpack.c.b16 %v4092, %v4091
        %v4121 = vpack.c.b16 %v4094, %v4093
        %v4122 = vpack.c.b16 %v4096, %v4095
        %v4123 = vpack.c.b16 %v4098, %v4097
        %v4124 = vpack.c.b16 %v4100, %v4099
        %v4125 = vpack.c.b16 %v4102, %v4101
        %v4126 = vpack.c.b16 %v4104, %v4103
        %v4127 = vpack.c.b16 %v4106, %v4105
        %v4128 = vpack.c.b16 %v4108, %v4107
        %v4129 = vpack.c.b16 %v4110, %v4109
        %v4130 = vpack.c.b16 %v4112, %v4111
        %v4131 = vpack.c.b16 %v4114, %v4113
        %v4132 = vpack.c.b16 %v4115, %v4115
        %v4134 = vshrl.u32 %v4116, 16
        %v4136 = vshll.u32 %v4116, 16
        %v4138 = vrot.slane %v4136, 1
        %v4139 = vor.u32 %v4134, %v4138
        %v4141 = vshll.u32 %v4117, 16
        %v4143 = vrot.slane %v4141, 1
        %v4144 = vsel %vm1050, %v4139, %v4143
        %v4145 = vshrl.u32 %v4117, 16
        %v4147 = vor.u32 %v4145, %v4143
        %v4149 = vshll.u32 %v4118, 16
        %v4151 = vrot.slane %v4149, 1
        %v4152 = vsel %vm1050, %v4147, %v4151
        %v4153 = vshrl.u32 %v4118, 16
        %v4155 = vor.u32 %v4153, %v4151
        %v4157 = vshll.u32 %v4119, 16
        %v4159 = vrot.slane %v4157, 1
        %v4160 = vsel %vm1050, %v4155, %v4159
        %v4161 = vshrl.u32 %v4119, 16
        %v4163 = vor.u32 %v4161, %v4159
        %v4165 = vshll.u32 %v4120, 16
        %v4167 = vrot.slane %v4165, 1
        %v4168 = vsel %vm1050, %v4163, %v4167
        %v4169 = vshrl.u32 %v4120, 16
        %v4171 = vor.u32 %v4169, %v4167
        %v4173 = vshll.u32 %v4121, 16
        %v4175 = vrot.slane %v4173, 1
        %v4176 = vsel %vm1050, %v4171, %v4175
        %v4177 = vshrl.u32 %v4121, 16
        %v4179 = vor.u32 %v4177, %v4175
        %v4181 = vshll.u32 %v4122, 16
        %v4183 = vrot.slane %v4181, 1
        %v4184 = vsel %vm1050, %v4179, %v4183
        %v4185 = vshrl.u32 %v4122, 16
        %v4187 = vor.u32 %v4185, %v4183
        %v4189 = vshll.u32 %v4123, 16
        %v4191 = vrot.slane %v4189, 1
        %v4192 = vsel %vm1050, %v4187, %v4191
        %v4193 = vshrl.u32 %v4123, 16
        %v4195 = vor.u32 %v4193, %v4191
        %v4197 = vshll.u32 %v4124, 16
        %v4199 = vrot.slane %v4197, 1
        %v4200 = vsel %vm1050, %v4195, %v4199
        %v4201 = vshrl.u32 %v4124, 16
        %v4203 = vor.u32 %v4201, %v4199
        %v4205 = vshll.u32 %v4125, 16
        %v4207 = vrot.slane %v4205, 1
        %v4208 = vsel %vm1050, %v4203, %v4207
        %v4209 = vshrl.u32 %v4125, 16
        %v4211 = vor.u32 %v4209, %v4207
        %v4213 = vshll.u32 %v4126, 16
        %v4215 = vrot.slane %v4213, 1
        %v4216 = vsel %vm1050, %v4211, %v4215
        %v4217 = vshrl.u32 %v4126, 16
        %v4219 = vor.u32 %v4217, %v4215
        %v4221 = vshll.u32 %v4127, 16
        %v4223 = vrot.slane %v4221, 1
        %v4224 = vsel %vm1050, %v4219, %v4223
        %v4225 = vshrl.u32 %v4127, 16
        %v4227 = vor.u32 %v4225, %v4223
        %v4229 = vshll.u32 %v4128, 16
        %v4231 = vrot.slane %v4229, 1
        %v4232 = vsel %vm1050, %v4227, %v4231
        %v4233 = vshrl.u32 %v4128, 16
        %v4235 = vor.u32 %v4233, %v4231
        %v4237 = vshll.u32 %v4129, 16
        %v4239 = vrot.slane %v4237, 1
        %v4240 = vsel %vm1050, %v4235, %v4239
        %v4241 = vshrl.u32 %v4129, 16
        %v4243 = vor.u32 %v4241, %v4239
        %v4245 = vshll.u32 %v4130, 16
        %v4247 = vrot.slane %v4245, 1
        %v4248 = vsel %vm1050, %v4243, %v4247
        %v4249 = vshrl.u32 %v4130, 16
        %v4251 = vor.u32 %v4249, %v4247
        %v4253 = vshll.u32 %v4131, 16
        %v4255 = vrot.slane %v4253, 1
        %v4256 = vsel %vm1050, %v4251, %v4255
        %v4257 = vshrl.u32 %v4131, 16
        %v4259 = vor.u32 %v4257, %v4255
        %v4261 = vshll.u32 %v4132, 16
        %v4263 = vrot.slane %v4261, 1
        %v4264 = vsel %vm1050, %v4259, %v4263
        %v4266 = vsel %vm1183, %v4144, 0
        %v4269 = vsel %vm1183, %v4152, 0
        %v4272 = vsel %vm1183, %v4160, 0
        %v4275 = vsel %vm1183, %v4168, 0
        %v4278 = vsel %vm1183, %v4176, 0
        %v4281 = vsel %vm1183, %v4184, 0
        %v4284 = vsel %vm1183, %v4192, 0
        %v4287 = vsel %vm1183, %v4200, 0
        %v4290 = vsel %vm1183, %v4208, 0
        %v4293 = vsel %vm1183, %v4216, 0
        %v4296 = vsel %vm1183, %v4224, 0
        %v4299 = vsel %vm1183, %v4232, 0
        %v4302 = vsel %vm1183, %v4240, 0
        %v4305 = vsel %vm1183, %v4248, 0
        %v4308 = vsel %vm1183, %v4256, 0
        %v4311 = vsel %vm1183, %v4264, 0
        %v4314 = vsel %vm1232, %v4049, 0
        %4316 = vmatprep.subr.bf16.mxu0 0
        %4317 = vmatpush1.bf16.msra.mxu0 %v4314
        %4318 = vmatprep.subr.bf16.mxu0 0
        %4319 = vmatpush1.bf16.msra.mxu0 0
        %4320 = vmatprep.subr.bf16.mxu0 0
        %4321 = vmatpush1.bf16.msra.mxu0 0
        %4322 = vmatprep.subr.bf16.mxu0 0
        %4323 = vmatpush1.bf16.msra.mxu0 0
        %4324 = vmatprep.subr.bf16.mxu0 0
        %4325 = vmatpush1.bf16.msra.mxu0 0
        %4326 = vmatprep.subr.bf16.mxu0 0
        %4327 = vmatpush1.bf16.msra.mxu0 0
        %4328 = vmatprep.subr.bf16.mxu0 0
        %4329 = vmatpush1.bf16.msra.mxu0 0
        %4330 = vmatprep.subr.bf16.mxu0 0
        %4331 = vmatpush1.bf16.msra.mxu0 0
        %4332 = vmatprep.subr.bf16.mxu0 0
        %4333 = vmatpush1.bf16.msra.mxu0 0
        %4334 = vmatprep.subr.bf16.mxu0 0
        %4335 = vmatpush1.bf16.msra.mxu0 0
        %4336 = vmatprep.subr.bf16.mxu0 0
        %4337 = vmatpush1.bf16.msra.mxu0 0
        %4338 = vmatprep.subr.bf16.mxu0 0
        %4339 = vmatpush1.bf16.msra.mxu0 0
        %4340 = vmatprep.subr.bf16.mxu0 0
        %4341 = vmatpush1.bf16.msra.mxu0 0
        %4342 = vmatprep.subr.bf16.mxu0 0
        %4343 = vmatpush1.bf16.msra.mxu0 0
        %4344 = vmatprep.subr.bf16.mxu0 0
        %4345 = vmatpush1.bf16.msra.mxu0 0
        %4346 = vmatprep.subr.bf16.mxu0 0
        %4347 = vmatpush1.bf16.msra.mxu0 0
        %4348 = vmatprep.mubr.bf16.mxu0 0
        %4349 = vmatmul.mubr.bf16.gmra.mrb[0].mxu0 %v4266
        %v4350 = vpop.f32.mrb[0].mxu0
        %v4351 = vadd.f32 0.0, %v4350
        %v4352 = vpop.f32.mrb[0].mxu0
        %v4353 = vpop.f32.mrb[0].mxu0
        %v4354 = vadd.f32 0.0, %v4353
        %v4355 = vpop.f32.mrb[0].mxu0
        %4356 = vmatprep.mubr.bf16.mxu0 0
        %4357 = vmatmul.mubr.bf16.gmra.mrb[0].mxu0 %v4269
        %v4358 = vpop.f32.mrb[0].mxu0
        %v4359 = vadd.f32 0.0, %v4358
        %v4360 = vpop.f32.mrb[0].mxu0
        %v4361 = vpop.f32.mrb[0].mxu0
        %v4362 = vadd.f32 0.0, %v4361
        %v4363 = vpop.f32.mrb[0].mxu0
        %4364 = vmatprep.mubr.bf16.mxu0 0
        %4365 = vmatmul.mubr.bf16.gmra.mrb[0].mxu0 %v4272
        %v4366 = vpop.f32.mrb[0].mxu0
        %v4367 = vadd.f32 0.0, %v4366
        %v4368 = vpop.f32.mrb[0].mxu0
        %v4369 = vpop.f32.mrb[0].mxu0
        %v4370 = vadd.f32 0.0, %v4369
        %v4371 = vpop.f32.mrb[0].mxu0
        %4372 = vmatprep.mubr.bf16.mxu0 0
        %4373 = vmatmul.mubr.bf16.gmra.mrb[0].mxu0 %v4275
        %v4374 = vpop.f32.mrb[0].mxu0
        %v4375 = vadd.f32 0.0, %v4374
        %v4376 = vpop.f32.mrb[0].mxu0
        %v4377 = vpop.f32.mrb[0].mxu0
        %v4378 = vadd.f32 0.0, %v4377
        %v4379 = vpop.f32.mrb[0].mxu0
        %4380 = vmatprep.mubr.bf16.mxu0 0
        %4381 = vmatmul.mubr.bf16.gmra.mrb[0].mxu0 %v4278
        %v4382 = vpop.f32.mrb[0].mxu0
        %v4383 = vadd.f32 0.0, %v4382
        %v4384 = vpop.f32.mrb[0].mxu0
        %v4385 = vpop.f32.mrb[0].mxu0
        %v4386 = vadd.f32 0.0, %v4385
        %v4387 = vpop.f32.mrb[0].mxu0
        %4388 = vmatprep.mubr.bf16.mxu0 0
        %4389 = vmatmul.mubr.bf16.gmra.mrb[0].mxu0 %v4281
        %v4390 = vpop.f32.mrb[0].mxu0
        %v4391 = vadd.f32 0.0, %v4390
        %v4392 = vpop.f32.mrb[0].mxu0
        %v4393 = vpop.f32.mrb[0].mxu0
        %v4394 = vadd.f32 0.0, %v4393
        %v4395 = vpop.f32.mrb[0].mxu0
        %4396 = vmatprep.mubr.bf16.mxu0 0
        %4397 = vmatmul.mubr.bf16.gmra.mrb[0].mxu0 %v4284
        %v4398 = vpop.f32.mrb[0].mxu0
        %v4399 = vadd.f32 0.0, %v4398
        %v4400 = vpop.f32.mrb[0].mxu0
        %v4401 = vpop.f32.mrb[0].mxu0
        %v4402 = vadd.f32 0.0, %v4401
        %v4403 = vpop.f32.mrb[0].mxu0
        %4404 = vmatprep.mubr.bf16.mxu0 0
        %4405 = vmatmul.mubr.bf16.gmra.mrb[0].mxu0 %v4287
        %v4406 = vpop.f32.mrb[0].mxu0
        %v4407 = vadd.f32 0.0, %v4406
        %v4408 = vpop.f32.mrb[0].mxu0
        %v4409 = vpop.f32.mrb[0].mxu0
        %v4410 = vadd.f32 0.0, %v4409
        %v4411 = vpop.f32.mrb[0].mxu0
        %4412 = vmatprep.mubr.bf16.mxu0 0
        %4413 = vmatmul.mubr.bf16.gmra.mrb[0].mxu0 %v4290
        %v4414 = vpop.f32.mrb[0].mxu0
        %v4415 = vadd.f32 0.0, %v4414
        %v4416 = vpop.f32.mrb[0].mxu0
        %v4417 = vpop.f32.mrb[0].mxu0
        %v4418 = vadd.f32 0.0, %v4417
        %v4419 = vpop.f32.mrb[0].mxu0
        %4420 = vmatprep.mubr.bf16.mxu0 0
        %4421 = vmatmul.mubr.bf16.gmra.mrb[0].mxu0 %v4293
        %v4422 = vpop.f32.mrb[0].mxu0
        %v4423 = vadd.f32 0.0, %v4422
        %v4424 = vpop.f32.mrb[0].mxu0
        %v4425 = vpop.f32.mrb[0].mxu0
        %v4426 = vadd.f32 0.0, %v4425
        %v4427 = vpop.f32.mrb[0].mxu0
        %4428 = vmatprep.mubr.bf16.mxu0 0
        %4429 = vmatmul.mubr.bf16.gmra.mrb[0].mxu0 %v4296
        %v4430 = vpop.f32.mrb[0].mxu0
        %v4431 = vadd.f32 0.0, %v4430
        %v4432 = vpop.f32.mrb[0].mxu0
        %v4433 = vpop.f32.mrb[0].mxu0
        %v4434 = vadd.f32 0.0, %v4433
        %v4435 = vpop.f32.mrb[0].mxu0
        %4436 = vmatprep.mubr.bf16.mxu0 0
        %4437 = vmatmul.mubr.bf16.gmra.mrb[0].mxu0 %v4299
        %v4438 = vpop.f32.mrb[0].mxu0
        %v4439 = vadd.f32 0.0, %v4438
        %v4440 = vpop.f32.mrb[0].mxu0
        %v4441 = vpop.f32.mrb[0].mxu0
        %v4442 = vadd.f32 0.0, %v4441
        %v4443 = vpop.f32.mrb[0].mxu0
        %4444 = vmatprep.mubr.bf16.mxu0 0
        %4445 = vmatmul.mubr.bf16.gmra.mrb[0].mxu0 %v4302
        %v4446 = vpop.f32.mrb[0].mxu0
        %v4447 = vadd.f32 0.0, %v4446
        %v4448 = vpop.f32.mrb[0].mxu0
        %v4449 = vpop.f32.mrb[0].mxu0
        %v4450 = vadd.f32 0.0, %v4449
        %v4451 = vpop.f32.mrb[0].mxu0
        %4452 = vmatprep.mubr.bf16.mxu0 0
        %4453 = vmatmul.mubr.bf16.gmra.mrb[0].mxu0 %v4305
        %v4454 = vpop.f32.mrb[0].mxu0
        %v4455 = vadd.f32 0.0, %v4454
        %v4456 = vpop.f32.mrb[0].mxu0
        %v4457 = vpop.f32.mrb[0].mxu0
        %v4458 = vadd.f32 0.0, %v4457
        %v4459 = vpop.f32.mrb[0].mxu0
        %4460 = vmatprep.mubr.bf16.mxu0 0
        %4461 = vmatmul.mubr.bf16.gmra.mrb[0].mxu0 %v4308
        %v4462 = vpop.f32.mrb[0].mxu0
        %v4463 = vadd.f32 0.0, %v4462
        %v4464 = vpop.f32.mrb[0].mxu0
        %v4465 = vpop.f32.mrb[0].mxu0
        %v4466 = vadd.f32 0.0, %v4465
        %v4467 = vpop.f32.mrb[0].mxu0
        %4468 = vmatprep.mubr.bf16.mxu0 0
        %4469 = vmatmul.mubr.bf16.gmra.mrb[0].mxu0 %v4311
        %v4470 = vpop.f32.mrb[0].mxu0
        %v4471 = vadd.f32 0.0, %v4470
        %v4472 = vpop.f32.mrb[0].mxu0
        %v4473 = vpop.f32.mrb[0].mxu0
        %v4474 = vadd.f32 0.0, %v4473
        %v4475 = vpop.f32.mrb[0].mxu0
        %4476 = vdwg.mxu0
        %v4477 = vadd.f32 %v3983, %v4351
        %v4478 = vadd.f32 %v3984, %v4354
        %v4479 = vadd.f32 %v3985, %v4359
        %v4480 = vadd.f32 %v3986, %v4362
        %v4481 = vadd.f32 %v3987, %v4367
        %v4482 = vadd.f32 %v3988, %v4370
        %v4483 = vadd.f32 %v3989, %v4375
        %v4484 = vadd.f32 %v3990, %v4378
        %v4485 = vadd.f32 %v3991, %v4383
        %v4486 = vadd.f32 %v3992, %v4386
        %v4487 = vadd.f32 %v3993, %v4391
        %v4488 = vadd.f32 %v3994, %v4394
        %v4489 = vadd.f32 %v3995, %v4399
        %v4490 = vadd.f32 %v3996, %v4402
        %v4491 = vadd.f32 %v3997, %v4407
        %v4492 = vadd.f32 %v3998, %v4410
        %v4493 = vadd.f32 %v3999, %v4415
        %v4494 = vadd.f32 %v4000, %v4418
        %v4495 = vadd.f32 %v4001, %v4423
        %v4496 = vadd.f32 %v4002, %v4426
        %v4497 = vadd.f32 %v4003, %v4431
        %v4498 = vadd.f32 %v4004, %v4434
        %v4499 = vadd.f32 %v4005, %v4439
        %v4500 = vadd.f32 %v4006, %v4442
        %v4501 = vadd.f32 %v4007, %v4447
        %v4502 = vadd.f32 %v4008, %v4450
        %v4503 = vadd.f32 %v4009, %v4455
        %v4504 = vadd.f32 %v4010, %v4458
        %v4505 = vadd.f32 %v4011, %v4463
        %v4506 = vadd.f32 %v4012, %v4466
        %v4507 = vadd.f32 %v4013, %v4471
        %v4508 = vadd.f32 %v4014, %v4474
        %v4509 = vld [vmem:[%s318 + $0x10] sm:$0xe]
        %v4510 = vsel %vm1916, %v4509, 0
        %v4511 = vsel %vm1917, %v4016, 0
        %v4512 = vsel %vm1918, %v4017, 0
        %v4513 = vsel %vm1919, %v4018, 0
        %v4514 = vsel %vm1920, %v4019, 0
        %v4515 = vsel %vm1921, %v4020, 0
        %v4516 = vsel %vm1922, %v4021, 0
        %v4517 = vsel %vm1923, %v4022, 0
        %v4518 = vsel %vm1924, %v4023, 0
        %v4519 = vsel %vm1925, %v4024, 0
        %v4520 = vsel %vm1926, %v4025, 0
        %v4521 = vsel %vm1927, %v4026, 0
        %v4522 = vsel %vm1928, %v4027, 0
        %v4523 = vsel %vm1929, %v4028, 0
        %v4524 = vsel %vm1930, %v4029, 0
        %v4525 = vsel %vm1931, %v4030, 0
        %v4526 = vsel %vm1932, %v4031, 0
        %v4527 = vsel %vm1933, %v4032, 0
        %v4528 = vsel %vm1934, %v4033, 0
        %v4529 = vsel %vm1935, %v4034, 0
        %v4530 = vsel %vm1936, %v4035, 0
        %v4531 = vsel %vm1937, %v4036, 0
        %v4532 = vsel %vm1938, %v4037, 0
        %v4533 = vsel %vm1939, %v4038, 0
        %v4534 = vsel %vm1940, %v4039, 0
        %v4535 = vsel %vm1941, %v4040, 0
        %v4536 = vsel %vm1942, %v4041, 0
        %v4537 = vsel %vm1943, %v4042, 0
        %v4538 = vsel %vm1944, %v4043, 0
        %v4539 = vsel %vm1945, %v4044, 0
        %v4540 = vsel %vm1946, %v4045, 0
        %v4541 = vsel %vm1947, %v4046, 0
        %v4542 = vsel %vm1948, %v4047, 0
        %s4543 = scalar_lea.vmem %s1, 16
        %v4544 = vld [vmem:[%s4543] sm:$0x3]
        %v4578 = vunpack.c.l.b16 %v4510
        %v4579 = vunpack.c.l.b16 %v4511
        %v4580 = vunpack.c.l.b16 %v4512
        %v4581 = vunpack.c.l.b16 %v4513
        %v4582 = vunpack.c.l.b16 %v4514
        %v4583 = vunpack.c.l.b16 %v4515
        %v4584 = vunpack.c.l.b16 %v4516
        %v4585 = vunpack.c.l.b16 %v4517
        %v4586 = vunpack.c.l.b16 %v4518
        %v4587 = vunpack.c.l.b16 %v4519
        %v4588 = vunpack.c.l.b16 %v4520
        %v4589 = vunpack.c.l.b16 %v4521
        %v4590 = vunpack.c.l.b16 %v4522
        %v4591 = vunpack.c.l.b16 %v4523
        %v4592 = vunpack.c.l.b16 %v4524
        %v4593 = vunpack.c.l.b16 %v4525
        %v4594 = vunpack.c.l.b16 %v4526
        %v4595 = vunpack.c.l.b16 %v4527
        %v4596 = vunpack.c.l.b16 %v4528
        %v4597 = vunpack.c.l.b16 %v4529
        %v4598 = vunpack.c.l.b16 %v4530
        %v4599 = vunpack.c.l.b16 %v4531
        %v4600 = vunpack.c.l.b16 %v4532
        %v4601 = vunpack.c.l.b16 %v4533
        %v4602 = vunpack.c.l.b16 %v4534
        %v4603 = vunpack.c.l.b16 %v4535
        %v4604 = vunpack.c.l.b16 %v4536
        %v4605 = vunpack.c.l.b16 %v4537
        %v4606 = vunpack.c.l.b16 %v4538
        %v4607 = vunpack.c.l.b16 %v4539
        %v4608 = vunpack.c.l.b16 %v4540
        %v4609 = vunpack.c.l.b16 %v4541
        %v4610 = vunpack.c.l.b16 %v4542
        %v4611 = vpack.c.b16 %v4579, %v4578
        %v4612 = vpack.c.b16 %v4581, %v4580
        %v4613 = vpack.c.b16 %v4583, %v4582
        %v4614 = vpack.c.b16 %v4585, %v4584
        %v4615 = vpack.c.b16 %v4587, %v4586
        %v4616 = vpack.c.b16 %v4589, %v4588
        %v4617 = vpack.c.b16 %v4591, %v4590
        %v4618 = vpack.c.b16 %v4593, %v4592
        %v4619 = vpack.c.b16 %v4595, %v4594
        %v4620 = vpack.c.b16 %v4597, %v4596
        %v4621 = vpack.c.b16 %v4599, %v4598
        %v4622 = vpack.c.b16 %v4601, %v4600
        %v4623 = vpack.c.b16 %v4603, %v4602
        %v4624 = vpack.c.b16 %v4605, %v4604
        %v4625 = vpack.c.b16 %v4607, %v4606
        %v4626 = vpack.c.b16 %v4609, %v4608
        %v4627 = vpack.c.b16 %v4610, %v4610
        %v4628 = vrot.slane %v4611, 1
        %v4629 = vrot.slane %v4612, 1
        %v4630 = vsel %vm2067, %v4628, %v4629
        %v4631 = vrot.slane %v4613, 1
        %v4632 = vsel %vm2067, %v4629, %v4631
        %v4633 = vrot.slane %v4614, 1
        %v4634 = vsel %vm2067, %v4631, %v4633
        %v4635 = vrot.slane %v4615, 1
        %v4636 = vsel %vm2067, %v4633, %v4635
        %v4637 = vrot.slane %v4616, 1
        %v4638 = vsel %vm2067, %v4635, %v4637
        %v4639 = vrot.slane %v4617, 1
        %v4640 = vsel %vm2067, %v4637, %v4639
        %v4641 = vrot.slane %v4618, 1
        %v4642 = vsel %vm2067, %v4639, %v4641
        %v4643 = vrot.slane %v4619, 1
        %v4644 = vsel %vm2067, %v4641, %v4643
        %v4645 = vrot.slane %v4620, 1
        %v4646 = vsel %vm2067, %v4643, %v4645
        %v4647 = vrot.slane %v4621, 1
        %v4648 = vsel %vm2067, %v4645, %v4647
        %v4649 = vrot.slane %v4622, 1
        %v4650 = vsel %vm2067, %v4647, %v4649
        %v4651 = vrot.slane %v4623, 1
        %v4652 = vsel %vm2067, %v4649, %v4651
        %v4653 = vrot.slane %v4624, 1
        %v4654 = vsel %vm2067, %v4651, %v4653
        %v4655 = vrot.slane %v4625, 1
        %v4656 = vsel %vm2067, %v4653, %v4655
        %v4657 = vrot.slane %v4626, 1
        %v4658 = vsel %vm2067, %v4655, %v4657
        %v4659 = vrot.slane %v4627, 1
        %v4660 = vsel %vm2067, %v4657, %v4659
        %v4662 = vsel %vm1183, %v4630, 0
        %v4665 = vsel %vm1183, %v4632, 0
        %v4668 = vsel %vm1183, %v4634, 0
        %v4671 = vsel %vm1183, %v4636, 0
        %v4674 = vsel %vm1183, %v4638, 0
        %v4677 = vsel %vm1183, %v4640, 0
        %v4680 = vsel %vm1183, %v4642, 0
        %v4683 = vsel %vm1183, %v4644, 0
        %v4686 = vsel %vm1183, %v4646, 0
        %v4689 = vsel %vm1183, %v4648, 0
        %v4692 = vsel %vm1183, %v4650, 0
        %v4695 = vsel %vm1183, %v4652, 0
        %v4698 = vsel %vm1183, %v4654, 0
        %v4701 = vsel %vm1183, %v4656, 0
        %v4704 = vsel %vm1183, %v4658, 0
        %v4707 = vsel %vm1183, %v4660, 0
        %v4710 = vsel %vm1232, %v4544, 0
        %4712 = vmatprep.subr.bf16.mxu0 0
        %4713 = vmatpush1.bf16.msra.mxu0 %v4710
        %4714 = vmatprep.subr.bf16.mxu0 0
        %4715 = vmatpush1.bf16.msra.mxu0 0
        %4716 = vmatprep.subr.bf16.mxu0 0
        %4717 = vmatpush1.bf16.msra.mxu0 0
        %4718 = vmatprep.subr.bf16.mxu0 0
        %4719 = vmatpush1.bf16.msra.mxu0 0
        %4720 = vmatprep.subr.bf16.mxu0 0
        %4721 = vmatpush1.bf16.msra.mxu0 0
        %4722 = vmatprep.subr.bf16.mxu0 0
        %4723 = vmatpush1.bf16.msra.mxu0 0
        %4724 = vmatprep.subr.bf16.mxu0 0
        %4725 = vmatpush1.bf16.msra.mxu0 0
        %4726 = vmatprep.subr.bf16.mxu0 0
        %4727 = vmatpush1.bf16.msra.mxu0 0
        %4728 = vmatprep.subr.bf16.mxu0 0
        %4729 = vmatpush1.bf16.msra.mxu0 0
        %4730 = vmatprep.subr.bf16.mxu0 0
        %4731 = vmatpush1.bf16.msra.mxu0 0
        %4732 = vmatprep.subr.bf16.mxu0 0
        %4733 = vmatpush1.bf16.msra.mxu0 0
        %4734 = vmatprep.subr.bf16.mxu0 0
        %4735 = vmatpush1.bf16.msra.mxu0 0
        %4736 = vmatprep.subr.bf16.mxu0 0
        %4737 = vmatpush1.bf16.msra.mxu0 0
        %4738 = vmatprep.subr.bf16.mxu0 0
        %4739 = vmatpush1.bf16.msra.mxu0 0
        %4740 = vmatprep.subr.bf16.mxu0 0
        %4741 = vmatpush1.bf16.msra.mxu0 0
        %4742 = vmatprep.subr.bf16.mxu0 0
        %4743 = vmatpush1.bf16.msra.mxu0 0
        %4744 = vmatprep.mubr.bf16.mxu0 0
        %4745 = vmatmul.mubr.bf16.gmra.mrb[0].mxu0 %v4662
        %v4746 = vpop.f32.mrb[0].mxu0
        %v4747 = vadd.f32 0.0, %v4746
        %v4748 = vpop.f32.mrb[0].mxu0
        %v4749 = vpop.f32.mrb[0].mxu0
        %v4750 = vadd.f32 0.0, %v4749
        %v4751 = vpop.f32.mrb[0].mxu0
        %4752 = vmatprep.mubr.bf16.mxu0 0
        %4753 = vmatmul.mubr.bf16.gmra.mrb[0].mxu0 %v4665
        %v4754 = vpop.f32.mrb[0].mxu0
        %v4755 = vadd.f32 0.0, %v4754
        %v4756 = vpop.f32.mrb[0].mxu0
        %v4757 = vpop.f32.mrb[0].mxu0
        %v4758 = vadd.f32 0.0, %v4757
        %v4759 = vpop.f32.mrb[0].mxu0
        %4760 = vmatprep.mubr.bf16.mxu0 0
        %4761 = vmatmul.mubr.bf16.gmra.mrb[0].mxu0 %v4668
        %v4762 = vpop.f32.mrb[0].mxu0
        %v4763 = vadd.f32 0.0, %v4762
        %v4764 = vpop.f32.mrb[0].mxu0
        %v4765 = vpop.f32.mrb[0].mxu0
        %v4766 = vadd.f32 0.0, %v4765
        %v4767 = vpop.f32.mrb[0].mxu0
        %4768 = vmatprep.mubr.bf16.mxu0 0
        %4769 = vmatmul.mubr.bf16.gmra.mrb[0].mxu0 %v4671
        %v4770 = vpop.f32.mrb[0].mxu0
        %v4771 = vadd.f32 0.0, %v4770
        %v4772 = vpop.f32.mrb[0].mxu0
        %v4773 = vpop.f32.mrb[0].mxu0
        %v4774 = vadd.f32 0.0, %v4773
        %v4775 = vpop.f32.mrb[0].mxu0
        %4776 = vmatprep.mubr.bf16.mxu0 0
        %4777 = vmatmul.mubr.bf16.gmra.mrb[0].mxu0 %v4674
        %v4778 = vpop.f32.mrb[0].mxu0
        %v4779 = vadd.f32 0.0, %v4778
        %v4780 = vpop.f32.mrb[0].mxu0
        %v4781 = vpop.f32.mrb[0].mxu0
        %v4782 = vadd.f32 0.0, %v4781
        %v4783 = vpop.f32.mrb[0].mxu0
        %4784 = vmatprep.mubr.bf16.mxu0 0
        %4785 = vmatmul.mubr.bf16.gmra.mrb[0].mxu0 %v4677
        %v4786 = vpop.f32.mrb[0].mxu0
        %v4787 = vadd.f32 0.0, %v4786
        %v4788 = vpop.f32.mrb[0].mxu0
        %v4789 = vpop.f32.mrb[0].mxu0
        %v4790 = vadd.f32 0.0, %v4789
        %v4791 = vpop.f32.mrb[0].mxu0
        %4792 = vmatprep.mubr.bf16.mxu0 0
        %4793 = vmatmul.mubr.bf16.gmra.mrb[0].mxu0 %v4680
        %v4794 = vpop.f32.mrb[0].mxu0
        %v4795 = vadd.f32 0.0, %v4794
        %v4796 = vpop.f32.mrb[0].mxu0
        %v4797 = vpop.f32.mrb[0].mxu0
        %v4798 = vadd.f32 0.0, %v4797
        %v4799 = vpop.f32.mrb[0].mxu0
        %4800 = vmatprep.mubr.bf16.mxu0 0
        %4801 = vmatmul.mubr.bf16.gmra.mrb[0].mxu0 %v4683
        %v4802 = vpop.f32.mrb[0].mxu0
        %v4803 = vadd.f32 0.0, %v4802
        %v4804 = vpop.f32.mrb[0].mxu0
        %v4805 = vpop.f32.mrb[0].mxu0
        %v4806 = vadd.f32 0.0, %v4805
        %v4807 = vpop.f32.mrb[0].mxu0
        %4808 = vmatprep.mubr.bf16.mxu0 0
        %4809 = vmatmul.mubr.bf16.gmra.mrb[0].mxu0 %v4686
        %v4810 = vpop.f32.mrb[0].mxu0
        %v4811 = vadd.f32 0.0, %v4810
        %v4812 = vpop.f32.mrb[0].mxu0
        %v4813 = vpop.f32.mrb[0].mxu0
        %v4814 = vadd.f32 0.0, %v4813
        %v4815 = vpop.f32.mrb[0].mxu0
        %4816 = vmatprep.mubr.bf16.mxu0 0
        %4817 = vmatmul.mubr.bf16.gmra.mrb[0].mxu0 %v4689
        %v4818 = vpop.f32.mrb[0].mxu0
        %v4819 = vadd.f32 0.0, %v4818
        %v4820 = vpop.f32.mrb[0].mxu0
        %v4821 = vpop.f32.mrb[0].mxu0
        %v4822 = vadd.f32 0.0, %v4821
        %v4823 = vpop.f32.mrb[0].mxu0
        %4824 = vmatprep.mubr.bf16.mxu0 0
        %4825 = vmatmul.mubr.bf16.gmra.mrb[0].mxu0 %v4692
        %v4826 = vpop.f32.mrb[0].mxu0
        %v4827 = vadd.f32 0.0, %v4826
        %v4828 = vpop.f32.mrb[0].mxu0
        %v4829 = vpop.f32.mrb[0].mxu0
        %v4830 = vadd.f32 0.0, %v4829
        %v4831 = vpop.f32.mrb[0].mxu0
        %4832 = vmatprep.mubr.bf16.mxu0 0
        %4833 = vmatmul.mubr.bf16.gmra.mrb[0].mxu0 %v4695
        %v4834 = vpop.f32.mrb[0].mxu0
        %v4835 = vadd.f32 0.0, %v4834
        %v4836 = vpop.f32.mrb[0].mxu0
        %v4837 = vpop.f32.mrb[0].mxu0
        %v4838 = vadd.f32 0.0, %v4837
        %v4839 = vpop.f32.mrb[0].mxu0
        %4840 = vmatprep.mubr.bf16.mxu0 0
        %4841 = vmatmul.mubr.bf16.gmra.mrb[0].mxu0 %v4698
        %v4842 = vpop.f32.mrb[0].mxu0
        %v4843 = vadd.f32 0.0, %v4842
        %v4844 = vpop.f32.mrb[0].mxu0
        %v4845 = vpop.f32.mrb[0].mxu0
        %v4846 = vadd.f32 0.0, %v4845
        %v4847 = vpop.f32.mrb[0].mxu0
        %4848 = vmatprep.mubr.bf16.mxu0 0
        %4849 = vmatmul.mubr.bf16.gmra.mrb[0].mxu0 %v4701
        %v4850 = vpop.f32.mrb[0].mxu0
        %v4851 = vadd.f32 0.0, %v4850
        %v4852 = vpop.f32.mrb[0].mxu0
        %v4853 = vpop.f32.mrb[0].mxu0
        %v4854 = vadd.f32 0.0, %v4853
        %v4855 = vpop.f32.mrb[0].mxu0
        %4856 = vmatprep.mubr.bf16.mxu0 0
        %4857 = vmatmul.mubr.bf16.gmra.mrb[0].mxu0 %v4704
        %v4858 = vpop.f32.mrb[0].mxu0
        %v4859 = vadd.f32 0.0, %v4858
        %v4860 = vpop.f32.mrb[0].mxu0
        %v4861 = vpop.f32.mrb[0].mxu0
        %v4862 = vadd.f32 0.0, %v4861
        %v4863 = vpop.f32.mrb[0].mxu0
        %4864 = vmatprep.mubr.bf16.mxu0 0
        %4865 = vmatmul.mubr.bf16.gmra.mrb[0].mxu0 %v4707
        %v4866 = vpop.f32.mrb[0].mxu0
        %v4867 = vadd.f32 0.0, %v4866
        %v4868 = vpop.f32.mrb[0].mxu0
        %v4869 = vpop.f32.mrb[0].mxu0
        %v4870 = vadd.f32 0.0, %v4869
        %v4871 = vpop.f32.mrb[0].mxu0
        %4872 = vdwg.mxu0
        %v4873 = vadd.f32 %v4477, %v4747
        %v4874 = vadd.f32 %v4478, %v4750
        %v4875 = vadd.f32 %v4479, %v4755
        %v4876 = vadd.f32 %v4480, %v4758
        %v4877 = vadd.f32 %v4481, %v4763
        %v4878 = vadd.f32 %v4482, %v4766
        %v4879 = vadd.f32 %v4483, %v4771
        %v4880 = vadd.f32 %v4484, %v4774
        %v4881 = vadd.f32 %v4485, %v4779
        %v4882 = vadd.f32 %v4486, %v4782
        %v4883 = vadd.f32 %v4487, %v4787
        %v4884 = vadd.f32 %v4488, %v4790
        %v4885 = vadd.f32 %v4489, %v4795
        %v4886 = vadd.f32 %v4490, %v4798
        %v4887 = vadd.f32 %v4491, %v4803
        %v4888 = vadd.f32 %v4492, %v4806
        %v4889 = vadd.f32 %v4493, %v4811
        %v4890 = vadd.f32 %v4494, %v4814
        %v4891 = vadd.f32 %v4495, %v4819
        %v4892 = vadd.f32 %v4496, %v4822
        %v4893 = vadd.f32 %v4497, %v4827
        %v4894 = vadd.f32 %v4498, %v4830
        %v4895 = vadd.f32 %v4499, %v4835
        %v4896 = vadd.f32 %v4500, %v4838
        %v4897 = vadd.f32 %v4501, %v4843
        %v4898 = vadd.f32 %v4502, %v4846
        %v4899 = vadd.f32 %v4503, %v4851
        %v4900 = vadd.f32 %v4504, %v4854
        %v4901 = vadd.f32 %v4505, %v4859
        %v4902 = vadd.f32 %v4506, %v4862
        %v4903 = vadd.f32 %v4507, %v4867
        %v4904 = vadd.f32 %v4508, %v4870
        %v4905 = vld [vmem:[%s4] sm:$0x1]
        %v4907 = vlaneseq
        %v4908 = vshrl.u32 %v4907, 7
        %v4909 = vsub.s32 0, %v4908
        %v4910 = vrot.slane %v4905, %v4909
        %v4912 = vmul.f32 %v4873, %v4910
        %v4913 = vmul.f32 %v4874, %v4910
        %v4914 = vmul.f32 %v4875, %v4910
        %v4915 = vmul.f32 %v4876, %v4910
        %v4916 = vmul.f32 %v4877, %v4910
        %v4917 = vmul.f32 %v4878, %v4910
        %v4918 = vmul.f32 %v4879, %v4910
        %v4919 = vmul.f32 %v4880, %v4910
        %v4920 = vmul.f32 %v4881, %v4910
        %v4921 = vmul.f32 %v4882, %v4910
        %v4922 = vmul.f32 %v4883, %v4910
        %v4923 = vmul.f32 %v4884, %v4910
        %v4924 = vmul.f32 %v4885, %v4910
        %v4925 = vmul.f32 %v4886, %v4910
        %v4926 = vmul.f32 %v4887, %v4910
        %v4927 = vmul.f32 %v4888, %v4910
        %v4928 = vmul.f32 %v4889, %v4910
        %v4929 = vmul.f32 %v4890, %v4910
        %v4930 = vmul.f32 %v4891, %v4910
        %v4931 = vmul.f32 %v4892, %v4910
        %v4932 = vmul.f32 %v4893, %v4910
        %v4933 = vmul.f32 %v4894, %v4910
        %v4934 = vmul.f32 %v4895, %v4910
        %v4935 = vmul.f32 %v4896, %v4910
        %v4936 = vmul.f32 %v4897, %v4910
        %v4937 = vmul.f32 %v4898, %v4910
        %v4938 = vmul.f32 %v4899, %v4910
        %v4939 = vmul.f32 %v4900, %v4910
        %v4940 = vmul.f32 %v4901, %v4910
        %v4941 = vmul.f32 %v4902, %v4910
        %v4942 = vmul.f32 %v4903, %v4910
        %v4943 = vmul.f32 %v4904, %v4910
        %v4944 = vld [vmem:[%s5] sm:$0x1]
        %v4946 = vlaneseq
        %v4947 = vshrl.u32 %v4946, 7
        %v4948 = vsub.s32 0, %v4947
        %v4949 = vrot.slane %v4944, %v4948
        %v4951 = vadd.f32 %v4912, %v4949
        %v4952 = vadd.f32 %v4913, %v4949
        %v4953 = vadd.f32 %v4914, %v4949
        %v4954 = vadd.f32 %v4915, %v4949
        %v4955 = vadd.f32 %v4916, %v4949
        %v4956 = vadd.f32 %v4917, %v4949
        %v4957 = vadd.f32 %v4918, %v4949
        %v4958 = vadd.f32 %v4919, %v4949
        %v4959 = vadd.f32 %v4920, %v4949
        %v4960 = vadd.f32 %v4921, %v4949
        %v4961 = vadd.f32 %v4922, %v4949
        %v4962 = vadd.f32 %v4923, %v4949
        %v4963 = vadd.f32 %v4924, %v4949
        %v4964 = vadd.f32 %v4925, %v4949
        %v4965 = vadd.f32 %v4926, %v4949
        %v4966 = vadd.f32 %v4927, %v4949
        %v4967 = vadd.f32 %v4928, %v4949
        %v4968 = vadd.f32 %v4929, %v4949
        %v4969 = vadd.f32 %v4930, %v4949
        %v4970 = vadd.f32 %v4931, %v4949
        %v4971 = vadd.f32 %v4932, %v4949
        %v4972 = vadd.f32 %v4933, %v4949
        %v4973 = vadd.f32 %v4934, %v4949
        %v4974 = vadd.f32 %v4935, %v4949
        %v4975 = vadd.f32 %v4936, %v4949
        %v4976 = vadd.f32 %v4937, %v4949
        %v4977 = vadd.f32 %v4938, %v4949
        %v4978 = vadd.f32 %v4939, %v4949
        %v4979 = vadd.f32 %v4940, %v4949
        %v4980 = vadd.f32 %v4941, %v4949
        %v4981 = vadd.f32 %v4942, %v4949
        %v4982 = vadd.f32 %v4943, %v4949
        %v4983 = vmax.f32 %v4951, 0.0
        %v4984 = vmax.f32 %v4952, 0.0
        %v4985 = vmax.f32 %v4953, 0.0
        %v4986 = vmax.f32 %v4954, 0.0
        %v4987 = vmax.f32 %v4955, 0.0
        %v4988 = vmax.f32 %v4956, 0.0
        %v4989 = vmax.f32 %v4957, 0.0
        %v4990 = vmax.f32 %v4958, 0.0
        %v4991 = vmax.f32 %v4959, 0.0
        %v4992 = vmax.f32 %v4960, 0.0
        %v4993 = vmax.f32 %v4961, 0.0
        %v4994 = vmax.f32 %v4962, 0.0
        %v4995 = vmax.f32 %v4963, 0.0
        %v4996 = vmax.f32 %v4964, 0.0
        %v4997 = vmax.f32 %v4965, 0.0
        %v4998 = vmax.f32 %v4966, 0.0
        %v4999 = vmax.f32 %v4967, 0.0
        %v5000 = vmax.f32 %v4968, 0.0
        %v5001 = vmax.f32 %v4969, 0.0
        %v5002 = vmax.f32 %v4970, 0.0
        %v5003 = vmax.f32 %v4971, 0.0
        %v5004 = vmax.f32 %v4972, 0.0
        %v5005 = vmax.f32 %v4973, 0.0
        %v5006 = vmax.f32 %v4974, 0.0
        %v5007 = vmax.f32 %v4975, 0.0
        %v5008 = vmax.f32 %v4976, 0.0
        %v5009 = vmax.f32 %v4977, 0.0
        %v5010 = vmax.f32 %v4978, 0.0
        %v5011 = vmax.f32 %v4979, 0.0
        %v5012 = vmax.f32 %v4980, 0.0
        %v5013 = vmax.f32 %v4981, 0.0
        %v5014 = vmax.f32 %v4982, 0.0
        %5015 = vst [vmem:[#allocation2] sm:$0xf] 0
        %5016 = vst [vmem:[#allocation2 + $0x4] sm:$0xf] 0
        %vm5017 = vsmask.f32 256
        %vm5018 = vmand %vm1818, %vm5017
        %v5019 = vld [vmem:[#allocation2 + $0x8] sm:$0x1]
        %v5020 = vsel %vm5018, 0, %v5019
        %5021 = vst [vmem:[#allocation2 + $0x8] sm:$0x1] %v5020
        %vm5022 = vcmask 1043456
        %vm5023 = vsmask.f32 7938
        %vm5024 = vmand %vm5022, %vm5023
        %v5025 = vld [vmem:[#allocation2 + $0x88] sm:$0xf]
        %v5026 = vsel %vm5024, 0, %v5025
        %5027 = vst [vmem:[#allocation2 + $0x88] sm:$0xf] %v5026
        %5028 = vst [vmem:[#allocation2 + $0x8c] sm:$0xf] 0
        %5029 = vst [vmem:[#allocation2 + $0x90] sm:$0x1] 0
        %v5030 = vpack.c.bf16 %v4984, %v4983
        %v5031 = vpack.c.bf16 %v4986, %v4985
        %v5032 = vpack.c.bf16 %v4988, %v4987
        %v5033 = vpack.c.bf16 %v4990, %v4989
        %v5034 = vpack.c.bf16 %v4992, %v4991
        %v5035 = vpack.c.bf16 %v4994, %v4993
        %v5036 = vpack.c.bf16 %v4996, %v4995
        %v5037 = vpack.c.bf16 %v4998, %v4997
        %v5038 = vpack.c.bf16 %v5000, %v4999
        %v5039 = vpack.c.bf16 %v5002, %v5001
        %v5040 = vpack.c.bf16 %v5004, %v5003
        %v5041 = vpack.c.bf16 %v5006, %v5005
        %v5042 = vpack.c.bf16 %v5008, %v5007
        %v5043 = vpack.c.bf16 %v5010, %v5009
        %v5044 = vpack.c.bf16 %v5012, %v5011
        %v5045 = vpack.c.bf16 %v5014, %v5013
        %v5062 = vunpack.c.l.b16 %v5030
        %v5063 = vunpack.c.h.b16 %v5030
        %v5064 = vunpack.c.l.b16 %v5031
        %v5065 = vunpack.c.h.b16 %v5031
        %v5066 = vunpack.c.l.b16 %v5032
        %v5067 = vunpack.c.h.b16 %v5032
        %v5068 = vunpack.c.l.b16 %v5033
        %v5069 = vunpack.c.h.b16 %v5033
        %v5070 = vunpack.c.l.b16 %v5034
        %v5071 = vunpack.c.h.b16 %v5034
        %v5072 = vunpack.c.l.b16 %v5035
        %v5073 = vunpack.c.h.b16 %v5035
        %v5074 = vunpack.c.l.b16 %v5036
        %v5075 = vunpack.c.h.b16 %v5036
        %v5076 = vunpack.c.l.b16 %v5037
        %v5077 = vunpack.c.h.b16 %v5037
        %v5078 = vunpack.c.l.b16 %v5038
        %v5079 = vunpack.c.h.b16 %v5038
        %v5080 = vunpack.c.l.b16 %v5039
        %v5081 = vunpack.c.h.b16 %v5039
        %v5082 = vunpack.c.l.b16 %v5040
        %v5083 = vunpack.c.h.b16 %v5040
        %v5084 = vunpack.c.l.b16 %v5041
        %v5085 = vunpack.c.h.b16 %v5041
        %v5086 = vunpack.c.l.b16 %v5042
        %v5087 = vunpack.c.h.b16 %v5042
        %v5088 = vunpack.c.l.b16 %v5043
        %v5089 = vunpack.c.h.b16 %v5043
        %v5090 = vunpack.c.l.b16 %v5044
        %v5091 = vunpack.c.h.b16 %v5044
        %v5092 = vunpack.c.l.b16 %v5045
        %v5093 = vunpack.c.h.b16 %v5045
        %v5094 = vpack.c.b16 %v5062, %v5062
        %v5095 = vpack.c.b16 %v5063, %v5063
        %v5096 = vpack.c.b16 %v5064, %v5064
        %v5097 = vpack.c.b16 %v5065, %v5065
        %v5098 = vpack.c.b16 %v5066, %v5066
        %v5099 = vpack.c.b16 %v5067, %v5067
        %v5100 = vpack.c.b16 %v5068, %v5068
        %v5101 = vpack.c.b16 %v5069, %v5069
        %v5102 = vpack.c.b16 %v5070, %v5070
        %v5103 = vpack.c.b16 %v5071, %v5071
        %v5104 = vpack.c.b16 %v5072, %v5072
        %v5105 = vpack.c.b16 %v5073, %v5073
        %v5106 = vpack.c.b16 %v5074, %v5074
        %v5107 = vpack.c.b16 %v5075, %v5075
        %v5108 = vpack.c.b16 %v5076, %v5076
        %v5109 = vpack.c.b16 %v5077, %v5077
        %v5110 = vpack.c.b16 %v5078, %v5078
        %v5111 = vpack.c.b16 %v5079, %v5079
        %v5112 = vpack.c.b16 %v5080, %v5080
        %v5113 = vpack.c.b16 %v5081, %v5081
        %v5114 = vpack.c.b16 %v5082, %v5082
        %v5115 = vpack.c.b16 %v5083, %v5083
        %v5116 = vpack.c.b16 %v5084, %v5084
        %v5117 = vpack.c.b16 %v5085, %v5085
        %v5118 = vpack.c.b16 %v5086, %v5086
        %v5119 = vpack.c.b16 %v5087, %v5087
        %v5120 = vpack.c.b16 %v5088, %v5088
        %v5121 = vpack.c.b16 %v5089, %v5089
        %v5122 = vpack.c.b16 %v5090, %v5090
        %v5123 = vpack.c.b16 %v5091, %v5091
        %v5124 = vpack.c.b16 %v5092, %v5092
        %v5125 = vpack.c.b16 %v5093, %v5093
        %vm5126 = vsmask.f32 4368
        %vm5127 = vmor %vm5017, %vm5126
        %v5129 = vshrl.u32 %v5094, 16
        %v5131 = vrot.slane %v5129, 7
        %v5132 = vshll.u32 %v5094, 16
        %v5134 = vor.u32 %v5131, %v5132
        %v5135 = vrot.slane %v5131, 4
        %v5137 = vshrl.u32 %v5095, 16
        %v5139 = vrot.slane %v5137, 7
        %v5140 = vshll.u32 %v5095, 16
        %v5142 = vor.u32 %v5139, %v5140
        %v5143 = vsel %vm5127, %v5135, %v5142
        %v5144 = vrot.slane %v5139, 4
        %v5146 = vshrl.u32 %v5096, 16
        %v5148 = vrot.slane %v5146, 7
        %v5149 = vshll.u32 %v5096, 16
        %v5151 = vor.u32 %v5148, %v5149
        %v5152 = vsel %vm5127, %v5144, %v5151
        %v5153 = vrot.slane %v5148, 4
        %v5155 = vshrl.u32 %v5097, 16
        %v5157 = vrot.slane %v5155, 7
        %v5158 = vshll.u32 %v5097, 16
        %v5160 = vor.u32 %v5157, %v5158
        %v5161 = vsel %vm5127, %v5153, %v5160
        %v5162 = vrot.slane %v5157, 4
        %v5164 = vshrl.u32 %v5098, 16
        %v5166 = vrot.slane %v5164, 7
        %v5167 = vshll.u32 %v5098, 16
        %v5169 = vor.u32 %v5166, %v5167
        %v5170 = vsel %vm5127, %v5162, %v5169
        %v5171 = vrot.slane %v5166, 4
        %v5173 = vshrl.u32 %v5099, 16
        %v5175 = vrot.slane %v5173, 7
        %v5176 = vshll.u32 %v5099, 16
        %v5178 = vor.u32 %v5175, %v5176
        %v5179 = vsel %vm5127, %v5171, %v5178
        %v5180 = vrot.slane %v5175, 4
        %v5182 = vshrl.u32 %v5100, 16
        %v5184 = vrot.slane %v5182, 7
        %v5185 = vshll.u32 %v5100, 16
        %v5187 = vor.u32 %v5184, %v5185
        %v5188 = vsel %vm5127, %v5180, %v5187
        %v5189 = vrot.slane %v5184, 4
        %v5191 = vshrl.u32 %v5101, 16
        %v5193 = vrot.slane %v5191, 7
        %v5194 = vshll.u32 %v5101, 16
        %v5196 = vor.u32 %v5193, %v5194
        %v5197 = vsel %vm5127, %v5189, %v5196
        %v5198 = vrot.slane %v5193, 4
        %v5200 = vshrl.u32 %v5102, 16
        %v5202 = vrot.slane %v5200, 7
        %v5203 = vshll.u32 %v5102, 16
        %v5205 = vor.u32 %v5202, %v5203
        %v5206 = vsel %vm5127, %v5198, %v5205
        %v5207 = vrot.slane %v5202, 4
        %v5209 = vshrl.u32 %v5103, 16
        %v5211 = vrot.slane %v5209, 7
        %v5212 = vshll.u32 %v5103, 16
        %v5214 = vor.u32 %v5211, %v5212
        %v5215 = vsel %vm5127, %v5207, %v5214
        %v5216 = vrot.slane %v5211, 4
        %v5218 = vshrl.u32 %v5104, 16
        %v5220 = vrot.slane %v5218, 7
        %v5221 = vshll.u32 %v5104, 16
        %v5223 = vor.u32 %v5220, %v5221
        %v5224 = vsel %vm5127, %v5216, %v5223
        %v5225 = vrot.slane %v5220, 4
        %v5227 = vshrl.u32 %v5105, 16
        %v5229 = vrot.slane %v5227, 7
        %v5230 = vshll.u32 %v5105, 16
        %v5232 = vor.u32 %v5229, %v5230
        %v5233 = vsel %vm5127, %v5225, %v5232
        %v5234 = vrot.slane %v5229, 4
        %v5236 = vshrl.u32 %v5106, 16
        %v5238 = vrot.slane %v5236, 7
        %v5239 = vshll.u32 %v5106, 16
        %v5241 = vor.u32 %v5238, %v5239
        %v5242 = vsel %vm5127, %v5234, %v5241
        %v5243 = vrot.slane %v5238, 4
        %v5245 = vshrl.u32 %v5107, 16
        %v5247 = vrot.slane %v5245, 7
        %v5248 = vshll.u32 %v5107, 16
        %v5250 = vor.u32 %v5247, %v5248
        %v5251 = vsel %vm5127, %v5243, %v5250
        %v5252 = vrot.slane %v5247, 4
        %v5254 = vshrl.u32 %v5108, 16
        %v5256 = vrot.slane %v5254, 7
        %v5257 = vshll.u32 %v5108, 16
        %v5259 = vor.u32 %v5256, %v5257
        %v5260 = vsel %vm5127, %v5252, %v5259
        %v5261 = vrot.slane %v5256, 4
        %v5263 = vshrl.u32 %v5109, 16
        %v5265 = vrot.slane %v5263, 7
        %v5266 = vshll.u32 %v5109, 16
        %v5268 = vor.u32 %v5265, %v5266
        %v5269 = vsel %vm5127, %v5261, %v5268
        %v5270 = vrot.slane %v5265, 4
        %v5272 = vshrl.u32 %v5110, 16
        %v5274 = vrot.slane %v5272, 7
        %v5275 = vshll.u32 %v5110, 16
        %v5277 = vor.u32 %v5274, %v5275
        %v5278 = vsel %vm5127, %v5270, %v5277
        %v5279 = vrot.slane %v5274, 4
        %v5281 = vshrl.u32 %v5111, 16
        %v5283 = vrot.slane %v5281, 7
        %v5284 = vshll.u32 %v5111, 16
        %v5286 = vor.u32 %v5283, %v5284
        %v5287 = vsel %vm5127, %v5279, %v5286
        %v5288 = vrot.slane %v5283, 4
        %v5290 = vshrl.u32 %v5112, 16
        %v5292 = vrot.slane %v5290, 7
        %v5293 = vshll.u32 %v5112, 16
        %v5295 = vor.u32 %v5292, %v5293
        %v5296 = vsel %vm5127, %v5288, %v5295
        %v5297 = vrot.slane %v5292, 4
        %v5299 = vshrl.u32 %v5113, 16
        %v5301 = vrot.slane %v5299, 7
        %v5302 = vshll.u32 %v5113, 16
        %v5304 = vor.u32 %v5301, %v5302
        %v5305 = vsel %vm5127, %v5297, %v5304
        %v5306 = vrot.slane %v5301, 4
        %v5308 = vshrl.u32 %v5114, 16
        %v5310 = vrot.slane %v5308, 7
        %v5311 = vshll.u32 %v5114, 16
        %v5313 = vor.u32 %v5310, %v5311
        %v5314 = vsel %vm5127, %v5306, %v5313
        %v5315 = vrot.slane %v5310, 4
        %v5317 = vshrl.u32 %v5115, 16
        %v5319 = vrot.slane %v5317, 7
        %v5320 = vshll.u32 %v5115, 16
        %v5322 = vor.u32 %v5319, %v5320
        %v5323 = vsel %vm5127, %v5315, %v5322
        %v5324 = vrot.slane %v5319, 4
        %v5326 = vshrl.u32 %v5116, 16
        %v5328 = vrot.slane %v5326, 7
        %v5329 = vshll.u32 %v5116, 16
        %v5331 = vor.u32 %v5328, %v5329
        %v5332 = vsel %vm5127, %v5324, %v5331
        %v5333 = vrot.slane %v5328, 4
        %v5335 = vshrl.u32 %v5117, 16
        %v5337 = vrot.slane %v5335, 7
        %v5338 = vshll.u32 %v5117, 16
        %v5340 = vor.u32 %v5337, %v5338
        %v5341 = vsel %vm5127, %v5333, %v5340
        %v5342 = vrot.slane %v5337, 4
        %v5344 = vshrl.u32 %v5118, 16
        %v5346 = vrot.slane %v5344, 7
        %v5347 = vshll.u32 %v5118, 16
        %v5349 = vor.u32 %v5346, %v5347
        %v5350 = vsel %vm5127, %v5342, %v5349
        %v5351 = vrot.slane %v5346, 4
        %v5353 = vshrl.u32 %v5119, 16
        %v5355 = vrot.slane %v5353, 7
        %v5356 = vshll.u32 %v5119, 16
        %v5358 = vor.u32 %v5355, %v5356
        %v5359 = vsel %vm5127, %v5351, %v5358
        %v5360 = vrot.slane %v5355, 4
        %v5362 = vshrl.u32 %v5120, 16
        %v5364 = vrot.slane %v5362, 7
        %v5365 = vshll.u32 %v5120, 16
        %v5367 = vor.u32 %v5364, %v5365
        %v5368 = vsel %vm5127, %v5360, %v5367
        %v5369 = vrot.slane %v5364, 4
        %v5371 = vshrl.u32 %v5121, 16
        %v5373 = vrot.slane %v5371, 7
        %v5374 = vshll.u32 %v5121, 16
        %v5376 = vor.u32 %v5373, %v5374
        %v5377 = vsel %vm5127, %v5369, %v5376
        %v5378 = vrot.slane %v5373, 4
        %v5380 = vshrl.u32 %v5122, 16
        %v5382 = vrot.slane %v5380, 7
        %v5383 = vshll.u32 %v5122, 16
        %v5385 = vor.u32 %v5382, %v5383
        %v5386 = vsel %vm5127, %v5378, %v5385
        %v5387 = vrot.slane %v5382, 4
        %v5389 = vshrl.u32 %v5123, 16
        %v5391 = vrot.slane %v5389, 7
        %v5392 = vshll.u32 %v5123, 16
        %v5394 = vor.u32 %v5391, %v5392
        %v5395 = vsel %vm5127, %v5387, %v5394
        %v5396 = vrot.slane %v5391, 4
        %v5398 = vshrl.u32 %v5124, 16
        %v5400 = vrot.slane %v5398, 7
        %v5401 = vshll.u32 %v5124, 16
        %v5403 = vor.u32 %v5400, %v5401
        %v5404 = vsel %vm5127, %v5396, %v5403
        %v5405 = vrot.slane %v5400, 4
        %v5407 = vshrl.u32 %v5125, 16
        %v5409 = vrot.slane %v5407, 7
        %v5410 = vshll.u32 %v5125, 16
        %v5412 = vor.u32 %v5409, %v5410
        %v5413 = vsel %vm5127, %v5405, %v5412
        %v5414 = vrot.slane %v5409, 4
        %v5448 = vld [vmem:[#allocation2 + $0x8] sm:$0xf]
        %v5449 = vsel %vm5024, %v5134, %v5448
        %5450 = vst [vmem:[#allocation2 + $0x8] sm:$0xf] %v5449
        %5451 = vst [vmem:[#allocation2 + $0xc] sm:$0xf] %v5143
        %5452 = vst [vmem:[#allocation2 + $0x10] sm:$0xf] %v5152
        %5453 = vst [vmem:[#allocation2 + $0x14] sm:$0xf] %v5161
        %5454 = vst [vmem:[#allocation2 + $0x18] sm:$0xf] %v5170
        %5455 = vst [vmem:[#allocation2 + $0x1c] sm:$0xf] %v5179
        %5456 = vst [vmem:[#allocation2 + $0x20] sm:$0xf] %v5188
        %5457 = vst [vmem:[#allocation2 + $0x24] sm:$0xf] %v5197
        %5458 = vst [vmem:[#allocation2 + $0x28] sm:$0xf] %v5206
        %5459 = vst [vmem:[#allocation2 + $0x2c] sm:$0xf] %v5215
        %5460 = vst [vmem:[#allocation2 + $0x30] sm:$0xf] %v5224
        %5461 = vst [vmem:[#allocation2 + $0x34] sm:$0xf] %v5233
        %5462 = vst [vmem:[#allocation2 + $0x38] sm:$0xf] %v5242
        %5463 = vst [vmem:[#allocation2 + $0x3c] sm:$0xf] %v5251
        %5464 = vst [vmem:[#allocation2 + $0x40] sm:$0xf] %v5260
        %5465 = vst [vmem:[#allocation2 + $0x44] sm:$0xf] %v5269
        %5466 = vst [vmem:[#allocation2 + $0x48] sm:$0xf] %v5278
        %5467 = vst [vmem:[#allocation2 + $0x4c] sm:$0xf] %v5287
        %5468 = vst [vmem:[#allocation2 + $0x50] sm:$0xf] %v5296
        %5469 = vst [vmem:[#allocation2 + $0x54] sm:$0xf] %v5305
        %5470 = vst [vmem:[#allocation2 + $0x58] sm:$0xf] %v5314
        %5471 = vst [vmem:[#allocation2 + $0x5c] sm:$0xf] %v5323
        %5472 = vst [vmem:[#allocation2 + $0x60] sm:$0xf] %v5332
        %5473 = vst [vmem:[#allocation2 + $0x64] sm:$0xf] %v5341
        %5474 = vst [vmem:[#allocation2 + $0x68] sm:$0xf] %v5350
        %5475 = vst [vmem:[#allocation2 + $0x6c] sm:$0xf] %v5359
        %5476 = vst [vmem:[#allocation2 + $0x70] sm:$0xf] %v5368
        %5477 = vst [vmem:[#allocation2 + $0x74] sm:$0xf] %v5377
        %5478 = vst [vmem:[#allocation2 + $0x78] sm:$0xf] %v5386
        %5479 = vst [vmem:[#allocation2 + $0x7c] sm:$0xf] %v5395
        %5480 = vst [vmem:[#allocation2 + $0x80] sm:$0xf] %v5404
        %5481 = vst [vmem:[#allocation2 + $0x84] sm:$0xf] %v5413
        %v5482 = vld [vmem:[#allocation2 + $0x88] sm:$0x1]
        %v5483 = vsel %vm5018, %v5414, %v5482
        %5484 = vst [vmem:[#allocation2 + $0x88] sm:$0x1] %v5483
        %v5485 = vld [vmem:[#allocation2] sm:$0xf]
        %v5486 = vld [vmem:[#allocation2 + $0x4] sm:$0xf]
        %v5487 = vld [vmem:[#allocation2 + $0x8] sm:$0xf]
        %v5488 = vld [vmem:[#allocation2 + $0xc] sm:$0xf]
        %v5489 = vld [vmem:[#allocation2 + $0x10] sm:$0xf]
        %v5490 = vld [vmem:[#allocation2 + $0x14] sm:$0xf]
        %v5491 = vld [vmem:[#allocation2 + $0x18] sm:$0xf]
        %v5492 = vld [vmem:[#allocation2 + $0x1c] sm:$0xf]
        %v5493 = vld [vmem:[#allocation2 + $0x20] sm:$0xf]
        %v5494 = vld [vmem:[#allocation2 + $0x24] sm:$0xf]
        %v5495 = vld [vmem:[#allocation2 + $0x28] sm:$0xf]
        %v5496 = vld [vmem:[#allocation2 + $0x2c] sm:$0xf]
        %v5497 = vld [vmem:[#allocation2 + $0x30] sm:$0xf]
        %v5498 = vld [vmem:[#allocation2 + $0x34] sm:$0xf]
        %v5499 = vld [vmem:[#allocation2 + $0x38] sm:$0xf]
        %v5500 = vld [vmem:[#allocation2 + $0x3c] sm:$0xf]
        %v5501 = vld [vmem:[#allocation2 + $0x40] sm:$0xf]
        %v5502 = vld [vmem:[#allocation2 + $0x44] sm:$0xf]
        %v5503 = vld [vmem:[#allocation2 + $0x48] sm:$0xf]
        %v5504 = vld [vmem:[#allocation2 + $0x4c] sm:$0xf]
        %v5505 = vld [vmem:[#allocation2 + $0x50] sm:$0xf]
        %v5506 = vld [vmem:[#allocation2 + $0x54] sm:$0xf]
        %v5507 = vld [vmem:[#allocation2 + $0x58] sm:$0xf]
        %v5508 = vld [vmem:[#allocation2 + $0x5c] sm:$0xf]
        %v5509 = vld [vmem:[#allocation2 + $0x60] sm:$0xf]
        %v5510 = vld [vmem:[#allocation2 + $0x64] sm:$0xf]
        %v5511 = vld [vmem:[#allocation2 + $0x68] sm:$0xf]
        %v5512 = vld [vmem:[#allocation2 + $0x6c] sm:$0xf]
        %v5513 = vld [vmem:[#allocation2 + $0x70] sm:$0xf]
        %v5514 = vld [vmem:[#allocation2 + $0x74] sm:$0xf]
        %v5515 = vld [vmem:[#allocation2 + $0x78] sm:$0xf]
        %v5516 = vld [vmem:[#allocation2 + $0x7c] sm:$0xf]
        %v5517 = vsel %vm899, %v5485, 0
        %v5518 = vsel %vm900, %v5486, 0
        %v5519 = vsel %vm901, %v5487, 0
        %v5520 = vsel %vm902, %v5488, 0
        %v5521 = vsel %vm903, %v5489, 0
        %v5522 = vsel %vm904, %v5490, 0
        %v5523 = vsel %vm905, %v5491, 0
        %v5524 = vsel %vm906, %v5492, 0
        %v5525 = vsel %vm907, %v5493, 0
        %v5526 = vsel %vm908, %v5494, 0
        %v5527 = vsel %vm909, %v5495, 0
        %v5528 = vsel %vm910, %v5496, 0
        %v5529 = vsel %vm911, %v5497, 0
        %v5530 = vsel %vm912, %v5498, 0
        %v5531 = vsel %vm913, %v5499, 0
        %v5532 = vsel %vm914, %v5500, 0
        %v5533 = vsel %vm915, %v5501, 0
        %v5534 = vsel %vm916, %v5502, 0
        %v5535 = vsel %vm917, %v5503, 0
        %v5536 = vsel %vm918, %v5504, 0
        %v5537 = vsel %vm919, %v5505, 0
        %v5538 = vsel %vm920, %v5506, 0
        %v5539 = vsel %vm921, %v5507, 0
        %v5540 = vsel %vm922, %v5508, 0
        %v5541 = vsel %vm923, %v5509, 0
        %v5542 = vsel %vm924, %v5510, 0
        %v5543 = vsel %vm925, %v5511, 0
        %v5544 = vsel %vm926, %v5512, 0
        %v5545 = vsel %vm927, %v5513, 0
        %v5546 = vsel %vm928, %v5514, 0
        %v5547 = vsel %vm929, %v5515, 0
        %v5548 = vsel %vm930, %v5516, 0
        %v5549 = vld [vmem:[#allocation3] sm:$0xf]
        %v5550 = vld [vmem:[#allocation3 + $0x4] sm:$0xf]
        %v5551 = vld [vmem:[#allocation3 + $0x8] sm:$0xf]
        %v5552 = vld [vmem:[#allocation3 + $0xc] sm:$0xf]
        %v5553 = vld [vmem:[#allocation3 + $0x10] sm:$0xf]
        %v5554 = vld [vmem:[#allocation3 + $0x14] sm:$0xf]
        %v5555 = vld [vmem:[#allocation3 + $0x18] sm:$0xf]
        %v5556 = vld [vmem:[#allocation3 + $0x1c] sm:$0xf]
        %v5557 = vld [vmem:[#allocation3 + $0x20] sm:$0xf]
        %v5558 = vld [vmem:[#allocation3 + $0x24] sm:$0xf]
        %v5559 = vld [vmem:[#allocation3 + $0x28] sm:$0xf]
        %v5560 = vld [vmem:[#allocation3 + $0x2c] sm:$0xf]
        %v5561 = vld [vmem:[#allocation3 + $0x30] sm:$0xf]
        %v5562 = vld [vmem:[#allocation3 + $0x34] sm:$0xf]
        %v5563 = vld [vmem:[#allocation3 + $0x38] sm:$0xf]
        %v5564 = vld [vmem:[#allocation3 + $0x3c] sm:$0xf]
        %v5565 = vld [vmem:[#allocation2 + $0x80] sm:$0x1]
        %s5566 = scalar_lea.vmem [#allocation3], 64
        %v5567 = vld [vmem:[%s5566] sm:$0xf]
        %v5568 = vld [vmem:[%s5566 + $0x4] sm:$0xf]
        %v5569 = vld [vmem:[%s5566 + $0x8] sm:$0xf]
        %v5570 = vld [vmem:[%s5566 + $0xc] sm:$0xf]
        %v5571 = vld [vmem:[%s5566 + $0x10] sm:$0xf]
        %v5572 = vld [vmem:[%s5566 + $0x14] sm:$0xf]
        %v5573 = vld [vmem:[%s5566 + $0x18] sm:$0xf]
        %v5574 = vld [vmem:[%s5566 + $0x1c] sm:$0xf]
        %v5575 = vld [vmem:[%s5566 + $0x20] sm:$0xf]
        %v5576 = vld [vmem:[%s5566 + $0x24] sm:$0xf]
        %v5577 = vld [vmem:[%s5566 + $0x28] sm:$0xf]
        %v5578 = vld [vmem:[%s5566 + $0x2c] sm:$0xf]
        %v5579 = vld [vmem:[%s5566 + $0x30] sm:$0xf]
        %v5580 = vld [vmem:[%s5566 + $0x34] sm:$0xf]
        %v5581 = vld [vmem:[%s5566 + $0x38] sm:$0xf]
        %v5582 = vld [vmem:[%s5566 + $0x3c] sm:$0xf]
        %v5616 = vunpack.c.l.b16 %v5485
        %v5617 = vunpack.c.l.b16 %v5486
        %v5618 = vunpack.c.l.b16 %v5487
        %v5619 = vunpack.c.l.b16 %v5488
        %v5620 = vunpack.c.l.b16 %v5489
        %v5621 = vunpack.c.l.b16 %v5490
        %v5622 = vunpack.c.l.b16 %v5491
        %v5623 = vunpack.c.l.b16 %v5492
        %v5624 = vunpack.c.l.b16 %v5493
        %v5625 = vunpack.c.l.b16 %v5494
        %v5626 = vunpack.c.l.b16 %v5495
        %v5627 = vunpack.c.l.b16 %v5496
        %v5628 = vunpack.c.l.b16 %v5497
        %v5629 = vunpack.c.l.b16 %v5498
        %v5630 = vunpack.c.l.b16 %v5499
        %v5631 = vunpack.c.l.b16 %v5500
        %v5632 = vunpack.c.l.b16 %v5501
        %v5633 = vunpack.c.l.b16 %v5502
        %v5634 = vunpack.c.l.b16 %v5503
        %v5635 = vunpack.c.l.b16 %v5504
        %v5636 = vunpack.c.l.b16 %v5505
        %v5637 = vunpack.c.l.b16 %v5506
        %v5638 = vunpack.c.l.b16 %v5507
        %v5639 = vunpack.c.l.b16 %v5508
        %v5640 = vunpack.c.l.b16 %v5509
        %v5641 = vunpack.c.l.b16 %v5510
        %v5642 = vunpack.c.l.b16 %v5511
        %v5643 = vunpack.c.l.b16 %v5512
        %v5644 = vunpack.c.l.b16 %v5513
        %v5645 = vunpack.c.l.b16 %v5514
        %v5646 = vunpack.c.l.b16 %v5515
        %v5647 = vunpack.c.l.b16 %v5516
        %v5648 = vunpack.c.l.b16 %v5565
        %v5649 = vpack.c.b16 %v5617, %v5616
        %v5650 = vpack.c.b16 %v5619, %v5618
        %v5651 = vpack.c.b16 %v5621, %v5620
        %v5652 = vpack.c.b16 %v5623, %v5622
        %v5653 = vpack.c.b16 %v5625, %v5624
        %v5654 = vpack.c.b16 %v5627, %v5626
        %v5655 = vpack.c.b16 %v5629, %v5628
        %v5656 = vpack.c.b16 %v5631, %v5630
        %v5657 = vpack.c.b16 %v5633, %v5632
        %v5658 = vpack.c.b16 %v5635, %v5634
        %v5659 = vpack.c.b16 %v5637, %v5636
        %v5660 = vpack.c.b16 %v5639, %v5638
        %v5661 = vpack.c.b16 %v5641, %v5640
        %v5662 = vpack.c.b16 %v5643, %v5642
        %v5663 = vpack.c.b16 %v5645, %v5644
        %v5664 = vpack.c.b16 %v5647, %v5646
        %v5665 = vpack.c.b16 %v5648, %v5648
        %v5667 = vshrl.u32 %v5649, 16
        %v5669 = vshll.u32 %v5649, 16
        %v5671 = vrot.slane %v5669, 1
        %v5672 = vor.u32 %v5667, %v5671
        %v5674 = vshll.u32 %v5650, 16
        %v5676 = vrot.slane %v5674, 1
        %v5677 = vsel %vm1050, %v5672, %v5676
        %v5678 = vshrl.u32 %v5650, 16
        %v5680 = vor.u32 %v5678, %v5676
        %v5682 = vshll.u32 %v5651, 16
        %v5684 = vrot.slane %v5682, 1
        %v5685 = vsel %vm1050, %v5680, %v5684
        %v5686 = vshrl.u32 %v5651, 16
        %v5688 = vor.u32 %v5686, %v5684
        %v5690 = vshll.u32 %v5652, 16
        %v5692 = vrot.slane %v5690, 1
        %v5693 = vsel %vm1050, %v5688, %v5692
        %v5694 = vshrl.u32 %v5652, 16
        %v5696 = vor.u32 %v5694, %v5692
        %v5698 = vshll.u32 %v5653, 16
        %v5700 = vrot.slane %v5698, 1
        %v5701 = vsel %vm1050, %v5696, %v5700
        %v5702 = vshrl.u32 %v5653, 16
        %v5704 = vor.u32 %v5702, %v5700
        %v5706 = vshll.u32 %v5654, 16
        %v5708 = vrot.slane %v5706, 1
        %v5709 = vsel %vm1050, %v5704, %v5708
        %v5710 = vshrl.u32 %v5654, 16
        %v5712 = vor.u32 %v5710, %v5708
        %v5714 = vshll.u32 %v5655, 16
        %v5716 = vrot.slane %v5714, 1
        %v5717 = vsel %vm1050, %v5712, %v5716
        %v5718 = vshrl.u32 %v5655, 16
        %v5720 = vor.u32 %v5718, %v5716
        %v5722 = vshll.u32 %v5656, 16
        %v5724 = vrot.slane %v5722, 1
        %v5725 = vsel %vm1050, %v5720, %v5724
        %v5726 = vshrl.u32 %v5656, 16
        %v5728 = vor.u32 %v5726, %v5724
        %v5730 = vshll.u32 %v5657, 16
        %v5732 = vrot.slane %v5730, 1
        %v5733 = vsel %vm1050, %v5728, %v5732
        %v5734 = vshrl.u32 %v5657, 16
        %v5736 = vor.u32 %v5734, %v5732
        %v5738 = vshll.u32 %v5658, 16
        %v5740 = vrot.slane %v5738, 1
        %v5741 = vsel %vm1050, %v5736, %v5740
        %v5742 = vshrl.u32 %v5658, 16
        %v5744 = vor.u32 %v5742, %v5740
        %v5746 = vshll.u32 %v5659, 16
        %v5748 = vrot.slane %v5746, 1
        %v5749 = vsel %vm1050, %v5744, %v5748
        %v5750 = vshrl.u32 %v5659, 16
        %v5752 = vor.u32 %v5750, %v5748
        %v5754 = vshll.u32 %v5660, 16
        %v5756 = vrot.slane %v5754, 1
        %v5757 = vsel %vm1050, %v5752, %v5756
        %v5758 = vshrl.u32 %v5660, 16
        %v5760 = vor.u32 %v5758, %v5756
        %v5762 = vshll.u32 %v5661, 16
        %v5764 = vrot.slane %v5762, 1
        %v5765 = vsel %vm1050, %v5760, %v5764
        %v5766 = vshrl.u32 %v5661, 16
        %v5768 = vor.u32 %v5766, %v5764
        %v5770 = vshll.u32 %v5662, 16
        %v5772 = vrot.slane %v5770, 1
        %v5773 = vsel %vm1050, %v5768, %v5772
        %v5774 = vshrl.u32 %v5662, 16
        %v5776 = vor.u32 %v5774, %v5772
        %v5778 = vshll.u32 %v5663, 16
        %v5780 = vrot.slane %v5778, 1
        %v5781 = vsel %vm1050, %v5776, %v5780
        %v5782 = vshrl.u32 %v5663, 16
        %v5784 = vor.u32 %v5782, %v5780
        %v5786 = vshll.u32 %v5664, 16
        %v5788 = vrot.slane %v5786, 1
        %v5789 = vsel %vm1050, %v5784, %v5788
        %v5790 = vshrl.u32 %v5664, 16
        %v5792 = vor.u32 %v5790, %v5788
        %v5794 = vshll.u32 %v5665, 16
        %v5796 = vrot.slane %v5794, 1
        %v5797 = vsel %vm1050, %v5792, %v5796
        %v5830 = vunpack.c.l.b16 %v5567
        %v5831 = vunpack.c.l.b16 %v5568
        %v5832 = vunpack.c.l.b16 %v5569
        %v5833 = vunpack.c.l.b16 %v5570
        %v5834 = vunpack.c.l.b16 %v5571
        %v5835 = vunpack.c.l.b16 %v5572
        %v5836 = vunpack.c.l.b16 %v5573
        %v5837 = vunpack.c.l.b16 %v5574
        %v5838 = vunpack.c.l.b16 %v5575
        %v5839 = vunpack.c.l.b16 %v5576
        %v5840 = vunpack.c.l.b16 %v5577
        %v5841 = vunpack.c.l.b16 %v5578
        %v5842 = vunpack.c.l.b16 %v5579
        %v5843 = vunpack.c.l.b16 %v5580
        %v5844 = vunpack.c.l.b16 %v5581
        %v5845 = vunpack.c.l.b16 %v5582
        %v5846 = vpack.c.b16 %v5831, %v5830
        %v5847 = vpack.c.b16 %v5833, %v5832
        %v5848 = vpack.c.b16 %v5835, %v5834
        %v5849 = vpack.c.b16 %v5837, %v5836
        %v5850 = vpack.c.b16 %v5839, %v5838
        %v5851 = vpack.c.b16 %v5841, %v5840
        %v5852 = vpack.c.b16 %v5843, %v5842
        %v5853 = vpack.c.b16 %v5845, %v5844
        %5862 = vmatprep.subr.bf16.mxu0 0
        %5863 = vmatpush1.bf16.msra.mxu0 %v5846
        %5864 = vmatprep.subr.bf16.mxu0 0
        %5865 = vmatpush1.bf16.msra.mxu0 %v5847
        %5866 = vmatprep.subr.bf16.mxu0 0
        %5867 = vmatpush1.bf16.msra.mxu0 %v5848
        %5868 = vmatprep.subr.bf16.mxu0 0
        %5869 = vmatpush1.bf16.msra.mxu0 %v5849
        %5870 = vmatprep.subr.bf16.mxu0 0
        %5871 = vmatpush1.bf16.msra.mxu0 %v5850
        %5872 = vmatprep.subr.bf16.mxu0 0
        %5873 = vmatpush1.bf16.msra.mxu0 %v5851
        %5874 = vmatprep.subr.bf16.mxu0 0
        %5875 = vmatpush1.bf16.msra.mxu0 %v5852
        %5876 = vmatprep.subr.bf16.mxu0 0
        %5877 = vmatpush1.bf16.msra.mxu0 %v5853
        %5878 = vmatprep.subr.bf16.mxu0 0
        %5879 = vmatpush1.bf16.msra.mxu0 0
        %5880 = vmatprep.subr.bf16.mxu0 0
        %5881 = vmatpush1.bf16.msra.mxu0 0
        %5882 = vmatprep.subr.bf16.mxu0 0
        %5883 = vmatpush1.bf16.msra.mxu0 0
        %5884 = vmatprep.subr.bf16.mxu0 0
        %5885 = vmatpush1.bf16.msra.mxu0 0
        %5886 = vmatprep.subr.bf16.mxu0 0
        %5887 = vmatpush1.bf16.msra.mxu0 0
        %5888 = vmatprep.subr.bf16.mxu0 0
        %5889 = vmatpush1.bf16.msra.mxu0 0
        %5890 = vmatprep.subr.bf16.mxu0 0
        %5891 = vmatpush1.bf16.msra.mxu0 0
        %5892 = vmatprep.subr.bf16.mxu0 0
        %5893 = vmatpush1.bf16.msra.mxu0 0
        %5894 = vmatprep.mubr.bf16.mxu0 0
        %5895 = vmatmul.mubr.bf16.gmra.mrb[0].mxu0 %v5677
        %v5896 = vpop.f32.mrb[0].mxu0
        %v5897 = vadd.f32 0.0, %v5896
        %v5898 = vpop.f32.mrb[0].mxu0
        %v5899 = vpop.f32.mrb[0].mxu0
        %v5900 = vadd.f32 0.0, %v5899
        %v5901 = vpop.f32.mrb[0].mxu0
        %5902 = vmatprep.mubr.bf16.mxu0 0
        %5903 = vmatmul.mubr.bf16.gmra.mrb[0].mxu0 %v5685
        %v5904 = vpop.f32.mrb[0].mxu0
        %v5905 = vadd.f32 0.0, %v5904
        %v5906 = vpop.f32.mrb[0].mxu0
        %v5907 = vpop.f32.mrb[0].mxu0
        %v5908 = vadd.f32 0.0, %v5907
        %v5909 = vpop.f32.mrb[0].mxu0
        %5910 = vmatprep.mubr.bf16.mxu0 0
        %5911 = vmatmul.mubr.bf16.gmra.mrb[0].mxu0 %v5693
        %v5912 = vpop.f32.mrb[0].mxu0
        %v5913 = vadd.f32 0.0, %v5912
        %v5914 = vpop.f32.mrb[0].mxu0
        %v5915 = vpop.f32.mrb[0].mxu0
        %v5916 = vadd.f32 0.0, %v5915
        %v5917 = vpop.f32.mrb[0].mxu0
        %5918 = vmatprep.mubr.bf16.mxu0 0
        %5919 = vmatmul.mubr.bf16.gmra.mrb[0].mxu0 %v5701
        %v5920 = vpop.f32.mrb[0].mxu0
        %v5921 = vadd.f32 0.0, %v5920
        %v5922 = vpop.f32.mrb[0].mxu0
        %v5923 = vpop.f32.mrb[0].mxu0
        %v5924 = vadd.f32 0.0, %v5923
        %v5925 = vpop.f32.mrb[0].mxu0
        %5926 = vmatprep.mubr.bf16.mxu0 0
        %5927 = vmatmul.mubr.bf16.gmra.mrb[0].mxu0 %v5709
        %v5928 = vpop.f32.mrb[0].mxu0
        %v5929 = vadd.f32 0.0, %v5928
        %v5930 = vpop.f32.mrb[0].mxu0
        %v5931 = vpop.f32.mrb[0].mxu0
        %v5932 = vadd.f32 0.0, %v5931
        %v5933 = vpop.f32.mrb[0].mxu0
        %5934 = vmatprep.mubr.bf16.mxu0 0
        %5935 = vmatmul.mubr.bf16.gmra.mrb[0].mxu0 %v5717
        %v5936 = vpop.f32.mrb[0].mxu0
        %v5937 = vadd.f32 0.0, %v5936
        %v5938 = vpop.f32.mrb[0].mxu0
        %v5939 = vpop.f32.mrb[0].mxu0
        %v5940 = vadd.f32 0.0, %v5939
        %v5941 = vpop.f32.mrb[0].mxu0
        %5942 = vmatprep.mubr.bf16.mxu0 0
        %5943 = vmatmul.mubr.bf16.gmra.mrb[0].mxu0 %v5725
        %v5944 = vpop.f32.mrb[0].mxu0
        %v5945 = vadd.f32 0.0, %v5944
        %v5946 = vpop.f32.mrb[0].mxu0
        %v5947 = vpop.f32.mrb[0].mxu0
        %v5948 = vadd.f32 0.0, %v5947
        %v5949 = vpop.f32.mrb[0].mxu0
        %5950 = vmatprep.mubr.bf16.mxu0 0
        %5951 = vmatmul.mubr.bf16.gmra.mrb[0].mxu0 %v5733
        %v5952 = vpop.f32.mrb[0].mxu0
        %v5953 = vadd.f32 0.0, %v5952
        %v5954 = vpop.f32.mrb[0].mxu0
        %v5955 = vpop.f32.mrb[0].mxu0
        %v5956 = vadd.f32 0.0, %v5955
        %v5957 = vpop.f32.mrb[0].mxu0
        %5958 = vmatprep.mubr.bf16.mxu0 0
        %5959 = vmatmul.mubr.bf16.gmra.mrb[0].mxu0 %v5741
        %v5960 = vpop.f32.mrb[0].mxu0
        %v5961 = vadd.f32 0.0, %v5960
        %v5962 = vpop.f32.mrb[0].mxu0
        %v5963 = vpop.f32.mrb[0].mxu0
        %v5964 = vadd.f32 0.0, %v5963
        %v5965 = vpop.f32.mrb[0].mxu0
        %5966 = vmatprep.mubr.bf16.mxu0 0
        %5967 = vmatmul.mubr.bf16.gmra.mrb[0].mxu0 %v5749
        %v5968 = vpop.f32.mrb[0].mxu0
        %v5969 = vadd.f32 0.0, %v5968
        %v5970 = vpop.f32.mrb[0].mxu0
        %v5971 = vpop.f32.mrb[0].mxu0
        %v5972 = vadd.f32 0.0, %v5971
        %v5973 = vpop.f32.mrb[0].mxu0
        %5974 = vmatprep.mubr.bf16.mxu0 0
        %5975 = vmatmul.mubr.bf16.gmra.mrb[0].mxu0 %v5757
        %v5976 = vpop.f32.mrb[0].mxu0
        %v5977 = vadd.f32 0.0, %v5976
        %v5978 = vpop.f32.mrb[0].mxu0
        %v5979 = vpop.f32.mrb[0].mxu0
        %v5980 = vadd.f32 0.0, %v5979
        %v5981 = vpop.f32.mrb[0].mxu0
        %5982 = vmatprep.mubr.bf16.mxu0 0
        %5983 = vmatmul.mubr.bf16.gmra.mrb[0].mxu0 %v5765
        %v5984 = vpop.f32.mrb[0].mxu0
        %v5985 = vadd.f32 0.0, %v5984
        %v5986 = vpop.f32.mrb[0].mxu0
        %v5987 = vpop.f32.mrb[0].mxu0
        %v5988 = vadd.f32 0.0, %v5987
        %v5989 = vpop.f32.mrb[0].mxu0
        %5990 = vmatprep.mubr.bf16.mxu0 0
        %5991 = vmatmul.mubr.bf16.gmra.mrb[0].mxu0 %v5773
        %v5992 = vpop.f32.mrb[0].mxu0
        %v5993 = vadd.f32 0.0, %v5992
        %v5994 = vpop.f32.mrb[0].mxu0
        %v5995 = vpop.f32.mrb[0].mxu0
        %v5996 = vadd.f32 0.0, %v5995
        %v5997 = vpop.f32.mrb[0].mxu0
        %5998 = vmatprep.mubr.bf16.mxu0 0
        %5999 = vmatmul.mubr.bf16.gmra.mrb[0].mxu0 %v5781
        %v6000 = vpop.f32.mrb[0].mxu0
        %v6001 = vadd.f32 0.0, %v6000
        %v6002 = vpop.f32.mrb[0].mxu0
        %v6003 = vpop.f32.mrb[0].mxu0
        %v6004 = vadd.f32 0.0, %v6003
        %v6005 = vpop.f32.mrb[0].mxu0
        %6006 = vmatprep.mubr.bf16.mxu0 0
        %6007 = vmatmul.mubr.bf16.gmra.mrb[0].mxu0 %v5789
        %v6008 = vpop.f32.mrb[0].mxu0
        %v6009 = vadd.f32 0.0, %v6008
        %v6010 = vpop.f32.mrb[0].mxu0
        %v6011 = vpop.f32.mrb[0].mxu0
        %v6012 = vadd.f32 0.0, %v6011
        %v6013 = vpop.f32.mrb[0].mxu0
        %6014 = vmatprep.mubr.bf16.mxu0 0
        %6015 = vmatmul.mubr.bf16.gmra.mrb[0].mxu0 %v5797
        %v6016 = vpop.f32.mrb[0].mxu0
        %v6017 = vadd.f32 0.0, %v6016
        %v6018 = vpop.f32.mrb[0].mxu0
        %v6019 = vpop.f32.mrb[0].mxu0
        %v6020 = vadd.f32 0.0, %v6019
        %v6021 = vpop.f32.mrb[0].mxu0
        %6022 = vdwg.mxu0
        %v6055 = vunpack.c.l.b16 %v5517
        %v6056 = vunpack.c.l.b16 %v5518
        %v6057 = vunpack.c.l.b16 %v5519
        %v6058 = vunpack.c.l.b16 %v5520
        %v6059 = vunpack.c.l.b16 %v5521
        %v6060 = vunpack.c.l.b16 %v5522
        %v6061 = vunpack.c.l.b16 %v5523
        %v6062 = vunpack.c.l.b16 %v5524
        %v6063 = vunpack.c.l.b16 %v5525
        %v6064 = vunpack.c.l.b16 %v5526
        %v6065 = vunpack.c.l.b16 %v5527
        %v6066 = vunpack.c.l.b16 %v5528
        %v6067 = vunpack.c.l.b16 %v5529
        %v6068 = vunpack.c.l.b16 %v5530
        %v6069 = vunpack.c.l.b16 %v5531
        %v6070 = vunpack.c.l.b16 %v5532
        %v6071 = vunpack.c.l.b16 %v5533
        %v6072 = vunpack.c.l.b16 %v5534
        %v6073 = vunpack.c.l.b16 %v5535
        %v6074 = vunpack.c.l.b16 %v5536
        %v6075 = vunpack.c.l.b16 %v5537
        %v6076 = vunpack.c.l.b16 %v5538
        %v6077 = vunpack.c.l.b16 %v5539
        %v6078 = vunpack.c.l.b16 %v5540
        %v6079 = vunpack.c.l.b16 %v5541
        %v6080 = vunpack.c.l.b16 %v5542
        %v6081 = vunpack.c.l.b16 %v5543
        %v6082 = vunpack.c.l.b16 %v5544
        %v6083 = vunpack.c.l.b16 %v5545
        %v6084 = vunpack.c.l.b16 %v5546
        %v6085 = vunpack.c.l.b16 %v5547
        %v6086 = vunpack.c.l.b16 %v5548
        %v6087 = vpack.c.b16 %v6056, %v6055
        %v6088 = vpack.c.b16 %v6058, %v6057
        %v6089 = vpack.c.b16 %v6060, %v6059
        %v6090 = vpack.c.b16 %v6062, %v6061
        %v6091 = vpack.c.b16 %v6064, %v6063
        %v6092 = vpack.c.b16 %v6066, %v6065
        %v6093 = vpack.c.b16 %v6068, %v6067
        %v6094 = vpack.c.b16 %v6070, %v6069
        %v6095 = vpack.c.b16 %v6072, %v6071
        %v6096 = vpack.c.b16 %v6074, %v6073
        %v6097 = vpack.c.b16 %v6076, %v6075
        %v6098 = vpack.c.b16 %v6078, %v6077
        %v6099 = vpack.c.b16 %v6080, %v6079
        %v6100 = vpack.c.b16 %v6082, %v6081
        %v6101 = vpack.c.b16 %v6084, %v6083
        %v6102 = vpack.c.b16 %v6086, %v6085
        %v6135 = vunpack.c.l.b16 %v5549
        %v6136 = vunpack.c.l.b16 %v5550
        %v6137 = vunpack.c.l.b16 %v5551
        %v6138 = vunpack.c.l.b16 %v5552
        %v6139 = vunpack.c.l.b16 %v5553
        %v6140 = vunpack.c.l.b16 %v5554
        %v6141 = vunpack.c.l.b16 %v5555
        %v6142 = vunpack.c.l.b16 %v5556
        %v6143 = vunpack.c.l.b16 %v5557
        %v6144 = vunpack.c.l.b16 %v5558
        %v6145 = vunpack.c.l.b16 %v5559
        %v6146 = vunpack.c.l.b16 %v5560
        %v6147 = vunpack.c.l.b16 %v5561
        %v6148 = vunpack.c.l.b16 %v5562
        %v6149 = vunpack.c.l.b16 %v5563
        %v6150 = vunpack.c.l.b16 %v5564
        %v6151 = vpack.c.b16 %v6136, %v6135
        %v6152 = vpack.c.b16 %v6138, %v6137
        %v6153 = vpack.c.b16 %v6140, %v6139
        %v6154 = vpack.c.b16 %v6142, %v6141
        %v6155 = vpack.c.b16 %v6144, %v6143
        %v6156 = vpack.c.b16 %v6146, %v6145
        %v6157 = vpack.c.b16 %v6148, %v6147
        %v6158 = vpack.c.b16 %v6150, %v6149
        %6167 = vmatprep.subr.bf16.mxu0 0
        %6168 = vmatpush1.bf16.msra.mxu0 %v6151
        %6169 = vmatprep.subr.bf16.mxu0 0
        %6170 = vmatpush1.bf16.msra.mxu0 %v6152
        %6171 = vmatprep.subr.bf16.mxu0 0
        %6172 = vmatpush1.bf16.msra.mxu0 %v6153
        %6173 = vmatprep.subr.bf16.mxu0 0
        %6174 = vmatpush1.bf16.msra.mxu0 %v6154
        %6175 = vmatprep.subr.bf16.mxu0 0
        %6176 = vmatpush1.bf16.msra.mxu0 %v6155
        %6177 = vmatprep.subr.bf16.mxu0 0
        %6178 = vmatpush1.bf16.msra.mxu0 %v6156
        %6179 = vmatprep.subr.bf16.mxu0 0
        %6180 = vmatpush1.bf16.msra.mxu0 %v6157
        %6181 = vmatprep.subr.bf16.mxu0 0
        %6182 = vmatpush1.bf16.msra.mxu0 %v6158
        %6183 = vmatprep.subr.bf16.mxu0 0
        %6184 = vmatpush1.bf16.msra.mxu0 0
        %6185 = vmatprep.subr.bf16.mxu0 0
        %6186 = vmatpush1.bf16.msra.mxu0 0
        %6187 = vmatprep.subr.bf16.mxu0 0
        %6188 = vmatpush1.bf16.msra.mxu0 0
        %6189 = vmatprep.subr.bf16.mxu0 0
        %6190 = vmatpush1.bf16.msra.mxu0 0
        %6191 = vmatprep.subr.bf16.mxu0 0
        %6192 = vmatpush1.bf16.msra.mxu0 0
        %6193 = vmatprep.subr.bf16.mxu0 0
        %6194 = vmatpush1.bf16.msra.mxu0 0
        %6195 = vmatprep.subr.bf16.mxu0 0
        %6196 = vmatpush1.bf16.msra.mxu0 0
        %6197 = vmatprep.subr.bf16.mxu0 0
        %6198 = vmatpush1.bf16.msra.mxu0 0
        %6199 = vmatprep.mubr.bf16.mxu0 0
        %6200 = vmatmul.mubr.bf16.gmra.mrb[0].mxu0 %v6087
        %v6201 = vpop.f32.mrb[0].mxu0
        %v6202 = vadd.f32 %v5897, %v6201
        %v6203 = vpop.f32.mrb[0].mxu0
        %v6204 = vpop.f32.mrb[0].mxu0
        %v6205 = vadd.f32 %v5900, %v6204
        %v6206 = vpop.f32.mrb[0].mxu0
        %6207 = vmatprep.mubr.bf16.mxu0 0
        %6208 = vmatmul.mubr.bf16.gmra.mrb[0].mxu0 %v6088
        %v6209 = vpop.f32.mrb[0].mxu0
        %v6210 = vadd.f32 %v5905, %v6209
        %v6211 = vpop.f32.mrb[0].mxu0
        %v6212 = vpop.f32.mrb[0].mxu0
        %v6213 = vadd.f32 %v5908, %v6212
        %v6214 = vpop.f32.mrb[0].mxu0
        %6215 = vmatprep.mubr.bf16.mxu0 0
        %6216 = vmatmul.mubr.bf16.gmra.mrb[0].mxu0 %v6089
        %v6217 = vpop.f32.mrb[0].mxu0
        %v6218 = vadd.f32 %v5913, %v6217
        %v6219 = vpop.f32.mrb[0].mxu0
        %v6220 = vpop.f32.mrb[0].mxu0
        %v6221 = vadd.f32 %v5916, %v6220
        %v6222 = vpop.f32.mrb[0].mxu0
        %6223 = vmatprep.mubr.bf16.mxu0 0
        %6224 = vmatmul.mubr.bf16.gmra.mrb[0].mxu0 %v6090
        %v6225 = vpop.f32.mrb[0].mxu0
        %v6226 = vadd.f32 %v5921, %v6225
        %v6227 = vpop.f32.mrb[0].mxu0
        %v6228 = vpop.f32.mrb[0].mxu0
        %v6229 = vadd.f32 %v5924, %v6228
        %v6230 = vpop.f32.mrb[0].mxu0
        %6231 = vmatprep.mubr.bf16.mxu0 0
        %6232 = vmatmul.mubr.bf16.gmra.mrb[0].mxu0 %v6091
        %v6233 = vpop.f32.mrb[0].mxu0
        %v6234 = vadd.f32 %v5929, %v6233
        %v6235 = vpop.f32.mrb[0].mxu0
        %v6236 = vpop.f32.mrb[0].mxu0
        %v6237 = vadd.f32 %v5932, %v6236
        %v6238 = vpop.f32.mrb[0].mxu0
        %6239 = vmatprep.mubr.bf16.mxu0 0
        %6240 = vmatmul.mubr.bf16.gmra.mrb[0].mxu0 %v6092
        %v6241 = vpop.f32.mrb[0].mxu0
        %v6242 = vadd.f32 %v5937, %v6241
        %v6243 = vpop.f32.mrb[0].mxu0
        %v6244 = vpop.f32.mrb[0].mxu0
        %v6245 = vadd.f32 %v5940, %v6244
        %v6246 = vpop.f32.mrb[0].mxu0
        %6247 = vmatprep.mubr.bf16.mxu0 0
        %6248 = vmatmul.mubr.bf16.gmra.mrb[0].mxu0 %v6093
        %v6249 = vpop.f32.mrb[0].mxu0
        %v6250 = vadd.f32 %v5945, %v6249
        %v6251 = vpop.f32.mrb[0].mxu0
        %v6252 = vpop.f32.mrb[0].mxu0
        %v6253 = vadd.f32 %v5948, %v6252
        %v6254 = vpop.f32.mrb[0].mxu0
        %6255 = vmatprep.mubr.bf16.mxu0 0
        %6256 = vmatmul.mubr.bf16.gmra.mrb[0].mxu0 %v6094
        %v6257 = vpop.f32.mrb[0].mxu0
        %v6258 = vadd.f32 %v5953, %v6257
        %v6259 = vpop.f32.mrb[0].mxu0
        %v6260 = vpop.f32.mrb[0].mxu0
        %v6261 = vadd.f32 %v5956, %v6260
        %v6262 = vpop.f32.mrb[0].mxu0
        %6263 = vmatprep.mubr.bf16.mxu0 0
        %6264 = vmatmul.mubr.bf16.gmra.mrb[0].mxu0 %v6095
        %v6265 = vpop.f32.mrb[0].mxu0
        %v6266 = vadd.f32 %v5961, %v6265
        %v6267 = vpop.f32.mrb[0].mxu0
        %v6268 = vpop.f32.mrb[0].mxu0
        %v6269 = vadd.f32 %v5964, %v6268
        %v6270 = vpop.f32.mrb[0].mxu0
        %6271 = vmatprep.mubr.bf16.mxu0 0
        %6272 = vmatmul.mubr.bf16.gmra.mrb[0].mxu0 %v6096
        %v6273 = vpop.f32.mrb[0].mxu0
        %v6274 = vadd.f32 %v5969, %v6273
        %v6275 = vpop.f32.mrb[0].mxu0
        %v6276 = vpop.f32.mrb[0].mxu0
        %v6277 = vadd.f32 %v5972, %v6276
        %v6278 = vpop.f32.mrb[0].mxu0
        %6279 = vmatprep.mubr.bf16.mxu0 0
        %6280 = vmatmul.mubr.bf16.gmra.mrb[0].mxu0 %v6097
        %v6281 = vpop.f32.mrb[0].mxu0
        %v6282 = vadd.f32 %v5977, %v6281
        %v6283 = vpop.f32.mrb[0].mxu0
        %v6284 = vpop.f32.mrb[0].mxu0
        %v6285 = vadd.f32 %v5980, %v6284
        %v6286 = vpop.f32.mrb[0].mxu0
        %6287 = vmatprep.mubr.bf16.mxu0 0
        %6288 = vmatmul.mubr.bf16.gmra.mrb[0].mxu0 %v6098
        %v6289 = vpop.f32.mrb[0].mxu0
        %v6290 = vadd.f32 %v5985, %v6289
        %v6291 = vpop.f32.mrb[0].mxu0
        %v6292 = vpop.f32.mrb[0].mxu0
        %v6293 = vadd.f32 %v5988, %v6292
        %v6294 = vpop.f32.mrb[0].mxu0
        %6295 = vmatprep.mubr.bf16.mxu0 0
        %6296 = vmatmul.mubr.bf16.gmra.mrb[0].mxu0 %v6099
        %v6297 = vpop.f32.mrb[0].mxu0
        %v6298 = vadd.f32 %v5993, %v6297
        %v6299 = vpop.f32.mrb[0].mxu0
        %v6300 = vpop.f32.mrb[0].mxu0
        %v6301 = vadd.f32 %v5996, %v6300
        %v6302 = vpop.f32.mrb[0].mxu0
        %6303 = vmatprep.mubr.bf16.mxu0 0
        %6304 = vmatmul.mubr.bf16.gmra.mrb[0].mxu0 %v6100
        %v6305 = vpop.f32.mrb[0].mxu0
        %v6306 = vadd.f32 %v6001, %v6305
        %v6307 = vpop.f32.mrb[0].mxu0
        %v6308 = vpop.f32.mrb[0].mxu0
        %v6309 = vadd.f32 %v6004, %v6308
        %v6310 = vpop.f32.mrb[0].mxu0
        %6311 = vmatprep.mubr.bf16.mxu0 0
        %6312 = vmatmul.mubr.bf16.gmra.mrb[0].mxu0 %v6101
        %v6313 = vpop.f32.mrb[0].mxu0
        %v6314 = vadd.f32 %v6009, %v6313
        %v6315 = vpop.f32.mrb[0].mxu0
        %v6316 = vpop.f32.mrb[0].mxu0
        %v6317 = vadd.f32 %v6012, %v6316
        %v6318 = vpop.f32.mrb[0].mxu0
        %6319 = vmatprep.mubr.bf16.mxu0 0
        %6320 = vmatmul.mubr.bf16.gmra.mrb[0].mxu0 %v6102
        %v6321 = vpop.f32.mrb[0].mxu0
        %v6322 = vadd.f32 %v6017, %v6321
        %v6323 = vpop.f32.mrb[0].mxu0
        %v6324 = vpop.f32.mrb[0].mxu0
        %v6325 = vadd.f32 %v6020, %v6324
        %v6326 = vpop.f32.mrb[0].mxu0
        %6327 = vdwg.mxu0
        %v6328 = vld [vmem:[#allocation2] sm:$0xe]
        %v6329 = vsel %vm1916, %v6328, 0
        %v6330 = vsel %vm1917, %v5486, 0
        %v6331 = vsel %vm1918, %v5487, 0
        %v6332 = vsel %vm1919, %v5488, 0
        %v6333 = vsel %vm1920, %v5489, 0
        %v6334 = vsel %vm1921, %v5490, 0
        %v6335 = vsel %vm1922, %v5491, 0
        %v6336 = vsel %vm1923, %v5492, 0
        %v6337 = vsel %vm1924, %v5493, 0
        %v6338 = vsel %vm1925, %v5494, 0
        %v6339 = vsel %vm1926, %v5495, 0
        %v6340 = vsel %vm1927, %v5496, 0
        %v6341 = vsel %vm1928, %v5497, 0
        %v6342 = vsel %vm1929, %v5498, 0
        %v6343 = vsel %vm1930, %v5499, 0
        %v6344 = vsel %vm1931, %v5500, 0
        %v6345 = vsel %vm1932, %v5501, 0
        %v6346 = vsel %vm1933, %v5502, 0
        %v6347 = vsel %vm1934, %v5503, 0
        %v6348 = vsel %vm1935, %v5504, 0
        %v6349 = vsel %vm1936, %v5505, 0
        %v6350 = vsel %vm1937, %v5506, 0
        %v6351 = vsel %vm1938, %v5507, 0
        %v6352 = vsel %vm1939, %v5508, 0
        %v6353 = vsel %vm1940, %v5509, 0
        %v6354 = vsel %vm1941, %v5510, 0
        %v6355 = vsel %vm1942, %v5511, 0
        %v6356 = vsel %vm1943, %v5512, 0
        %v6357 = vsel %vm1944, %v5513, 0
        %v6358 = vsel %vm1945, %v5514, 0
        %v6359 = vsel %vm1946, %v5515, 0
        %v6360 = vsel %vm1947, %v5516, 0
        %v6361 = vsel %vm1948, %v5565, 0
        %s6362 = scalar_lea.vmem [#allocation3], 128
        %v6363 = vld [vmem:[%s6362] sm:$0xf]
        %v6364 = vld [vmem:[%s6362 + $0x4] sm:$0xf]
        %v6365 = vld [vmem:[%s6362 + $0x8] sm:$0xf]
        %v6366 = vld [vmem:[%s6362 + $0xc] sm:$0xf]
        %v6367 = vld [vmem:[%s6362 + $0x10] sm:$0xf]
        %v6368 = vld [vmem:[%s6362 + $0x14] sm:$0xf]
        %v6369 = vld [vmem:[%s6362 + $0x18] sm:$0xf]
        %v6370 = vld [vmem:[%s6362 + $0x1c] sm:$0xf]
        %v6371 = vld [vmem:[%s6362 + $0x20] sm:$0xf]
        %v6372 = vld [vmem:[%s6362 + $0x24] sm:$0xf]
        %v6373 = vld [vmem:[%s6362 + $0x28] sm:$0xf]
        %v6374 = vld [vmem:[%s6362 + $0x2c] sm:$0xf]
        %v6375 = vld [vmem:[%s6362 + $0x30] sm:$0xf]
        %v6376 = vld [vmem:[%s6362 + $0x34] sm:$0xf]
        %v6377 = vld [vmem:[%s6362 + $0x38] sm:$0xf]
        %v6378 = vld [vmem:[%s6362 + $0x3c] sm:$0xf]
        %v6412 = vunpack.c.l.b16 %v6329
        %v6413 = vunpack.c.l.b16 %v6330
        %v6414 = vunpack.c.l.b16 %v6331
        %v6415 = vunpack.c.l.b16 %v6332
        %v6416 = vunpack.c.l.b16 %v6333
        %v6417 = vunpack.c.l.b16 %v6334
        %v6418 = vunpack.c.l.b16 %v6335
        %v6419 = vunpack.c.l.b16 %v6336
        %v6420 = vunpack.c.l.b16 %v6337
        %v6421 = vunpack.c.l.b16 %v6338
        %v6422 = vunpack.c.l.b16 %v6339
        %v6423 = vunpack.c.l.b16 %v6340
        %v6424 = vunpack.c.l.b16 %v6341
        %v6425 = vunpack.c.l.b16 %v6342
        %v6426 = vunpack.c.l.b16 %v6343
        %v6427 = vunpack.c.l.b16 %v6344
        %v6428 = vunpack.c.l.b16 %v6345
        %v6429 = vunpack.c.l.b16 %v6346
        %v6430 = vunpack.c.l.b16 %v6347
        %v6431 = vunpack.c.l.b16 %v6348
        %v6432 = vunpack.c.l.b16 %v6349
        %v6433 = vunpack.c.l.b16 %v6350
        %v6434 = vunpack.c.l.b16 %v6351
        %v6435 = vunpack.c.l.b16 %v6352
        %v6436 = vunpack.c.l.b16 %v6353
        %v6437 = vunpack.c.l.b16 %v6354
        %v6438 = vunpack.c.l.b16 %v6355
        %v6439 = vunpack.c.l.b16 %v6356
        %v6440 = vunpack.c.l.b16 %v6357
        %v6441 = vunpack.c.l.b16 %v6358
        %v6442 = vunpack.c.l.b16 %v6359
        %v6443 = vunpack.c.l.b16 %v6360
        %v6444 = vunpack.c.l.b16 %v6361
        %v6445 = vpack.c.b16 %v6413, %v6412
        %v6446 = vpack.c.b16 %v6415, %v6414
        %v6447 = vpack.c.b16 %v6417, %v6416
        %v6448 = vpack.c.b16 %v6419, %v6418
        %v6449 = vpack.c.b16 %v6421, %v6420
        %v6450 = vpack.c.b16 %v6423, %v6422
        %v6451 = vpack.c.b16 %v6425, %v6424
        %v6452 = vpack.c.b16 %v6427, %v6426
        %v6453 = vpack.c.b16 %v6429, %v6428
        %v6454 = vpack.c.b16 %v6431, %v6430
        %v6455 = vpack.c.b16 %v6433, %v6432
        %v6456 = vpack.c.b16 %v6435, %v6434
        %v6457 = vpack.c.b16 %v6437, %v6436
        %v6458 = vpack.c.b16 %v6439, %v6438
        %v6459 = vpack.c.b16 %v6441, %v6440
        %v6460 = vpack.c.b16 %v6443, %v6442
        %v6461 = vpack.c.b16 %v6444, %v6444
        %v6462 = vrot.slane %v6445, 1
        %v6463 = vrot.slane %v6446, 1
        %v6464 = vsel %vm2067, %v6462, %v6463
        %v6465 = vrot.slane %v6447, 1
        %v6466 = vsel %vm2067, %v6463, %v6465
        %v6467 = vrot.slane %v6448, 1
        %v6468 = vsel %vm2067, %v6465, %v6467
        %v6469 = vrot.slane %v6449, 1
        %v6470 = vsel %vm2067, %v6467, %v6469
        %v6471 = vrot.slane %v6450, 1
        %v6472 = vsel %vm2067, %v6469, %v6471
        %v6473 = vrot.slane %v6451, 1
        %v6474 = vsel %vm2067, %v6471, %v6473
        %v6475 = vrot.slane %v6452, 1
        %v6476 = vsel %vm2067, %v6473, %v6475
        %v6477 = vrot.slane %v6453, 1
        %v6478 = vsel %vm2067, %v6475, %v6477
        %v6479 = vrot.slane %v6454, 1
        %v6480 = vsel %vm2067, %v6477, %v6479
        %v6481 = vrot.slane %v6455, 1
        %v6482 = vsel %vm2067, %v6479, %v6481
        %v6483 = vrot.slane %v6456, 1
        %v6484 = vsel %vm2067, %v6481, %v6483
        %v6485 = vrot.slane %v6457, 1
        %v6486 = vsel %vm2067, %v6483, %v6485
        %v6487 = vrot.slane %v6458, 1
        %v6488 = vsel %vm2067, %v6485, %v6487
        %v6489 = vrot.slane %v6459, 1
        %v6490 = vsel %vm2067, %v6487, %v6489
        %v6491 = vrot.slane %v6460, 1
        %v6492 = vsel %vm2067, %v6489, %v6491
        %v6493 = vrot.slane %v6461, 1
        %v6494 = vsel %vm2067, %v6491, %v6493
        %v6527 = vunpack.c.l.b16 %v6363
        %v6528 = vunpack.c.l.b16 %v6364
        %v6529 = vunpack.c.l.b16 %v6365
        %v6530 = vunpack.c.l.b16 %v6366
        %v6531 = vunpack.c.l.b16 %v6367
        %v6532 = vunpack.c.l.b16 %v6368
        %v6533 = vunpack.c.l.b16 %v6369
        %v6534 = vunpack.c.l.b16 %v6370
        %v6535 = vunpack.c.l.b16 %v6371
        %v6536 = vunpack.c.l.b16 %v6372
        %v6537 = vunpack.c.l.b16 %v6373
        %v6538 = vunpack.c.l.b16 %v6374
        %v6539 = vunpack.c.l.b16 %v6375
        %v6540 = vunpack.c.l.b16 %v6376
        %v6541 = vunpack.c.l.b16 %v6377
        %v6542 = vunpack.c.l.b16 %v6378
        %v6543 = vpack.c.b16 %v6528, %v6527
        %v6544 = vpack.c.b16 %v6530, %v6529
        %v6545 = vpack.c.b16 %v6532, %v6531
        %v6546 = vpack.c.b16 %v6534, %v6533
        %v6547 = vpack.c.b16 %v6536, %v6535
        %v6548 = vpack.c.b16 %v6538, %v6537
        %v6549 = vpack.c.b16 %v6540, %v6539
        %v6550 = vpack.c.b16 %v6542, %v6541
        %6559 = vmatprep.subr.bf16.mxu0 0
        %6560 = vmatpush1.bf16.msra.mxu0 %v6543
        %6561 = vmatprep.subr.bf16.mxu0 0
        %6562 = vmatpush1.bf16.msra.mxu0 %v6544
        %6563 = vmatprep.subr.bf16.mxu0 0
        %6564 = vmatpush1.bf16.msra.mxu0 %v6545
        %6565 = vmatprep.subr.bf16.mxu0 0
        %6566 = vmatpush1.bf16.msra.mxu0 %v6546
        %6567 = vmatprep.subr.bf16.mxu0 0
        %6568 = vmatpush1.bf16.msra.mxu0 %v6547
        %6569 = vmatprep.subr.bf16.mxu0 0
        %6570 = vmatpush1.bf16.msra.mxu0 %v6548
        %6571 = vmatprep.subr.bf16.mxu0 0
        %6572 = vmatpush1.bf16.msra.mxu0 %v6549
        %6573 = vmatprep.subr.bf16.mxu0 0
        %6574 = vmatpush1.bf16.msra.mxu0 %v6550
        %6575 = vmatprep.subr.bf16.mxu0 0
        %6576 = vmatpush1.bf16.msra.mxu0 0
        %6577 = vmatprep.subr.bf16.mxu0 0
        %6578 = vmatpush1.bf16.msra.mxu0 0
        %6579 = vmatprep.subr.bf16.mxu0 0
        %6580 = vmatpush1.bf16.msra.mxu0 0
        %6581 = vmatprep.subr.bf16.mxu0 0
        %6582 = vmatpush1.bf16.msra.mxu0 0
        %6583 = vmatprep.subr.bf16.mxu0 0
        %6584 = vmatpush1.bf16.msra.mxu0 0
        %6585 = vmatprep.subr.bf16.mxu0 0
        %6586 = vmatpush1.bf16.msra.mxu0 0
        %6587 = vmatprep.subr.bf16.mxu0 0
        %6588 = vmatpush1.bf16.msra.mxu0 0
        %6589 = vmatprep.subr.bf16.mxu0 0
        %6590 = vmatpush1.bf16.msra.mxu0 0
        %6591 = vmatprep.mubr.bf16.mxu0 0
        %6592 = vmatmul.mubr.bf16.gmra.mrb[0].mxu0 %v6464
        %v6593 = vpop.f32.mrb[0].mxu0
        %v6594 = vadd.f32 0.0, %v6593
        %v6595 = vpop.f32.mrb[0].mxu0
        %v6596 = vpop.f32.mrb[0].mxu0
        %v6597 = vadd.f32 0.0, %v6596
        %v6598 = vpop.f32.mrb[0].mxu0
        %6599 = vmatprep.mubr.bf16.mxu0 0
        %6600 = vmatmul.mubr.bf16.gmra.mrb[0].mxu0 %v6466
        %v6601 = vpop.f32.mrb[0].mxu0
        %v6602 = vadd.f32 0.0, %v6601
        %v6603 = vpop.f32.mrb[0].mxu0
        %v6604 = vpop.f32.mrb[0].mxu0
        %v6605 = vadd.f32 0.0, %v6604
        %v6606 = vpop.f32.mrb[0].mxu0
        %6607 = vmatprep.mubr.bf16.mxu0 0
        %6608 = vmatmul.mubr.bf16.gmra.mrb[0].mxu0 %v6468
        %v6609 = vpop.f32.mrb[0].mxu0
        %v6610 = vadd.f32 0.0, %v6609
        %v6611 = vpop.f32.mrb[0].mxu0
        %v6612 = vpop.f32.mrb[0].mxu0
        %v6613 = vadd.f32 0.0, %v6612
        %v6614 = vpop.f32.mrb[0].mxu0
        %6615 = vmatprep.mubr.bf16.mxu0 0
        %6616 = vmatmul.mubr.bf16.gmra.mrb[0].mxu0 %v6470
        %v6617 = vpop.f32.mrb[0].mxu0
        %v6618 = vadd.f32 0.0, %v6617
        %v6619 = vpop.f32.mrb[0].mxu0
        %v6620 = vpop.f32.mrb[0].mxu0
        %v6621 = vadd.f32 0.0, %v6620
        %v6622 = vpop.f32.mrb[0].mxu0
        %6623 = vmatprep.mubr.bf16.mxu0 0
        %6624 = vmatmul.mubr.bf16.gmra.mrb[0].mxu0 %v6472
        %v6625 = vpop.f32.mrb[0].mxu0
        %v6626 = vadd.f32 0.0, %v6625
        %v6627 = vpop.f32.mrb[0].mxu0
        %v6628 = vpop.f32.mrb[0].mxu0
        %v6629 = vadd.f32 0.0, %v6628
        %v6630 = vpop.f32.mrb[0].mxu0
        %6631 = vmatprep.mubr.bf16.mxu0 0
        %6632 = vmatmul.mubr.bf16.gmra.mrb[0].mxu0 %v6474
        %v6633 = vpop.f32.mrb[0].mxu0
        %v6634 = vadd.f32 0.0, %v6633
        %v6635 = vpop.f32.mrb[0].mxu0
        %v6636 = vpop.f32.mrb[0].mxu0
        %v6637 = vadd.f32 0.0, %v6636
        %v6638 = vpop.f32.mrb[0].mxu0
        %6639 = vmatprep.mubr.bf16.mxu0 0
        %6640 = vmatmul.mubr.bf16.gmra.mrb[0].mxu0 %v6476
        %v6641 = vpop.f32.mrb[0].mxu0
        %v6642 = vadd.f32 0.0, %v6641
        %v6643 = vpop.f32.mrb[0].mxu0
        %v6644 = vpop.f32.mrb[0].mxu0
        %v6645 = vadd.f32 0.0, %v6644
        %v6646 = vpop.f32.mrb[0].mxu0
        %6647 = vmatprep.mubr.bf16.mxu0 0
        %6648 = vmatmul.mubr.bf16.gmra.mrb[0].mxu0 %v6478
        %v6649 = vpop.f32.mrb[0].mxu0
        %v6650 = vadd.f32 0.0, %v6649
        %v6651 = vpop.f32.mrb[0].mxu0
        %v6652 = vpop.f32.mrb[0].mxu0
        %v6653 = vadd.f32 0.0, %v6652
        %v6654 = vpop.f32.mrb[0].mxu0
        %6655 = vmatprep.mubr.bf16.mxu0 0
        %6656 = vmatmul.mubr.bf16.gmra.mrb[0].mxu0 %v6480
        %v6657 = vpop.f32.mrb[0].mxu0
        %v6658 = vadd.f32 0.0, %v6657
        %v6659 = vpop.f32.mrb[0].mxu0
        %v6660 = vpop.f32.mrb[0].mxu0
        %v6661 = vadd.f32 0.0, %v6660
        %v6662 = vpop.f32.mrb[0].mxu0
        %6663 = vmatprep.mubr.bf16.mxu0 0
        %6664 = vmatmul.mubr.bf16.gmra.mrb[0].mxu0 %v6482
        %v6665 = vpop.f32.mrb[0].mxu0
        %v6666 = vadd.f32 0.0, %v6665
        %v6667 = vpop.f32.mrb[0].mxu0
        %v6668 = vpop.f32.mrb[0].mxu0
        %v6669 = vadd.f32 0.0, %v6668
        %v6670 = vpop.f32.mrb[0].mxu0
        %6671 = vmatprep.mubr.bf16.mxu0 0
        %6672 = vmatmul.mubr.bf16.gmra.mrb[0].mxu0 %v6484
        %v6673 = vpop.f32.mrb[0].mxu0
        %v6674 = vadd.f32 0.0, %v6673
        %v6675 = vpop.f32.mrb[0].mxu0
        %v6676 = vpop.f32.mrb[0].mxu0
        %v6677 = vadd.f32 0.0, %v6676
        %v6678 = vpop.f32.mrb[0].mxu0
        %6679 = vmatprep.mubr.bf16.mxu0 0
        %6680 = vmatmul.mubr.bf16.gmra.mrb[0].mxu0 %v6486
        %v6681 = vpop.f32.mrb[0].mxu0
        %v6682 = vadd.f32 0.0, %v6681
        %v6683 = vpop.f32.mrb[0].mxu0
        %v6684 = vpop.f32.mrb[0].mxu0
        %v6685 = vadd.f32 0.0, %v6684
        %v6686 = vpop.f32.mrb[0].mxu0
        %6687 = vmatprep.mubr.bf16.mxu0 0
        %6688 = vmatmul.mubr.bf16.gmra.mrb[0].mxu0 %v6488
        %v6689 = vpop.f32.mrb[0].mxu0
        %v6690 = vadd.f32 0.0, %v6689
        %v6691 = vpop.f32.mrb[0].mxu0
        %v6692 = vpop.f32.mrb[0].mxu0
        %v6693 = vadd.f32 0.0, %v6692
        %v6694 = vpop.f32.mrb[0].mxu0
        %6695 = vmatprep.mubr.bf16.mxu0 0
        %6696 = vmatmul.mubr.bf16.gmra.mrb[0].mxu0 %v6490
        %v6697 = vpop.f32.mrb[0].mxu0
        %v6698 = vadd.f32 0.0, %v6697
        %v6699 = vpop.f32.mrb[0].mxu0
        %v6700 = vpop.f32.mrb[0].mxu0
        %v6701 = vadd.f32 0.0, %v6700
        %v6702 = vpop.f32.mrb[0].mxu0
        %6703 = vmatprep.mubr.bf16.mxu0 0
        %6704 = vmatmul.mubr.bf16.gmra.mrb[0].mxu0 %v6492
        %v6705 = vpop.f32.mrb[0].mxu0
        %v6706 = vadd.f32 0.0, %v6705
        %v6707 = vpop.f32.mrb[0].mxu0
        %v6708 = vpop.f32.mrb[0].mxu0
        %v6709 = vadd.f32 0.0, %v6708
        %v6710 = vpop.f32.mrb[0].mxu0
        %6711 = vmatprep.mubr.bf16.mxu0 0
        %6712 = vmatmul.mubr.bf16.gmra.mrb[0].mxu0 %v6494
        %v6713 = vpop.f32.mrb[0].mxu0
        %v6714 = vadd.f32 0.0, %v6713
        %v6715 = vpop.f32.mrb[0].mxu0
        %v6716 = vpop.f32.mrb[0].mxu0
        %v6717 = vadd.f32 0.0, %v6716
        %v6718 = vpop.f32.mrb[0].mxu0
        %6719 = vdwg.mxu0
        %v6720 = vadd.f32 %v6202, %v6594
        %v6721 = vadd.f32 %v6205, %v6597
        %v6722 = vadd.f32 %v6210, %v6602
        %v6723 = vadd.f32 %v6213, %v6605
        %v6724 = vadd.f32 %v6218, %v6610
        %v6725 = vadd.f32 %v6221, %v6613
        %v6726 = vadd.f32 %v6226, %v6618
        %v6727 = vadd.f32 %v6229, %v6621
        %v6728 = vadd.f32 %v6234, %v6626
        %v6729 = vadd.f32 %v6237, %v6629
        %v6730 = vadd.f32 %v6242, %v6634
        %v6731 = vadd.f32 %v6245, %v6637
        %v6732 = vadd.f32 %v6250, %v6642
        %v6733 = vadd.f32 %v6253, %v6645
        %v6734 = vadd.f32 %v6258, %v6650
        %v6735 = vadd.f32 %v6261, %v6653
        %v6736 = vadd.f32 %v6266, %v6658
        %v6737 = vadd.f32 %v6269, %v6661
        %v6738 = vadd.f32 %v6274, %v6666
        %v6739 = vadd.f32 %v6277, %v6669
        %v6740 = vadd.f32 %v6282, %v6674
        %v6741 = vadd.f32 %v6285, %v6677
        %v6742 = vadd.f32 %v6290, %v6682
        %v6743 = vadd.f32 %v6293, %v6685
        %v6744 = vadd.f32 %v6298, %v6690
        %v6745 = vadd.f32 %v6301, %v6693
        %v6746 = vadd.f32 %v6306, %v6698
        %v6747 = vadd.f32 %v6309, %v6701
        %v6748 = vadd.f32 %v6314, %v6706
        %v6749 = vadd.f32 %v6317, %v6709
        %v6750 = vadd.f32 %v6322, %v6714
        %v6751 = vadd.f32 %v6325, %v6717
        %v6752 = vld [vmem:[#allocation2 + $0x8] sm:$0xf]
        %v6753 = vld [vmem:[#allocation2 + $0xc] sm:$0xf]
        %v6754 = vld [vmem:[#allocation2 + $0x10] sm:$0xf]
        %v6755 = vld [vmem:[#allocation2 + $0x14] sm:$0xf]
        %v6756 = vld [vmem:[#allocation2 + $0x18] sm:$0xf]
        %v6757 = vld [vmem:[#allocation2 + $0x1c] sm:$0xf]
        %v6758 = vld [vmem:[#allocation2 + $0x20] sm:$0xf]
        %v6759 = vld [vmem:[#allocation2 + $0x24] sm:$0xf]
        %v6760 = vld [vmem:[#allocation2 + $0x28] sm:$0xf]
        %v6761 = vld [vmem:[#allocation2 + $0x2c] sm:$0xf]
        %v6762 = vld [vmem:[#allocation2 + $0x30] sm:$0xf]
        %v6763 = vld [vmem:[#allocation2 + $0x34] sm:$0xf]
        %v6764 = vld [vmem:[#allocation2 + $0x38] sm:$0xf]
        %v6765 = vld [vmem:[#allocation2 + $0x3c] sm:$0xf]
        %v6766 = vld [vmem:[#allocation2 + $0x40] sm:$0xf]
        %v6767 = vld [vmem:[#allocation2 + $0x44] sm:$0xf]
        %v6768 = vld [vmem:[#allocation2 + $0x48] sm:$0xf]
        %v6769 = vld [vmem:[#allocation2 + $0x4c] sm:$0xf]
        %v6770 = vld [vmem:[#allocation2 + $0x50] sm:$0xf]
        %v6771 = vld [vmem:[#allocation2 + $0x54] sm:$0xf]
        %v6772 = vld [vmem:[#allocation2 + $0x58] sm:$0xf]
        %v6773 = vld [vmem:[#allocation2 + $0x5c] sm:$0xf]
        %v6774 = vld [vmem:[#allocation2 + $0x60] sm:$0xf]
        %v6775 = vld [vmem:[#allocation2 + $0x64] sm:$0xf]
        %v6776 = vld [vmem:[#allocation2 + $0x68] sm:$0xf]
        %v6777 = vld [vmem:[#allocation2 + $0x6c] sm:$0xf]
        %v6778 = vld [vmem:[#allocation2 + $0x70] sm:$0xf]
        %v6779 = vld [vmem:[#allocation2 + $0x74] sm:$0xf]
        %v6780 = vld [vmem:[#allocation2 + $0x78] sm:$0xf]
        %v6781 = vld [vmem:[#allocation2 + $0x7c] sm:$0xf]
        %v6782 = vld [vmem:[#allocation2 + $0x80] sm:$0xf]
        %v6783 = vld [vmem:[#allocation2 + $0x84] sm:$0xf]
        %v6784 = vsel %vm899, %v6752, 0
        %v6785 = vsel %vm900, %v6753, 0
        %v6786 = vsel %vm901, %v6754, 0
        %v6787 = vsel %vm902, %v6755, 0
        %v6788 = vsel %vm903, %v6756, 0
        %v6789 = vsel %vm904, %v6757, 0
        %v6790 = vsel %vm905, %v6758, 0
        %v6791 = vsel %vm906, %v6759, 0
        %v6792 = vsel %vm907, %v6760, 0
        %v6793 = vsel %vm908, %v6761, 0
        %v6794 = vsel %vm909, %v6762, 0
        %v6795 = vsel %vm910, %v6763, 0
        %v6796 = vsel %vm911, %v6764, 0
        %v6797 = vsel %vm912, %v6765, 0
        %v6798 = vsel %vm913, %v6766, 0
        %v6799 = vsel %vm914, %v6767, 0
        %v6800 = vsel %vm915, %v6768, 0
        %v6801 = vsel %vm916, %v6769, 0
        %v6802 = vsel %vm917, %v6770, 0
        %v6803 = vsel %vm918, %v6771, 0
        %v6804 = vsel %vm919, %v6772, 0
        %v6805 = vsel %vm920, %v6773, 0
        %v6806 = vsel %vm921, %v6774, 0
        %v6807 = vsel %vm922, %v6775, 0
        %v6808 = vsel %vm923, %v6776, 0
        %v6809 = vsel %vm924, %v6777, 0
        %v6810 = vsel %vm925, %v6778, 0
        %v6811 = vsel %vm926, %v6779, 0
        %v6812 = vsel %vm927, %v6780, 0
        %v6813 = vsel %vm928, %v6781, 0
        %v6814 = vsel %vm929, %v6782, 0
        %v6815 = vsel %vm930, %v6783, 0
        %s6816 = scalar_lea.vmem [#allocation3], 192
        %v6817 = vld [vmem:[%s6816] sm:$0xf]
        %v6818 = vld [vmem:[%s6816 + $0x4] sm:$0xf]
        %v6819 = vld [vmem:[%s6816 + $0x8] sm:$0xf]
        %v6820 = vld [vmem:[%s6816 + $0xc] sm:$0xf]
        %v6821 = vld [vmem:[%s6816 + $0x10] sm:$0xf]
        %v6822 = vld [vmem:[%s6816 + $0x14] sm:$0xf]
        %v6823 = vld [vmem:[%s6816 + $0x18] sm:$0xf]
        %v6824 = vld [vmem:[%s6816 + $0x1c] sm:$0xf]
        %v6825 = vld [vmem:[%s6816 + $0x20] sm:$0xf]
        %v6826 = vld [vmem:[%s6816 + $0x24] sm:$0xf]
        %v6827 = vld [vmem:[%s6816 + $0x28] sm:$0xf]
        %v6828 = vld [vmem:[%s6816 + $0x2c] sm:$0xf]
        %v6829 = vld [vmem:[%s6816 + $0x30] sm:$0xf]
        %v6830 = vld [vmem:[%s6816 + $0x34] sm:$0xf]
        %v6831 = vld [vmem:[%s6816 + $0x38] sm:$0xf]
        %v6832 = vld [vmem:[%s6816 + $0x3c] sm:$0xf]
        %v6865 = vunpack.c.l.b16 %v6784
        %v6866 = vunpack.c.l.b16 %v6785
        %v6867 = vunpack.c.l.b16 %v6786
        %v6868 = vunpack.c.l.b16 %v6787
        %v6869 = vunpack.c.l.b16 %v6788
        %v6870 = vunpack.c.l.b16 %v6789
        %v6871 = vunpack.c.l.b16 %v6790
        %v6872 = vunpack.c.l.b16 %v6791
        %v6873 = vunpack.c.l.b16 %v6792
        %v6874 = vunpack.c.l.b16 %v6793
        %v6875 = vunpack.c.l.b16 %v6794
        %v6876 = vunpack.c.l.b16 %v6795
        %v6877 = vunpack.c.l.b16 %v6796
        %v6878 = vunpack.c.l.b16 %v6797
        %v6879 = vunpack.c.l.b16 %v6798
        %v6880 = vunpack.c.l.b16 %v6799
        %v6881 = vunpack.c.l.b16 %v6800
        %v6882 = vunpack.c.l.b16 %v6801
        %v6883 = vunpack.c.l.b16 %v6802
        %v6884 = vunpack.c.l.b16 %v6803
        %v6885 = vunpack.c.l.b16 %v6804
        %v6886 = vunpack.c.l.b16 %v6805
        %v6887 = vunpack.c.l.b16 %v6806
        %v6888 = vunpack.c.l.b16 %v6807
        %v6889 = vunpack.c.l.b16 %v6808
        %v6890 = vunpack.c.l.b16 %v6809
        %v6891 = vunpack.c.l.b16 %v6810
        %v6892 = vunpack.c.l.b16 %v6811
        %v6893 = vunpack.c.l.b16 %v6812
        %v6894 = vunpack.c.l.b16 %v6813
        %v6895 = vunpack.c.l.b16 %v6814
        %v6896 = vunpack.c.l.b16 %v6815
        %v6897 = vpack.c.b16 %v6866, %v6865
        %v6898 = vpack.c.b16 %v6868, %v6867
        %v6899 = vpack.c.b16 %v6870, %v6869
        %v6900 = vpack.c.b16 %v6872, %v6871
        %v6901 = vpack.c.b16 %v6874, %v6873
        %v6902 = vpack.c.b16 %v6876, %v6875
        %v6903 = vpack.c.b16 %v6878, %v6877
        %v6904 = vpack.c.b16 %v6880, %v6879
        %v6905 = vpack.c.b16 %v6882, %v6881
        %v6906 = vpack.c.b16 %v6884, %v6883
        %v6907 = vpack.c.b16 %v6886, %v6885
        %v6908 = vpack.c.b16 %v6888, %v6887
        %v6909 = vpack.c.b16 %v6890, %v6889
        %v6910 = vpack.c.b16 %v6892, %v6891
        %v6911 = vpack.c.b16 %v6894, %v6893
        %v6912 = vpack.c.b16 %v6896, %v6895
        %v6945 = vunpack.c.l.b16 %v6817
        %v6946 = vunpack.c.l.b16 %v6818
        %v6947 = vunpack.c.l.b16 %v6819
        %v6948 = vunpack.c.l.b16 %v6820
        %v6949 = vunpack.c.l.b16 %v6821
        %v6950 = vunpack.c.l.b16 %v6822
        %v6951 = vunpack.c.l.b16 %v6823
        %v6952 = vunpack.c.l.b16 %v6824
        %v6953 = vunpack.c.l.b16 %v6825
        %v6954 = vunpack.c.l.b16 %v6826
        %v6955 = vunpack.c.l.b16 %v6827
        %v6956 = vunpack.c.l.b16 %v6828
        %v6957 = vunpack.c.l.b16 %v6829
        %v6958 = vunpack.c.l.b16 %v6830
        %v6959 = vunpack.c.l.b16 %v6831
        %v6960 = vunpack.c.l.b16 %v6832
        %v6961 = vpack.c.b16 %v6946, %v6945
        %v6962 = vpack.c.b16 %v6948, %v6947
        %v6963 = vpack.c.b16 %v6950, %v6949
        %v6964 = vpack.c.b16 %v6952, %v6951
        %v6965 = vpack.c.b16 %v6954, %v6953
        %v6966 = vpack.c.b16 %v6956, %v6955
        %v6967 = vpack.c.b16 %v6958, %v6957
        %v6968 = vpack.c.b16 %v6960, %v6959
        %6977 = vmatprep.subr.bf16.mxu0 0
        %6978 = vmatpush1.bf16.msra.mxu0 %v6961
        %6979 = vmatprep.subr.bf16.mxu0 0
        %6980 = vmatpush1.bf16.msra.mxu0 %v6962
        %6981 = vmatprep.subr.bf16.mxu0 0
        %6982 = vmatpush1.bf16.msra.mxu0 %v6963
        %6983 = vmatprep.subr.bf16.mxu0 0
        %6984 = vmatpush1.bf16.msra.mxu0 %v6964
        %6985 = vmatprep.subr.bf16.mxu0 0
        %6986 = vmatpush1.bf16.msra.mxu0 %v6965
        %6987 = vmatprep.subr.bf16.mxu0 0
        %6988 = vmatpush1.bf16.msra.mxu0 %v6966
        %6989 = vmatprep.subr.bf16.mxu0 0
        %6990 = vmatpush1.bf16.msra.mxu0 %v6967
        %6991 = vmatprep.subr.bf16.mxu0 0
        %6992 = vmatpush1.bf16.msra.mxu0 %v6968
        %6993 = vmatprep.subr.bf16.mxu0 0
        %6994 = vmatpush1.bf16.msra.mxu0 0
        %6995 = vmatprep.subr.bf16.mxu0 0
        %6996 = vmatpush1.bf16.msra.mxu0 0
        %6997 = vmatprep.subr.bf16.mxu0 0
        %6998 = vmatpush1.bf16.msra.mxu0 0
        %6999 = vmatprep.subr.bf16.mxu0 0
        %7000 = vmatpush1.bf16.msra.mxu0 0
        %7001 = vmatprep.subr.bf16.mxu0 0
        %7002 = vmatpush1.bf16.msra.mxu0 0
        %7003 = vmatprep.subr.bf16.mxu0 0
        %7004 = vmatpush1.bf16.msra.mxu0 0
        %7005 = vmatprep.subr.bf16.mxu0 0
        %7006 = vmatpush1.bf16.msra.mxu0 0
        %7007 = vmatprep.subr.bf16.mxu0 0
        %7008 = vmatpush1.bf16.msra.mxu0 0
        %7009 = vmatprep.mubr.bf16.mxu0 0
        %7010 = vmatmul.mubr.bf16.gmra.mrb[0].mxu0 %v6897
        %v7011 = vpop.f32.mrb[0].mxu0
        %v7012 = vadd.f32 0.0, %v7011
        %v7013 = vpop.f32.mrb[0].mxu0
        %v7014 = vpop.f32.mrb[0].mxu0
        %v7015 = vadd.f32 0.0, %v7014
        %v7016 = vpop.f32.mrb[0].mxu0
        %7017 = vmatprep.mubr.bf16.mxu0 0
        %7018 = vmatmul.mubr.bf16.gmra.mrb[0].mxu0 %v6898
        %v7019 = vpop.f32.mrb[0].mxu0
        %v7020 = vadd.f32 0.0, %v7019
        %v7021 = vpop.f32.mrb[0].mxu0
        %v7022 = vpop.f32.mrb[0].mxu0
        %v7023 = vadd.f32 0.0, %v7022
        %v7024 = vpop.f32.mrb[0].mxu0
        %7025 = vmatprep.mubr.bf16.mxu0 0
        %7026 = vmatmul.mubr.bf16.gmra.mrb[0].mxu0 %v6899
        %v7027 = vpop.f32.mrb[0].mxu0
        %v7028 = vadd.f32 0.0, %v7027
        %v7029 = vpop.f32.mrb[0].mxu0
        %v7030 = vpop.f32.mrb[0].mxu0
        %v7031 = vadd.f32 0.0, %v7030
        %v7032 = vpop.f32.mrb[0].mxu0
        %7033 = vmatprep.mubr.bf16.mxu0 0
        %7034 = vmatmul.mubr.bf16.gmra.mrb[0].mxu0 %v6900
        %v7035 = vpop.f32.mrb[0].mxu0
        %v7036 = vadd.f32 0.0, %v7035
        %v7037 = vpop.f32.mrb[0].mxu0
        %v7038 = vpop.f32.mrb[0].mxu0
        %v7039 = vadd.f32 0.0, %v7038
        %v7040 = vpop.f32.mrb[0].mxu0
        %7041 = vmatprep.mubr.bf16.mxu0 0
        %7042 = vmatmul.mubr.bf16.gmra.mrb[0].mxu0 %v6901
        %v7043 = vpop.f32.mrb[0].mxu0
        %v7044 = vadd.f32 0.0, %v7043
        %v7045 = vpop.f32.mrb[0].mxu0
        %v7046 = vpop.f32.mrb[0].mxu0
        %v7047 = vadd.f32 0.0, %v7046
        %v7048 = vpop.f32.mrb[0].mxu0
        %7049 = vmatprep.mubr.bf16.mxu0 0
        %7050 = vmatmul.mubr.bf16.gmra.mrb[0].mxu0 %v6902
        %v7051 = vpop.f32.mrb[0].mxu0
        %v7052 = vadd.f32 0.0, %v7051
        %v7053 = vpop.f32.mrb[0].mxu0
        %v7054 = vpop.f32.mrb[0].mxu0
        %v7055 = vadd.f32 0.0, %v7054
        %v7056 = vpop.f32.mrb[0].mxu0
        %7057 = vmatprep.mubr.bf16.mxu0 0
        %7058 = vmatmul.mubr.bf16.gmra.mrb[0].mxu0 %v6903
        %v7059 = vpop.f32.mrb[0].mxu0
        %v7060 = vadd.f32 0.0, %v7059
        %v7061 = vpop.f32.mrb[0].mxu0
        %v7062 = vpop.f32.mrb[0].mxu0
        %v7063 = vadd.f32 0.0, %v7062
        %v7064 = vpop.f32.mrb[0].mxu0
        %7065 = vmatprep.mubr.bf16.mxu0 0
        %7066 = vmatmul.mubr.bf16.gmra.mrb[0].mxu0 %v6904
        %v7067 = vpop.f32.mrb[0].mxu0
        %v7068 = vadd.f32 0.0, %v7067
        %v7069 = vpop.f32.mrb[0].mxu0
        %v7070 = vpop.f32.mrb[0].mxu0
        %v7071 = vadd.f32 0.0, %v7070
        %v7072 = vpop.f32.mrb[0].mxu0
        %7073 = vmatprep.mubr.bf16.mxu0 0
        %7074 = vmatmul.mubr.bf16.gmra.mrb[0].mxu0 %v6905
        %v7075 = vpop.f32.mrb[0].mxu0
        %v7076 = vadd.f32 0.0, %v7075
        %v7077 = vpop.f32.mrb[0].mxu0
        %v7078 = vpop.f32.mrb[0].mxu0
        %v7079 = vadd.f32 0.0, %v7078
        %v7080 = vpop.f32.mrb[0].mxu0
        %7081 = vmatprep.mubr.bf16.mxu0 0
        %7082 = vmatmul.mubr.bf16.gmra.mrb[0].mxu0 %v6906
        %v7083 = vpop.f32.mrb[0].mxu0
        %v7084 = vadd.f32 0.0, %v7083
        %v7085 = vpop.f32.mrb[0].mxu0
        %v7086 = vpop.f32.mrb[0].mxu0
        %v7087 = vadd.f32 0.0, %v7086
        %v7088 = vpop.f32.mrb[0].mxu0
        %7089 = vmatprep.mubr.bf16.mxu0 0
        %7090 = vmatmul.mubr.bf16.gmra.mrb[0].mxu0 %v6907
        %v7091 = vpop.f32.mrb[0].mxu0
        %v7092 = vadd.f32 0.0, %v7091
        %v7093 = vpop.f32.mrb[0].mxu0
        %v7094 = vpop.f32.mrb[0].mxu0
        %v7095 = vadd.f32 0.0, %v7094
        %v7096 = vpop.f32.mrb[0].mxu0
        %7097 = vmatprep.mubr.bf16.mxu0 0
        %7098 = vmatmul.mubr.bf16.gmra.mrb[0].mxu0 %v6908
        %v7099 = vpop.f32.mrb[0].mxu0
        %v7100 = vadd.f32 0.0, %v7099
        %v7101 = vpop.f32.mrb[0].mxu0
        %v7102 = vpop.f32.mrb[0].mxu0
        %v7103 = vadd.f32 0.0, %v7102
        %v7104 = vpop.f32.mrb[0].mxu0
        %7105 = vmatprep.mubr.bf16.mxu0 0
        %7106 = vmatmul.mubr.bf16.gmra.mrb[0].mxu0 %v6909
        %v7107 = vpop.f32.mrb[0].mxu0
        %v7108 = vadd.f32 0.0, %v7107
        %v7109 = vpop.f32.mrb[0].mxu0
        %v7110 = vpop.f32.mrb[0].mxu0
        %v7111 = vadd.f32 0.0, %v7110
        %v7112 = vpop.f32.mrb[0].mxu0
        %7113 = vmatprep.mubr.bf16.mxu0 0
        %7114 = vmatmul.mubr.bf16.gmra.mrb[0].mxu0 %v6910
        %v7115 = vpop.f32.mrb[0].mxu0
        %v7116 = vadd.f32 0.0, %v7115
        %v7117 = vpop.f32.mrb[0].mxu0
        %v7118 = vpop.f32.mrb[0].mxu0
        %v7119 = vadd.f32 0.0, %v7118
        %v7120 = vpop.f32.mrb[0].mxu0
        %7121 = vmatprep.mubr.bf16.mxu0 0
        %7122 = vmatmul.mubr.bf16.gmra.mrb[0].mxu0 %v6911
        %v7123 = vpop.f32.mrb[0].mxu0
        %v7124 = vadd.f32 0.0, %v7123
        %v7125 = vpop.f32.mrb[0].mxu0
        %v7126 = vpop.f32.mrb[0].mxu0
        %v7127 = vadd.f32 0.0, %v7126
        %v7128 = vpop.f32.mrb[0].mxu0
        %7129 = vmatprep.mubr.bf16.mxu0 0
        %7130 = vmatmul.mubr.bf16.gmra.mrb[0].mxu0 %v6912
        %v7131 = vpop.f32.mrb[0].mxu0
        %v7132 = vadd.f32 0.0, %v7131
        %v7133 = vpop.f32.mrb[0].mxu0
        %v7134 = vpop.f32.mrb[0].mxu0
        %v7135 = vadd.f32 0.0, %v7134
        %v7136 = vpop.f32.mrb[0].mxu0
        %7137 = vdwg.mxu0
        %v7138 = vadd.f32 %v6720, %v7012
        %v7139 = vadd.f32 %v6721, %v7015
        %v7140 = vadd.f32 %v6722, %v7020
        %v7141 = vadd.f32 %v6723, %v7023
        %v7142 = vadd.f32 %v6724, %v7028
        %v7143 = vadd.f32 %v6725, %v7031
        %v7144 = vadd.f32 %v6726, %v7036
        %v7145 = vadd.f32 %v6727, %v7039
        %v7146 = vadd.f32 %v6728, %v7044
        %v7147 = vadd.f32 %v6729, %v7047
        %v7148 = vadd.f32 %v6730, %v7052
        %v7149 = vadd.f32 %v6731, %v7055
        %v7150 = vadd.f32 %v6732, %v7060
        %v7151 = vadd.f32 %v6733, %v7063
        %v7152 = vadd.f32 %v6734, %v7068
        %v7153 = vadd.f32 %v6735, %v7071
        %v7154 = vadd.f32 %v6736, %v7076
        %v7155 = vadd.f32 %v6737, %v7079
        %v7156 = vadd.f32 %v6738, %v7084
        %v7157 = vadd.f32 %v6739, %v7087
        %v7158 = vadd.f32 %v6740, %v7092
        %v7159 = vadd.f32 %v6741, %v7095
        %v7160 = vadd.f32 %v6742, %v7100
        %v7161 = vadd.f32 %v6743, %v7103
        %v7162 = vadd.f32 %v6744, %v7108
        %v7163 = vadd.f32 %v6745, %v7111
        %v7164 = vadd.f32 %v6746, %v7116
        %v7165 = vadd.f32 %v6747, %v7119
        %v7166 = vadd.f32 %v6748, %v7124
        %v7167 = vadd.f32 %v6749, %v7127
        %v7168 = vadd.f32 %v6750, %v7132
        %v7169 = vadd.f32 %v6751, %v7135
        %v7170 = vld [vmem:[#allocation2 + $0x8] sm:$0xf]
        %v7171 = vld [vmem:[#allocation2 + $0xc] sm:$0xf]
        %v7172 = vld [vmem:[#allocation2 + $0x10] sm:$0xf]
        %v7173 = vld [vmem:[#allocation2 + $0x14] sm:$0xf]
        %v7174 = vld [vmem:[#allocation2 + $0x18] sm:$0xf]
        %v7175 = vld [vmem:[#allocation2 + $0x1c] sm:$0xf]
        %v7176 = vld [vmem:[#allocation2 + $0x20] sm:$0xf]
        %v7177 = vld [vmem:[#allocation2 + $0x24] sm:$0xf]
        %v7178 = vld [vmem:[#allocation2 + $0x28] sm:$0xf]
        %v7179 = vld [vmem:[#allocation2 + $0x2c] sm:$0xf]
        %v7180 = vld [vmem:[#allocation2 + $0x30] sm:$0xf]
        %v7181 = vld [vmem:[#allocation2 + $0x34] sm:$0xf]
        %v7182 = vld [vmem:[#allocation2 + $0x38] sm:$0xf]
        %v7183 = vld [vmem:[#allocation2 + $0x3c] sm:$0xf]
        %v7184 = vld [vmem:[#allocation2 + $0x40] sm:$0xf]
        %v7185 = vld [vmem:[#allocation2 + $0x44] sm:$0xf]
        %v7186 = vld [vmem:[#allocation2 + $0x48] sm:$0xf]
        %v7187 = vld [vmem:[#allocation2 + $0x4c] sm:$0xf]
        %v7188 = vld [vmem:[#allocation2 + $0x50] sm:$0xf]
        %v7189 = vld [vmem:[#allocation2 + $0x54] sm:$0xf]
        %v7190 = vld [vmem:[#allocation2 + $0x58] sm:$0xf]
        %v7191 = vld [vmem:[#allocation2 + $0x5c] sm:$0xf]
        %v7192 = vld [vmem:[#allocation2 + $0x60] sm:$0xf]
        %v7193 = vld [vmem:[#allocation2 + $0x64] sm:$0xf]
        %v7194 = vld [vmem:[#allocation2 + $0x68] sm:$0xf]
        %v7195 = vld [vmem:[#allocation2 + $0x6c] sm:$0xf]
        %v7196 = vld [vmem:[#allocation2 + $0x70] sm:$0xf]
        %v7197 = vld [vmem:[#allocation2 + $0x74] sm:$0xf]
        %v7198 = vld [vmem:[#allocation2 + $0x78] sm:$0xf]
        %v7199 = vld [vmem:[#allocation2 + $0x7c] sm:$0xf]
        %v7200 = vld [vmem:[#allocation2 + $0x80] sm:$0xf]
        %v7201 = vld [vmem:[#allocation2 + $0x84] sm:$0xf]
        %v7202 = vld [vmem:[#allocation2 + $0x88] sm:$0x1]
        %s7203 = scalar_lea.vmem [#allocation3], 256
        %v7204 = vld [vmem:[%s7203] sm:$0xf]
        %v7205 = vld [vmem:[%s7203 + $0x4] sm:$0xf]
        %v7206 = vld [vmem:[%s7203 + $0x8] sm:$0xf]
        %v7207 = vld [vmem:[%s7203 + $0xc] sm:$0xf]
        %v7208 = vld [vmem:[%s7203 + $0x10] sm:$0xf]
        %v7209 = vld [vmem:[%s7203 + $0x14] sm:$0xf]
        %v7210 = vld [vmem:[%s7203 + $0x18] sm:$0xf]
        %v7211 = vld [vmem:[%s7203 + $0x1c] sm:$0xf]
        %v7212 = vld [vmem:[%s7203 + $0x20] sm:$0xf]
        %v7213 = vld [vmem:[%s7203 + $0x24] sm:$0xf]
        %v7214 = vld [vmem:[%s7203 + $0x28] sm:$0xf]
        %v7215 = vld [vmem:[%s7203 + $0x2c] sm:$0xf]
        %v7216 = vld [vmem:[%s7203 + $0x30] sm:$0xf]
        %v7217 = vld [vmem:[%s7203 + $0x34] sm:$0xf]
        %v7218 = vld [vmem:[%s7203 + $0x38] sm:$0xf]
        %v7219 = vld [vmem:[%s7203 + $0x3c] sm:$0xf]
        %v7253 = vunpack.c.l.b16 %v7170
        %v7254 = vunpack.c.l.b16 %v7171
        %v7255 = vunpack.c.l.b16 %v7172
        %v7256 = vunpack.c.l.b16 %v7173
        %v7257 = vunpack.c.l.b16 %v7174
        %v7258 = vunpack.c.l.b16 %v7175
        %v7259 = vunpack.c.l.b16 %v7176
        %v7260 = vunpack.c.l.b16 %v7177
        %v7261 = vunpack.c.l.b16 %v7178
        %v7262 = vunpack.c.l.b16 %v7179
        %v7263 = vunpack.c.l.b16 %v7180
        %v7264 = vunpack.c.l.b16 %v7181
        %v7265 = vunpack.c.l.b16 %v7182
        %v7266 = vunpack.c.l.b16 %v7183
        %v7267 = vunpack.c.l.b16 %v7184
        %v7268 = vunpack.c.l.b16 %v7185
        %v7269 = vunpack.c.l.b16 %v7186
        %v7270 = vunpack.c.l.b16 %v7187
        %v7271 = vunpack.c.l.b16 %v7188
        %v7272 = vunpack.c.l.b16 %v7189
        %v7273 = vunpack.c.l.b16 %v7190
        %v7274 = vunpack.c.l.b16 %v7191
        %v7275 = vunpack.c.l.b16 %v7192
        %v7276 = vunpack.c.l.b16 %v7193
        %v7277 = vunpack.c.l.b16 %v7194
        %v7278 = vunpack.c.l.b16 %v7195
        %v7279 = vunpack.c.l.b16 %v7196
        %v7280 = vunpack.c.l.b16 %v7197
        %v7281 = vunpack.c.l.b16 %v7198
        %v7282 = vunpack.c.l.b16 %v7199
        %v7283 = vunpack.c.l.b16 %v7200
        %v7284 = vunpack.c.l.b16 %v7201
        %v7285 = vunpack.c.l.b16 %v7202
        %v7286 = vpack.c.b16 %v7254, %v7253
        %v7287 = vpack.c.b16 %v7256, %v7255
        %v7288 = vpack.c.b16 %v7258, %v7257
        %v7289 = vpack.c.b16 %v7260, %v7259
        %v7290 = vpack.c.b16 %v7262, %v7261
        %v7291 = vpack.c.b16 %v7264, %v7263
        %v7292 = vpack.c.b16 %v7266, %v7265
        %v7293 = vpack.c.b16 %v7268, %v7267
        %v7294 = vpack.c.b16 %v7270, %v7269
        %v7295 = vpack.c.b16 %v7272, %v7271
        %v7296 = vpack.c.b16 %v7274, %v7273
        %v7297 = vpack.c.b16 %v7276, %v7275
        %v7298 = vpack.c.b16 %v7278, %v7277
        %v7299 = vpack.c.b16 %v7280, %v7279
        %v7300 = vpack.c.b16 %v7282, %v7281
        %v7301 = vpack.c.b16 %v7284, %v7283
        %v7302 = vpack.c.b16 %v7285, %v7285
        %v7304 = vshrl.u32 %v7286, 16
        %v7306 = vshll.u32 %v7286, 16
        %v7308 = vrot.slane %v7306, 1
        %v7309 = vor.u32 %v7304, %v7308
        %v7311 = vshll.u32 %v7287, 16
        %v7313 = vrot.slane %v7311, 1
        %v7314 = vsel %vm1050, %v7309, %v7313
        %v7315 = vshrl.u32 %v7287, 16
        %v7317 = vor.u32 %v7315, %v7313
        %v7319 = vshll.u32 %v7288, 16
        %v7321 = vrot.slane %v7319, 1
        %v7322 = vsel %vm1050, %v7317, %v7321
        %v7323 = vshrl.u32 %v7288, 16
        %v7325 = vor.u32 %v7323, %v7321
        %v7327 = vshll.u32 %v7289, 16
        %v7329 = vrot.slane %v7327, 1
        %v7330 = vsel %vm1050, %v7325, %v7329
        %v7331 = vshrl.u32 %v7289, 16
        %v7333 = vor.u32 %v7331, %v7329
        %v7335 = vshll.u32 %v7290, 16
        %v7337 = vrot.slane %v7335, 1
        %v7338 = vsel %vm1050, %v7333, %v7337
        %v7339 = vshrl.u32 %v7290, 16
        %v7341 = vor.u32 %v7339, %v7337
        %v7343 = vshll.u32 %v7291, 16
        %v7345 = vrot.slane %v7343, 1
        %v7346 = vsel %vm1050, %v7341, %v7345
        %v7347 = vshrl.u32 %v7291, 16
        %v7349 = vor.u32 %v7347, %v7345
        %v7351 = vshll.u32 %v7292, 16
        %v7353 = vrot.slane %v7351, 1
        %v7354 = vsel %vm1050, %v7349, %v7353
        %v7355 = vshrl.u32 %v7292, 16
        %v7357 = vor.u32 %v7355, %v7353
        %v7359 = vshll.u32 %v7293, 16
        %v7361 = vrot.slane %v7359, 1
        %v7362 = vsel %vm1050, %v7357, %v7361
        %v7363 = vshrl.u32 %v7293, 16
        %v7365 = vor.u32 %v7363, %v7361
        %v7367 = vshll.u32 %v7294, 16
        %v7369 = vrot.slane %v7367, 1
        %v7370 = vsel %vm1050, %v7365, %v7369
        %v7371 = vshrl.u32 %v7294, 16
        %v7373 = vor.u32 %v7371, %v7369
        %v7375 = vshll.u32 %v7295, 16
        %v7377 = vrot.slane %v7375, 1
        %v7378 = vsel %vm1050, %v7373, %v7377
        %v7379 = vshrl.u32 %v7295, 16
        %v7381 = vor.u32 %v7379, %v7377
        %v7383 = vshll.u32 %v7296, 16
        %v7385 = vrot.slane %v7383, 1
        %v7386 = vsel %vm1050, %v7381, %v7385
        %v7387 = vshrl.u32 %v7296, 16
        %v7389 = vor.u32 %v7387, %v7385
        %v7391 = vshll.u32 %v7297, 16
        %v7393 = vrot.slane %v7391, 1
        %v7394 = vsel %vm1050, %v7389, %v7393
        %v7395 = vshrl.u32 %v7297, 16
        %v7397 = vor.u32 %v7395, %v7393
        %v7399 = vshll.u32 %v7298, 16
        %v7401 = vrot.slane %v7399, 1
        %v7402 = vsel %vm1050, %v7397, %v7401
        %v7403 = vshrl.u32 %v7298, 16
        %v7405 = vor.u32 %v7403, %v7401
        %v7407 = vshll.u32 %v7299, 16
        %v7409 = vrot.slane %v7407, 1
        %v7410 = vsel %vm1050, %v7405, %v7409
        %v7411 = vshrl.u32 %v7299, 16
        %v7413 = vor.u32 %v7411, %v7409
        %v7415 = vshll.u32 %v7300, 16
        %v7417 = vrot.slane %v7415, 1
        %v7418 = vsel %vm1050, %v7413, %v7417
        %v7419 = vshrl.u32 %v7300, 16
        %v7421 = vor.u32 %v7419, %v7417
        %v7423 = vshll.u32 %v7301, 16
        %v7425 = vrot.slane %v7423, 1
        %v7426 = vsel %vm1050, %v7421, %v7425
        %v7427 = vshrl.u32 %v7301, 16
        %v7429 = vor.u32 %v7427, %v7425
        %v7431 = vshll.u32 %v7302, 16
        %v7433 = vrot.slane %v7431, 1
        %v7434 = vsel %vm1050, %v7429, %v7433
        %v7467 = vunpack.c.l.b16 %v7204
        %v7468 = vunpack.c.l.b16 %v7205
        %v7469 = vunpack.c.l.b16 %v7206
        %v7470 = vunpack.c.l.b16 %v7207
        %v7471 = vunpack.c.l.b16 %v7208
        %v7472 = vunpack.c.l.b16 %v7209
        %v7473 = vunpack.c.l.b16 %v7210
        %v7474 = vunpack.c.l.b16 %v7211
        %v7475 = vunpack.c.l.b16 %v7212
        %v7476 = vunpack.c.l.b16 %v7213
        %v7477 = vunpack.c.l.b16 %v7214
        %v7478 = vunpack.c.l.b16 %v7215
        %v7479 = vunpack.c.l.b16 %v7216
        %v7480 = vunpack.c.l.b16 %v7217
        %v7481 = vunpack.c.l.b16 %v7218
        %v7482 = vunpack.c.l.b16 %v7219
        %v7483 = vpack.c.b16 %v7468, %v7467
        %v7484 = vpack.c.b16 %v7470, %v7469
        %v7485 = vpack.c.b16 %v7472, %v7471
        %v7486 = vpack.c.b16 %v7474, %v7473
        %v7487 = vpack.c.b16 %v7476, %v7475
        %v7488 = vpack.c.b16 %v7478, %v7477
        %v7489 = vpack.c.b16 %v7480, %v7479
        %v7490 = vpack.c.b16 %v7482, %v7481
        %7499 = vmatprep.subr.bf16.mxu0 0
        %7500 = vmatpush1.bf16.msra.mxu0 %v7483
        %7501 = vmatprep.subr.bf16.mxu0 0
        %7502 = vmatpush1.bf16.msra.mxu0 %v7484
        %7503 = vmatprep.subr.bf16.mxu0 0
        %7504 = vmatpush1.bf16.msra.mxu0 %v7485
        %7505 = vmatprep.subr.bf16.mxu0 0
        %7506 = vmatpush1.bf16.msra.mxu0 %v7486
        %7507 = vmatprep.subr.bf16.mxu0 0
        %7508 = vmatpush1.bf16.msra.mxu0 %v7487
        %7509 = vmatprep.subr.bf16.mxu0 0
        %7510 = vmatpush1.bf16.msra.mxu0 %v7488
        %7511 = vmatprep.subr.bf16.mxu0 0
        %7512 = vmatpush1.bf16.msra.mxu0 %v7489
        %7513 = vmatprep.subr.bf16.mxu0 0
        %7514 = vmatpush1.bf16.msra.mxu0 %v7490
        %7515 = vmatprep.subr.bf16.mxu0 0
        %7516 = vmatpush1.bf16.msra.mxu0 0
        %7517 = vmatprep.subr.bf16.mxu0 0
        %7518 = vmatpush1.bf16.msra.mxu0 0
        %7519 = vmatprep.subr.bf16.mxu0 0
        %7520 = vmatpush1.bf16.msra.mxu0 0
        %7521 = vmatprep.subr.bf16.mxu0 0
        %7522 = vmatpush1.bf16.msra.mxu0 0
        %7523 = vmatprep.subr.bf16.mxu0 0
        %7524 = vmatpush1.bf16.msra.mxu0 0
        %7525 = vmatprep.subr.bf16.mxu0 0
        %7526 = vmatpush1.bf16.msra.mxu0 0
        %7527 = vmatprep.subr.bf16.mxu0 0
        %7528 = vmatpush1.bf16.msra.mxu0 0
        %7529 = vmatprep.subr.bf16.mxu0 0
        %7530 = vmatpush1.bf16.msra.mxu0 0
        %7531 = vmatprep.mubr.bf16.mxu0 0
        %7532 = vmatmul.mubr.bf16.gmra.mrb[0].mxu0 %v7314
        %v7533 = vpop.f32.mrb[0].mxu0
        %v7534 = vadd.f32 0.0, %v7533
        %v7535 = vpop.f32.mrb[0].mxu0
        %v7536 = vpop.f32.mrb[0].mxu0
        %v7537 = vadd.f32 0.0, %v7536
        %v7538 = vpop.f32.mrb[0].mxu0
        %7539 = vmatprep.mubr.bf16.mxu0 0
        %7540 = vmatmul.mubr.bf16.gmra.mrb[0].mxu0 %v7322
        %v7541 = vpop.f32.mrb[0].mxu0
        %v7542 = vadd.f32 0.0, %v7541
        %v7543 = vpop.f32.mrb[0].mxu0
        %v7544 = vpop.f32.mrb[0].mxu0
        %v7545 = vadd.f32 0.0, %v7544
        %v7546 = vpop.f32.mrb[0].mxu0
        %7547 = vmatprep.mubr.bf16.mxu0 0
        %7548 = vmatmul.mubr.bf16.gmra.mrb[0].mxu0 %v7330
        %v7549 = vpop.f32.mrb[0].mxu0
        %v7550 = vadd.f32 0.0, %v7549
        %v7551 = vpop.f32.mrb[0].mxu0
        %v7552 = vpop.f32.mrb[0].mxu0
        %v7553 = vadd.f32 0.0, %v7552
        %v7554 = vpop.f32.mrb[0].mxu0
        %7555 = vmatprep.mubr.bf16.mxu0 0
        %7556 = vmatmul.mubr.bf16.gmra.mrb[0].mxu0 %v7338
        %v7557 = vpop.f32.mrb[0].mxu0
        %v7558 = vadd.f32 0.0, %v7557
        %v7559 = vpop.f32.mrb[0].mxu0
        %v7560 = vpop.f32.mrb[0].mxu0
        %v7561 = vadd.f32 0.0, %v7560
        %v7562 = vpop.f32.mrb[0].mxu0
        %7563 = vmatprep.mubr.bf16.mxu0 0
        %7564 = vmatmul.mubr.bf16.gmra.mrb[0].mxu0 %v7346
        %v7565 = vpop.f32.mrb[0].mxu0
        %v7566 = vadd.f32 0.0, %v7565
        %v7567 = vpop.f32.mrb[0].mxu0
        %v7568 = vpop.f32.mrb[0].mxu0
        %v7569 = vadd.f32 0.0, %v7568
        %v7570 = vpop.f32.mrb[0].mxu0
        %7571 = vmatprep.mubr.bf16.mxu0 0
        %7572 = vmatmul.mubr.bf16.gmra.mrb[0].mxu0 %v7354
        %v7573 = vpop.f32.mrb[0].mxu0
        %v7574 = vadd.f32 0.0, %v7573
        %v7575 = vpop.f32.mrb[0].mxu0
        %v7576 = vpop.f32.mrb[0].mxu0
        %v7577 = vadd.f32 0.0, %v7576
        %v7578 = vpop.f32.mrb[0].mxu0
        %7579 = vmatprep.mubr.bf16.mxu0 0
        %7580 = vmatmul.mubr.bf16.gmra.mrb[0].mxu0 %v7362
        %v7581 = vpop.f32.mrb[0].mxu0
        %v7582 = vadd.f32 0.0, %v7581
        %v7583 = vpop.f32.mrb[0].mxu0
        %v7584 = vpop.f32.mrb[0].mxu0
        %v7585 = vadd.f32 0.0, %v7584
        %v7586 = vpop.f32.mrb[0].mxu0
        %7587 = vmatprep.mubr.bf16.mxu0 0
        %7588 = vmatmul.mubr.bf16.gmra.mrb[0].mxu0 %v7370
        %v7589 = vpop.f32.mrb[0].mxu0
        %v7590 = vadd.f32 0.0, %v7589
        %v7591 = vpop.f32.mrb[0].mxu0
        %v7592 = vpop.f32.mrb[0].mxu0
        %v7593 = vadd.f32 0.0, %v7592
        %v7594 = vpop.f32.mrb[0].mxu0
        %7595 = vmatprep.mubr.bf16.mxu0 0
        %7596 = vmatmul.mubr.bf16.gmra.mrb[0].mxu0 %v7378
        %v7597 = vpop.f32.mrb[0].mxu0
        %v7598 = vadd.f32 0.0, %v7597
        %v7599 = vpop.f32.mrb[0].mxu0
        %v7600 = vpop.f32.mrb[0].mxu0
        %v7601 = vadd.f32 0.0, %v7600
        %v7602 = vpop.f32.mrb[0].mxu0
        %7603 = vmatprep.mubr.bf16.mxu0 0
        %7604 = vmatmul.mubr.bf16.gmra.mrb[0].mxu0 %v7386
        %v7605 = vpop.f32.mrb[0].mxu0
        %v7606 = vadd.f32 0.0, %v7605
        %v7607 = vpop.f32.mrb[0].mxu0
        %v7608 = vpop.f32.mrb[0].mxu0
        %v7609 = vadd.f32 0.0, %v7608
        %v7610 = vpop.f32.mrb[0].mxu0
        %7611 = vmatprep.mubr.bf16.mxu0 0
        %7612 = vmatmul.mubr.bf16.gmra.mrb[0].mxu0 %v7394
        %v7613 = vpop.f32.mrb[0].mxu0
        %v7614 = vadd.f32 0.0, %v7613
        %v7615 = vpop.f32.mrb[0].mxu0
        %v7616 = vpop.f32.mrb[0].mxu0
        %v7617 = vadd.f32 0.0, %v7616
        %v7618 = vpop.f32.mrb[0].mxu0
        %7619 = vmatprep.mubr.bf16.mxu0 0
        %7620 = vmatmul.mubr.bf16.gmra.mrb[0].mxu0 %v7402
        %v7621 = vpop.f32.mrb[0].mxu0
        %v7622 = vadd.f32 0.0, %v7621
        %v7623 = vpop.f32.mrb[0].mxu0
        %v7624 = vpop.f32.mrb[0].mxu0
        %v7625 = vadd.f32 0.0, %v7624
        %v7626 = vpop.f32.mrb[0].mxu0
        %7627 = vmatprep.mubr.bf16.mxu0 0
        %7628 = vmatmul.mubr.bf16.gmra.mrb[0].mxu0 %v7410
        %v7629 = vpop.f32.mrb[0].mxu0
        %v7630 = vadd.f32 0.0, %v7629
        %v7631 = vpop.f32.mrb[0].mxu0
        %v7632 = vpop.f32.mrb[0].mxu0
        %v7633 = vadd.f32 0.0, %v7632
        %v7634 = vpop.f32.mrb[0].mxu0
        %7635 = vmatprep.mubr.bf16.mxu0 0
        %7636 = vmatmul.mubr.bf16.gmra.mrb[0].mxu0 %v7418
        %v7637 = vpop.f32.mrb[0].mxu0
        %v7638 = vadd.f32 0.0, %v7637
        %v7639 = vpop.f32.mrb[0].mxu0
        %v7640 = vpop.f32.mrb[0].mxu0
        %v7641 = vadd.f32 0.0, %v7640
        %v7642 = vpop.f32.mrb[0].mxu0
        %7643 = vmatprep.mubr.bf16.mxu0 0
        %7644 = vmatmul.mubr.bf16.gmra.mrb[0].mxu0 %v7426
        %v7645 = vpop.f32.mrb[0].mxu0
        %v7646 = vadd.f32 0.0, %v7645
        %v7647 = vpop.f32.mrb[0].mxu0
        %v7648 = vpop.f32.mrb[0].mxu0
        %v7649 = vadd.f32 0.0, %v7648
        %v7650 = vpop.f32.mrb[0].mxu0
        %7651 = vmatprep.mubr.bf16.mxu0 0
        %7652 = vmatmul.mubr.bf16.gmra.mrb[0].mxu0 %v7434
        %v7653 = vpop.f32.mrb[0].mxu0
        %v7654 = vadd.f32 0.0, %v7653
        %v7655 = vpop.f32.mrb[0].mxu0
        %v7656 = vpop.f32.mrb[0].mxu0
        %v7657 = vadd.f32 0.0, %v7656
        %v7658 = vpop.f32.mrb[0].mxu0
        %7659 = vdwg.mxu0
        %v7660 = vadd.f32 %v7138, %v7534
        %v7661 = vadd.f32 %v7139, %v7537
        %v7662 = vadd.f32 %v7140, %v7542
        %v7663 = vadd.f32 %v7141, %v7545
        %v7664 = vadd.f32 %v7142, %v7550
        %v7665 = vadd.f32 %v7143, %v7553
        %v7666 = vadd.f32 %v7144, %v7558
        %v7667 = vadd.f32 %v7145, %v7561
        %v7668 = vadd.f32 %v7146, %v7566
        %v7669 = vadd.f32 %v7147, %v7569
        %v7670 = vadd.f32 %v7148, %v7574
        %v7671 = vadd.f32 %v7149, %v7577
        %v7672 = vadd.f32 %v7150, %v7582
        %v7673 = vadd.f32 %v7151, %v7585
        %v7674 = vadd.f32 %v7152, %v7590
        %v7675 = vadd.f32 %v7153, %v7593
        %v7676 = vadd.f32 %v7154, %v7598
        %v7677 = vadd.f32 %v7155, %v7601
        %v7678 = vadd.f32 %v7156, %v7606
        %v7679 = vadd.f32 %v7157, %v7609
        %v7680 = vadd.f32 %v7158, %v7614
        %v7681 = vadd.f32 %v7159, %v7617
        %v7682 = vadd.f32 %v7160, %v7622
        %v7683 = vadd.f32 %v7161, %v7625
        %v7684 = vadd.f32 %v7162, %v7630
        %v7685 = vadd.f32 %v7163, %v7633
        %v7686 = vadd.f32 %v7164, %v7638
        %v7687 = vadd.f32 %v7165, %v7641
        %v7688 = vadd.f32 %v7166, %v7646
        %v7689 = vadd.f32 %v7167, %v7649
        %v7690 = vadd.f32 %v7168, %v7654
        %v7691 = vadd.f32 %v7169, %v7657
        %v7692 = vld [vmem:[#allocation2 + $0x8] sm:$0xe]
        %v7693 = vsel %vm1916, %v7692, 0
        %v7694 = vsel %vm1917, %v7171, 0
        %v7695 = vsel %vm1918, %v7172, 0
        %v7696 = vsel %vm1919, %v7173, 0
        %v7697 = vsel %vm1920, %v7174, 0
        %v7698 = vsel %vm1921, %v7175, 0
        %v7699 = vsel %vm1922, %v7176, 0
        %v7700 = vsel %vm1923, %v7177, 0
        %v7701 = vsel %vm1924, %v7178, 0
        %v7702 = vsel %vm1925, %v7179, 0
        %v7703 = vsel %vm1926, %v7180, 0
        %v7704 = vsel %vm1927, %v7181, 0
        %v7705 = vsel %vm1928, %v7182, 0
        %v7706 = vsel %vm1929, %v7183, 0
        %v7707 = vsel %vm1930, %v7184, 0
        %v7708 = vsel %vm1931, %v7185, 0
        %v7709 = vsel %vm1932, %v7186, 0
        %v7710 = vsel %vm1933, %v7187, 0
        %v7711 = vsel %vm1934, %v7188, 0
        %v7712 = vsel %vm1935, %v7189, 0
        %v7713 = vsel %vm1936, %v7190, 0
        %v7714 = vsel %vm1937, %v7191, 0
        %v7715 = vsel %vm1938, %v7192, 0
        %v7716 = vsel %vm1939, %v7193, 0
        %v7717 = vsel %vm1940, %v7194, 0
        %v7718 = vsel %vm1941, %v7195, 0
        %v7719 = vsel %vm1942, %v7196, 0
        %v7720 = vsel %vm1943, %v7197, 0
        %v7721 = vsel %vm1944, %v7198, 0
        %v7722 = vsel %vm1945, %v7199, 0
        %v7723 = vsel %vm1946, %v7200, 0
        %v7724 = vsel %vm1947, %v7201, 0
        %v7725 = vsel %vm1948, %v7202, 0
        %s7726 = scalar_lea.vmem [#allocation3], 320
        %v7727 = vld [vmem:[%s7726] sm:$0xf]
        %v7728 = vld [vmem:[%s7726 + $0x4] sm:$0xf]
        %v7729 = vld [vmem:[%s7726 + $0x8] sm:$0xf]
        %v7730 = vld [vmem:[%s7726 + $0xc] sm:$0xf]
        %v7731 = vld [vmem:[%s7726 + $0x10] sm:$0xf]
        %v7732 = vld [vmem:[%s7726 + $0x14] sm:$0xf]
        %v7733 = vld [vmem:[%s7726 + $0x18] sm:$0xf]
        %v7734 = vld [vmem:[%s7726 + $0x1c] sm:$0xf]
        %v7735 = vld [vmem:[%s7726 + $0x20] sm:$0xf]
        %v7736 = vld [vmem:[%s7726 + $0x24] sm:$0xf]
        %v7737 = vld [vmem:[%s7726 + $0x28] sm:$0xf]
        %v7738 = vld [vmem:[%s7726 + $0x2c] sm:$0xf]
        %v7739 = vld [vmem:[%s7726 + $0x30] sm:$0xf]
        %v7740 = vld [vmem:[%s7726 + $0x34] sm:$0xf]
        %v7741 = vld [vmem:[%s7726 + $0x38] sm:$0xf]
        %v7742 = vld [vmem:[%s7726 + $0x3c] sm:$0xf]
        %v7776 = vunpack.c.l.b16 %v7693
        %v7777 = vunpack.c.l.b16 %v7694
        %v7778 = vunpack.c.l.b16 %v7695
        %v7779 = vunpack.c.l.b16 %v7696
        %v7780 = vunpack.c.l.b16 %v7697
        %v7781 = vunpack.c.l.b16 %v7698
        %v7782 = vunpack.c.l.b16 %v7699
        %v7783 = vunpack.c.l.b16 %v7700
        %v7784 = vunpack.c.l.b16 %v7701
        %v7785 = vunpack.c.l.b16 %v7702
        %v7786 = vunpack.c.l.b16 %v7703
        %v7787 = vunpack.c.l.b16 %v7704
        %v7788 = vunpack.c.l.b16 %v7705
        %v7789 = vunpack.c.l.b16 %v7706
        %v7790 = vunpack.c.l.b16 %v7707
        %v7791 = vunpack.c.l.b16 %v7708
        %v7792 = vunpack.c.l.b16 %v7709
        %v7793 = vunpack.c.l.b16 %v7710
        %v7794 = vunpack.c.l.b16 %v7711
        %v7795 = vunpack.c.l.b16 %v7712
        %v7796 = vunpack.c.l.b16 %v7713
        %v7797 = vunpack.c.l.b16 %v7714
        %v7798 = vunpack.c.l.b16 %v7715
        %v7799 = vunpack.c.l.b16 %v7716
        %v7800 = vunpack.c.l.b16 %v7717
        %v7801 = vunpack.c.l.b16 %v7718
        %v7802 = vunpack.c.l.b16 %v7719
        %v7803 = vunpack.c.l.b16 %v7720
        %v7804 = vunpack.c.l.b16 %v7721
        %v7805 = vunpack.c.l.b16 %v7722
        %v7806 = vunpack.c.l.b16 %v7723
        %v7807 = vunpack.c.l.b16 %v7724
        %v7808 = vunpack.c.l.b16 %v7725
        %v7809 = vpack.c.b16 %v7777, %v7776
        %v7810 = vpack.c.b16 %v7779, %v7778
        %v7811 = vpack.c.b16 %v7781, %v7780
        %v7812 = vpack.c.b16 %v7783, %v7782
        %v7813 = vpack.c.b16 %v7785, %v7784
        %v7814 = vpack.c.b16 %v7787, %v7786
        %v7815 = vpack.c.b16 %v7789, %v7788
        %v7816 = vpack.c.b16 %v7791, %v7790
        %v7817 = vpack.c.b16 %v7793, %v7792
        %v7818 = vpack.c.b16 %v7795, %v7794
        %v7819 = vpack.c.b16 %v7797, %v7796
        %v7820 = vpack.c.b16 %v7799, %v7798
        %v7821 = vpack.c.b16 %v7801, %v7800
        %v7822 = vpack.c.b16 %v7803, %v7802
        %v7823 = vpack.c.b16 %v7805, %v7804
        %v7824 = vpack.c.b16 %v7807, %v7806
        %v7825 = vpack.c.b16 %v7808, %v7808
        %v7826 = vrot.slane %v7809, 1
        %v7827 = vrot.slane %v7810, 1
        %v7828 = vsel %vm2067, %v7826, %v7827
        %v7829 = vrot.slane %v7811, 1
        %v7830 = vsel %vm2067, %v7827, %v7829
        %v7831 = vrot.slane %v7812, 1
        %v7832 = vsel %vm2067, %v7829, %v7831
        %v7833 = vrot.slane %v7813, 1
        %v7834 = vsel %vm2067, %v7831, %v7833
        %v7835 = vrot.slane %v7814, 1
        %v7836 = vsel %vm2067, %v7833, %v7835
        %v7837 = vrot.slane %v7815, 1
        %v7838 = vsel %vm2067, %v7835, %v7837
        %v7839 = vrot.slane %v7816, 1
        %v7840 = vsel %vm2067, %v7837, %v7839
        %v7841 = vrot.slane %v7817, 1
        %v7842 = vsel %vm2067, %v7839, %v7841
        %v7843 = vrot.slane %v7818, 1
        %v7844 = vsel %vm2067, %v7841, %v7843
        %v7845 = vrot.slane %v7819, 1
        %v7846 = vsel %vm2067, %v7843, %v7845
        %v7847 = vrot.slane %v7820, 1
        %v7848 = vsel %vm2067, %v7845, %v7847
        %v7849 = vrot.slane %v7821, 1
        %v7850 = vsel %vm2067, %v7847, %v7849
        %v7851 = vrot.slane %v7822, 1
        %v7852 = vsel %vm2067, %v7849, %v7851
        %v7853 = vrot.slane %v7823, 1
        %v7854 = vsel %vm2067, %v7851, %v7853
        %v7855 = vrot.slane %v7824, 1
        %v7856 = vsel %vm2067, %v7853, %v7855
        %v7857 = vrot.slane %v7825, 1
        %v7858 = vsel %vm2067, %v7855, %v7857
        %v7891 = vunpack.c.l.b16 %v7727
        %v7892 = vunpack.c.l.b16 %v7728
        %v7893 = vunpack.c.l.b16 %v7729
        %v7894 = vunpack.c.l.b16 %v7730
        %v7895 = vunpack.c.l.b16 %v7731
        %v7896 = vunpack.c.l.b16 %v7732
        %v7897 = vunpack.c.l.b16 %v7733
        %v7898 = vunpack.c.l.b16 %v7734
        %v7899 = vunpack.c.l.b16 %v7735
        %v7900 = vunpack.c.l.b16 %v7736
        %v7901 = vunpack.c.l.b16 %v7737
        %v7902 = vunpack.c.l.b16 %v7738
        %v7903 = vunpack.c.l.b16 %v7739
        %v7904 = vunpack.c.l.b16 %v7740
        %v7905 = vunpack.c.l.b16 %v7741
        %v7906 = vunpack.c.l.b16 %v7742
        %v7907 = vpack.c.b16 %v7892, %v7891
        %v7908 = vpack.c.b16 %v7894, %v7893
        %v7909 = vpack.c.b16 %v7896, %v7895
        %v7910 = vpack.c.b16 %v7898, %v7897
        %v7911 = vpack.c.b16 %v7900, %v7899
        %v7912 = vpack.c.b16 %v7902, %v7901
        %v7913 = vpack.c.b16 %v7904, %v7903
        %v7914 = vpack.c.b16 %v7906, %v7905
        %7923 = vmatprep.subr.bf16.mxu0 0
        %7924 = vmatpush1.bf16.msra.mxu0 %v7907
        %7925 = vmatprep.subr.bf16.mxu0 0
        %7926 = vmatpush1.bf16.msra.mxu0 %v7908
        %7927 = vmatprep.subr.bf16.mxu0 0
        %7928 = vmatpush1.bf16.msra.mxu0 %v7909
        %7929 = vmatprep.subr.bf16.mxu0 0
        %7930 = vmatpush1.bf16.msra.mxu0 %v7910
        %7931 = vmatprep.subr.bf16.mxu0 0
        %7932 = vmatpush1.bf16.msra.mxu0 %v7911
        %7933 = vmatprep.subr.bf16.mxu0 0
        %7934 = vmatpush1.bf16.msra.mxu0 %v7912
        %7935 = vmatprep.subr.bf16.mxu0 0
        %7936 = vmatpush1.bf16.msra.mxu0 %v7913
        %7937 = vmatprep.subr.bf16.mxu0 0
        %7938 = vmatpush1.bf16.msra.mxu0 %v7914
        %7939 = vmatprep.subr.bf16.mxu0 0
        %7940 = vmatpush1.bf16.msra.mxu0 0
        %7941 = vmatprep.subr.bf16.mxu0 0
        %7942 = vmatpush1.bf16.msra.mxu0 0
        %7943 = vmatprep.subr.bf16.mxu0 0
        %7944 = vmatpush1.bf16.msra.mxu0 0
        %7945 = vmatprep.subr.bf16.mxu0 0
        %7946 = vmatpush1.bf16.msra.mxu0 0
        %7947 = vmatprep.subr.bf16.mxu0 0
        %7948 = vmatpush1.bf16.msra.mxu0 0
        %7949 = vmatprep.subr.bf16.mxu0 0
        %7950 = vmatpush1.bf16.msra.mxu0 0
        %7951 = vmatprep.subr.bf16.mxu0 0
        %7952 = vmatpush1.bf16.msra.mxu0 0
        %7953 = vmatprep.subr.bf16.mxu0 0
        %7954 = vmatpush1.bf16.msra.mxu0 0
        %7955 = vmatprep.mubr.bf16.mxu0 0
        %7956 = vmatmul.mubr.bf16.gmra.mrb[0].mxu0 %v7828
        %v7957 = vpop.f32.mrb[0].mxu0
        %v7958 = vadd.f32 0.0, %v7957
        %v7959 = vpop.f32.mrb[0].mxu0
        %v7960 = vpop.f32.mrb[0].mxu0
        %v7961 = vadd.f32 0.0, %v7960
        %v7962 = vpop.f32.mrb[0].mxu0
        %7963 = vmatprep.mubr.bf16.mxu0 0
        %7964 = vmatmul.mubr.bf16.gmra.mrb[0].mxu0 %v7830
        %v7965 = vpop.f32.mrb[0].mxu0
        %v7966 = vadd.f32 0.0, %v7965
        %v7967 = vpop.f32.mrb[0].mxu0
        %v7968 = vpop.f32.mrb[0].mxu0
        %v7969 = vadd.f32 0.0, %v7968
        %v7970 = vpop.f32.mrb[0].mxu0
        %7971 = vmatprep.mubr.bf16.mxu0 0
        %7972 = vmatmul.mubr.bf16.gmra.mrb[0].mxu0 %v7832
        %v7973 = vpop.f32.mrb[0].mxu0
        %v7974 = vadd.f32 0.0, %v7973
        %v7975 = vpop.f32.mrb[0].mxu0
        %v7976 = vpop.f32.mrb[0].mxu0
        %v7977 = vadd.f32 0.0, %v7976
        %v7978 = vpop.f32.mrb[0].mxu0
        %7979 = vmatprep.mubr.bf16.mxu0 0
        %7980 = vmatmul.mubr.bf16.gmra.mrb[0].mxu0 %v7834
        %v7981 = vpop.f32.mrb[0].mxu0
        %v7982 = vadd.f32 0.0, %v7981
        %v7983 = vpop.f32.mrb[0].mxu0
        %v7984 = vpop.f32.mrb[0].mxu0
        %v7985 = vadd.f32 0.0, %v7984
        %v7986 = vpop.f32.mrb[0].mxu0
        %7987 = vmatprep.mubr.bf16.mxu0 0
        %7988 = vmatmul.mubr.bf16.gmra.mrb[0].mxu0 %v7836
        %v7989 = vpop.f32.mrb[0].mxu0
        %v7990 = vadd.f32 0.0, %v7989
        %v7991 = vpop.f32.mrb[0].mxu0
        %v7992 = vpop.f32.mrb[0].mxu0
        %v7993 = vadd.f32 0.0, %v7992
        %v7994 = vpop.f32.mrb[0].mxu0
        %7995 = vmatprep.mubr.bf16.mxu0 0
        %7996 = vmatmul.mubr.bf16.gmra.mrb[0].mxu0 %v7838
        %v7997 = vpop.f32.mrb[0].mxu0
        %v7998 = vadd.f32 0.0, %v7997
        %v7999 = vpop.f32.mrb[0].mxu0
        %v8000 = vpop.f32.mrb[0].mxu0
        %v8001 = vadd.f32 0.0, %v8000
        %v8002 = vpop.f32.mrb[0].mxu0
        %8003 = vmatprep.mubr.bf16.mxu0 0
        %8004 = vmatmul.mubr.bf16.gmra.mrb[0].mxu0 %v7840
        %v8005 = vpop.f32.mrb[0].mxu0
        %v8006 = vadd.f32 0.0, %v8005
        %v8007 = vpop.f32.mrb[0].mxu0
        %v8008 = vpop.f32.mrb[0].mxu0
        %v8009 = vadd.f32 0.0, %v8008
        %v8010 = vpop.f32.mrb[0].mxu0
        %8011 = vmatprep.mubr.bf16.mxu0 0
        %8012 = vmatmul.mubr.bf16.gmra.mrb[0].mxu0 %v7842
        %v8013 = vpop.f32.mrb[0].mxu0
        %v8014 = vadd.f32 0.0, %v8013
        %v8015 = vpop.f32.mrb[0].mxu0
        %v8016 = vpop.f32.mrb[0].mxu0
        %v8017 = vadd.f32 0.0, %v8016
        %v8018 = vpop.f32.mrb[0].mxu0
        %8019 = vmatprep.mubr.bf16.mxu0 0
        %8020 = vmatmul.mubr.bf16.gmra.mrb[0].mxu0 %v7844
        %v8021 = vpop.f32.mrb[0].mxu0
        %v8022 = vadd.f32 0.0, %v8021
        %v8023 = vpop.f32.mrb[0].mxu0
        %v8024 = vpop.f32.mrb[0].mxu0
        %v8025 = vadd.f32 0.0, %v8024
        %v8026 = vpop.f32.mrb[0].mxu0
        %8027 = vmatprep.mubr.bf16.mxu0 0
        %8028 = vmatmul.mubr.bf16.gmra.mrb[0].mxu0 %v7846
        %v8029 = vpop.f32.mrb[0].mxu0
        %v8030 = vadd.f32 0.0, %v8029
        %v8031 = vpop.f32.mrb[0].mxu0
        %v8032 = vpop.f32.mrb[0].mxu0
        %v8033 = vadd.f32 0.0, %v8032
        %v8034 = vpop.f32.mrb[0].mxu0
        %8035 = vmatprep.mubr.bf16.mxu0 0
        %8036 = vmatmul.mubr.bf16.gmra.mrb[0].mxu0 %v7848
        %v8037 = vpop.f32.mrb[0].mxu0
        %v8038 = vadd.f32 0.0, %v8037
        %v8039 = vpop.f32.mrb[0].mxu0
        %v8040 = vpop.f32.mrb[0].mxu0
        %v8041 = vadd.f32 0.0, %v8040
        %v8042 = vpop.f32.mrb[0].mxu0
        %8043 = vmatprep.mubr.bf16.mxu0 0
        %8044 = vmatmul.mubr.bf16.gmra.mrb[0].mxu0 %v7850
        %v8045 = vpop.f32.mrb[0].mxu0
        %v8046 = vadd.f32 0.0, %v8045
        %v8047 = vpop.f32.mrb[0].mxu0
        %v8048 = vpop.f32.mrb[0].mxu0
        %v8049 = vadd.f32 0.0, %v8048
        %v8050 = vpop.f32.mrb[0].mxu0
        %8051 = vmatprep.mubr.bf16.mxu0 0
        %8052 = vmatmul.mubr.bf16.gmra.mrb[0].mxu0 %v7852
        %v8053 = vpop.f32.mrb[0].mxu0
        %v8054 = vadd.f32 0.0, %v8053
        %v8055 = vpop.f32.mrb[0].mxu0
        %v8056 = vpop.f32.mrb[0].mxu0
        %v8057 = vadd.f32 0.0, %v8056
        %v8058 = vpop.f32.mrb[0].mxu0
        %8059 = vmatprep.mubr.bf16.mxu0 0
        %8060 = vmatmul.mubr.bf16.gmra.mrb[0].mxu0 %v7854
        %v8061 = vpop.f32.mrb[0].mxu0
        %v8062 = vadd.f32 0.0, %v8061
        %v8063 = vpop.f32.mrb[0].mxu0
        %v8064 = vpop.f32.mrb[0].mxu0
        %v8065 = vadd.f32 0.0, %v8064
        %v8066 = vpop.f32.mrb[0].mxu0
        %8067 = vmatprep.mubr.bf16.mxu0 0
        %8068 = vmatmul.mubr.bf16.gmra.mrb[0].mxu0 %v7856
        %v8069 = vpop.f32.mrb[0].mxu0
        %v8070 = vadd.f32 0.0, %v8069
        %v8071 = vpop.f32.mrb[0].mxu0
        %v8072 = vpop.f32.mrb[0].mxu0
        %v8073 = vadd.f32 0.0, %v8072
        %v8074 = vpop.f32.mrb[0].mxu0
        %8075 = vmatprep.mubr.bf16.mxu0 0
        %8076 = vmatmul.mubr.bf16.gmra.mrb[0].mxu0 %v7858
        %v8077 = vpop.f32.mrb[0].mxu0
        %v8078 = vadd.f32 0.0, %v8077
        %v8079 = vpop.f32.mrb[0].mxu0
        %v8080 = vpop.f32.mrb[0].mxu0
        %v8081 = vadd.f32 0.0, %v8080
        %v8082 = vpop.f32.mrb[0].mxu0
        %8083 = vdwg.mxu0
        %v8084 = vadd.f32 %v7660, %v7958
        %v8085 = vadd.f32 %v7661, %v7961
        %v8086 = vadd.f32 %v7662, %v7966
        %v8087 = vadd.f32 %v7663, %v7969
        %v8088 = vadd.f32 %v7664, %v7974
        %v8089 = vadd.f32 %v7665, %v7977
        %v8090 = vadd.f32 %v7666, %v7982
        %v8091 = vadd.f32 %v7667, %v7985
        %v8092 = vadd.f32 %v7668, %v7990
        %v8093 = vadd.f32 %v7669, %v7993
        %v8094 = vadd.f32 %v7670, %v7998
        %v8095 = vadd.f32 %v7671, %v8001
        %v8096 = vadd.f32 %v7672, %v8006
        %v8097 = vadd.f32 %v7673, %v8009
        %v8098 = vadd.f32 %v7674, %v8014
        %v8099 = vadd.f32 %v7675, %v8017
        %v8100 = vadd.f32 %v7676, %v8022
        %v8101 = vadd.f32 %v7677, %v8025
        %v8102 = vadd.f32 %v7678, %v8030
        %v8103 = vadd.f32 %v7679, %v8033
        %v8104 = vadd.f32 %v7680, %v8038
        %v8105 = vadd.f32 %v7681, %v8041
        %v8106 = vadd.f32 %v7682, %v8046
        %v8107 = vadd.f32 %v7683, %v8049
        %v8108 = vadd.f32 %v7684, %v8054
        %v8109 = vadd.f32 %v7685, %v8057
        %v8110 = vadd.f32 %v7686, %v8062
        %v8111 = vadd.f32 %v7687, %v8065
        %v8112 = vadd.f32 %v7688, %v8070
        %v8113 = vadd.f32 %v7689, %v8073
        %v8114 = vadd.f32 %v7690, %v8078
        %v8115 = vadd.f32 %v7691, %v8081
        %v8116 = vld [vmem:[#allocation2 + $0x10] sm:$0xf]
        %v8117 = vld [vmem:[#allocation2 + $0x14] sm:$0xf]
        %v8118 = vld [vmem:[#allocation2 + $0x18] sm:$0xf]
        %v8119 = vld [vmem:[#allocation2 + $0x1c] sm:$0xf]
        %v8120 = vld [vmem:[#allocation2 + $0x20] sm:$0xf]
        %v8121 = vld [vmem:[#allocation2 + $0x24] sm:$0xf]
        %v8122 = vld [vmem:[#allocation2 + $0x28] sm:$0xf]
        %v8123 = vld [vmem:[#allocation2 + $0x2c] sm:$0xf]
        %v8124 = vld [vmem:[#allocation2 + $0x30] sm:$0xf]
        %v8125 = vld [vmem:[#allocation2 + $0x34] sm:$0xf]
        %v8126 = vld [vmem:[#allocation2 + $0x38] sm:$0xf]
        %v8127 = vld [vmem:[#allocation2 + $0x3c] sm:$0xf]
        %v8128 = vld [vmem:[#allocation2 + $0x40] sm:$0xf]
        %v8129 = vld [vmem:[#allocation2 + $0x44] sm:$0xf]
        %v8130 = vld [vmem:[#allocation2 + $0x48] sm:$0xf]
        %v8131 = vld [vmem:[#allocation2 + $0x4c] sm:$0xf]
        %v8132 = vld [vmem:[#allocation2 + $0x50] sm:$0xf]
        %v8133 = vld [vmem:[#allocation2 + $0x54] sm:$0xf]
        %v8134 = vld [vmem:[#allocation2 + $0x58] sm:$0xf]
        %v8135 = vld [vmem:[#allocation2 + $0x5c] sm:$0xf]
        %v8136 = vld [vmem:[#allocation2 + $0x60] sm:$0xf]
        %v8137 = vld [vmem:[#allocation2 + $0x64] sm:$0xf]
        %v8138 = vld [vmem:[#allocation2 + $0x68] sm:$0xf]
        %v8139 = vld [vmem:[#allocation2 + $0x6c] sm:$0xf]
        %v8140 = vld [vmem:[#allocation2 + $0x70] sm:$0xf]
        %v8141 = vld [vmem:[#allocation2 + $0x74] sm:$0xf]
        %v8142 = vld [vmem:[#allocation2 + $0x78] sm:$0xf]
        %v8143 = vld [vmem:[#allocation2 + $0x7c] sm:$0xf]
        %v8144 = vld [vmem:[#allocation2 + $0x80] sm:$0xf]
        %v8145 = vld [vmem:[#allocation2 + $0x84] sm:$0xf]
        %v8146 = vld [vmem:[#allocation2 + $0x88] sm:$0xf]
        %v8147 = vld [vmem:[#allocation2 + $0x8c] sm:$0xf]
        %v8148 = vsel %vm899, %v8116, 0
        %v8149 = vsel %vm900, %v8117, 0
        %v8150 = vsel %vm901, %v8118, 0
        %v8151 = vsel %vm902, %v8119, 0
        %v8152 = vsel %vm903, %v8120, 0
        %v8153 = vsel %vm904, %v8121, 0
        %v8154 = vsel %vm905, %v8122, 0
        %v8155 = vsel %vm906, %v8123, 0
        %v8156 = vsel %vm907, %v8124, 0
        %v8157 = vsel %vm908, %v8125, 0
        %v8158 = vsel %vm909, %v8126, 0
        %v8159 = vsel %vm910, %v8127, 0
        %v8160 = vsel %vm911, %v8128, 0
        %v8161 = vsel %vm912, %v8129, 0
        %v8162 = vsel %vm913, %v8130, 0
        %v8163 = vsel %vm914, %v8131, 0
        %v8164 = vsel %vm915, %v8132, 0
        %v8165 = vsel %vm916, %v8133, 0
        %v8166 = vsel %vm917, %v8134, 0
        %v8167 = vsel %vm918, %v8135, 0
        %v8168 = vsel %vm919, %v8136, 0
        %v8169 = vsel %vm920, %v8137, 0
        %v8170 = vsel %vm921, %v8138, 0
        %v8171 = vsel %vm922, %v8139, 0
        %v8172 = vsel %vm923, %v8140, 0
        %v8173 = vsel %vm924, %v8141, 0
        %v8174 = vsel %vm925, %v8142, 0
        %v8175 = vsel %vm926, %v8143, 0
        %v8176 = vsel %vm927, %v8144, 0
        %v8177 = vsel %vm928, %v8145, 0
        %v8178 = vsel %vm929, %v8146, 0
        %v8179 = vsel %vm930, %v8147, 0
        %s8180 = scalar_lea.vmem [#allocation3], 384
        %v8181 = vld [vmem:[%s8180] sm:$0xf]
        %v8182 = vld [vmem:[%s8180 + $0x4] sm:$0xf]
        %v8183 = vld [vmem:[%s8180 + $0x8] sm:$0xf]
        %v8184 = vld [vmem:[%s8180 + $0xc] sm:$0xf]
        %v8185 = vld [vmem:[%s8180 + $0x10] sm:$0xf]
        %v8186 = vld [vmem:[%s8180 + $0x14] sm:$0xf]
        %v8187 = vld [vmem:[%s8180 + $0x18] sm:$0xf]
        %v8188 = vld [vmem:[%s8180 + $0x1c] sm:$0xf]
        %v8189 = vld [vmem:[%s8180 + $0x20] sm:$0xf]
        %v8190 = vld [vmem:[%s8180 + $0x24] sm:$0xf]
        %v8191 = vld [vmem:[%s8180 + $0x28] sm:$0xf]
        %v8192 = vld [vmem:[%s8180 + $0x2c] sm:$0xf]
        %v8193 = vld [vmem:[%s8180 + $0x30] sm:$0xf]
        %v8194 = vld [vmem:[%s8180 + $0x34] sm:$0xf]
        %v8195 = vld [vmem:[%s8180 + $0x38] sm:$0xf]
        %v8196 = vld [vmem:[%s8180 + $0x3c] sm:$0xf]
        %v8229 = vunpack.c.l.b16 %v8148
        %v8230 = vunpack.c.l.b16 %v8149
        %v8231 = vunpack.c.l.b16 %v8150
        %v8232 = vunpack.c.l.b16 %v8151
        %v8233 = vunpack.c.l.b16 %v8152
        %v8234 = vunpack.c.l.b16 %v8153
        %v8235 = vunpack.c.l.b16 %v8154
        %v8236 = vunpack.c.l.b16 %v8155
        %v8237 = vunpack.c.l.b16 %v8156
        %v8238 = vunpack.c.l.b16 %v8157
        %v8239 = vunpack.c.l.b16 %v8158
        %v8240 = vunpack.c.l.b16 %v8159
        %v8241 = vunpack.c.l.b16 %v8160
        %v8242 = vunpack.c.l.b16 %v8161
        %v8243 = vunpack.c.l.b16 %v8162
        %v8244 = vunpack.c.l.b16 %v8163
        %v8245 = vunpack.c.l.b16 %v8164
        %v8246 = vunpack.c.l.b16 %v8165
        %v8247 = vunpack.c.l.b16 %v8166
        %v8248 = vunpack.c.l.b16 %v8167
        %v8249 = vunpack.c.l.b16 %v8168
        %v8250 = vunpack.c.l.b16 %v8169
        %v8251 = vunpack.c.l.b16 %v8170
        %v8252 = vunpack.c.l.b16 %v8171
        %v8253 = vunpack.c.l.b16 %v8172
        %v8254 = vunpack.c.l.b16 %v8173
        %v8255 = vunpack.c.l.b16 %v8174
        %v8256 = vunpack.c.l.b16 %v8175
        %v8257 = vunpack.c.l.b16 %v8176
        %v8258 = vunpack.c.l.b16 %v8177
        %v8259 = vunpack.c.l.b16 %v8178
        %v8260 = vunpack.c.l.b16 %v8179
        %v8261 = vpack.c.b16 %v8230, %v8229
        %v8262 = vpack.c.b16 %v8232, %v8231
        %v8263 = vpack.c.b16 %v8234, %v8233
        %v8264 = vpack.c.b16 %v8236, %v8235
        %v8265 = vpack.c.b16 %v8238, %v8237
        %v8266 = vpack.c.b16 %v8240, %v8239
        %v8267 = vpack.c.b16 %v8242, %v8241
        %v8268 = vpack.c.b16 %v8244, %v8243
        %v8269 = vpack.c.b16 %v8246, %v8245
        %v8270 = vpack.c.b16 %v8248, %v8247
        %v8271 = vpack.c.b16 %v8250, %v8249
        %v8272 = vpack.c.b16 %v8252, %v8251
        %v8273 = vpack.c.b16 %v8254, %v8253
        %v8274 = vpack.c.b16 %v8256, %v8255
        %v8275 = vpack.c.b16 %v8258, %v8257
        %v8276 = vpack.c.b16 %v8260, %v8259
        %v8309 = vunpack.c.l.b16 %v8181
        %v8310 = vunpack.c.l.b16 %v8182
        %v8311 = vunpack.c.l.b16 %v8183
        %v8312 = vunpack.c.l.b16 %v8184
        %v8313 = vunpack.c.l.b16 %v8185
        %v8314 = vunpack.c.l.b16 %v8186
        %v8315 = vunpack.c.l.b16 %v8187
        %v8316 = vunpack.c.l.b16 %v8188
        %v8317 = vunpack.c.l.b16 %v8189
        %v8318 = vunpack.c.l.b16 %v8190
        %v8319 = vunpack.c.l.b16 %v8191
        %v8320 = vunpack.c.l.b16 %v8192
        %v8321 = vunpack.c.l.b16 %v8193
        %v8322 = vunpack.c.l.b16 %v8194
        %v8323 = vunpack.c.l.b16 %v8195
        %v8324 = vunpack.c.l.b16 %v8196
        %v8325 = vpack.c.b16 %v8310, %v8309
        %v8326 = vpack.c.b16 %v8312, %v8311
        %v8327 = vpack.c.b16 %v8314, %v8313
        %v8328 = vpack.c.b16 %v8316, %v8315
        %v8329 = vpack.c.b16 %v8318, %v8317
        %v8330 = vpack.c.b16 %v8320, %v8319
        %v8331 = vpack.c.b16 %v8322, %v8321
        %v8332 = vpack.c.b16 %v8324, %v8323
        %8341 = vmatprep.subr.bf16.mxu0 0
        %8342 = vmatpush1.bf16.msra.mxu0 %v8325
        %8343 = vmatprep.subr.bf16.mxu0 0
        %8344 = vmatpush1.bf16.msra.mxu0 %v8326
        %8345 = vmatprep.subr.bf16.mxu0 0
        %8346 = vmatpush1.bf16.msra.mxu0 %v8327
        %8347 = vmatprep.subr.bf16.mxu0 0
        %8348 = vmatpush1.bf16.msra.mxu0 %v8328
        %8349 = vmatprep.subr.bf16.mxu0 0
        %8350 = vmatpush1.bf16.msra.mxu0 %v8329
        %8351 = vmatprep.subr.bf16.mxu0 0
        %8352 = vmatpush1.bf16.msra.mxu0 %v8330
        %8353 = vmatprep.subr.bf16.mxu0 0
        %8354 = vmatpush1.bf16.msra.mxu0 %v8331
        %8355 = vmatprep.subr.bf16.mxu0 0
        %8356 = vmatpush1.bf16.msra.mxu0 %v8332
        %8357 = vmatprep.subr.bf16.mxu0 0
        %8358 = vmatpush1.bf16.msra.mxu0 0
        %8359 = vmatprep.subr.bf16.mxu0 0
        %8360 = vmatpush1.bf16.msra.mxu0 0
        %8361 = vmatprep.subr.bf16.mxu0 0
        %8362 = vmatpush1.bf16.msra.mxu0 0
        %8363 = vmatprep.subr.bf16.mxu0 0
        %8364 = vmatpush1.bf16.msra.mxu0 0
        %8365 = vmatprep.subr.bf16.mxu0 0
        %8366 = vmatpush1.bf16.msra.mxu0 0
        %8367 = vmatprep.subr.bf16.mxu0 0
        %8368 = vmatpush1.bf16.msra.mxu0 0
        %8369 = vmatprep.subr.bf16.mxu0 0
        %8370 = vmatpush1.bf16.msra.mxu0 0
        %8371 = vmatprep.subr.bf16.mxu0 0
        %8372 = vmatpush1.bf16.msra.mxu0 0
        %8373 = vmatprep.mubr.bf16.mxu0 0
        %8374 = vmatmul.mubr.bf16.gmra.mrb[0].mxu0 %v8261
        %v8375 = vpop.f32.mrb[0].mxu0
        %v8376 = vadd.f32 0.0, %v8375
        %v8377 = vpop.f32.mrb[0].mxu0
        %v8378 = vpop.f32.mrb[0].mxu0
        %v8379 = vadd.f32 0.0, %v8378
        %v8380 = vpop.f32.mrb[0].mxu0
        %8381 = vmatprep.mubr.bf16.mxu0 0
        %8382 = vmatmul.mubr.bf16.gmra.mrb[0].mxu0 %v8262
        %v8383 = vpop.f32.mrb[0].mxu0
        %v8384 = vadd.f32 0.0, %v8383
        %v8385 = vpop.f32.mrb[0].mxu0
        %v8386 = vpop.f32.mrb[0].mxu0
        %v8387 = vadd.f32 0.0, %v8386
        %v8388 = vpop.f32.mrb[0].mxu0
        %8389 = vmatprep.mubr.bf16.mxu0 0
        %8390 = vmatmul.mubr.bf16.gmra.mrb[0].mxu0 %v8263
        %v8391 = vpop.f32.mrb[0].mxu0
        %v8392 = vadd.f32 0.0, %v8391
        %v8393 = vpop.f32.mrb[0].mxu0
        %v8394 = vpop.f32.mrb[0].mxu0
        %v8395 = vadd.f32 0.0, %v8394
        %v8396 = vpop.f32.mrb[0].mxu0
        %8397 = vmatprep.mubr.bf16.mxu0 0
        %8398 = vmatmul.mubr.bf16.gmra.mrb[0].mxu0 %v8264
        %v8399 = vpop.f32.mrb[0].mxu0
        %v8400 = vadd.f32 0.0, %v8399
        %v8401 = vpop.f32.mrb[0].mxu0
        %v8402 = vpop.f32.mrb[0].mxu0
        %v8403 = vadd.f32 0.0, %v8402
        %v8404 = vpop.f32.mrb[0].mxu0
        %8405 = vmatprep.mubr.bf16.mxu0 0
        %8406 = vmatmul.mubr.bf16.gmra.mrb[0].mxu0 %v8265
        %v8407 = vpop.f32.mrb[0].mxu0
        %v8408 = vadd.f32 0.0, %v8407
        %v8409 = vpop.f32.mrb[0].mxu0
        %v8410 = vpop.f32.mrb[0].mxu0
        %v8411 = vadd.f32 0.0, %v8410
        %v8412 = vpop.f32.mrb[0].mxu0
        %8413 = vmatprep.mubr.bf16.mxu0 0
        %8414 = vmatmul.mubr.bf16.gmra.mrb[0].mxu0 %v8266
        %v8415 = vpop.f32.mrb[0].mxu0
        %v8416 = vadd.f32 0.0, %v8415
        %v8417 = vpop.f32.mrb[0].mxu0
        %v8418 = vpop.f32.mrb[0].mxu0
        %v8419 = vadd.f32 0.0, %v8418
        %v8420 = vpop.f32.mrb[0].mxu0
        %8421 = vmatprep.mubr.bf16.mxu0 0
        %8422 = vmatmul.mubr.bf16.gmra.mrb[0].mxu0 %v8267
        %v8423 = vpop.f32.mrb[0].mxu0
        %v8424 = vadd.f32 0.0, %v8423
        %v8425 = vpop.f32.mrb[0].mxu0
        %v8426 = vpop.f32.mrb[0].mxu0
        %v8427 = vadd.f32 0.0, %v8426
        %v8428 = vpop.f32.mrb[0].mxu0
        %8429 = vmatprep.mubr.bf16.mxu0 0
        %8430 = vmatmul.mubr.bf16.gmra.mrb[0].mxu0 %v8268
        %v8431 = vpop.f32.mrb[0].mxu0
        %v8432 = vadd.f32 0.0, %v8431
        %v8433 = vpop.f32.mrb[0].mxu0
        %v8434 = vpop.f32.mrb[0].mxu0
        %v8435 = vadd.f32 0.0, %v8434
        %v8436 = vpop.f32.mrb[0].mxu0
        %8437 = vmatprep.mubr.bf16.mxu0 0
        %8438 = vmatmul.mubr.bf16.gmra.mrb[0].mxu0 %v8269
        %v8439 = vpop.f32.mrb[0].mxu0
        %v8440 = vadd.f32 0.0, %v8439
        %v8441 = vpop.f32.mrb[0].mxu0
        %v8442 = vpop.f32.mrb[0].mxu0
        %v8443 = vadd.f32 0.0, %v8442
        %v8444 = vpop.f32.mrb[0].mxu0
        %8445 = vmatprep.mubr.bf16.mxu0 0
        %8446 = vmatmul.mubr.bf16.gmra.mrb[0].mxu0 %v8270
        %v8447 = vpop.f32.mrb[0].mxu0
        %v8448 = vadd.f32 0.0, %v8447
        %v8449 = vpop.f32.mrb[0].mxu0
        %v8450 = vpop.f32.mrb[0].mxu0
        %v8451 = vadd.f32 0.0, %v8450
        %v8452 = vpop.f32.mrb[0].mxu0
        %8453 = vmatprep.mubr.bf16.mxu0 0
        %8454 = vmatmul.mubr.bf16.gmra.mrb[0].mxu0 %v8271
        %v8455 = vpop.f32.mrb[0].mxu0
        %v8456 = vadd.f32 0.0, %v8455
        %v8457 = vpop.f32.mrb[0].mxu0
        %v8458 = vpop.f32.mrb[0].mxu0
        %v8459 = vadd.f32 0.0, %v8458
        %v8460 = vpop.f32.mrb[0].mxu0
        %8461 = vmatprep.mubr.bf16.mxu0 0
        %8462 = vmatmul.mubr.bf16.gmra.mrb[0].mxu0 %v8272
        %v8463 = vpop.f32.mrb[0].mxu0
        %v8464 = vadd.f32 0.0, %v8463
        %v8465 = vpop.f32.mrb[0].mxu0
        %v8466 = vpop.f32.mrb[0].mxu0
        %v8467 = vadd.f32 0.0, %v8466
        %v8468 = vpop.f32.mrb[0].mxu0
        %8469 = vmatprep.mubr.bf16.mxu0 0
        %8470 = vmatmul.mubr.bf16.gmra.mrb[0].mxu0 %v8273
        %v8471 = vpop.f32.mrb[0].mxu0
        %v8472 = vadd.f32 0.0, %v8471
        %v8473 = vpop.f32.mrb[0].mxu0
        %v8474 = vpop.f32.mrb[0].mxu0
        %v8475 = vadd.f32 0.0, %v8474
        %v8476 = vpop.f32.mrb[0].mxu0
        %8477 = vmatprep.mubr.bf16.mxu0 0
        %8478 = vmatmul.mubr.bf16.gmra.mrb[0].mxu0 %v8274
        %v8479 = vpop.f32.mrb[0].mxu0
        %v8480 = vadd.f32 0.0, %v8479
        %v8481 = vpop.f32.mrb[0].mxu0
        %v8482 = vpop.f32.mrb[0].mxu0
        %v8483 = vadd.f32 0.0, %v8482
        %v8484 = vpop.f32.mrb[0].mxu0
        %8485 = vmatprep.mubr.bf16.mxu0 0
        %8486 = vmatmul.mubr.bf16.gmra.mrb[0].mxu0 %v8275
        %v8487 = vpop.f32.mrb[0].mxu0
        %v8488 = vadd.f32 0.0, %v8487
        %v8489 = vpop.f32.mrb[0].mxu0
        %v8490 = vpop.f32.mrb[0].mxu0
        %v8491 = vadd.f32 0.0, %v8490
        %v8492 = vpop.f32.mrb[0].mxu0
        %8493 = vmatprep.mubr.bf16.mxu0 0
        %8494 = vmatmul.mubr.bf16.gmra.mrb[0].mxu0 %v8276
        %v8495 = vpop.f32.mrb[0].mxu0
        %v8496 = vadd.f32 0.0, %v8495
        %v8497 = vpop.f32.mrb[0].mxu0
        %v8498 = vpop.f32.mrb[0].mxu0
        %v8499 = vadd.f32 0.0, %v8498
        %v8500 = vpop.f32.mrb[0].mxu0
        %8501 = vdwg.mxu0
        %v8502 = vadd.f32 %v8084, %v8376
        %v8503 = vadd.f32 %v8085, %v8379
        %v8504 = vadd.f32 %v8086, %v8384
        %v8505 = vadd.f32 %v8087, %v8387
        %v8506 = vadd.f32 %v8088, %v8392
        %v8507 = vadd.f32 %v8089, %v8395
        %v8508 = vadd.f32 %v8090, %v8400
        %v8509 = vadd.f32 %v8091, %v8403
        %v8510 = vadd.f32 %v8092, %v8408
        %v8511 = vadd.f32 %v8093, %v8411
        %v8512 = vadd.f32 %v8094, %v8416
        %v8513 = vadd.f32 %v8095, %v8419
        %v8514 = vadd.f32 %v8096, %v8424
        %v8515 = vadd.f32 %v8097, %v8427
        %v8516 = vadd.f32 %v8098, %v8432
        %v8517 = vadd.f32 %v8099, %v8435
        %v8518 = vadd.f32 %v8100, %v8440
        %v8519 = vadd.f32 %v8101, %v8443
        %v8520 = vadd.f32 %v8102, %v8448
        %v8521 = vadd.f32 %v8103, %v8451
        %v8522 = vadd.f32 %v8104, %v8456
        %v8523 = vadd.f32 %v8105, %v8459
        %v8524 = vadd.f32 %v8106, %v8464
        %v8525 = vadd.f32 %v8107, %v8467
        %v8526 = vadd.f32 %v8108, %v8472
        %v8527 = vadd.f32 %v8109, %v8475
        %v8528 = vadd.f32 %v8110, %v8480
        %v8529 = vadd.f32 %v8111, %v8483
        %v8530 = vadd.f32 %v8112, %v8488
        %v8531 = vadd.f32 %v8113, %v8491
        %v8532 = vadd.f32 %v8114, %v8496
        %v8533 = vadd.f32 %v8115, %v8499
        %v8534 = vld [vmem:[#allocation2 + $0x10] sm:$0xf]
        %v8535 = vld [vmem:[#allocation2 + $0x14] sm:$0xf]
        %v8536 = vld [vmem:[#allocation2 + $0x18] sm:$0xf]
        %v8537 = vld [vmem:[#allocation2 + $0x1c] sm:$0xf]
        %v8538 = vld [vmem:[#allocation2 + $0x20] sm:$0xf]
        %v8539 = vld [vmem:[#allocation2 + $0x24] sm:$0xf]
        %v8540 = vld [vmem:[#allocation2 + $0x28] sm:$0xf]
        %v8541 = vld [vmem:[#allocation2 + $0x2c] sm:$0xf]
        %v8542 = vld [vmem:[#allocation2 + $0x30] sm:$0xf]
        %v8543 = vld [vmem:[#allocation2 + $0x34] sm:$0xf]
        %v8544 = vld [vmem:[#allocation2 + $0x38] sm:$0xf]
        %v8545 = vld [vmem:[#allocation2 + $0x3c] sm:$0xf]
        %v8546 = vld [vmem:[#allocation2 + $0x40] sm:$0xf]
        %v8547 = vld [vmem:[#allocation2 + $0x44] sm:$0xf]
        %v8548 = vld [vmem:[#allocation2 + $0x48] sm:$0xf]
        %v8549 = vld [vmem:[#allocation2 + $0x4c] sm:$0xf]
        %v8550 = vld [vmem:[#allocation2 + $0x50] sm:$0xf]
        %v8551 = vld [vmem:[#allocation2 + $0x54] sm:$0xf]
        %v8552 = vld [vmem:[#allocation2 + $0x58] sm:$0xf]
        %v8553 = vld [vmem:[#allocation2 + $0x5c] sm:$0xf]
        %v8554 = vld [vmem:[#allocation2 + $0x60] sm:$0xf]
        %v8555 = vld [vmem:[#allocation2 + $0x64] sm:$0xf]
        %v8556 = vld [vmem:[#allocation2 + $0x68] sm:$0xf]
        %v8557 = vld [vmem:[#allocation2 + $0x6c] sm:$0xf]
        %v8558 = vld [vmem:[#allocation2 + $0x70] sm:$0xf]
        %v8559 = vld [vmem:[#allocation2 + $0x74] sm:$0xf]
        %v8560 = vld [vmem:[#allocation2 + $0x78] sm:$0xf]
        %v8561 = vld [vmem:[#allocation2 + $0x7c] sm:$0xf]
        %v8562 = vld [vmem:[#allocation2 + $0x80] sm:$0xf]
        %v8563 = vld [vmem:[#allocation2 + $0x84] sm:$0xf]
        %v8564 = vld [vmem:[#allocation2 + $0x88] sm:$0xf]
        %v8565 = vld [vmem:[#allocation2 + $0x8c] sm:$0xf]
        %v8566 = vld [vmem:[#allocation2 + $0x90] sm:$0x1]
        %s8567 = scalar_lea.vmem [#allocation3], 448
        %v8568 = vld [vmem:[%s8567] sm:$0xf]
        %v8569 = vld [vmem:[%s8567 + $0x4] sm:$0xf]
        %v8570 = vld [vmem:[%s8567 + $0x8] sm:$0xf]
        %v8571 = vld [vmem:[%s8567 + $0xc] sm:$0xf]
        %v8572 = vld [vmem:[%s8567 + $0x10] sm:$0xf]
        %v8573 = vld [vmem:[%s8567 + $0x14] sm:$0xf]
        %v8574 = vld [vmem:[%s8567 + $0x18] sm:$0xf]
        %v8575 = vld [vmem:[%s8567 + $0x1c] sm:$0xf]
        %v8576 = vld [vmem:[%s8567 + $0x20] sm:$0xf]
        %v8577 = vld [vmem:[%s8567 + $0x24] sm:$0xf]
        %v8578 = vld [vmem:[%s8567 + $0x28] sm:$0xf]
        %v8579 = vld [vmem:[%s8567 + $0x2c] sm:$0xf]
        %v8580 = vld [vmem:[%s8567 + $0x30] sm:$0xf]
        %v8581 = vld [vmem:[%s8567 + $0x34] sm:$0xf]
        %v8582 = vld [vmem:[%s8567 + $0x38] sm:$0xf]
        %v8583 = vld [vmem:[%s8567 + $0x3c] sm:$0xf]
        %v8617 = vunpack.c.l.b16 %v8534
        %v8618 = vunpack.c.l.b16 %v8535
        %v8619 = vunpack.c.l.b16 %v8536
        %v8620 = vunpack.c.l.b16 %v8537
        %v8621 = vunpack.c.l.b16 %v8538
        %v8622 = vunpack.c.l.b16 %v8539
        %v8623 = vunpack.c.l.b16 %v8540
        %v8624 = vunpack.c.l.b16 %v8541
        %v8625 = vunpack.c.l.b16 %v8542
        %v8626 = vunpack.c.l.b16 %v8543
        %v8627 = vunpack.c.l.b16 %v8544
        %v8628 = vunpack.c.l.b16 %v8545
        %v8629 = vunpack.c.l.b16 %v8546
        %v8630 = vunpack.c.l.b16 %v8547
        %v8631 = vunpack.c.l.b16 %v8548
        %v8632 = vunpack.c.l.b16 %v8549
        %v8633 = vunpack.c.l.b16 %v8550
        %v8634 = vunpack.c.l.b16 %v8551
        %v8635 = vunpack.c.l.b16 %v8552
        %v8636 = vunpack.c.l.b16 %v8553
        %v8637 = vunpack.c.l.b16 %v8554
        %v8638 = vunpack.c.l.b16 %v8555
        %v8639 = vunpack.c.l.b16 %v8556
        %v8640 = vunpack.c.l.b16 %v8557
        %v8641 = vunpack.c.l.b16 %v8558
        %v8642 = vunpack.c.l.b16 %v8559
        %v8643 = vunpack.c.l.b16 %v8560
        %v8644 = vunpack.c.l.b16 %v8561
        %v8645 = vunpack.c.l.b16 %v8562
        %v8646 = vunpack.c.l.b16 %v8563
        %v8647 = vunpack.c.l.b16 %v8564
        %v8648 = vunpack.c.l.b16 %v8565
        %v8649 = vunpack.c.l.b16 %v8566
        %v8650 = vpack.c.b16 %v8618, %v8617
        %v8651 = vpack.c.b16 %v8620, %v8619
        %v8652 = vpack.c.b16 %v8622, %v8621
        %v8653 = vpack.c.b16 %v8624, %v8623
        %v8654 = vpack.c.b16 %v8626, %v8625
        %v8655 = vpack.c.b16 %v8628, %v8627
        %v8656 = vpack.c.b16 %v8630, %v8629
        %v8657 = vpack.c.b16 %v8632, %v8631
        %v8658 = vpack.c.b16 %v8634, %v8633
        %v8659 = vpack.c.b16 %v8636, %v8635
        %v8660 = vpack.c.b16 %v8638, %v8637
        %v8661 = vpack.c.b16 %v8640, %v8639
        %v8662 = vpack.c.b16 %v8642, %v8641
        %v8663 = vpack.c.b16 %v8644, %v8643
        %v8664 = vpack.c.b16 %v8646, %v8645
        %v8665 = vpack.c.b16 %v8648, %v8647
        %v8666 = vpack.c.b16 %v8649, %v8649
        %v8668 = vshrl.u32 %v8650, 16
        %v8670 = vshll.u32 %v8650, 16
        %v8672 = vrot.slane %v8670, 1
        %v8673 = vor.u32 %v8668, %v8672
        %v8675 = vshll.u32 %v8651, 16
        %v8677 = vrot.slane %v8675, 1
        %v8678 = vsel %vm1050, %v8673, %v8677
        %v8679 = vshrl.u32 %v8651, 16
        %v8681 = vor.u32 %v8679, %v8677
        %v8683 = vshll.u32 %v8652, 16
        %v8685 = vrot.slane %v8683, 1
        %v8686 = vsel %vm1050, %v8681, %v8685
        %v8687 = vshrl.u32 %v8652, 16
        %v8689 = vor.u32 %v8687, %v8685
        %v8691 = vshll.u32 %v8653, 16
        %v8693 = vrot.slane %v8691, 1
        %v8694 = vsel %vm1050, %v8689, %v8693
        %v8695 = vshrl.u32 %v8653, 16
        %v8697 = vor.u32 %v8695, %v8693
        %v8699 = vshll.u32 %v8654, 16
        %v8701 = vrot.slane %v8699, 1
        %v8702 = vsel %vm1050, %v8697, %v8701
        %v8703 = vshrl.u32 %v8654, 16
        %v8705 = vor.u32 %v8703, %v8701
        %v8707 = vshll.u32 %v8655, 16
        %v8709 = vrot.slane %v8707, 1
        %v8710 = vsel %vm1050, %v8705, %v8709
        %v8711 = vshrl.u32 %v8655, 16
        %v8713 = vor.u32 %v8711, %v8709
        %v8715 = vshll.u32 %v8656, 16
        %v8717 = vrot.slane %v8715, 1
        %v8718 = vsel %vm1050, %v8713, %v8717
        %v8719 = vshrl.u32 %v8656, 16
        %v8721 = vor.u32 %v8719, %v8717
        %v8723 = vshll.u32 %v8657, 16
        %v8725 = vrot.slane %v8723, 1
        %v8726 = vsel %vm1050, %v8721, %v8725
        %v8727 = vshrl.u32 %v8657, 16
        %v8729 = vor.u32 %v8727, %v8725
        %v8731 = vshll.u32 %v8658, 16
        %v8733 = vrot.slane %v8731, 1
        %v8734 = vsel %vm1050, %v8729, %v8733
        %v8735 = vshrl.u32 %v8658, 16
        %v8737 = vor.u32 %v8735, %v8733
        %v8739 = vshll.u32 %v8659, 16
        %v8741 = vrot.slane %v8739, 1
        %v8742 = vsel %vm1050, %v8737, %v8741
        %v8743 = vshrl.u32 %v8659, 16
        %v8745 = vor.u32 %v8743, %v8741
        %v8747 = vshll.u32 %v8660, 16
        %v8749 = vrot.slane %v8747, 1
        %v8750 = vsel %vm1050, %v8745, %v8749
        %v8751 = vshrl.u32 %v8660, 16
        %v8753 = vor.u32 %v8751, %v8749
        %v8755 = vshll.u32 %v8661, 16
        %v8757 = vrot.slane %v8755, 1
        %v8758 = vsel %vm1050, %v8753, %v8757
        %v8759 = vshrl.u32 %v8661, 16
        %v8761 = vor.u32 %v8759, %v8757
        %v8763 = vshll.u32 %v8662, 16
        %v8765 = vrot.slane %v8763, 1
        %v8766 = vsel %vm1050, %v8761, %v8765
        %v8767 = vshrl.u32 %v8662, 16
        %v8769 = vor.u32 %v8767, %v8765
        %v8771 = vshll.u32 %v8663, 16
        %v8773 = vrot.slane %v8771, 1
        %v8774 = vsel %vm1050, %v8769, %v8773
        %v8775 = vshrl.u32 %v8663, 16
        %v8777 = vor.u32 %v8775, %v8773
        %v8779 = vshll.u32 %v8664, 16
        %v8781 = vrot.slane %v8779, 1
        %v8782 = vsel %vm1050, %v8777, %v8781
        %v8783 = vshrl.u32 %v8664, 16
        %v8785 = vor.u32 %v8783, %v8781
        %v8787 = vshll.u32 %v8665, 16
        %v8789 = vrot.slane %v8787, 1
        %v8790 = vsel %vm1050, %v8785, %v8789
        %v8791 = vshrl.u32 %v8665, 16
        %v8793 = vor.u32 %v8791, %v8789
        %v8795 = vshll.u32 %v8666, 16
        %v8797 = vrot.slane %v8795, 1
        %v8798 = vsel %vm1050, %v8793, %v8797
        %v8831 = vunpack.c.l.b16 %v8568
        %v8832 = vunpack.c.l.b16 %v8569
        %v8833 = vunpack.c.l.b16 %v8570
        %v8834 = vunpack.c.l.b16 %v8571
        %v8835 = vunpack.c.l.b16 %v8572
        %v8836 = vunpack.c.l.b16 %v8573
        %v8837 = vunpack.c.l.b16 %v8574
        %v8838 = vunpack.c.l.b16 %v8575
        %v8839 = vunpack.c.l.b16 %v8576
        %v8840 = vunpack.c.l.b16 %v8577
        %v8841 = vunpack.c.l.b16 %v8578
        %v8842 = vunpack.c.l.b16 %v8579
        %v8843 = vunpack.c.l.b16 %v8580
        %v8844 = vunpack.c.l.b16 %v8581
        %v8845 = vunpack.c.l.b16 %v8582
        %v8846 = vunpack.c.l.b16 %v8583
        %v8847 = vpack.c.b16 %v8832, %v8831
        %v8848 = vpack.c.b16 %v8834, %v8833
        %v8849 = vpack.c.b16 %v8836, %v8835
        %v8850 = vpack.c.b16 %v8838, %v8837
        %v8851 = vpack.c.b16 %v8840, %v8839
        %v8852 = vpack.c.b16 %v8842, %v8841
        %v8853 = vpack.c.b16 %v8844, %v8843
        %v8854 = vpack.c.b16 %v8846, %v8845
        %8863 = vmatprep.subr.bf16.mxu0 0
        %8864 = vmatpush1.bf16.msra.mxu0 %v8847
        %8865 = vmatprep.subr.bf16.mxu0 0
        %8866 = vmatpush1.bf16.msra.mxu0 %v8848
        %8867 = vmatprep.subr.bf16.mxu0 0
        %8868 = vmatpush1.bf16.msra.mxu0 %v8849
        %8869 = vmatprep.subr.bf16.mxu0 0
        %8870 = vmatpush1.bf16.msra.mxu0 %v8850
        %8871 = vmatprep.subr.bf16.mxu0 0
        %8872 = vmatpush1.bf16.msra.mxu0 %v8851
        %8873 = vmatprep.subr.bf16.mxu0 0
        %8874 = vmatpush1.bf16.msra.mxu0 %v8852
        %8875 = vmatprep.subr.bf16.mxu0 0
        %8876 = vmatpush1.bf16.msra.mxu0 %v8853
        %8877 = vmatprep.subr.bf16.mxu0 0
        %8878 = vmatpush1.bf16.msra.mxu0 %v8854
        %8879 = vmatprep.subr.bf16.mxu0 0
        %8880 = vmatpush1.bf16.msra.mxu0 0
        %8881 = vmatprep.subr.bf16.mxu0 0
        %8882 = vmatpush1.bf16.msra.mxu0 0
        %8883 = vmatprep.subr.bf16.mxu0 0
        %8884 = vmatpush1.bf16.msra.mxu0 0
        %8885 = vmatprep.subr.bf16.mxu0 0
        %8886 = vmatpush1.bf16.msra.mxu0 0
        %8887 = vmatprep.subr.bf16.mxu0 0
        %8888 = vmatpush1.bf16.msra.mxu0 0
        %8889 = vmatprep.subr.bf16.mxu0 0
        %8890 = vmatpush1.bf16.msra.mxu0 0
        %8891 = vmatprep.subr.bf16.mxu0 0
        %8892 = vmatpush1.bf16.msra.mxu0 0
        %8893 = vmatprep.subr.bf16.mxu0 0
        %8894 = vmatpush1.bf16.msra.mxu0 0
        %8895 = vmatprep.mubr.bf16.mxu0 0
        %8896 = vmatmul.mubr.bf16.gmra.mrb[0].mxu0 %v8678
        %v8897 = vpop.f32.mrb[0].mxu0
        %v8898 = vadd.f32 0.0, %v8897
        %v8899 = vpop.f32.mrb[0].mxu0
        %v8900 = vpop.f32.mrb[0].mxu0
        %v8901 = vadd.f32 0.0, %v8900
        %v8902 = vpop.f32.mrb[0].mxu0
        %8903 = vmatprep.mubr.bf16.mxu0 0
        %8904 = vmatmul.mubr.bf16.gmra.mrb[0].mxu0 %v8686
        %v8905 = vpop.f32.mrb[0].mxu0
        %v8906 = vadd.f32 0.0, %v8905
        %v8907 = vpop.f32.mrb[0].mxu0
        %v8908 = vpop.f32.mrb[0].mxu0
        %v8909 = vadd.f32 0.0, %v8908
        %v8910 = vpop.f32.mrb[0].mxu0
        %8911 = vmatprep.mubr.bf16.mxu0 0
        %8912 = vmatmul.mubr.bf16.gmra.mrb[0].mxu0 %v8694
        %v8913 = vpop.f32.mrb[0].mxu0
        %v8914 = vadd.f32 0.0, %v8913
        %v8915 = vpop.f32.mrb[0].mxu0
        %v8916 = vpop.f32.mrb[0].mxu0
        %v8917 = vadd.f32 0.0, %v8916
        %v8918 = vpop.f32.mrb[0].mxu0
        %8919 = vmatprep.mubr.bf16.mxu0 0
        %8920 = vmatmul.mubr.bf16.gmra.mrb[0].mxu0 %v8702
        %v8921 = vpop.f32.mrb[0].mxu0
        %v8922 = vadd.f32 0.0, %v8921
        %v8923 = vpop.f32.mrb[0].mxu0
        %v8924 = vpop.f32.mrb[0].mxu0
        %v8925 = vadd.f32 0.0, %v8924
        %v8926 = vpop.f32.mrb[0].mxu0
        %8927 = vmatprep.mubr.bf16.mxu0 0
        %8928 = vmatmul.mubr.bf16.gmra.mrb[0].mxu0 %v8710
        %v8929 = vpop.f32.mrb[0].mxu0
        %v8930 = vadd.f32 0.0, %v8929
        %v8931 = vpop.f32.mrb[0].mxu0
        %v8932 = vpop.f32.mrb[0].mxu0
        %v8933 = vadd.f32 0.0, %v8932
        %v8934 = vpop.f32.mrb[0].mxu0
        %8935 = vmatprep.mubr.bf16.mxu0 0
        %8936 = vmatmul.mubr.bf16.gmra.mrb[0].mxu0 %v8718
        %v8937 = vpop.f32.mrb[0].mxu0
        %v8938 = vadd.f32 0.0, %v8937
        %v8939 = vpop.f32.mrb[0].mxu0
        %v8940 = vpop.f32.mrb[0].mxu0
        %v8941 = vadd.f32 0.0, %v8940
        %v8942 = vpop.f32.mrb[0].mxu0
        %8943 = vmatprep.mubr.bf16.mxu0 0
        %8944 = vmatmul.mubr.bf16.gmra.mrb[0].mxu0 %v8726
        %v8945 = vpop.f32.mrb[0].mxu0
        %v8946 = vadd.f32 0.0, %v8945
        %v8947 = vpop.f32.mrb[0].mxu0
        %v8948 = vpop.f32.mrb[0].mxu0
        %v8949 = vadd.f32 0.0, %v8948
        %v8950 = vpop.f32.mrb[0].mxu0
        %8951 = vmatprep.mubr.bf16.mxu0 0
        %8952 = vmatmul.mubr.bf16.gmra.mrb[0].mxu0 %v8734
        %v8953 = vpop.f32.mrb[0].mxu0
        %v8954 = vadd.f32 0.0, %v8953
        %v8955 = vpop.f32.mrb[0].mxu0
        %v8956 = vpop.f32.mrb[0].mxu0
        %v8957 = vadd.f32 0.0, %v8956
        %v8958 = vpop.f32.mrb[0].mxu0
        %8959 = vmatprep.mubr.bf16.mxu0 0
        %8960 = vmatmul.mubr.bf16.gmra.mrb[0].mxu0 %v8742
        %v8961 = vpop.f32.mrb[0].mxu0
        %v8962 = vadd.f32 0.0, %v8961
        %v8963 = vpop.f32.mrb[0].mxu0
        %v8964 = vpop.f32.mrb[0].mxu0
        %v8965 = vadd.f32 0.0, %v8964
        %v8966 = vpop.f32.mrb[0].mxu0
        %8967 = vmatprep.mubr.bf16.mxu0 0
        %8968 = vmatmul.mubr.bf16.gmra.mrb[0].mxu0 %v8750
        %v8969 = vpop.f32.mrb[0].mxu0
        %v8970 = vadd.f32 0.0, %v8969
        %v8971 = vpop.f32.mrb[0].mxu0
        %v8972 = vpop.f32.mrb[0].mxu0
        %v8973 = vadd.f32 0.0, %v8972
        %v8974 = vpop.f32.mrb[0].mxu0
        %8975 = vmatprep.mubr.bf16.mxu0 0
        %8976 = vmatmul.mubr.bf16.gmra.mrb[0].mxu0 %v8758
        %v8977 = vpop.f32.mrb[0].mxu0
        %v8978 = vadd.f32 0.0, %v8977
        %v8979 = vpop.f32.mrb[0].mxu0
        %v8980 = vpop.f32.mrb[0].mxu0
        %v8981 = vadd.f32 0.0, %v8980
        %v8982 = vpop.f32.mrb[0].mxu0
        %8983 = vmatprep.mubr.bf16.mxu0 0
        %8984 = vmatmul.mubr.bf16.gmra.mrb[0].mxu0 %v8766
        %v8985 = vpop.f32.mrb[0].mxu0
        %v8986 = vadd.f32 0.0, %v8985
        %v8987 = vpop.f32.mrb[0].mxu0
        %v8988 = vpop.f32.mrb[0].mxu0
        %v8989 = vadd.f32 0.0, %v8988
        %v8990 = vpop.f32.mrb[0].mxu0
        %8991 = vmatprep.mubr.bf16.mxu0 0
        %8992 = vmatmul.mubr.bf16.gmra.mrb[0].mxu0 %v8774
        %v8993 = vpop.f32.mrb[0].mxu0
        %v8994 = vadd.f32 0.0, %v8993
        %v8995 = vpop.f32.mrb[0].mxu0
        %v8996 = vpop.f32.mrb[0].mxu0
        %v8997 = vadd.f32 0.0, %v8996
        %v8998 = vpop.f32.mrb[0].mxu0
        %8999 = vmatprep.mubr.bf16.mxu0 0
        %9000 = vmatmul.mubr.bf16.gmra.mrb[0].mxu0 %v8782
        %v9001 = vpop.f32.mrb[0].mxu0
        %v9002 = vadd.f32 0.0, %v9001
        %v9003 = vpop.f32.mrb[0].mxu0
        %v9004 = vpop.f32.mrb[0].mxu0
        %v9005 = vadd.f32 0.0, %v9004
        %v9006 = vpop.f32.mrb[0].mxu0
        %9007 = vmatprep.mubr.bf16.mxu0 0
        %9008 = vmatmul.mubr.bf16.gmra.mrb[0].mxu0 %v8790
        %v9009 = vpop.f32.mrb[0].mxu0
        %v9010 = vadd.f32 0.0, %v9009
        %v9011 = vpop.f32.mrb[0].mxu0
        %v9012 = vpop.f32.mrb[0].mxu0
        %v9013 = vadd.f32 0.0, %v9012
        %v9014 = vpop.f32.mrb[0].mxu0
        %9015 = vmatprep.mubr.bf16.mxu0 0
        %9016 = vmatmul.mubr.bf16.gmra.mrb[0].mxu0 %v8798
        %v9017 = vpop.f32.mrb[0].mxu0
        %v9018 = vadd.f32 0.0, %v9017
        %v9019 = vpop.f32.mrb[0].mxu0
        %v9020 = vpop.f32.mrb[0].mxu0
        %v9021 = vadd.f32 0.0, %v9020
        %v9022 = vpop.f32.mrb[0].mxu0
        %9023 = vdwg.mxu0
        %v9024 = vadd.f32 %v8502, %v8898
        %v9025 = vadd.f32 %v8503, %v8901
        %v9026 = vadd.f32 %v8504, %v8906
        %v9027 = vadd.f32 %v8505, %v8909
        %v9028 = vadd.f32 %v8506, %v8914
        %v9029 = vadd.f32 %v8507, %v8917
        %v9030 = vadd.f32 %v8508, %v8922
        %v9031 = vadd.f32 %v8509, %v8925
        %v9032 = vadd.f32 %v8510, %v8930
        %v9033 = vadd.f32 %v8511, %v8933
        %v9034 = vadd.f32 %v8512, %v8938
        %v9035 = vadd.f32 %v8513, %v8941
        %v9036 = vadd.f32 %v8514, %v8946
        %v9037 = vadd.f32 %v8515, %v8949
        %v9038 = vadd.f32 %v8516, %v8954
        %v9039 = vadd.f32 %v8517, %v8957
        %v9040 = vadd.f32 %v8518, %v8962
        %v9041 = vadd.f32 %v8519, %v8965
        %v9042 = vadd.f32 %v8520, %v8970
        %v9043 = vadd.f32 %v8521, %v8973
        %v9044 = vadd.f32 %v8522, %v8978
        %v9045 = vadd.f32 %v8523, %v8981
        %v9046 = vadd.f32 %v8524, %v8986
        %v9047 = vadd.f32 %v8525, %v8989
        %v9048 = vadd.f32 %v8526, %v8994
        %v9049 = vadd.f32 %v8527, %v8997
        %v9050 = vadd.f32 %v8528, %v9002
        %v9051 = vadd.f32 %v8529, %v9005
        %v9052 = vadd.f32 %v8530, %v9010
        %v9053 = vadd.f32 %v8531, %v9013
        %v9054 = vadd.f32 %v8532, %v9018
        %v9055 = vadd.f32 %v8533, %v9021
        %v9056 = vld [vmem:[#allocation2 + $0x10] sm:$0xe]
        %v9057 = vsel %vm1916, %v9056, 0
        %v9058 = vsel %vm1917, %v8535, 0
        %v9059 = vsel %vm1918, %v8536, 0
        %v9060 = vsel %vm1919, %v8537, 0
        %v9061 = vsel %vm1920, %v8538, 0
        %v9062 = vsel %vm1921, %v8539, 0
        %v9063 = vsel %vm1922, %v8540, 0
        %v9064 = vsel %vm1923, %v8541, 0
        %v9065 = vsel %vm1924, %v8542, 0
        %v9066 = vsel %vm1925, %v8543, 0
        %v9067 = vsel %vm1926, %v8544, 0
        %v9068 = vsel %vm1927, %v8545, 0
        %v9069 = vsel %vm1928, %v8546, 0
        %v9070 = vsel %vm1929, %v8547, 0
        %v9071 = vsel %vm1930, %v8548, 0
        %v9072 = vsel %vm1931, %v8549, 0
        %v9073 = vsel %vm1932, %v8550, 0
        %v9074 = vsel %vm1933, %v8551, 0
        %v9075 = vsel %vm1934, %v8552, 0
        %v9076 = vsel %vm1935, %v8553, 0
        %v9077 = vsel %vm1936, %v8554, 0
        %v9078 = vsel %vm1937, %v8555, 0
        %v9079 = vsel %vm1938, %v8556, 0
        %v9080 = vsel %vm1939, %v8557, 0
        %v9081 = vsel %vm1940, %v8558, 0
        %v9082 = vsel %vm1941, %v8559, 0
        %v9083 = vsel %vm1942, %v8560, 0
        %v9084 = vsel %vm1943, %v8561, 0
        %v9085 = vsel %vm1944, %v8562, 0
        %v9086 = vsel %vm1945, %v8563, 0
        %v9087 = vsel %vm1946, %v8564, 0
        %v9088 = vsel %vm1947, %v8565, 0
        %v9089 = vsel %vm1948, %v8566, 0
        %s9090 = scalar_lea.vmem [#allocation3], 512
        %v9091 = vld [vmem:[%s9090] sm:$0xf]
        %v9092 = vld [vmem:[%s9090 + $0x4] sm:$0xf]
        %v9093 = vld [vmem:[%s9090 + $0x8] sm:$0xf]
        %v9094 = vld [vmem:[%s9090 + $0xc] sm:$0xf]
        %v9095 = vld [vmem:[%s9090 + $0x10] sm:$0xf]
        %v9096 = vld [vmem:[%s9090 + $0x14] sm:$0xf]
        %v9097 = vld [vmem:[%s9090 + $0x18] sm:$0xf]
        %v9098 = vld [vmem:[%s9090 + $0x1c] sm:$0xf]
        %v9099 = vld [vmem:[%s9090 + $0x20] sm:$0xf]
        %v9100 = vld [vmem:[%s9090 + $0x24] sm:$0xf]
        %v9101 = vld [vmem:[%s9090 + $0x28] sm:$0xf]
        %v9102 = vld [vmem:[%s9090 + $0x2c] sm:$0xf]
        %v9103 = vld [vmem:[%s9090 + $0x30] sm:$0xf]
        %v9104 = vld [vmem:[%s9090 + $0x34] sm:$0xf]
        %v9105 = vld [vmem:[%s9090 + $0x38] sm:$0xf]
        %v9106 = vld [vmem:[%s9090 + $0x3c] sm:$0xf]
        %v9140 = vunpack.c.l.b16 %v9057
        %v9141 = vunpack.c.l.b16 %v9058
        %v9142 = vunpack.c.l.b16 %v9059
        %v9143 = vunpack.c.l.b16 %v9060
        %v9144 = vunpack.c.l.b16 %v9061
        %v9145 = vunpack.c.l.b16 %v9062
        %v9146 = vunpack.c.l.b16 %v9063
        %v9147 = vunpack.c.l.b16 %v9064
        %v9148 = vunpack.c.l.b16 %v9065
        %v9149 = vunpack.c.l.b16 %v9066
        %v9150 = vunpack.c.l.b16 %v9067
        %v9151 = vunpack.c.l.b16 %v9068
        %v9152 = vunpack.c.l.b16 %v9069
        %v9153 = vunpack.c.l.b16 %v9070
        %v9154 = vunpack.c.l.b16 %v9071
        %v9155 = vunpack.c.l.b16 %v9072
        %v9156 = vunpack.c.l.b16 %v9073
        %v9157 = vunpack.c.l.b16 %v9074
        %v9158 = vunpack.c.l.b16 %v9075
        %v9159 = vunpack.c.l.b16 %v9076
        %v9160 = vunpack.c.l.b16 %v9077
        %v9161 = vunpack.c.l.b16 %v9078
        %v9162 = vunpack.c.l.b16 %v9079
        %v9163 = vunpack.c.l.b16 %v9080
        %v9164 = vunpack.c.l.b16 %v9081
        %v9165 = vunpack.c.l.b16 %v9082
        %v9166 = vunpack.c.l.b16 %v9083
        %v9167 = vunpack.c.l.b16 %v9084
        %v9168 = vunpack.c.l.b16 %v9085
        %v9169 = vunpack.c.l.b16 %v9086
        %v9170 = vunpack.c.l.b16 %v9087
        %v9171 = vunpack.c.l.b16 %v9088
        %v9172 = vunpack.c.l.b16 %v9089
        %v9173 = vpack.c.b16 %v9141, %v9140
        %v9174 = vpack.c.b16 %v9143, %v9142
        %v9175 = vpack.c.b16 %v9145, %v9144
        %v9176 = vpack.c.b16 %v9147, %v9146
        %v9177 = vpack.c.b16 %v9149, %v9148
        %v9178 = vpack.c.b16 %v9151, %v9150
        %v9179 = vpack.c.b16 %v9153, %v9152
        %v9180 = vpack.c.b16 %v9155, %v9154
        %v9181 = vpack.c.b16 %v9157, %v9156
        %v9182 = vpack.c.b16 %v9159, %v9158
        %v9183 = vpack.c.b16 %v9161, %v9160
        %v9184 = vpack.c.b16 %v9163, %v9162
        %v9185 = vpack.c.b16 %v9165, %v9164
        %v9186 = vpack.c.b16 %v9167, %v9166
        %v9187 = vpack.c.b16 %v9169, %v9168
        %v9188 = vpack.c.b16 %v9171, %v9170
        %v9189 = vpack.c.b16 %v9172, %v9172
        %v9190 = vrot.slane %v9173, 1
        %v9191 = vrot.slane %v9174, 1
        %v9192 = vsel %vm2067, %v9190, %v9191
        %v9193 = vrot.slane %v9175, 1
        %v9194 = vsel %vm2067, %v9191, %v9193
        %v9195 = vrot.slane %v9176, 1
        %v9196 = vsel %vm2067, %v9193, %v9195
        %v9197 = vrot.slane %v9177, 1
        %v9198 = vsel %vm2067, %v9195, %v9197
        %v9199 = vrot.slane %v9178, 1
        %v9200 = vsel %vm2067, %v9197, %v9199
        %v9201 = vrot.slane %v9179, 1
        %v9202 = vsel %vm2067, %v9199, %v9201
        %v9203 = vrot.slane %v9180, 1
        %v9204 = vsel %vm2067, %v9201, %v9203
        %v9205 = vrot.slane %v9181, 1
        %v9206 = vsel %vm2067, %v9203, %v9205
        %v9207 = vrot.slane %v9182, 1
        %v9208 = vsel %vm2067, %v9205, %v9207
        %v9209 = vrot.slane %v9183, 1
        %v9210 = vsel %vm2067, %v9207, %v9209
        %v9211 = vrot.slane %v9184, 1
        %v9212 = vsel %vm2067, %v9209, %v9211
        %v9213 = vrot.slane %v9185, 1
        %v9214 = vsel %vm2067, %v9211, %v9213
        %v9215 = vrot.slane %v9186, 1
        %v9216 = vsel %vm2067, %v9213, %v9215
        %v9217 = vrot.slane %v9187, 1
        %v9218 = vsel %vm2067, %v9215, %v9217
        %v9219 = vrot.slane %v9188, 1
        %v9220 = vsel %vm2067, %v9217, %v9219
        %v9221 = vrot.slane %v9189, 1
        %v9222 = vsel %vm2067, %v9219, %v9221
        %v9255 = vunpack.c.l.b16 %v9091
        %v9256 = vunpack.c.l.b16 %v9092
        %v9257 = vunpack.c.l.b16 %v9093
        %v9258 = vunpack.c.l.b16 %v9094
        %v9259 = vunpack.c.l.b16 %v9095
        %v9260 = vunpack.c.l.b16 %v9096
        %v9261 = vunpack.c.l.b16 %v9097
        %v9262 = vunpack.c.l.b16 %v9098
        %v9263 = vunpack.c.l.b16 %v9099
        %v9264 = vunpack.c.l.b16 %v9100
        %v9265 = vunpack.c.l.b16 %v9101
        %v9266 = vunpack.c.l.b16 %v9102
        %v9267 = vunpack.c.l.b16 %v9103
        %v9268 = vunpack.c.l.b16 %v9104
        %v9269 = vunpack.c.l.b16 %v9105
        %v9270 = vunpack.c.l.b16 %v9106
        %v9271 = vpack.c.b16 %v9256, %v9255
        %v9272 = vpack.c.b16 %v9258, %v9257
        %v9273 = vpack.c.b16 %v9260, %v9259
        %v9274 = vpack.c.b16 %v9262, %v9261
        %v9275 = vpack.c.b16 %v9264, %v9263
        %v9276 = vpack.c.b16 %v9266, %v9265
        %v9277 = vpack.c.b16 %v9268, %v9267
        %v9278 = vpack.c.b16 %v9270, %v9269
        %9287 = vmatprep.subr.bf16.mxu0 0
        %9288 = vmatpush1.bf16.msra.mxu0 %v9271
        %9289 = vmatprep.subr.bf16.mxu0 0
        %9290 = vmatpush1.bf16.msra.mxu0 %v9272
        %9291 = vmatprep.subr.bf16.mxu0 0
        %9292 = vmatpush1.bf16.msra.mxu0 %v9273
        %9293 = vmatprep.subr.bf16.mxu0 0
        %9294 = vmatpush1.bf16.msra.mxu0 %v9274
        %9295 = vmatprep.subr.bf16.mxu0 0
        %9296 = vmatpush1.bf16.msra.mxu0 %v9275
        %9297 = vmatprep.subr.bf16.mxu0 0
        %9298 = vmatpush1.bf16.msra.mxu0 %v9276
        %9299 = vmatprep.subr.bf16.mxu0 0
        %9300 = vmatpush1.bf16.msra.mxu0 %v9277
        %9301 = vmatprep.subr.bf16.mxu0 0
        %9302 = vmatpush1.bf16.msra.mxu0 %v9278
        %9303 = vmatprep.subr.bf16.mxu0 0
        %9304 = vmatpush1.bf16.msra.mxu0 0
        %9305 = vmatprep.subr.bf16.mxu0 0
        %9306 = vmatpush1.bf16.msra.mxu0 0
        %9307 = vmatprep.subr.bf16.mxu0 0
        %9308 = vmatpush1.bf16.msra.mxu0 0
        %9309 = vmatprep.subr.bf16.mxu0 0
        %9310 = vmatpush1.bf16.msra.mxu0 0
        %9311 = vmatprep.subr.bf16.mxu0 0
        %9312 = vmatpush1.bf16.msra.mxu0 0
        %9313 = vmatprep.subr.bf16.mxu0 0
        %9314 = vmatpush1.bf16.msra.mxu0 0
        %9315 = vmatprep.subr.bf16.mxu0 0
        %9316 = vmatpush1.bf16.msra.mxu0 0
        %9317 = vmatprep.subr.bf16.mxu0 0
        %9318 = vmatpush1.bf16.msra.mxu0 0
        %9319 = vmatprep.mubr.bf16.mxu0 0
        %9320 = vmatmul.mubr.bf16.gmra.mrb[0].mxu0 %v9192
        %v9321 = vpop.f32.mrb[0].mxu0
        %v9322 = vadd.f32 0.0, %v9321
        %v9323 = vpop.f32.mrb[0].mxu0
        %v9324 = vpop.f32.mrb[0].mxu0
        %v9325 = vadd.f32 0.0, %v9324
        %v9326 = vpop.f32.mrb[0].mxu0
        %9327 = vmatprep.mubr.bf16.mxu0 0
        %9328 = vmatmul.mubr.bf16.gmra.mrb[0].mxu0 %v9194
        %v9329 = vpop.f32.mrb[0].mxu0
        %v9330 = vadd.f32 0.0, %v9329
        %v9331 = vpop.f32.mrb[0].mxu0
        %v9332 = vpop.f32.mrb[0].mxu0
        %v9333 = vadd.f32 0.0, %v9332
        %v9334 = vpop.f32.mrb[0].mxu0
        %9335 = vmatprep.mubr.bf16.mxu0 0
        %9336 = vmatmul.mubr.bf16.gmra.mrb[0].mxu0 %v9196
        %v9337 = vpop.f32.mrb[0].mxu0
        %v9338 = vadd.f32 0.0, %v9337
        %v9339 = vpop.f32.mrb[0].mxu0
        %v9340 = vpop.f32.mrb[0].mxu0
        %v9341 = vadd.f32 0.0, %v9340
        %v9342 = vpop.f32.mrb[0].mxu0
        %9343 = vmatprep.mubr.bf16.mxu0 0
        %9344 = vmatmul.mubr.bf16.gmra.mrb[0].mxu0 %v9198
        %v9345 = vpop.f32.mrb[0].mxu0
        %v9346 = vadd.f32 0.0, %v9345
        %v9347 = vpop.f32.mrb[0].mxu0
        %v9348 = vpop.f32.mrb[0].mxu0
        %v9349 = vadd.f32 0.0, %v9348
        %v9350 = vpop.f32.mrb[0].mxu0
        %9351 = vmatprep.mubr.bf16.mxu0 0
        %9352 = vmatmul.mubr.bf16.gmra.mrb[0].mxu0 %v9200
        %v9353 = vpop.f32.mrb[0].mxu0
        %v9354 = vadd.f32 0.0, %v9353
        %v9355 = vpop.f32.mrb[0].mxu0
        %v9356 = vpop.f32.mrb[0].mxu0
        %v9357 = vadd.f32 0.0, %v9356
        %v9358 = vpop.f32.mrb[0].mxu0
        %9359 = vmatprep.mubr.bf16.mxu0 0
        %9360 = vmatmul.mubr.bf16.gmra.mrb[0].mxu0 %v9202
        %v9361 = vpop.f32.mrb[0].mxu0
        %v9362 = vadd.f32 0.0, %v9361
        %v9363 = vpop.f32.mrb[0].mxu0
        %v9364 = vpop.f32.mrb[0].mxu0
        %v9365 = vadd.f32 0.0, %v9364
        %v9366 = vpop.f32.mrb[0].mxu0
        %9367 = vmatprep.mubr.bf16.mxu0 0
        %9368 = vmatmul.mubr.bf16.gmra.mrb[0].mxu0 %v9204
        %v9369 = vpop.f32.mrb[0].mxu0
        %v9370 = vadd.f32 0.0, %v9369
        %v9371 = vpop.f32.mrb[0].mxu0
        %v9372 = vpop.f32.mrb[0].mxu0
        %v9373 = vadd.f32 0.0, %v9372
        %v9374 = vpop.f32.mrb[0].mxu0
        %9375 = vmatprep.mubr.bf16.mxu0 0
        %9376 = vmatmul.mubr.bf16.gmra.mrb[0].mxu0 %v9206
        %v9377 = vpop.f32.mrb[0].mxu0
        %v9378 = vadd.f32 0.0, %v9377
        %v9379 = vpop.f32.mrb[0].mxu0
        %v9380 = vpop.f32.mrb[0].mxu0
        %v9381 = vadd.f32 0.0, %v9380
        %v9382 = vpop.f32.mrb[0].mxu0
        %9383 = vmatprep.mubr.bf16.mxu0 0
        %9384 = vmatmul.mubr.bf16.gmra.mrb[0].mxu0 %v9208
        %v9385 = vpop.f32.mrb[0].mxu0
        %v9386 = vadd.f32 0.0, %v9385
        %v9387 = vpop.f32.mrb[0].mxu0
        %v9388 = vpop.f32.mrb[0].mxu0
        %v9389 = vadd.f32 0.0, %v9388
        %v9390 = vpop.f32.mrb[0].mxu0
        %9391 = vmatprep.mubr.bf16.mxu0 0
        %9392 = vmatmul.mubr.bf16.gmra.mrb[0].mxu0 %v9210
        %v9393 = vpop.f32.mrb[0].mxu0
        %v9394 = vadd.f32 0.0, %v9393
        %v9395 = vpop.f32.mrb[0].mxu0
        %v9396 = vpop.f32.mrb[0].mxu0
        %v9397 = vadd.f32 0.0, %v9396
        %v9398 = vpop.f32.mrb[0].mxu0
        %9399 = vmatprep.mubr.bf16.mxu0 0
        %9400 = vmatmul.mubr.bf16.gmra.mrb[0].mxu0 %v9212
        %v9401 = vpop.f32.mrb[0].mxu0
        %v9402 = vadd.f32 0.0, %v9401
        %v9403 = vpop.f32.mrb[0].mxu0
        %v9404 = vpop.f32.mrb[0].mxu0
        %v9405 = vadd.f32 0.0, %v9404
        %v9406 = vpop.f32.mrb[0].mxu0
        %9407 = vmatprep.mubr.bf16.mxu0 0
        %9408 = vmatmul.mubr.bf16.gmra.mrb[0].mxu0 %v9214
        %v9409 = vpop.f32.mrb[0].mxu0
        %v9410 = vadd.f32 0.0, %v9409
        %v9411 = vpop.f32.mrb[0].mxu0
        %v9412 = vpop.f32.mrb[0].mxu0
        %v9413 = vadd.f32 0.0, %v9412
        %v9414 = vpop.f32.mrb[0].mxu0
        %9415 = vmatprep.mubr.bf16.mxu0 0
        %9416 = vmatmul.mubr.bf16.gmra.mrb[0].mxu0 %v9216
        %v9417 = vpop.f32.mrb[0].mxu0
        %v9418 = vadd.f32 0.0, %v9417
        %v9419 = vpop.f32.mrb[0].mxu0
        %v9420 = vpop.f32.mrb[0].mxu0
        %v9421 = vadd.f32 0.0, %v9420
        %v9422 = vpop.f32.mrb[0].mxu0
        %9423 = vmatprep.mubr.bf16.mxu0 0
        %9424 = vmatmul.mubr.bf16.gmra.mrb[0].mxu0 %v9218
        %v9425 = vpop.f32.mrb[0].mxu0
        %v9426 = vadd.f32 0.0, %v9425
        %v9427 = vpop.f32.mrb[0].mxu0
        %v9428 = vpop.f32.mrb[0].mxu0
        %v9429 = vadd.f32 0.0, %v9428
        %v9430 = vpop.f32.mrb[0].mxu0
        %9431 = vmatprep.mubr.bf16.mxu0 0
        %9432 = vmatmul.mubr.bf16.gmra.mrb[0].mxu0 %v9220
        %v9433 = vpop.f32.mrb[0].mxu0
        %v9434 = vadd.f32 0.0, %v9433
        %v9435 = vpop.f32.mrb[0].mxu0
        %v9436 = vpop.f32.mrb[0].mxu0
        %v9437 = vadd.f32 0.0, %v9436
        %v9438 = vpop.f32.mrb[0].mxu0
        %9439 = vmatprep.mubr.bf16.mxu0 0
        %9440 = vmatmul.mubr.bf16.gmra.mrb[0].mxu0 %v9222
        %v9441 = vpop.f32.mrb[0].mxu0
        %v9442 = vadd.f32 0.0, %v9441
        %v9443 = vpop.f32.mrb[0].mxu0
        %v9444 = vpop.f32.mrb[0].mxu0
        %v9445 = vadd.f32 0.0, %v9444
        %v9446 = vpop.f32.mrb[0].mxu0
        %9447 = vdwg.mxu0
        %v9448 = vadd.f32 %v9024, %v9322
        %v9449 = vadd.f32 %v9025, %v9325
        %v9450 = vadd.f32 %v9026, %v9330
        %v9451 = vadd.f32 %v9027, %v9333
        %v9452 = vadd.f32 %v9028, %v9338
        %v9453 = vadd.f32 %v9029, %v9341
        %v9454 = vadd.f32 %v9030, %v9346
        %v9455 = vadd.f32 %v9031, %v9349
        %v9456 = vadd.f32 %v9032, %v9354
        %v9457 = vadd.f32 %v9033, %v9357
        %v9458 = vadd.f32 %v9034, %v9362
        %v9459 = vadd.f32 %v9035, %v9365
        %v9460 = vadd.f32 %v9036, %v9370
        %v9461 = vadd.f32 %v9037, %v9373
        %v9462 = vadd.f32 %v9038, %v9378
        %v9463 = vadd.f32 %v9039, %v9381
        %v9464 = vadd.f32 %v9040, %v9386
        %v9465 = vadd.f32 %v9041, %v9389
        %v9466 = vadd.f32 %v9042, %v9394
        %v9467 = vadd.f32 %v9043, %v9397
        %v9468 = vadd.f32 %v9044, %v9402
        %v9469 = vadd.f32 %v9045, %v9405
        %v9470 = vadd.f32 %v9046, %v9410
        %v9471 = vadd.f32 %v9047, %v9413
        %v9472 = vadd.f32 %v9048, %v9418
        %v9473 = vadd.f32 %v9049, %v9421
        %v9474 = vadd.f32 %v9050, %v9426
        %v9475 = vadd.f32 %v9051, %v9429
        %v9476 = vadd.f32 %v9052, %v9434
        %v9477 = vadd.f32 %v9053, %v9437
        %v9478 = vadd.f32 %v9054, %v9442
        %v9479 = vadd.f32 %v9055, %v9445
        %v9480 = vld [vmem:[%s318 + $0x8] sm:$0xf]
        %v9481 = vld [vmem:[%s318 + $0xc] sm:$0xf]
        %v9482 = vld [vmem:[%s318 + $0x10] sm:$0xf]
        %v9483 = vld [vmem:[%s318 + $0x14] sm:$0xf]
        %v9484 = vld [vmem:[%s318 + $0x18] sm:$0xf]
        %v9485 = vld [vmem:[%s318 + $0x1c] sm:$0xf]
        %v9486 = vld [vmem:[%s318 + $0x20] sm:$0xf]
        %v9487 = vld [vmem:[%s318 + $0x24] sm:$0xf]
        %v9488 = vld [vmem:[%s318 + $0x28] sm:$0xf]
        %v9489 = vld [vmem:[%s318 + $0x2c] sm:$0xf]
        %v9490 = vld [vmem:[%s318 + $0x30] sm:$0xf]
        %v9491 = vld [vmem:[%s318 + $0x34] sm:$0xf]
        %v9492 = vld [vmem:[%s318 + $0x38] sm:$0xf]
        %v9493 = vld [vmem:[%s318 + $0x3c] sm:$0xf]
        %v9494 = vld [vmem:[%s318 + $0x40] sm:$0xf]
        %v9495 = vld [vmem:[%s318 + $0x44] sm:$0xf]
        %v9496 = vld [vmem:[%s318 + $0x48] sm:$0xf]
        %v9497 = vld [vmem:[%s318 + $0x4c] sm:$0xf]
        %v9498 = vld [vmem:[%s318 + $0x50] sm:$0xf]
        %v9499 = vld [vmem:[%s318 + $0x54] sm:$0xf]
        %v9500 = vld [vmem:[%s318 + $0x58] sm:$0xf]
        %v9501 = vld [vmem:[%s318 + $0x5c] sm:$0xf]
        %v9502 = vld [vmem:[%s318 + $0x60] sm:$0xf]
        %v9503 = vld [vmem:[%s318 + $0x64] sm:$0xf]
        %v9504 = vld [vmem:[%s318 + $0x68] sm:$0xf]
        %v9505 = vld [vmem:[%s318 + $0x6c] sm:$0xf]
        %v9506 = vld [vmem:[%s318 + $0x70] sm:$0xf]
        %v9507 = vld [vmem:[%s318 + $0x74] sm:$0xf]
        %v9508 = vld [vmem:[%s318 + $0x78] sm:$0xf]
        %v9509 = vld [vmem:[%s318 + $0x7c] sm:$0xf]
        %v9510 = vld [vmem:[%s318 + $0x80] sm:$0xf]
        %v9511 = vld [vmem:[%s318 + $0x84] sm:$0xf]
        %v9512 = vld [vmem:[%s318 + $0x88] sm:$0x1]
        %v9513 = vld [vmem:[%s3] sm:$0x3]
        %v9547 = vunpack.c.l.b16 %v9480
        %v9548 = vunpack.c.l.b16 %v9481
        %v9549 = vunpack.c.l.b16 %v9482
        %v9550 = vunpack.c.l.b16 %v9483
        %v9551 = vunpack.c.l.b16 %v9484
        %v9552 = vunpack.c.l.b16 %v9485
        %v9553 = vunpack.c.l.b16 %v9486
        %v9554 = vunpack.c.l.b16 %v9487
        %v9555 = vunpack.c.l.b16 %v9488
        %v9556 = vunpack.c.l.b16 %v9489
        %v9557 = vunpack.c.l.b16 %v9490
        %v9558 = vunpack.c.l.b16 %v9491
        %v9559 = vunpack.c.l.b16 %v9492
        %v9560 = vunpack.c.l.b16 %v9493
        %v9561 = vunpack.c.l.b16 %v9494
        %v9562 = vunpack.c.l.b16 %v9495
        %v9563 = vunpack.c.l.b16 %v9496
        %v9564 = vunpack.c.l.b16 %v9497
        %v9565 = vunpack.c.l.b16 %v9498
        %v9566 = vunpack.c.l.b16 %v9499
        %v9567 = vunpack.c.l.b16 %v9500
        %v9568 = vunpack.c.l.b16 %v9501
        %v9569 = vunpack.c.l.b16 %v9502
        %v9570 = vunpack.c.l.b16 %v9503
        %v9571 = vunpack.c.l.b16 %v9504
        %v9572 = vunpack.c.l.b16 %v9505
        %v9573 = vunpack.c.l.b16 %v9506
        %v9574 = vunpack.c.l.b16 %v9507
        %v9575 = vunpack.c.l.b16 %v9508
        %v9576 = vunpack.c.l.b16 %v9509
        %v9577 = vunpack.c.l.b16 %v9510
        %v9578 = vunpack.c.l.b16 %v9511
        %v9579 = vunpack.c.l.b16 %v9512
        %v9580 = vpack.c.b16 %v9548, %v9547
        %v9581 = vpack.c.b16 %v9550, %v9549
        %v9582 = vpack.c.b16 %v9552, %v9551
        %v9583 = vpack.c.b16 %v9554, %v9553
        %v9584 = vpack.c.b16 %v9556, %v9555
        %v9585 = vpack.c.b16 %v9558, %v9557
        %v9586 = vpack.c.b16 %v9560, %v9559
        %v9587 = vpack.c.b16 %v9562, %v9561
        %v9588 = vpack.c.b16 %v9564, %v9563
        %v9589 = vpack.c.b16 %v9566, %v9565
        %v9590 = vpack.c.b16 %v9568, %v9567
        %v9591 = vpack.c.b16 %v9570, %v9569
        %v9592 = vpack.c.b16 %v9572, %v9571
        %v9593 = vpack.c.b16 %v9574, %v9573
        %v9594 = vpack.c.b16 %v9576, %v9575
        %v9595 = vpack.c.b16 %v9578, %v9577
        %v9596 = vpack.c.b16 %v9579, %v9579
        %v9598 = vshrl.u32 %v9580, 16
        %v9600 = vshll.u32 %v9580, 16
        %v9602 = vrot.slane %v9600, 1
        %v9603 = vor.u32 %v9598, %v9602
        %v9605 = vshll.u32 %v9581, 16
        %v9607 = vrot.slane %v9605, 1
        %v9608 = vsel %vm1050, %v9603, %v9607
        %v9609 = vshrl.u32 %v9581, 16
        %v9611 = vor.u32 %v9609, %v9607
        %v9613 = vshll.u32 %v9582, 16
        %v9615 = vrot.slane %v9613, 1
        %v9616 = vsel %vm1050, %v9611, %v9615
        %v9617 = vshrl.u32 %v9582, 16
        %v9619 = vor.u32 %v9617, %v9615
        %v9621 = vshll.u32 %v9583, 16
        %v9623 = vrot.slane %v9621, 1
        %v9624 = vsel %vm1050, %v9619, %v9623
        %v9625 = vshrl.u32 %v9583, 16
        %v9627 = vor.u32 %v9625, %v9623
        %v9629 = vshll.u32 %v9584, 16
        %v9631 = vrot.slane %v9629, 1
        %v9632 = vsel %vm1050, %v9627, %v9631
        %v9633 = vshrl.u32 %v9584, 16
        %v9635 = vor.u32 %v9633, %v9631
        %v9637 = vshll.u32 %v9585, 16
        %v9639 = vrot.slane %v9637, 1
        %v9640 = vsel %vm1050, %v9635, %v9639
        %v9641 = vshrl.u32 %v9585, 16
        %v9643 = vor.u32 %v9641, %v9639
        %v9645 = vshll.u32 %v9586, 16
        %v9647 = vrot.slane %v9645, 1
        %v9648 = vsel %vm1050, %v9643, %v9647
        %v9649 = vshrl.u32 %v9586, 16
        %v9651 = vor.u32 %v9649, %v9647
        %v9653 = vshll.u32 %v9587, 16
        %v9655 = vrot.slane %v9653, 1
        %v9656 = vsel %vm1050, %v9651, %v9655
        %v9657 = vshrl.u32 %v9587, 16
        %v9659 = vor.u32 %v9657, %v9655
        %v9661 = vshll.u32 %v9588, 16
        %v9663 = vrot.slane %v9661, 1
        %v9664 = vsel %vm1050, %v9659, %v9663
        %v9665 = vshrl.u32 %v9588, 16
        %v9667 = vor.u32 %v9665, %v9663
        %v9669 = vshll.u32 %v9589, 16
        %v9671 = vrot.slane %v9669, 1
        %v9672 = vsel %vm1050, %v9667, %v9671
        %v9673 = vshrl.u32 %v9589, 16
        %v9675 = vor.u32 %v9673, %v9671
        %v9677 = vshll.u32 %v9590, 16
        %v9679 = vrot.slane %v9677, 1
        %v9680 = vsel %vm1050, %v9675, %v9679
        %v9681 = vshrl.u32 %v9590, 16
        %v9683 = vor.u32 %v9681, %v9679
        %v9685 = vshll.u32 %v9591, 16
        %v9687 = vrot.slane %v9685, 1
        %v9688 = vsel %vm1050, %v9683, %v9687
        %v9689 = vshrl.u32 %v9591, 16
        %v9691 = vor.u32 %v9689, %v9687
        %v9693 = vshll.u32 %v9592, 16
        %v9695 = vrot.slane %v9693, 1
        %v9696 = vsel %vm1050, %v9691, %v9695
        %v9697 = vshrl.u32 %v9592, 16
        %v9699 = vor.u32 %v9697, %v9695
        %v9701 = vshll.u32 %v9593, 16
        %v9703 = vrot.slane %v9701, 1
        %v9704 = vsel %vm1050, %v9699, %v9703
        %v9705 = vshrl.u32 %v9593, 16
        %v9707 = vor.u32 %v9705, %v9703
        %v9709 = vshll.u32 %v9594, 16
        %v9711 = vrot.slane %v9709, 1
        %v9712 = vsel %vm1050, %v9707, %v9711
        %v9713 = vshrl.u32 %v9594, 16
        %v9715 = vor.u32 %v9713, %v9711
        %v9717 = vshll.u32 %v9595, 16
        %v9719 = vrot.slane %v9717, 1
        %v9720 = vsel %vm1050, %v9715, %v9719
        %v9721 = vshrl.u32 %v9595, 16
        %v9723 = vor.u32 %v9721, %v9719
        %v9725 = vshll.u32 %v9596, 16
        %v9727 = vrot.slane %v9725, 1
        %v9728 = vsel %vm1050, %v9723, %v9727
        %v9730 = vsel %vm1183, %v9608, 0
        %v9733 = vsel %vm1183, %v9616, 0
        %v9736 = vsel %vm1183, %v9624, 0
        %v9739 = vsel %vm1183, %v9632, 0
        %v9742 = vsel %vm1183, %v9640, 0
        %v9745 = vsel %vm1183, %v9648, 0
        %v9748 = vsel %vm1183, %v9656, 0
        %v9751 = vsel %vm1183, %v9664, 0
        %v9754 = vsel %vm1183, %v9672, 0
        %v9757 = vsel %vm1183, %v9680, 0
        %v9760 = vsel %vm1183, %v9688, 0
        %v9763 = vsel %vm1183, %v9696, 0
        %v9766 = vsel %vm1183, %v9704, 0
        %v9769 = vsel %vm1183, %v9712, 0
        %v9772 = vsel %vm1183, %v9720, 0
        %v9775 = vsel %vm1183, %v9728, 0
        %v9778 = vsel %vm1232, %v9513, 0
        %9780 = vmatprep.subr.bf16.mxu0 0
        %9781 = vmatpush1.bf16.msra.mxu0 %v9778
        %9782 = vmatprep.subr.bf16.mxu0 0
        %9783 = vmatpush1.bf16.msra.mxu0 0
        %9784 = vmatprep.subr.bf16.mxu0 0
        %9785 = vmatpush1.bf16.msra.mxu0 0
        %9786 = vmatprep.subr.bf16.mxu0 0
        %9787 = vmatpush1.bf16.msra.mxu0 0
        %9788 = vmatprep.subr.bf16.mxu0 0
        %9789 = vmatpush1.bf16.msra.mxu0 0
        %9790 = vmatprep.subr.bf16.mxu0 0
        %9791 = vmatpush1.bf16.msra.mxu0 0
        %9792 = vmatprep.subr.bf16.mxu0 0
        %9793 = vmatpush1.bf16.msra.mxu0 0
        %9794 = vmatprep.subr.bf16.mxu0 0
        %9795 = vmatpush1.bf16.msra.mxu0 0
        %9796 = vmatprep.subr.bf16.mxu0 0
        %9797 = vmatpush1.bf16.msra.mxu0 0
        %9798 = vmatprep.subr.bf16.mxu0 0
        %9799 = vmatpush1.bf16.msra.mxu0 0
        %9800 = vmatprep.subr.bf16.mxu0 0
        %9801 = vmatpush1.bf16.msra.mxu0 0
        %9802 = vmatprep.subr.bf16.mxu0 0
        %9803 = vmatpush1.bf16.msra.mxu0 0
        %9804 = vmatprep.subr.bf16.mxu0 0
        %9805 = vmatpush1.bf16.msra.mxu0 0
        %9806 = vmatprep.subr.bf16.mxu0 0
        %9807 = vmatpush1.bf16.msra.mxu0 0
        %9808 = vmatprep.subr.bf16.mxu0 0
        %9809 = vmatpush1.bf16.msra.mxu0 0
        %9810 = vmatprep.subr.bf16.mxu0 0
        %9811 = vmatpush1.bf16.msra.mxu0 0
        %9812 = vmatprep.mubr.bf16.mxu0 0
        %9813 = vmatmul.mubr.bf16.gmra.mrb[0].mxu0 %v9730
        %v9814 = vpop.f32.mrb[0].mxu0
        %v9815 = vadd.f32 0.0, %v9814
        %v9816 = vpop.f32.mrb[0].mxu0
        %v9817 = vpop.f32.mrb[0].mxu0
        %v9818 = vadd.f32 0.0, %v9817
        %v9819 = vpop.f32.mrb[0].mxu0
        %9820 = vmatprep.mubr.bf16.mxu0 0
        %9821 = vmatmul.mubr.bf16.gmra.mrb[0].mxu0 %v9733
        %v9822 = vpop.f32.mrb[0].mxu0
        %v9823 = vadd.f32 0.0, %v9822
        %v9824 = vpop.f32.mrb[0].mxu0
        %v9825 = vpop.f32.mrb[0].mxu0
        %v9826 = vadd.f32 0.0, %v9825
        %v9827 = vpop.f32.mrb[0].mxu0
        %9828 = vmatprep.mubr.bf16.mxu0 0
        %9829 = vmatmul.mubr.bf16.gmra.mrb[0].mxu0 %v9736
        %v9830 = vpop.f32.mrb[0].mxu0
        %v9831 = vadd.f32 0.0, %v9830
        %v9832 = vpop.f32.mrb[0].mxu0
        %v9833 = vpop.f32.mrb[0].mxu0
        %v9834 = vadd.f32 0.0, %v9833
        %v9835 = vpop.f32.mrb[0].mxu0
        %9836 = vmatprep.mubr.bf16.mxu0 0
        %9837 = vmatmul.mubr.bf16.gmra.mrb[0].mxu0 %v9739
        %v9838 = vpop.f32.mrb[0].mxu0
        %v9839 = vadd.f32 0.0, %v9838
        %v9840 = vpop.f32.mrb[0].mxu0
        %v9841 = vpop.f32.mrb[0].mxu0
        %v9842 = vadd.f32 0.0, %v9841
        %v9843 = vpop.f32.mrb[0].mxu0
        %9844 = vmatprep.mubr.bf16.mxu0 0
        %9845 = vmatmul.mubr.bf16.gmra.mrb[0].mxu0 %v9742
        %v9846 = vpop.f32.mrb[0].mxu0
        %v9847 = vadd.f32 0.0, %v9846
        %v9848 = vpop.f32.mrb[0].mxu0
        %v9849 = vpop.f32.mrb[0].mxu0
        %v9850 = vadd.f32 0.0, %v9849
        %v9851 = vpop.f32.mrb[0].mxu0
        %9852 = vmatprep.mubr.bf16.mxu0 0
        %9853 = vmatmul.mubr.bf16.gmra.mrb[0].mxu0 %v9745
        %v9854 = vpop.f32.mrb[0].mxu0
        %v9855 = vadd.f32 0.0, %v9854
        %v9856 = vpop.f32.mrb[0].mxu0
        %v9857 = vpop.f32.mrb[0].mxu0
        %v9858 = vadd.f32 0.0, %v9857
        %v9859 = vpop.f32.mrb[0].mxu0
        %9860 = vmatprep.mubr.bf16.mxu0 0
        %9861 = vmatmul.mubr.bf16.gmra.mrb[0].mxu0 %v9748
        %v9862 = vpop.f32.mrb[0].mxu0
        %v9863 = vadd.f32 0.0, %v9862
        %v9864 = vpop.f32.mrb[0].mxu0
        %v9865 = vpop.f32.mrb[0].mxu0
        %v9866 = vadd.f32 0.0, %v9865
        %v9867 = vpop.f32.mrb[0].mxu0
        %9868 = vmatprep.mubr.bf16.mxu0 0
        %9869 = vmatmul.mubr.bf16.gmra.mrb[0].mxu0 %v9751
        %v9870 = vpop.f32.mrb[0].mxu0
        %v9871 = vadd.f32 0.0, %v9870
        %v9872 = vpop.f32.mrb[0].mxu0
        %v9873 = vpop.f32.mrb[0].mxu0
        %v9874 = vadd.f32 0.0, %v9873
        %v9875 = vpop.f32.mrb[0].mxu0
        %9876 = vmatprep.mubr.bf16.mxu0 0
        %9877 = vmatmul.mubr.bf16.gmra.mrb[0].mxu0 %v9754
        %v9878 = vpop.f32.mrb[0].mxu0
        %v9879 = vadd.f32 0.0, %v9878
        %v9880 = vpop.f32.mrb[0].mxu0
        %v9881 = vpop.f32.mrb[0].mxu0
        %v9882 = vadd.f32 0.0, %v9881
        %v9883 = vpop.f32.mrb[0].mxu0
        %9884 = vmatprep.mubr.bf16.mxu0 0
        %9885 = vmatmul.mubr.bf16.gmra.mrb[0].mxu0 %v9757
        %v9886 = vpop.f32.mrb[0].mxu0
        %v9887 = vadd.f32 0.0, %v9886
        %v9888 = vpop.f32.mrb[0].mxu0
        %v9889 = vpop.f32.mrb[0].mxu0
        %v9890 = vadd.f32 0.0, %v9889
        %v9891 = vpop.f32.mrb[0].mxu0
        %9892 = vmatprep.mubr.bf16.mxu0 0
        %9893 = vmatmul.mubr.bf16.gmra.mrb[0].mxu0 %v9760
        %v9894 = vpop.f32.mrb[0].mxu0
        %v9895 = vadd.f32 0.0, %v9894
        %v9896 = vpop.f32.mrb[0].mxu0
        %v9897 = vpop.f32.mrb[0].mxu0
        %v9898 = vadd.f32 0.0, %v9897
        %v9899 = vpop.f32.mrb[0].mxu0
        %9900 = vmatprep.mubr.bf16.mxu0 0
        %9901 = vmatmul.mubr.bf16.gmra.mrb[0].mxu0 %v9763
        %v9902 = vpop.f32.mrb[0].mxu0
        %v9903 = vadd.f32 0.0, %v9902
        %v9904 = vpop.f32.mrb[0].mxu0
        %v9905 = vpop.f32.mrb[0].mxu0
        %v9906 = vadd.f32 0.0, %v9905
        %v9907 = vpop.f32.mrb[0].mxu0
        %9908 = vmatprep.mubr.bf16.mxu0 0
        %9909 = vmatmul.mubr.bf16.gmra.mrb[0].mxu0 %v9766
        %v9910 = vpop.f32.mrb[0].mxu0
        %v9911 = vadd.f32 0.0, %v9910
        %v9912 = vpop.f32.mrb[0].mxu0
        %v9913 = vpop.f32.mrb[0].mxu0
        %v9914 = vadd.f32 0.0, %v9913
        %v9915 = vpop.f32.mrb[0].mxu0
        %9916 = vmatprep.mubr.bf16.mxu0 0
        %9917 = vmatmul.mubr.bf16.gmra.mrb[0].mxu0 %v9769
        %v9918 = vpop.f32.mrb[0].mxu0
        %v9919 = vadd.f32 0.0, %v9918
        %v9920 = vpop.f32.mrb[0].mxu0
        %v9921 = vpop.f32.mrb[0].mxu0
        %v9922 = vadd.f32 0.0, %v9921
        %v9923 = vpop.f32.mrb[0].mxu0
        %9924 = vmatprep.mubr.bf16.mxu0 0
        %9925 = vmatmul.mubr.bf16.gmra.mrb[0].mxu0 %v9772
        %v9926 = vpop.f32.mrb[0].mxu0
        %v9927 = vadd.f32 0.0, %v9926
        %v9928 = vpop.f32.mrb[0].mxu0
        %v9929 = vpop.f32.mrb[0].mxu0
        %v9930 = vadd.f32 0.0, %v9929
        %v9931 = vpop.f32.mrb[0].mxu0
        %9932 = vmatprep.mubr.bf16.mxu0 0
        %9933 = vmatmul.mubr.bf16.gmra.mrb[0].mxu0 %v9775
        %v9934 = vpop.f32.mrb[0].mxu0
        %v9935 = vadd.f32 0.0, %v9934
        %v9936 = vpop.f32.mrb[0].mxu0
        %v9937 = vpop.f32.mrb[0].mxu0
        %v9938 = vadd.f32 0.0, %v9937
        %v9939 = vpop.f32.mrb[0].mxu0
        %9940 = vdwg.mxu0
        %v9941 = vld [vmem:[%s6] sm:$0x1]
        %v9943 = vlaneseq
        %v9944 = vshrl.u32 %v9943, 7
        %v9945 = vsub.s32 0, %v9944
        %v9946 = vrot.slane %v9941, %v9945
        %v9948 = vmul.f32 %v9448, %v9946
        %v9949 = vmul.f32 %v9449, %v9946
        %v9950 = vmul.f32 %v9450, %v9946
        %v9951 = vmul.f32 %v9451, %v9946
        %v9952 = vmul.f32 %v9452, %v9946
        %v9953 = vmul.f32 %v9453, %v9946
        %v9954 = vmul.f32 %v9454, %v9946
        %v9955 = vmul.f32 %v9455, %v9946
        %v9956 = vmul.f32 %v9456, %v9946
        %v9957 = vmul.f32 %v9457, %v9946
        %v9958 = vmul.f32 %v9458, %v9946
        %v9959 = vmul.f32 %v9459, %v9946
        %v9960 = vmul.f32 %v9460, %v9946
        %v9961 = vmul.f32 %v9461, %v9946
        %v9962 = vmul.f32 %v9462, %v9946
        %v9963 = vmul.f32 %v9463, %v9946
        %v9964 = vmul.f32 %v9464, %v9946
        %v9965 = vmul.f32 %v9465, %v9946
        %v9966 = vmul.f32 %v9466, %v9946
        %v9967 = vmul.f32 %v9467, %v9946
        %v9968 = vmul.f32 %v9468, %v9946
        %v9969 = vmul.f32 %v9469, %v9946
        %v9970 = vmul.f32 %v9470, %v9946
        %v9971 = vmul.f32 %v9471, %v9946
        %v9972 = vmul.f32 %v9472, %v9946
        %v9973 = vmul.f32 %v9473, %v9946
        %v9974 = vmul.f32 %v9474, %v9946
        %v9975 = vmul.f32 %v9475, %v9946
        %v9976 = vmul.f32 %v9476, %v9946
        %v9977 = vmul.f32 %v9477, %v9946
        %v9978 = vmul.f32 %v9478, %v9946
        %v9979 = vmul.f32 %v9479, %v9946
        %v9980 = vld [vmem:[%s7] sm:$0x1]
        %v9982 = vlaneseq
        %v9983 = vshrl.u32 %v9982, 7
        %v9984 = vsub.s32 0, %v9983
        %v9985 = vrot.slane %v9980, %v9984
        %v9987 = vadd.f32 %v9948, %v9985
        %v9988 = vadd.f32 %v9949, %v9985
        %v9989 = vadd.f32 %v9950, %v9985
        %v9990 = vadd.f32 %v9951, %v9985
        %v9991 = vadd.f32 %v9952, %v9985
        %v9992 = vadd.f32 %v9953, %v9985
        %v9993 = vadd.f32 %v9954, %v9985
        %v9994 = vadd.f32 %v9955, %v9985
        %v9995 = vadd.f32 %v9956, %v9985
        %v9996 = vadd.f32 %v9957, %v9985
        %v9997 = vadd.f32 %v9958, %v9985
        %v9998 = vadd.f32 %v9959, %v9985
        %v9999 = vadd.f32 %v9960, %v9985
        %v10000 = vadd.f32 %v9961, %v9985
        %v10001 = vadd.f32 %v9962, %v9985
        %v10002 = vadd.f32 %v9963, %v9985
        %v10003 = vadd.f32 %v9964, %v9985
        %v10004 = vadd.f32 %v9965, %v9985
        %v10005 = vadd.f32 %v9966, %v9985
        %v10006 = vadd.f32 %v9967, %v9985
        %v10007 = vadd.f32 %v9968, %v9985
        %v10008 = vadd.f32 %v9969, %v9985
        %v10009 = vadd.f32 %v9970, %v9985
        %v10010 = vadd.f32 %v9971, %v9985
        %v10011 = vadd.f32 %v9972, %v9985
        %v10012 = vadd.f32 %v9973, %v9985
        %v10013 = vadd.f32 %v9974, %v9985
        %v10014 = vadd.f32 %v9975, %v9985
        %v10015 = vadd.f32 %v9976, %v9985
        %v10016 = vadd.f32 %v9977, %v9985
        %v10017 = vadd.f32 %v9978, %v9985
        %v10018 = vadd.f32 %v9979, %v9985
        %v10019 = vadd.f32 %v9987, %v9815
        %v10020 = vadd.f32 %v9988, %v9818
        %v10021 = vadd.f32 %v9989, %v9823
        %v10022 = vadd.f32 %v9990, %v9826
        %v10023 = vadd.f32 %v9991, %v9831
        %v10024 = vadd.f32 %v9992, %v9834
        %v10025 = vadd.f32 %v9993, %v9839
        %v10026 = vadd.f32 %v9994, %v9842
        %v10027 = vadd.f32 %v9995, %v9847
        %v10028 = vadd.f32 %v9996, %v9850
        %v10029 = vadd.f32 %v9997, %v9855
        %v10030 = vadd.f32 %v9998, %v9858
        %v10031 = vadd.f32 %v9999, %v9863
        %v10032 = vadd.f32 %v10000, %v9866
        %v10033 = vadd.f32 %v10001, %v9871
        %v10034 = vadd.f32 %v10002, %v9874
        %v10035 = vadd.f32 %v10003, %v9879
        %v10036 = vadd.f32 %v10004, %v9882
        %v10037 = vadd.f32 %v10005, %v9887
        %v10038 = vadd.f32 %v10006, %v9890
        %v10039 = vadd.f32 %v10007, %v9895
        %v10040 = vadd.f32 %v10008, %v9898
        %v10041 = vadd.f32 %v10009, %v9903
        %v10042 = vadd.f32 %v10010, %v9906
        %v10043 = vadd.f32 %v10011, %v9911
        %v10044 = vadd.f32 %v10012, %v9914
        %v10045 = vadd.f32 %v10013, %v9919
        %v10046 = vadd.f32 %v10014, %v9922
        %v10047 = vadd.f32 %v10015, %v9927
        %v10048 = vadd.f32 %v10016, %v9930
        %v10049 = vadd.f32 %v10017, %v9935
        %v10050 = vadd.f32 %v10018, %v9938
        %v10051 = vmax.f32 %v10019, 0.0
        %v10052 = vmax.f32 %v10020, 0.0
        %v10053 = vmax.f32 %v10021, 0.0
        %v10054 = vmax.f32 %v10022, 0.0
        %v10055 = vmax.f32 %v10023, 0.0
        %v10056 = vmax.f32 %v10024, 0.0
        %v10057 = vmax.f32 %v10025, 0.0
        %v10058 = vmax.f32 %v10026, 0.0
        %v10059 = vmax.f32 %v10027, 0.0
        %v10060 = vmax.f32 %v10028, 0.0
        %v10061 = vmax.f32 %v10029, 0.0
        %v10062 = vmax.f32 %v10030, 0.0
        %v10063 = vmax.f32 %v10031, 0.0
        %v10064 = vmax.f32 %v10032, 0.0
        %v10065 = vmax.f32 %v10033, 0.0
        %v10066 = vmax.f32 %v10034, 0.0
        %v10067 = vmax.f32 %v10035, 0.0
        %v10068 = vmax.f32 %v10036, 0.0
        %v10069 = vmax.f32 %v10037, 0.0
        %v10070 = vmax.f32 %v10038, 0.0
        %v10071 = vmax.f32 %v10039, 0.0
        %v10072 = vmax.f32 %v10040, 0.0
        %v10073 = vmax.f32 %v10041, 0.0
        %v10074 = vmax.f32 %v10042, 0.0
        %v10075 = vmax.f32 %v10043, 0.0
        %v10076 = vmax.f32 %v10044, 0.0
        %v10077 = vmax.f32 %v10045, 0.0
        %v10078 = vmax.f32 %v10046, 0.0
        %v10079 = vmax.f32 %v10047, 0.0
        %v10080 = vmax.f32 %v10048, 0.0
        %v10081 = vmax.f32 %v10049, 0.0
        %v10082 = vmax.f32 %v10050, 0.0
        %10083 = vst [vmem:[%s313] sm:$0xff] %v10051
        %10084 = vst [vmem:[%s313 + $0x8] sm:$0xff] %v10052
        %10085 = vst [vmem:[%s313 + $0x10] sm:$0xff] %v10053
        %10086 = vst [vmem:[%s313 + $0x18] sm:$0xff] %v10054
        %10087 = vst [vmem:[%s313 + $0x20] sm:$0xff] %v10055
        %10088 = vst [vmem:[%s313 + $0x28] sm:$0xff] %v10056
        %10089 = vst [vmem:[%s313 + $0x30] sm:$0xff] %v10057
        %10090 = vst [vmem:[%s313 + $0x38] sm:$0xff] %v10058
        %10091 = vst [vmem:[%s313 + $0x40] sm:$0xff] %v10059
        %10092 = vst [vmem:[%s313 + $0x48] sm:$0xff] %v10060
        %10093 = vst [vmem:[%s313 + $0x50] sm:$0xff] %v10061
        %10094 = vst [vmem:[%s313 + $0x58] sm:$0xff] %v10062
        %10095 = vst [vmem:[%s313 + $0x60] sm:$0xff] %v10063
        %10096 = vst [vmem:[%s313 + $0x68] sm:$0xff] %v10064
        %10097 = vst [vmem:[%s313 + $0x70] sm:$0xff] %v10065
        %10098 = vst [vmem:[%s313 + $0x78] sm:$0xff] %v10066
        %10099 = vst [vmem:[%s313 + $0x80] sm:$0xff] %v10067
        %10100 = vst [vmem:[%s313 + $0x88] sm:$0xff] %v10068
        %10101 = vst [vmem:[%s313 + $0x90] sm:$0xff] %v10069
        %10102 = vst [vmem:[%s313 + $0x98] sm:$0xff] %v10070
        %10103 = vst [vmem:[%s313 + $0xa0] sm:$0xff] %v10071
        %10104 = vst [vmem:[%s313 + $0xa8] sm:$0xff] %v10072
        %10105 = vst [vmem:[%s313 + $0xb0] sm:$0xff] %v10073
        %10106 = vst [vmem:[%s313 + $0xb8] sm:$0xff] %v10074
        %10107 = vst [vmem:[%s313 + $0xc0] sm:$0xff] %v10075
        %10108 = vst [vmem:[%s313 + $0xc8] sm:$0xff] %v10076
        %10109 = vst [vmem:[%s313 + $0xd0] sm:$0xff] %v10077
        %10110 = vst [vmem:[%s313 + $0xd8] sm:$0xff] %v10078
        %10111 = vst [vmem:[%s313 + $0xe0] sm:$0xff] %v10079
        %10112 = vst [vmem:[%s313 + $0xe8] sm:$0xff] %v10080
        %10113 = vst [vmem:[%s313 + $0xf0] sm:$0xff] %v10081
        %10114 = vst [vmem:[%s313 + $0xf8] sm:$0xff] %v10082
        %s10115 = sand.u32 %s204, 1
        %s10116 = scalar_lea.sflag [#allocation5], %s10115
        %s10117 = sand.u32 %s204, 1
        %s10118 = smul.addr %s10117, 256
        %s10119 = scalar_lea.vmem [#allocation6], %s10118
        // Predicated region
        $region57: #{tpu_custom_call.1} parent=51 // pred_check
          %p10120 = pneg %p214
        $region58: #{tpu_custom_call.1} parent=51 // pred_check_branch
          %10122 = sbr.rel (%p10120) target = $region60
        $region59: #{tpu_custom_call.1} parent=51 // pred_region
          %s10124 = ssub.s32 4096, 4096
          %10125 = vsyncadd %s10116, %s10124
          %s10126 = smul.addr %s23, 32
          %s10127 = smul.addr %s10126, 128
          %s10128 = scalar_lea.hbm %s8, %s10127
          %s10129 = sshll.u32 %s10119, 4
          %s10130 = int_to_ptr.vmem [resolvable:$true] %s10129
          %10135 = dma.vmem_to_hbm [thread:$0]  %s10130, 4096, %s10128, %s10116, 128, 128, 8
        $region60: #{tpu_custom_call.1} parent=51 // pred_fallthru
          _
      $region52: #{tpu_custom_call.1} parent=5 // pred_fallthru
        _
      %p10136 = scmp.le.s32.totalorder 2, %s18
      // Predicated region
      $region61: #{tpu_custom_call.1} parent=5 // pred_check
        %p10137 = pneg %p10136
      $region62: #{tpu_custom_call.1} parent=5 // pred_check_branch
        %10139 = sbr.rel (%p10137) target = $region64
      $region63: #{tpu_custom_call.1} parent=5 // pred_region
        %s10140 = ssub.s32 %s18, 2
        // Predicated region
        $region65: #{tpu_custom_call.1} parent=63 // pred_check
          %p10141 = pneg %p220
        $region66: #{tpu_custom_call.1} parent=63 // pred_check_branch
          %10143 = sbr.rel (%p10141) target = $region68
        $region67: #{tpu_custom_call.1} parent=63 // pred_region
          %s10144 = sand.u32 %s205, 1
          %s10145 = scalar_lea.sflag [#allocation5], %s10144
          %s10146 = sand.u32 %s205, 1
          %s10147 = smul.addr %s10146, 256
          %s10148 = scalar_lea.vmem [#allocation6], %s10147
          %10149 = dma.done %s10145, 4096
        $region68: #{tpu_custom_call.1} parent=63 // pred_fallthru
          _
      $region64: #{tpu_custom_call.1} parent=5 // pred_fallthru
        _
    $region6: #{tpu_custom_call.1} parent=1 // loop_footer
      %s22 = sadd.s32 1, %s18
    $region7: #{tpu_custom_call.1} parent=1 // loop_footer_branch
      %17 = sbr.rel target = $region3
    $region8: #{tpu_custom_call.1} parent=1 // loop_exit
      _
    %10150 = vsyncpa [#allocation4], 1
    %s10151 = scalar_lea.sflag [#allocation4], 1
    %10152 = vsyncpa %s10151, 1
    %10153 = vsyncpa [#allocation5], 1
    %s10154 = scalar_lea.sflag [#allocation5], 1
    %10155 = vsyncpa %s10154, 1

</llo_original>
